<compile_context>
chip_gen: v5e
topology: v5e:2x2
jax: 0.10.0
libtpu: 0.0.40
codegen_flags: <defaults>
</compile_context>

<pallas_src>
import functools

import jax
import jax.numpy as jnp
from jax.experimental import pallas as pl
from jax.experimental.pallas import tpu as pltpu


def _fused_noise_estimator_kernel(
    x_ref,
    w1_ref, b1_ref, w2_ref, b2_ref, w3_ref, b3_ref, w4_ref, b4_ref,
    out_ref,
    col_ref,
    *, H, W, G, margin, gap):
  HW = H * W
  stride = HW + gap                       # lane stride between folded images
  span = G * HW + (G - 1) * gap           # matmul N dimension
  rows = col_ref.shape[0]                 # 3 * max_cin
  bf16 = jnp.bfloat16

  # ---- per-step zeroing: only lanes that are read but never written ------------------------
  # (interior lanes are fully overwritten every layer; halo/gap lanes provide the vertical
  #  "same" zero padding and the separation between lane-folded images).
  zstrip = jnp.zeros((rows, W), bf16)
  col_ref[:, margin - W:margin] = zstrip                       # left halo (dy=-1 at row 0)
  col_ref[:, margin + span:margin + span + W] = zstrip         # right halo (dy=+1 at row H-1)
  for g in range(G - 1):                                       # inter-image gaps (128-aligned)
    gs = margin + HW + g * stride
    col_ref[:, gs:gs + gap] = jnp.zeros((rows, gap), bf16)

  # ---- horizontal "same"-padding masks (gap % W == 0 keeps the column phase) ---------------
  lane = jax.lax.broadcasted_iota(jnp.int32, (1, span), 1)
  colm = lane % W
  keep_left = colm >= 1                   # tap dx=-1 valid
  keep_right = colm <= W - 2              # tap dx=+1 valid

  def stage_center(act_bf16, cin, g):
    """Write one image's (cin, HW) bf16 activation into the dx=0 block interior."""
    off = margin + g * stride
    col_ref[cin:2 * cin, off:off + HW] = act_bf16

  def conv3x3(w_ref, b_ref, cin, relu):
    # dx=0 block (rows [cin:2cin]) already holds this layer's activation (interior only; the
    # halo/gap lanes of every row are zero and are never written by interior stores).
    # Build the dx=-1 / dx=+1 blocks as lane-shifted, column-masked copies of the center.
    left_src = col_ref[cin:2 * cin, margin - 1:margin - 1 + span]
    right_src = col_ref[cin:2 * cin, margin + 1:margin + 1 + span]
    col_ref[0:cin, margin:margin + span] = (
        jnp.where(keep_left, left_src, 0).astype(bf16))
    col_ref[2 * cin:3 * cin, margin:margin + span] = (
        jnp.where(keep_right, right_src, 0).astype(bf16))

    # One matmul per dy in {-1, 0, +1}; each reads a lane-offset (3*cin, span) bf16 window of
    # the same buffer (no per-tap col writes).  f32 accumulation.
    acc = None
    for i in range(3):
      off = margin + (i - 1) * W
      rhs = col_ref[0:3 * cin, off:off + span]
      d = jnp.dot(w_ref[i], rhs, preferred_element_type=jnp.float32)
      acc = d if acc is None else acc + d
    acc = acc + b_ref[...]                # (cout_pad, 1) broadcast along lanes
    if relu:
      acc = jnp.maximum(acc, 0.0)
    return acc                            # (cout_pad, span) f32

  # ---- layer 1: stage the (bf16) input image(s) into the dx=0 block ------------------------
  xb = x_ref[0]                           # (G, HW) bf16
  for g in range(G):
    stage_center(xb[g:g + 1, :], 1, g)
  a = conv3x3(w1_ref, b1_ref, 1, True)    # (32, span)

  for g in range(G):
    stage_center(a[0:32, g * stride:g * stride + HW].astype(bf16), 32, g)
  a = conv3x3(w2_ref, b2_ref, 32, True)   # (64, span)

  for g in range(G):
    stage_center(a[0:64, g * stride:g * stride + HW].astype(bf16), 64, g)
  a = conv3x3(w3_ref, b3_ref, 64, True)   # (32, span)

  for g in range(G):
    stage_center(a[0:32, g * stride:g * stride + HW].astype(bf16), 32, g)
  a = conv3x3(w4_ref, b4_ref, 32, False)  # (8, span); row 0 is the real Cout=1 output

  out_rows = [a[0:1, g * stride:g * stride + HW] for g in range(G)]
  out_block = out_rows[0] if G == 1 else jnp.concatenate(out_rows, axis=0)
  out_ref[0] = out_block.astype(out_ref.dtype)   # (G, HW) lane-dense store


def _prep_params(params):
  """HWIO (3,3,Cin,Cout) f32 -> ((3 [dy], Cout_pad, 3*Cin [dx,cin]) bf16, (Cout_pad,1) f32)."""
  flat = []
  for w_hwio, b in params:
    kh, kw, cin, cout = w_hwio.shape
    w3 = jnp.transpose(w_hwio, (0, 3, 1, 2)).reshape(kh, cout, kw * cin)
    b2 = b.reshape(cout, 1)
    pad = (-cout) % 8                                  # only hits the final Cout=1
    if pad:
      w3 = jnp.pad(w3, ((0, 0), (0, pad), (0, 0)))
      b2 = jnp.pad(b2, ((0, pad), (0, 0)))
    flat.append((w3.astype(jnp.bfloat16), b2.astype(jnp.float32)))
  return flat


def _pick_gap(HW, W):
  """Smallest gap >= W, multiple of W, making the per-image lane stride 128-aligned."""
  for g in range(W, 2048 + 1, W):
    if (HW + g) % 128 == 0:
      return g
  return None


@jax.jit
def noise_estimator_forward(x_nchw, params):
  B, C, H, W = x_nchw.shape
  assert C == 1
  HW = H * W
  margin = max(1, (W + 1 + 127) // 128) * 128          # 128-lane-aligned halo, >= W+1

  # Images folded side-by-side along lanes per grid step (amortizes per-step fixed costs on
  # single-TC v5e/v6e); keep >= 2 grid steps so v7x megacore stays busy, cap G at 2 to bound
  # the (cout, span) f32 accumulator vreg footprint.
  gap = _pick_gap(HW, W)
  G = 2 if (gap is not None and B >= 4) else 1
  if G == 1:
    gap = 0
  num_steps = -(-B // G)
  B_pad = num_steps * G
  span = G * HW + (G - 1) * gap
  total_w = margin + span + margin

  (w1, b1), (w2, b2), (w3, b3), (w4, b4) = _prep_params(params)
  max_cin = max(w.shape[2] // 3 for w in (w1, w2, w3, w4))

  x_flat = x_nchw.reshape(B, HW).astype(jnp.bfloat16)
  if B_pad != B:
    x_flat = jnp.pad(x_flat, ((0, B_pad - B), (0, 0)))
  x_flat = x_flat.reshape(num_steps, G, HW)

  kernel = functools.partial(_fused_noise_estimator_kernel,
                             H=H, W=W, G=G, margin=margin, gap=gap)
  const3 = lambda a: pl.BlockSpec(a.shape, lambda s: (0, 0, 0))
  const2 = lambda a: pl.BlockSpec(a.shape, lambda s: (0, 0))

  out = pl.pallas_call(
      kernel,
      out_shape=jax.ShapeDtypeStruct((num_steps, G, HW), jnp.float32),
      grid_spec=pltpu.PrefetchScalarGridSpec(
          num_scalar_prefetch=0,
          grid=(num_steps,),
          in_specs=[
              pl.BlockSpec((1, G, HW), lambda s: (s, 0, 0)),
              const3(w1), const2(b1),
              const3(w2), const2(b2),
              const3(w3), const2(b3),
              const3(w4), const2(b4),
          ],
          out_specs=pl.BlockSpec((1, G, HW), lambda s: (s, 0, 0)),
          scratch_shapes=[
              # bf16 staged-activation / im2col buffer: [dx=-1 | dx=0 | dx=+1] x max_cin rows,
              # lanes = 128-aligned halo + folded-image span + halo.
              pltpu.VMEM((3 * max_cin, total_w), jnp.bfloat16),
          ],
      ),
      compiler_params=pltpu.CompilerParams(
          dimension_semantics=("parallel",)),
  )(x_flat, w1, b1, w2, b2, w3, b3, w4, b4)

  out = out.reshape(B_pad, HW)[:B]
  return out.reshape(B, 1, H, W)


def init_params(key):
  """Deterministic synthetic parameters, HWIO layout, matching NoiseEstimator shapes."""
  channels = [(1, 32), (32, 64), (64, 32), (32, 1)]
  params = []
  for i, (cin, cout) in enumerate(channels):
    kw, kb = jax.random.split(jax.random.fold_in(key, i))
    fan_in = cin * 9
    w = jax.random.normal(kw, (3, 3, cin, cout), jnp.float32) / jnp.sqrt(fan_in)
    b = 0.01 * jax.random.normal(kb, (cout,), jnp.float32)
    params.append((w, b))
  return params


def noise_estimator_reference(x_nchw, params):
  """Pure-JAX (f32) reference matching the PyTorch module."""
  x = x_nchw
  n = len(params)
  for idx, (w, b) in enumerate(params):
    x = jax.lax.conv_general_dilated(
        x, w, window_strides=(1, 1), padding="SAME",
        dimension_numbers=("NCHW", "HWIO", "NCHW"))
    x = x + b.reshape(1, -1, 1, 1)
    if idx < n - 1:
      x = jnp.maximum(x, 0.0)
  return x


if __name__ == "__main__":
  key = jax.random.PRNGKey(0)
  k_in, k_par = jax.random.split(key)

  # batch=4 exercises both the lane-folding path (2 images per step) and 2 parallel grid steps.
  x = jax.random.normal(k_in, (4, 1, 16, 16), jnp.float32)   # (N, 1, H, W) as in PyTorch
  params = init_params(k_par)

  out = noise_estimator_forward(x, params)
  out = jax.block_until_ready(out)

  assert out.shape == (4, 1, 16, 16), out.shape
  assert bool(jnp.all(jnp.isfinite(out)))

  ref = noise_estimator_reference(x, params)
  max_err = float(jnp.max(jnp.abs(out - ref)))
  # bf16 MXU feeds with f32 accumulation: allow small numeric drift vs the f32 reference.
  assert max_err < 1e-1, f"max abs err vs reference: {max_err}"

  print("KERNEL_OK")
</pallas_src>

<mosaic_0001>
module attributes {stable_mosaic.version = 11 : i64} {
  func.func @_fused_noise_estimator_kernel(%arg0: i32, %arg1: memref<1x2x256xbf16, #tpu.memory_space<vmem>>, %arg2: memref<3x32x3xbf16, #tpu.memory_space<vmem>>, %arg3: memref<32x1xf32, #tpu.memory_space<vmem>>, %arg4: memref<3x64x96xbf16, #tpu.memory_space<vmem>>, %arg5: memref<64x1xf32, #tpu.memory_space<vmem>>, %arg6: memref<3x32x192xbf16, #tpu.memory_space<vmem>>, %arg7: memref<32x1xf32, #tpu.memory_space<vmem>>, %arg8: memref<3x8x96xbf16, #tpu.memory_space<vmem>>, %arg9: memref<8x1xf32, #tpu.memory_space<vmem>>, %arg10: memref<1x2x256xf32, #tpu.memory_space<vmem>>, %arg11: memref<192x896xbf16, #tpu.memory_space<vmem>>) attributes {dimension_semantics = [#tpu.dimension_semantics<parallel>], iteration_bounds = array<i64: 2>, scalar_prefetch = 0 : i64, scratch_operands = 1 : i64, tpu.core_type = #tpu.core_type<tc>, window_params = [{transform_indices = @transform_0, window_bounds = array<i64: 1, 2, 256>}, {pipeline_mode = #tpu.pipeline_mode<synchronous>, transform_indices = @transform_1, window_bounds = array<i64: 3, 32, 3>}, {pipeline_mode = #tpu.pipeline_mode<synchronous>, transform_indices = @transform_2, window_bounds = array<i64: 32, 1>}, {pipeline_mode = #tpu.pipeline_mode<synchronous>, transform_indices = @transform_3, window_bounds = array<i64: 3, 64, 96>}, {pipeline_mode = #tpu.pipeline_mode<synchronous>, transform_indices = @transform_4, window_bounds = array<i64: 64, 1>}, {pipeline_mode = #tpu.pipeline_mode<synchronous>, transform_indices = @transform_5, window_bounds = array<i64: 3, 32, 192>}, {pipeline_mode = #tpu.pipeline_mode<synchronous>, transform_indices = @transform_6, window_bounds = array<i64: 32, 1>}, {pipeline_mode = #tpu.pipeline_mode<synchronous>, transform_indices = @transform_7, window_bounds = array<i64: 3, 8, 96>}, {pipeline_mode = #tpu.pipeline_mode<synchronous>, transform_indices = @transform_8, window_bounds = array<i64: 8, 1>}, {transform_indices = @transform_9, window_bounds = array<i64: 1, 2, 256>}]} {
    %cst = arith.constant 0.000000e+00 : bf16
    %0 = vector.broadcast %cst : bf16 to vector<192x16xbf16>
    %c0 = arith.constant 0 : index
    %c112 = arith.constant 112 : index
    %1 = vector.load %arg11[%c0, %c112] : memref<192x896xbf16, #tpu.memory_space<vmem>>, vector<192x16xbf16>
    tpu.vector_store %arg11[%c0, %c112], %0 {strides = array<i32>} : memref<192x896xbf16, #tpu.memory_space<vmem>>, vector<192x16xbf16>,
    %c0_0 = arith.constant 0 : index
    %c768 = arith.constant 768 : index
    %2 = vector.load %arg11[%c0_0, %c768] : memref<192x896xbf16, #tpu.memory_space<vmem>>, vector<192x16xbf16>
    tpu.vector_store %arg11[%c0_0, %c768], %0 {strides = array<i32>} : memref<192x896xbf16, #tpu.memory_space<vmem>>, vector<192x16xbf16>,
    %cst_1 = arith.constant 0.000000e+00 : bf16
    %3 = vector.broadcast %cst_1 : bf16 to vector<192x128xbf16>
    %c0_2 = arith.constant 0 : index
    %c384 = arith.constant 384 : index
    %4 = vector.load %arg11[%c0_2, %c384] : memref<192x896xbf16, #tpu.memory_space<vmem>>, vector<192x128xbf16>
    tpu.vector_store %arg11[%c0_2, %c384], %3 {strides = array<i32>} : memref<192x896xbf16, #tpu.memory_space<vmem>>, vector<192x128xbf16>,
    %5 = tpu.iota {dimensions = array<i32: 1>} : vector<1x640xi32>
    %c16_i32 = arith.constant 16 : i32
    %c0_i32 = arith.constant 0 : i32
    %6 = arith.cmpi eq, %c16_i32, %c0_i32 : i32
    %c1_i32 = arith.constant 1 : i32
    %7 = arith.select %6, %c1_i32, %c16_i32 : i32
    %8 = vector.broadcast %7 : i32 to vector<1x640xi32>
    %9 = arith.remsi %5, %8 : vector<1x640xi32>
    %c0_i32_3 = arith.constant 0 : i32
    %10 = vector.broadcast %c0_i32_3 : i32 to vector<1x640xi32>
    %11 = arith.cmpi ne, %9, %10 : vector<1x640xi32>
    %c0_i32_4 = arith.constant 0 : i32
    %12 = vector.broadcast %c0_i32_4 : i32 to vector<1x640xi32>
    %13 = arith.cmpi slt, %9, %12 : vector<1x640xi32>
    %c0_i32_5 = arith.constant 0 : i32
    %14 = arith.cmpi slt, %7, %c0_i32_5 : i32
    %15 = vector.broadcast %14 : i1 to vector<1x640xi1>
    %16 = vector.broadcast %15 : vector<1x640xi1> to vector<1x640xi1>
    %17 = arith.xori %13, %16 : vector<1x640xi1>
    %18 = arith.andi %17, %11 : vector<1x640xi1>
    %19 = vector.broadcast %7 : i32 to vector<1x640xi32>
    %20 = arith.addi %9, %19 : vector<1x640xi32>
    %21 = arith.select %18, %20, %9 : vector<1x640xi1>, vector<1x640xi32>
    %c1_i32_6 = arith.constant 1 : i32
    %22 = vector.broadcast %c1_i32_6 : i32 to vector<1x640xi32>
    %23 = arith.cmpi sge, %21, %22 : vector<1x640xi32>
    %c14_i32 = arith.constant 14 : i32
    %24 = vector.broadcast %c14_i32 : i32 to vector<1x640xi32>
    %25 = arith.cmpi sle, %21, %24 : vector<1x640xi32>
    %c0_7 = arith.constant 0 : index
    %c0_8 = arith.constant 0 : index
    %c0_9 = arith.constant 0 : index
    %26 = vector.load %arg1[%c0_7, %c0_8, %c0_9] : memref<1x2x256xbf16, #tpu.memory_space<vmem>>, vector<1x2x256xbf16>
    %27 = vector.shape_cast %26 : vector<1x2x256xbf16> to vector<2x256xbf16>
    %28 = vector.extract_strided_slice %27 {offsets = [0, 0], sizes = [1, 256], strides = [1, 1]} : vector<2x256xbf16> to vector<1x256xbf16>
    %c1 = arith.constant 1 : index
    %c128 = arith.constant 128 : index
    %29 = vector.load %arg11[%c1, %c128] : memref<192x896xbf16, #tpu.memory_space<vmem>>, vector<1x256xbf16>
    tpu.vector_store %arg11[%c1, %c128], %28 {strides = array<i32>} : memref<192x896xbf16, #tpu.memory_space<vmem>>, vector<1x256xbf16>,
    %30 = vector.extract_strided_slice %27 {offsets = [1, 0], sizes = [1, 256], strides = [1, 1]} : vector<2x256xbf16> to vector<1x256xbf16>
    %c1_10 = arith.constant 1 : index
    %c512 = arith.constant 512 : index
    %31 = vector.load %arg11[%c1_10, %c512] : memref<192x896xbf16, #tpu.memory_space<vmem>>, vector<1x256xbf16>
    tpu.vector_store %arg11[%c1_10, %c512], %30 {strides = array<i32>} : memref<192x896xbf16, #tpu.memory_space<vmem>>, vector<1x256xbf16>,
    %c1_11 = arith.constant 1 : index
    %c127 = arith.constant 127 : index
    %32 = vector.load %arg11[%c1_11, %c127] : memref<192x896xbf16, #tpu.memory_space<vmem>>, vector<1x640xbf16>
    %c1_12 = arith.constant 1 : index
    %c129 = arith.constant 129 : index
    %33 = vector.load %arg11[%c1_12, %c129] : memref<192x896xbf16, #tpu.memory_space<vmem>>, vector<1x640xbf16>
    %c0_i32_13 = arith.constant 0 : i32
    %34 = arith.sitofp %c0_i32_13 : i32 to bf16
    %35 = vector.broadcast %34 : bf16 to vector<1x640xbf16>
    %36 = arith.select %23, %32, %35 : vector<1x640xi1>, vector<1x640xbf16>
    %c0_14 = arith.constant 0 : index
    %c128_15 = arith.constant 128 : index
    %37 = vector.load %arg11[%c0_14, %c128_15] : memref<192x896xbf16, #tpu.memory_space<vmem>>, vector<1x640xbf16>
    tpu.vector_store %arg11[%c0_14, %c128_15], %36 {strides = array<i32>} : memref<192x896xbf16, #tpu.memory_space<vmem>>, vector<1x640xbf16>,
    %c0_i32_16 = arith.constant 0 : i32
    %38 = arith.sitofp %c0_i32_16 : i32 to bf16
    %39 = vector.broadcast %38 : bf16 to vector<1x640xbf16>
    %40 = arith.select %25, %33, %39 : vector<1x640xi1>, vector<1x640xbf16>
    %c2 = arith.constant 2 : index
    %c128_17 = arith.constant 128 : index
    %41 = vector.load %arg11[%c2, %c128_17] : memref<192x896xbf16, #tpu.memory_space<vmem>>, vector<1x640xbf16>
    tpu.vector_store %arg11[%c2, %c128_17], %40 {strides = array<i32>} : memref<192x896xbf16, #tpu.memory_space<vmem>>, vector<1x640xbf16>,
    %c0_18 = arith.constant 0 : index
    %c112_19 = arith.constant 112 : index
    %42 = vector.load %arg11[%c0_18, %c112_19] : memref<192x896xbf16, #tpu.memory_space<vmem>>, vector<3x640xbf16>
    %c0_20 = arith.constant 0 : index
    %c0_21 = arith.constant 0 : index
    %c0_22 = arith.constant 0 : index
    %43 = vector.load %arg2[%c0_20, %c0_21, %c0_22] : memref<3x32x3xbf16, #tpu.memory_space<vmem>>, vector<1x32x3xbf16>
    %44 = vector.shape_cast %43 : vector<1x32x3xbf16> to vector<32x3xbf16>
    %cst_23 = arith.constant dense<0.000000e+00> : vector<32x640xf32>
    %45 = tpu.matmul %44, %42, %cst_23 {dimension_numbers = #tpu.dot_dimension_numbers<[1], [0], [0], [1], [0, 0, 1, 1], [], []>} : vector<32x3xbf16>, vector<3x640xbf16>, vector<32x640xf32> -> vector<32x640xf32>
    %c0_24 = arith.constant 0 : index
    %c128_25 = arith.constant 128 : index
    %46 = vector.load %arg11[%c0_24, %c128_25] : memref<192x896xbf16, #tpu.memory_space<vmem>>, vector<3x640xbf16>
    %c1_26 = arith.constant 1 : index
    %c0_27 = arith.constant 0 : index
    %c0_28 = arith.constant 0 : index
    %47 = vector.load %arg2[%c1_26, %c0_27, %c0_28] : memref<3x32x3xbf16, #tpu.memory_space<vmem>>, vector<1x32x3xbf16>
    %48 = vector.shape_cast %47 : vector<1x32x3xbf16> to vector<32x3xbf16>
    %cst_29 = arith.constant dense<0.000000e+00> : vector<32x640xf32>
    %49 = tpu.matmul %48, %46, %cst_29 {dimension_numbers = #tpu.dot_dimension_numbers<[1], [0], [0], [1], [0, 0, 1, 1], [], []>} : vector<32x3xbf16>, vector<3x640xbf16>, vector<32x640xf32> -> vector<32x640xf32>
    %50 = arith.addf %45, %49 : vector<32x640xf32>
    %c0_30 = arith.constant 0 : index
    %c144 = arith.constant 144 : index
    %51 = vector.load %arg11[%c0_30, %c144] : memref<192x896xbf16, #tpu.memory_space<vmem>>, vector<3x640xbf16>
    %c2_31 = arith.constant 2 : index
    %c0_32 = arith.constant 0 : index
    %c0_33 = arith.constant 0 : index
    %52 = vector.load %arg2[%c2_31, %c0_32, %c0_33] : memref<3x32x3xbf16, #tpu.memory_space<vmem>>, vector<1x32x3xbf16>
    %53 = vector.shape_cast %52 : vector<1x32x3xbf16> to vector<32x3xbf16>
    %cst_34 = arith.constant dense<0.000000e+00> : vector<32x640xf32>
    %54 = tpu.matmul %53, %51, %cst_34 {dimension_numbers = #tpu.dot_dimension_numbers<[1], [0], [0], [1], [0, 0, 1, 1], [], []>} : vector<32x3xbf16>, vector<3x640xbf16>, vector<32x640xf32> -> vector<32x640xf32>
    %55 = arith.addf %50, %54 : vector<32x640xf32>
    %c0_35 = arith.constant 0 : index
    %c0_36 = arith.constant 0 : index
    %56 = vector.load %arg3[%c0_35, %c0_36] : memref<32x1xf32, #tpu.memory_space<vmem>>, vector<32x1xf32>
    %57 = vector.broadcast %56 : vector<32x1xf32> to vector<32x640xf32>
    %58 = arith.addf %55, %57 : vector<32x640xf32>
    %cst_37 = arith.constant 0.000000e+00 : f32
    %59 = vector.broadcast %cst_37 : f32 to vector<32x640xf32>
    %60 = arith.maximumf %58, %59 : vector<32x640xf32>
    %61 = vector.extract_strided_slice %60 {offsets = [0, 0], sizes = [32, 256], strides = [1, 1]} : vector<32x640xf32> to vector<32x256xf32>
    %62 = arith.truncf %61 : vector<32x256xf32> to vector<32x256xbf16>
    %c32 = arith.constant 32 : index
    %c128_38 = arith.constant 128 : index
    %63 = vector.load %arg11[%c32, %c128_38] : memref<192x896xbf16, #tpu.memory_space<vmem>>, vector<32x256xbf16>
    tpu.vector_store %arg11[%c32, %c128_38], %62 {strides = array<i32>} : memref<192x896xbf16, #tpu.memory_space<vmem>>, vector<32x256xbf16>,
    %64 = vector.extract_strided_slice %60 {offsets = [0, 384], sizes = [32, 256], strides = [1, 1]} : vector<32x640xf32> to vector<32x256xf32>
    %65 = arith.truncf %64 : vector<32x256xf32> to vector<32x256xbf16>
    %c32_39 = arith.constant 32 : index
    %c512_40 = arith.constant 512 : index
    %66 = vector.load %arg11[%c32_39, %c512_40] : memref<192x896xbf16, #tpu.memory_space<vmem>>, vector<32x256xbf16>
    tpu.vector_store %arg11[%c32_39, %c512_40], %65 {strides = array<i32>} : memref<192x896xbf16, #tpu.memory_space<vmem>>, vector<32x256xbf16>,
    %c32_41 = arith.constant 32 : index
    %c127_42 = arith.constant 127 : index
    %67 = vector.load %arg11[%c32_41, %c127_42] : memref<192x896xbf16, #tpu.memory_space<vmem>>, vector<32x640xbf16>
    %c32_43 = arith.constant 32 : index
    %c129_44 = arith.constant 129 : index
    %68 = vector.load %arg11[%c32_43, %c129_44] : memref<192x896xbf16, #tpu.memory_space<vmem>>, vector<32x640xbf16>
    %c0_i32_45 = arith.constant 0 : i32
    %69 = arith.sitofp %c0_i32_45 : i32 to bf16
    %70 = vector.shape_cast %23 : vector<1x640xi1> to vector<1x640xi1>
    %71 = vector.broadcast %70 : vector<1x640xi1> to vector<32x640xi1>
    %72 = vector.broadcast %69 : bf16 to vector<32x640xbf16>
    %73 = arith.select %71, %67, %72 : vector<32x640xi1>, vector<32x640xbf16>
    %c0_46 = arith.constant 0 : index
    %c128_47 = arith.constant 128 : index
    %74 = vector.load %arg11[%c0_46, %c128_47] : memref<192x896xbf16, #tpu.memory_space<vmem>>, vector<32x640xbf16>
    tpu.vector_store %arg11[%c0_46, %c128_47], %73 {strides = array<i32>} : memref<192x896xbf16, #tpu.memory_space<vmem>>, vector<32x640xbf16>,
    %c0_i32_48 = arith.constant 0 : i32
    %75 = arith.sitofp %c0_i32_48 : i32 to bf16
    %76 = vector.shape_cast %25 : vector<1x640xi1> to vector<1x640xi1>
    %77 = vector.broadcast %76 : vector<1x640xi1> to vector<32x640xi1>
    %78 = vector.broadcast %75 : bf16 to vector<32x640xbf16>
    %79 = arith.select %77, %68, %78 : vector<32x640xi1>, vector<32x640xbf16>
    %c64 = arith.constant 64 : index
    %c128_49 = arith.constant 128 : index
    %80 = vector.load %arg11[%c64, %c128_49] : memref<192x896xbf16, #tpu.memory_space<vmem>>, vector<32x640xbf16>
    tpu.vector_store %arg11[%c64, %c128_49], %79 {strides = array<i32>} : memref<192x896xbf16, #tpu.memory_space<vmem>>, vector<32x640xbf16>,
    %c0_50 = arith.constant 0 : index
    %c112_51 = arith.constant 112 : index
    %81 = vector.load %arg11[%c0_50, %c112_51] : memref<192x896xbf16, #tpu.memory_space<vmem>>, vector<96x640xbf16>
    %c0_52 = arith.constant 0 : index
    %c0_53 = arith.constant 0 : index
    %c0_54 = arith.constant 0 : index
    %82 = vector.load %arg4[%c0_52, %c0_53, %c0_54] : memref<3x64x96xbf16, #tpu.memory_space<vmem>>, vector<1x64x96xbf16>
    %83 = vector.shape_cast %82 : vector<1x64x96xbf16> to vector<64x96xbf16>
    %cst_55 = arith.constant dense<0.000000e+00> : vector<64x640xf32>
    %84 = tpu.matmul %83, %81, %cst_55 {dimension_numbers = #tpu.dot_dimension_numbers<[1], [0], [0], [1], [0, 0, 1, 1], [], []>} : vector<64x96xbf16>, vector<96x640xbf16>, vector<64x640xf32> -> vector<64x640xf32>
    %c0_56 = arith.constant 0 : index
    %c128_57 = arith.constant 128 : index
    %85 = vector.load %arg11[%c0_56, %c128_57] : memref<192x896xbf16, #tpu.memory_space<vmem>>, vector<96x640xbf16>
    %c1_58 = arith.constant 1 : index
    %c0_59 = arith.constant 0 : index
    %c0_60 = arith.constant 0 : index
    %86 = vector.load %arg4[%c1_58, %c0_59, %c0_60] : memref<3x64x96xbf16, #tpu.memory_space<vmem>>, vector<1x64x96xbf16>
    %87 = vector.shape_cast %86 : vector<1x64x96xbf16> to vector<64x96xbf16>
    %cst_61 = arith.constant dense<0.000000e+00> : vector<64x640xf32>
    %88 = tpu.matmul %87, %85, %cst_61 {dimension_numbers = #tpu.dot_dimension_numbers<[1], [0], [0], [1], [0, 0, 1, 1], [], []>} : vector<64x96xbf16>, vector<96x640xbf16>, vector<64x640xf32> -> vector<64x640xf32>
    %89 = arith.addf %84, %88 : vector<64x640xf32>
    %c0_62 = arith.constant 0 : index
    %c144_63 = arith.constant 144 : index
    %90 = vector.load %arg11[%c0_62, %c144_63] : memref<192x896xbf16, #tpu.memory_space<vmem>>, vector<96x640xbf16>
    %c2_64 = arith.constant 2 : index
    %c0_65 = arith.constant 0 : index
    %c0_66 = arith.constant 0 : index
    %91 = vector.load %arg4[%c2_64, %c0_65, %c0_66] : memref<3x64x96xbf16, #tpu.memory_space<vmem>>, vector<1x64x96xbf16>
    %92 = vector.shape_cast %91 : vector<1x64x96xbf16> to vector<64x96xbf16>
    %cst_67 = arith.constant dense<0.000000e+00> : vector<64x640xf32>
    %93 = tpu.matmul %92, %90, %cst_67 {dimension_numbers = #tpu.dot_dimension_numbers<[1], [0], [0], [1], [0, 0, 1, 1], [], []>} : vector<64x96xbf16>, vector<96x640xbf16>, vector<64x640xf32> -> vector<64x640xf32>
    %94 = arith.addf %89, %93 : vector<64x640xf32>
    %c0_68 = arith.constant 0 : index
    %c0_69 = arith.constant 0 : index
    %95 = vector.load %arg5[%c0_68, %c0_69] : memref<64x1xf32, #tpu.memory_space<vmem>>, vector<64x1xf32>
    %96 = vector.broadcast %95 : vector<64x1xf32> to vector<64x640xf32>
    %97 = arith.addf %94, %96 : vector<64x640xf32>
    %cst_70 = arith.constant 0.000000e+00 : f32
    %98 = vector.broadcast %cst_70 : f32 to vector<64x640xf32>
    %99 = arith.maximumf %97, %98 : vector<64x640xf32>
    %100 = vector.extract_strided_slice %99 {offsets = [0, 0], sizes = [64, 256], strides = [1, 1]} : vector<64x640xf32> to vector<64x256xf32>
    %101 = arith.truncf %100 : vector<64x256xf32> to vector<64x256xbf16>
    %c64_71 = arith.constant 64 : index
    %c128_72 = arith.constant 128 : index
    %102 = vector.load %arg11[%c64_71, %c128_72] : memref<192x896xbf16, #tpu.memory_space<vmem>>, vector<64x256xbf16>
    tpu.vector_store %arg11[%c64_71, %c128_72], %101 {strides = array<i32>} : memref<192x896xbf16, #tpu.memory_space<vmem>>, vector<64x256xbf16>,
    %103 = vector.extract_strided_slice %99 {offsets = [0, 384], sizes = [64, 256], strides = [1, 1]} : vector<64x640xf32> to vector<64x256xf32>
    %104 = arith.truncf %103 : vector<64x256xf32> to vector<64x256xbf16>
    %c64_73 = arith.constant 64 : index
    %c512_74 = arith.constant 512 : index
    %105 = vector.load %arg11[%c64_73, %c512_74] : memref<192x896xbf16, #tpu.memory_space<vmem>>, vector<64x256xbf16>
    tpu.vector_store %arg11[%c64_73, %c512_74], %104 {strides = array<i32>} : memref<192x896xbf16, #tpu.memory_space<vmem>>, vector<64x256xbf16>,
    %c64_75 = arith.constant 64 : index
    %c127_76 = arith.constant 127 : index
    %106 = vector.load %arg11[%c64_75, %c127_76] : memref<192x896xbf16, #tpu.memory_space<vmem>>, vector<64x640xbf16>
    %c64_77 = arith.constant 64 : index
    %c129_78 = arith.constant 129 : index
    %107 = vector.load %arg11[%c64_77, %c129_78] : memref<192x896xbf16, #tpu.memory_space<vmem>>, vector<64x640xbf16>
    %c0_i32_79 = arith.constant 0 : i32
    %108 = arith.sitofp %c0_i32_79 : i32 to bf16
    %109 = vector.shape_cast %23 : vector<1x640xi1> to vector<1x640xi1>
    %110 = vector.broadcast %109 : vector<1x640xi1> to vector<64x640xi1>
    %111 = vector.broadcast %108 : bf16 to vector<64x640xbf16>
    %112 = arith.select %110, %106, %111 : vector<64x640xi1>, vector<64x640xbf16>
    %c0_80 = arith.constant 0 : index
    %c128_81 = arith.constant 128 : index
    %113 = vector.load %arg11[%c0_80, %c128_81] : memref<192x896xbf16, #tpu.memory_space<vmem>>, vector<64x640xbf16>
    tpu.vector_store %arg11[%c0_80, %c128_81], %112 {strides = array<i32>} : memref<192x896xbf16, #tpu.memory_space<vmem>>, vector<64x640xbf16>,
    %c0_i32_82 = arith.constant 0 : i32
    %114 = arith.sitofp %c0_i32_82 : i32 to bf16
    %115 = vector.shape_cast %25 : vector<1x640xi1> to vector<1x640xi1>
    %116 = vector.broadcast %115 : vector<1x640xi1> to vector<64x640xi1>
    %117 = vector.broadcast %114 : bf16 to vector<64x640xbf16>
    %118 = arith.select %116, %107, %117 : vector<64x640xi1>, vector<64x640xbf16>
    %c128_83 = arith.constant 128 : index
    %c128_84 = arith.constant 128 : index
    %119 = vector.load %arg11[%c128_83, %c128_84] : memref<192x896xbf16, #tpu.memory_space<vmem>>, vector<64x640xbf16>
    tpu.vector_store %arg11[%c128_83, %c128_84], %118 {strides = array<i32>} : memref<192x896xbf16, #tpu.memory_space<vmem>>, vector<64x640xbf16>,
    %c0_85 = arith.constant 0 : index
    %c112_86 = arith.constant 112 : index
    %120 = vector.load %arg11[%c0_85, %c112_86] : memref<192x896xbf16, #tpu.memory_space<vmem>>, vector<192x640xbf16>
    %c0_87 = arith.constant 0 : index
    %c0_88 = arith.constant 0 : index
    %c0_89 = arith.constant 0 : index
    %121 = vector.load %arg6[%c0_87, %c0_88, %c0_89] : memref<3x32x192xbf16, #tpu.memory_space<vmem>>, vector<1x32x192xbf16>
    %122 = vector.shape_cast %121 : vector<1x32x192xbf16> to vector<32x192xbf16>
    %cst_90 = arith.constant dense<0.000000e+00> : vector<32x640xf32>
    %123 = tpu.matmul %122, %120, %cst_90 {dimension_numbers = #tpu.dot_dimension_numbers<[1], [0], [0], [1], [0, 0, 1, 1], [], []>} : vector<32x192xbf16>, vector<192x640xbf16>, vector<32x640xf32> -> vector<32x640xf32>
    %c0_91 = arith.constant 0 : index
    %c128_92 = arith.constant 128 : index
    %124 = vector.load %arg11[%c0_91, %c128_92] : memref<192x896xbf16, #tpu.memory_space<vmem>>, vector<192x640xbf16>
    %c1_93 = arith.constant 1 : index
    %c0_94 = arith.constant 0 : index
    %c0_95 = arith.constant 0 : index
    %125 = vector.load %arg6[%c1_93, %c0_94, %c0_95] : memref<3x32x192xbf16, #tpu.memory_space<vmem>>, vector<1x32x192xbf16>
    %126 = vector.shape_cast %125 : vector<1x32x192xbf16> to vector<32x192xbf16>
    %cst_96 = arith.constant dense<0.000000e+00> : vector<32x640xf32>
    %127 = tpu.matmul %126, %124, %cst_96 {dimension_numbers = #tpu.dot_dimension_numbers<[1], [0], [0], [1], [0, 0, 1, 1], [], []>} : vector<32x192xbf16>, vector<192x640xbf16>, vector<32x640xf32> -> vector<32x640xf32>
    %128 = arith.addf %123, %127 : vector<32x640xf32>
    %c0_97 = arith.constant 0 : index
    %c144_98 = arith.constant 144 : index
    %129 = vector.load %arg11[%c0_97, %c144_98] : memref<192x896xbf16, #tpu.memory_space<vmem>>, vector<192x640xbf16>
    %c2_99 = arith.constant 2 : index
    %c0_100 = arith.constant 0 : index
    %c0_101 = arith.constant 0 : index
    %130 = vector.load %arg6[%c2_99, %c0_100, %c0_101] : memref<3x32x192xbf16, #tpu.memory_space<vmem>>, vector<1x32x192xbf16>
    %131 = vector.shape_cast %130 : vector<1x32x192xbf16> to vector<32x192xbf16>
    %cst_102 = arith.constant dense<0.000000e+00> : vector<32x640xf32>
    %132 = tpu.matmul %131, %129, %cst_102 {dimension_numbers = #tpu.dot_dimension_numbers<[1], [0], [0], [1], [0, 0, 1, 1], [], []>} : vector<32x192xbf16>, vector<192x640xbf16>, vector<32x640xf32> -> vector<32x640xf32>
    %133 = arith.addf %128, %132 : vector<32x640xf32>
    %c0_103 = arith.constant 0 : index
    %c0_104 = arith.constant 0 : index
    %134 = vector.load %arg7[%c0_103, %c0_104] : memref<32x1xf32, #tpu.memory_space<vmem>>, vector<32x1xf32>
    %135 = vector.broadcast %134 : vector<32x1xf32> to vector<32x640xf32>
    %136 = arith.addf %133, %135 : vector<32x640xf32>
    %cst_105 = arith.constant 0.000000e+00 : f32
    %137 = vector.broadcast %cst_105 : f32 to vector<32x640xf32>
    %138 = arith.maximumf %136, %137 : vector<32x640xf32>
    %139 = vector.extract_strided_slice %138 {offsets = [0, 0], sizes = [32, 256], strides = [1, 1]} : vector<32x640xf32> to vector<32x256xf32>
    %140 = arith.truncf %139 : vector<32x256xf32> to vector<32x256xbf16>
    %c32_106 = arith.constant 32 : index
    %c128_107 = arith.constant 128 : index
    %141 = vector.load %arg11[%c32_106, %c128_107] : memref<192x896xbf16, #tpu.memory_space<vmem>>, vector<32x256xbf16>
    tpu.vector_store %arg11[%c32_106, %c128_107], %140 {strides = array<i32>} : memref<192x896xbf16, #tpu.memory_space<vmem>>, vector<32x256xbf16>,
    %142 = vector.extract_strided_slice %138 {offsets = [0, 384], sizes = [32, 256], strides = [1, 1]} : vector<32x640xf32> to vector<32x256xf32>
    %143 = arith.truncf %142 : vector<32x256xf32> to vector<32x256xbf16>
    %c32_108 = arith.constant 32 : index
    %c512_109 = arith.constant 512 : index
    %144 = vector.load %arg11[%c32_108, %c512_109] : memref<192x896xbf16, #tpu.memory_space<vmem>>, vector<32x256xbf16>
    tpu.vector_store %arg11[%c32_108, %c512_109], %143 {strides = array<i32>} : memref<192x896xbf16, #tpu.memory_space<vmem>>, vector<32x256xbf16>,
    %c32_110 = arith.constant 32 : index
    %c127_111 = arith.constant 127 : index
    %145 = vector.load %arg11[%c32_110, %c127_111] : memref<192x896xbf16, #tpu.memory_space<vmem>>, vector<32x640xbf16>
    %c32_112 = arith.constant 32 : index
    %c129_113 = arith.constant 129 : index
    %146 = vector.load %arg11[%c32_112, %c129_113] : memref<192x896xbf16, #tpu.memory_space<vmem>>, vector<32x640xbf16>
    %c0_i32_114 = arith.constant 0 : i32
    %147 = arith.sitofp %c0_i32_114 : i32 to bf16
    %148 = vector.shape_cast %23 : vector<1x640xi1> to vector<1x640xi1>
    %149 = vector.broadcast %148 : vector<1x640xi1> to vector<32x640xi1>
    %150 = vector.broadcast %147 : bf16 to vector<32x640xbf16>
    %151 = arith.select %149, %145, %150 : vector<32x640xi1>, vector<32x640xbf16>
    %c0_115 = arith.constant 0 : index
    %c128_116 = arith.constant 128 : index
    %152 = vector.load %arg11[%c0_115, %c128_116] : memref<192x896xbf16, #tpu.memory_space<vmem>>, vector<32x640xbf16>
    tpu.vector_store %arg11[%c0_115, %c128_116], %151 {strides = array<i32>} : memref<192x896xbf16, #tpu.memory_space<vmem>>, vector<32x640xbf16>,
    %c0_i32_117 = arith.constant 0 : i32
    %153 = arith.sitofp %c0_i32_117 : i32 to bf16
    %154 = vector.shape_cast %25 : vector<1x640xi1> to vector<1x640xi1>
    %155 = vector.broadcast %154 : vector<1x640xi1> to vector<32x640xi1>
    %156 = vector.broadcast %153 : bf16 to vector<32x640xbf16>
    %157 = arith.select %155, %146, %156 : vector<32x640xi1>, vector<32x640xbf16>
    %c64_118 = arith.constant 64 : index
    %c128_119 = arith.constant 128 : index
    %158 = vector.load %arg11[%c64_118, %c128_119] : memref<192x896xbf16, #tpu.memory_space<vmem>>, vector<32x640xbf16>
    tpu.vector_store %arg11[%c64_118, %c128_119], %157 {strides = array<i32>} : memref<192x896xbf16, #tpu.memory_space<vmem>>, vector<32x640xbf16>,
    %c0_120 = arith.constant 0 : index
    %c112_121 = arith.constant 112 : index
    %159 = vector.load %arg11[%c0_120, %c112_121] : memref<192x896xbf16, #tpu.memory_space<vmem>>, vector<96x640xbf16>
    %c0_122 = arith.constant 0 : index
    %c0_123 = arith.constant 0 : index
    %c0_124 = arith.constant 0 : index
    %160 = vector.load %arg8[%c0_122, %c0_123, %c0_124] : memref<3x8x96xbf16, #tpu.memory_space<vmem>>, vector<1x8x96xbf16>
    %161 = vector.shape_cast %160 : vector<1x8x96xbf16> to vector<8x96xbf16>
    %cst_125 = arith.constant dense<0.000000e+00> : vector<8x640xf32>
    %162 = tpu.matmul %161, %159, %cst_125 {dimension_numbers = #tpu.dot_dimension_numbers<[1], [0], [0], [1], [0, 0, 1, 1], [], []>} : vector<8x96xbf16>, vector<96x640xbf16>, vector<8x640xf32> -> vector<8x640xf32>
    %c0_126 = arith.constant 0 : index
    %c128_127 = arith.constant 128 : index
    %163 = vector.load %arg11[%c0_126, %c128_127] : memref<192x896xbf16, #tpu.memory_space<vmem>>, vector<96x640xbf16>
    %c1_128 = arith.constant 1 : index
    %c0_129 = arith.constant 0 : index
    %c0_130 = arith.constant 0 : index
    %164 = vector.load %arg8[%c1_128, %c0_129, %c0_130] : memref<3x8x96xbf16, #tpu.memory_space<vmem>>, vector<1x8x96xbf16>
    %165 = vector.shape_cast %164 : vector<1x8x96xbf16> to vector<8x96xbf16>
    %cst_131 = arith.constant dense<0.000000e+00> : vector<8x640xf32>
    %166 = tpu.matmul %165, %163, %cst_131 {dimension_numbers = #tpu.dot_dimension_numbers<[1], [0], [0], [1], [0, 0, 1, 1], [], []>} : vector<8x96xbf16>, vector<96x640xbf16>, vector<8x640xf32> -> vector<8x640xf32>
    %167 = arith.addf %162, %166 : vector<8x640xf32>
    %c0_132 = arith.constant 0 : index
    %c144_133 = arith.constant 144 : index
    %168 = vector.load %arg11[%c0_132, %c144_133] : memref<192x896xbf16, #tpu.memory_space<vmem>>, vector<96x640xbf16>
    %c2_134 = arith.constant 2 : index
    %c0_135 = arith.constant 0 : index
    %c0_136 = arith.constant 0 : index
    %169 = vector.load %arg8[%c2_134, %c0_135, %c0_136] : memref<3x8x96xbf16, #tpu.memory_space<vmem>>, vector<1x8x96xbf16>
    %170 = vector.shape_cast %169 : vector<1x8x96xbf16> to vector<8x96xbf16>
    %cst_137 = arith.constant dense<0.000000e+00> : vector<8x640xf32>
    %171 = tpu.matmul %170, %168, %cst_137 {dimension_numbers = #tpu.dot_dimension_numbers<[1], [0], [0], [1], [0, 0, 1, 1], [], []>} : vector<8x96xbf16>, vector<96x640xbf16>, vector<8x640xf32> -> vector<8x640xf32>
    %172 = arith.addf %167, %171 : vector<8x640xf32>
    %c0_138 = arith.constant 0 : index
    %c0_139 = arith.constant 0 : index
    %173 = vector.load %arg9[%c0_138, %c0_139] : memref<8x1xf32, #tpu.memory_space<vmem>>, vector<8x1xf32>
    %174 = vector.broadcast %173 : vector<8x1xf32> to vector<8x640xf32>
    %175 = arith.addf %172, %174 : vector<8x640xf32>
    %176 = vector.extract_strided_slice %175 {offsets = [0, 0], sizes = [1, 256], strides = [1, 1]} : vector<8x640xf32> to vector<1x256xf32>
    %177 = vector.extract_strided_slice %175 {offsets = [0, 384], sizes = [1, 256], strides = [1, 1]} : vector<8x640xf32> to vector<1x256xf32>
    %178 = tpu.concatenate %176, %177 in 0 : vector<1x256xf32>, vector<1x256xf32> -> vector<2x256xf32>
    %c0_140 = arith.constant 0 : index
    %c0_141 = arith.constant 0 : index
    %c0_142 = arith.constant 0 : index
    %179 = vector.load %arg10[%c0_140, %c0_141, %c0_142] : memref<1x2x256xf32, #tpu.memory_space<vmem>>, vector<1x2x256xf32>
    %180 = vector.shape_cast %179 : vector<1x2x256xf32> to vector<2x256xf32>
    %181 = vector.shape_cast %178 : vector<2x256xf32> to vector<1x2x256xf32>
    tpu.vector_store %arg10[%c0_140, %c0_141, %c0_142], %181 {strides = array<i32>} : memref<1x2x256xf32, #tpu.memory_space<vmem>>, vector<1x2x256xf32>,
    return
  }
  func.func @transform_0(%arg0: i32) -> (i32, i32, i32) {
    %c0_i32 = arith.constant 0 : i32
    %c0_i32_0 = arith.constant 0 : i32
    %c0_i32_1 = arith.constant 0 : i32
    return %arg0, %c0_i32, %c0_i32_0 : i32, i32, i32
  }
  func.func @transform_1(%arg0: i32) -> (i32, i32, i32) {
    %c0_i32 = arith.constant 0 : i32
    %c0_i32_0 = arith.constant 0 : i32
    %c0_i32_1 = arith.constant 0 : i32
    %c0_i32_2 = arith.constant 0 : i32
    return %c0_i32, %c0_i32_0, %c0_i32_1 : i32, i32, i32
  }
  func.func @transform_2(%arg0: i32) -> (i32, i32) {
    %c0_i32 = arith.constant 0 : i32
    %c0_i32_0 = arith.constant 0 : i32
    %c0_i32_1 = arith.constant 0 : i32
    return %c0_i32, %c0_i32_0 : i32, i32
  }
  func.func @transform_3(%arg0: i32) -> (i32, i32, i32) {
    %c0_i32 = arith.constant 0 : i32
    %c0_i32_0 = arith.constant 0 : i32
    %c0_i32_1 = arith.constant 0 : i32
    %c0_i32_2 = arith.constant 0 : i32
    return %c0_i32, %c0_i32_0, %c0_i32_1 : i32, i32, i32
  }
  func.func @transform_4(%arg0: i32) -> (i32, i32) {
    %c0_i32 = arith.constant 0 : i32
    %c0_i32_0 = arith.constant 0 : i32
    %c0_i32_1 = arith.constant 0 : i32
    return %c0_i32, %c0_i32_0 : i32, i32
  }
  func.func @transform_5(%arg0: i32) -> (i32, i32, i32) {
    %c0_i32 = arith.constant 0 : i32
    %c0_i32_0 = arith.constant 0 : i32
    %c0_i32_1 = arith.constant 0 : i32
    %c0_i32_2 = arith.constant 0 : i32
    return %c0_i32, %c0_i32_0, %c0_i32_1 : i32, i32, i32
  }
  func.func @transform_6(%arg0: i32) -> (i32, i32) {
    %c0_i32 = arith.constant 0 : i32
    %c0_i32_0 = arith.constant 0 : i32
    %c0_i32_1 = arith.constant 0 : i32
    return %c0_i32, %c0_i32_0 : i32, i32
  }
  func.func @transform_7(%arg0: i32) -> (i32, i32, i32) {
    %c0_i32 = arith.constant 0 : i32
    %c0_i32_0 = arith.constant 0 : i32
    %c0_i32_1 = arith.constant 0 : i32
    %c0_i32_2 = arith.constant 0 : i32
    return %c0_i32, %c0_i32_0, %c0_i32_1 : i32, i32, i32
  }
  func.func @transform_8(%arg0: i32) -> (i32, i32) {
    %c0_i32 = arith.constant 0 : i32
    %c0_i32_0 = arith.constant 0 : i32
    %c0_i32_1 = arith.constant 0 : i32
    return %c0_i32, %c0_i32_0 : i32, i32
  }
  func.func @transform_9(%arg0: i32) -> (i32, i32, i32) {
    %c0_i32 = arith.constant 0 : i32
    %c0_i32_0 = arith.constant 0 : i32
    %c0_i32_1 = arith.constant 0 : i32
    return %arg0, %c0_i32, %c0_i32_0 : i32, i32, i32
  }
}

</mosaic_0001>

<llo_original>
// kernel: noise_estimator_forward.1
$region0: #{noise_estimator_forward.1}
  #allocation0 [shape = 'u32[]', space=smem, size = 0x4, offset = 0x4, fixed_abs, tag = 'smem constant byte address 0x4 - core index']
  #allocation1 [shape = 'u32[72,128]{1,0:T(1,128)}', space=vmem, size = 0x9000, scoped, tag = 'internal scratch']
  #allocation2 [shape = 'bf16[192,896]{1,0:T(8,128)(2,1)}', space=vmem, size = 0x54000, scoped, tag = 'scratch operand']
  %s0 = inlined_call_operand.vmem [shape: bf16[2,2,256], index: 0, kind: input, shape index: {}]
  %s1 = inlined_call_operand.vmem [shape: bf16[3,32,3], index: 1, kind: input, shape index: {}]
  %s2 = inlined_call_operand.vmem [shape: f32[32,1], index: 2, kind: input, shape index: {}]
  %s3 = inlined_call_operand.vmem [shape: bf16[3,64,96], index: 3, kind: input, shape index: {}]
  %s4 = inlined_call_operand.vmem [shape: f32[64,1], index: 4, kind: input, shape index: {}]
  %s5 = inlined_call_operand.vmem [shape: bf16[3,32,192], index: 5, kind: input, shape index: {}]
  %s6 = inlined_call_operand.vmem [shape: f32[32,1], index: 6, kind: input, shape index: {}]
  %s7 = inlined_call_operand.vmem [shape: bf16[3,8,96], index: 7, kind: input, shape index: {}]
  %s8 = inlined_call_operand.vmem [shape: f32[8,1], index: 8, kind: input, shape index: {}]
  %s9 = inlined_call_operand.vmem [shape: f32[2,2,256], index: 9, kind: output, shape index: {}]
  %s10 = sld [smem:[#allocation0]]
  $region69: #{noise_estimator_forward.1} parent=0
    _
  %s12 = ssub.s32 1, %s10
  %s13 = scalar_select 0, %s12, %s10
  loop: start=0, step=1, limit=4
  $region2: #{noise_estimator_forward.1} parent=0 // loop_pre_header
    _
  $region3: #{noise_estimator_forward.1} parent=0 // loop_header
    %s15 = sphi 0, %s19
    %p16 = scmp.ge.s32.totalorder %s15, 4
    %s25 = sphi 0, %s27
    %s28 = sphi 0, %s25
    %s29 = sphi 0, %s28
    %s45 = sphi 0, %s29
    %s49 = sphi 0, %s49
    %s51 = sphi 0, %s49
    %s52 = sphi 0, %s51
    %s66 = sphi 0, %s52
    %s70 = sphi 0, %s70
    %s72 = sphi 0, %s70
    %s73 = sphi 0, %s72
    %s87 = sphi 0, %s73
    %s91 = sphi 0, %s91
    %s93 = sphi 0, %s91
    %s94 = sphi 0, %s93
    %s108 = sphi 0, %s94
    %s112 = sphi 0, %s112
    %s114 = sphi 0, %s112
    %s115 = sphi 0, %s114
    %s129 = sphi 0, %s115
    %s133 = sphi 0, %s133
    %s135 = sphi 0, %s133
    %s136 = sphi 0, %s135
    %s150 = sphi 0, %s136
    %s154 = sphi 0, %s154
    %s156 = sphi 0, %s154
    %s157 = sphi 0, %s156
    %s171 = sphi 0, %s157
    %s175 = sphi 0, %s175
    %s177 = sphi 0, %s175
    %s178 = sphi 0, %s177
    %s192 = sphi 0, %s178
    %s196 = sphi 0, %s196
    %s198 = sphi 0, %s196
    %s199 = sphi 0, %s198
    %s213 = sphi 0, %s199
    %s219 = sphi 0, %s221
    %s222 = sphi 0, %s219
    %s223 = sphi 0, %s222
    %s239 = sphi 0, %s223
  $region4: #{noise_estimator_forward.1} parent=0 // loop_header_branch
    %18 = sbr.rel (%p16) target = $region8
  $region5: #{noise_estimator_forward.1} parent=0 // loop_body
    %s20 = ssub.s32 %s15, 1
    %s21 = ssub.s32 %s15, 2
    %s22 = sadd.s32 %s15, 1
    %s23 = ssub.s32 %s15, %s22
    %p24 = scmp.eq.s32.totalorder %s23, 0
    %s26 = sadd.s32 %s25, 1
    %s27 = scalar_select %p24, %s25, %s26
    %p30 = pneg %p24
    %p31 = scmp.eq.s32.totalorder %s15, 1
    %p32 = por %p30, %p31
    %p33 = scmp.ne.s32.totalorder %s25, %s28
    %p34 = scmp.eq.s32.totalorder %s15, 0
    %p35 = por %p33, %p34
    %p36 = scmp.ne.s32.totalorder %s25, %s28
    %p37 = scmp.eq.s32.totalorder %s20, 1
    %p38 = por %p36, %p37
    %p39 = scmp.ne.s32.totalorder %s28, %s29
    %p40 = scmp.eq.s32.totalorder %s20, 0
    %p41 = por %p39, %p40
    %p42 = scmp.ne.s32.totalorder %s28, %s29
    %p43 = scmp.eq.s32.totalorder %s21, 1
    %p44 = por %p42, %p43
    %p46 = scmp.ne.s32.totalorder %s29, %s45
    %p47 = scmp.eq.s32.totalorder %s21, 0
    %p48 = por %p46, %p47
    %s50 = sadd.s32 %s49, 1
    %p53 = scmp.eq.s32.totalorder %s15, 1
    %p54 = scmp.ne.s32.totalorder %s49, %s51
    %p55 = scmp.eq.s32.totalorder %s15, 0
    %p56 = por %p54, %p55
    %p57 = scmp.ne.s32.totalorder %s49, %s51
    %p58 = scmp.eq.s32.totalorder %s20, 1
    %p59 = por %p57, %p58
    %p60 = scmp.ne.s32.totalorder %s51, %s52
    %p61 = scmp.eq.s32.totalorder %s20, 0
    %p62 = por %p60, %p61
    %p63 = scmp.ne.s32.totalorder %s51, %s52
    %p64 = scmp.eq.s32.totalorder %s21, 1
    %p65 = por %p63, %p64
    %p67 = scmp.ne.s32.totalorder %s52, %s66
    %p68 = scmp.eq.s32.totalorder %s21, 0
    %p69 = por %p67, %p68
    %s71 = sadd.s32 %s70, 1
    %p74 = scmp.eq.s32.totalorder %s15, 1
    %p75 = scmp.ne.s32.totalorder %s70, %s72
    %p76 = scmp.eq.s32.totalorder %s15, 0
    %p77 = por %p75, %p76
    %p78 = scmp.ne.s32.totalorder %s70, %s72
    %p79 = scmp.eq.s32.totalorder %s20, 1
    %p80 = por %p78, %p79
    %p81 = scmp.ne.s32.totalorder %s72, %s73
    %p82 = scmp.eq.s32.totalorder %s20, 0
    %p83 = por %p81, %p82
    %p84 = scmp.ne.s32.totalorder %s72, %s73
    %p85 = scmp.eq.s32.totalorder %s21, 1
    %p86 = por %p84, %p85
    %p88 = scmp.ne.s32.totalorder %s73, %s87
    %p89 = scmp.eq.s32.totalorder %s21, 0
    %p90 = por %p88, %p89
    %s92 = sadd.s32 %s91, 1
    %p95 = scmp.eq.s32.totalorder %s15, 1
    %p96 = scmp.ne.s32.totalorder %s91, %s93
    %p97 = scmp.eq.s32.totalorder %s15, 0
    %p98 = por %p96, %p97
    %p99 = scmp.ne.s32.totalorder %s91, %s93
    %p100 = scmp.eq.s32.totalorder %s20, 1
    %p101 = por %p99, %p100
    %p102 = scmp.ne.s32.totalorder %s93, %s94
    %p103 = scmp.eq.s32.totalorder %s20, 0
    %p104 = por %p102, %p103
    %p105 = scmp.ne.s32.totalorder %s93, %s94
    %p106 = scmp.eq.s32.totalorder %s21, 1
    %p107 = por %p105, %p106
    %p109 = scmp.ne.s32.totalorder %s94, %s108
    %p110 = scmp.eq.s32.totalorder %s21, 0
    %p111 = por %p109, %p110
    %s113 = sadd.s32 %s112, 1
    %p116 = scmp.eq.s32.totalorder %s15, 1
    %p117 = scmp.ne.s32.totalorder %s112, %s114
    %p118 = scmp.eq.s32.totalorder %s15, 0
    %p119 = por %p117, %p118
    %p120 = scmp.ne.s32.totalorder %s112, %s114
    %p121 = scmp.eq.s32.totalorder %s20, 1
    %p122 = por %p120, %p121
    %p123 = scmp.ne.s32.totalorder %s114, %s115
    %p124 = scmp.eq.s32.totalorder %s20, 0
    %p125 = por %p123, %p124
    %p126 = scmp.ne.s32.totalorder %s114, %s115
    %p127 = scmp.eq.s32.totalorder %s21, 1
    %p128 = por %p126, %p127
    %p130 = scmp.ne.s32.totalorder %s115, %s129
    %p131 = scmp.eq.s32.totalorder %s21, 0
    %p132 = por %p130, %p131
    %s134 = sadd.s32 %s133, 1
    %p137 = scmp.eq.s32.totalorder %s15, 1
    %p138 = scmp.ne.s32.totalorder %s133, %s135
    %p139 = scmp.eq.s32.totalorder %s15, 0
    %p140 = por %p138, %p139
    %p141 = scmp.ne.s32.totalorder %s133, %s135
    %p142 = scmp.eq.s32.totalorder %s20, 1
    %p143 = por %p141, %p142
    %p144 = scmp.ne.s32.totalorder %s135, %s136
    %p145 = scmp.eq.s32.totalorder %s20, 0
    %p146 = por %p144, %p145
    %p147 = scmp.ne.s32.totalorder %s135, %s136
    %p148 = scmp.eq.s32.totalorder %s21, 1
    %p149 = por %p147, %p148
    %p151 = scmp.ne.s32.totalorder %s136, %s150
    %p152 = scmp.eq.s32.totalorder %s21, 0
    %p153 = por %p151, %p152
    %s155 = sadd.s32 %s154, 1
    %p158 = scmp.eq.s32.totalorder %s15, 1
    %p159 = scmp.ne.s32.totalorder %s154, %s156
    %p160 = scmp.eq.s32.totalorder %s15, 0
    %p161 = por %p159, %p160
    %p162 = scmp.ne.s32.totalorder %s154, %s156
    %p163 = scmp.eq.s32.totalorder %s20, 1
    %p164 = por %p162, %p163
    %p165 = scmp.ne.s32.totalorder %s156, %s157
    %p166 = scmp.eq.s32.totalorder %s20, 0
    %p167 = por %p165, %p166
    %p168 = scmp.ne.s32.totalorder %s156, %s157
    %p169 = scmp.eq.s32.totalorder %s21, 1
    %p170 = por %p168, %p169
    %p172 = scmp.ne.s32.totalorder %s157, %s171
    %p173 = scmp.eq.s32.totalorder %s21, 0
    %p174 = por %p172, %p173
    %s176 = sadd.s32 %s175, 1
    %p179 = scmp.eq.s32.totalorder %s15, 1
    %p180 = scmp.ne.s32.totalorder %s175, %s177
    %p181 = scmp.eq.s32.totalorder %s15, 0
    %p182 = por %p180, %p181
    %p183 = scmp.ne.s32.totalorder %s175, %s177
    %p184 = scmp.eq.s32.totalorder %s20, 1
    %p185 = por %p183, %p184
    %p186 = scmp.ne.s32.totalorder %s177, %s178
    %p187 = scmp.eq.s32.totalorder %s20, 0
    %p188 = por %p186, %p187
    %p189 = scmp.ne.s32.totalorder %s177, %s178
    %p190 = scmp.eq.s32.totalorder %s21, 1
    %p191 = por %p189, %p190
    %p193 = scmp.ne.s32.totalorder %s178, %s192
    %p194 = scmp.eq.s32.totalorder %s21, 0
    %p195 = por %p193, %p194
    %s197 = sadd.s32 %s196, 1
    %p200 = scmp.eq.s32.totalorder %s15, 1
    %p201 = scmp.ne.s32.totalorder %s196, %s198
    %p202 = scmp.eq.s32.totalorder %s15, 0
    %p203 = por %p201, %p202
    %p204 = scmp.ne.s32.totalorder %s196, %s198
    %p205 = scmp.eq.s32.totalorder %s20, 1
    %p206 = por %p204, %p205
    %p207 = scmp.ne.s32.totalorder %s198, %s199
    %p208 = scmp.eq.s32.totalorder %s20, 0
    %p209 = por %p207, %p208
    %p210 = scmp.ne.s32.totalorder %s198, %s199
    %p211 = scmp.eq.s32.totalorder %s21, 1
    %p212 = por %p210, %p211
    %p214 = scmp.ne.s32.totalorder %s199, %s213
    %p215 = scmp.eq.s32.totalorder %s21, 0
    %p216 = por %p214, %p215
    %s217 = ssub.s32 %s15, %s22
    %p218 = scmp.eq.s32.totalorder %s217, 0
    %s220 = sadd.s32 %s219, 1
    %s221 = scalar_select %p218, %s219, %s220
    %p224 = pneg %p218
    %p225 = scmp.eq.s32.totalorder %s15, 1
    %p226 = por %p224, %p225
    %p227 = scmp.ne.s32.totalorder %s219, %s222
    %p228 = scmp.eq.s32.totalorder %s15, 0
    %p229 = por %p227, %p228
    %p230 = scmp.ne.s32.totalorder %s219, %s222
    %p231 = scmp.eq.s32.totalorder %s20, 1
    %p232 = por %p230, %p231
    %p233 = scmp.ne.s32.totalorder %s222, %s223
    %p234 = scmp.eq.s32.totalorder %s20, 0
    %p235 = por %p233, %p234
    %p236 = scmp.ne.s32.totalorder %s222, %s223
    %p237 = scmp.eq.s32.totalorder %s21, 1
    %p238 = por %p236, %p237
    %p240 = scmp.ne.s32.totalorder %s223, %s239
    %p241 = scmp.eq.s32.totalorder %s21, 0
    %p242 = por %p240, %p241
    %p243 = scmp.le.s32.totalorder 1, %s15
    %p244 = scmp.lt.s32.totalorder %s15, 3
    %p245 = pnand %p243, %p244
    %p246 = pneg %p245
    // Predicated region
    $region9: #{noise_estimator_forward.1} parent=5 // pred_check
      _
    $region10: #{noise_estimator_forward.1} parent=5 // pred_check_branch
      %248 = sbr.rel (%p245) target = $region12
    $region11: #{noise_estimator_forward.1} parent=5 // pred_region
      %s249 = ssub.s32 %s15, 1
      // Predicated region
      $region13: #{noise_estimator_forward.1} parent=11 // pred_check
        %p250 = pneg %p62
      $region14: #{noise_estimator_forward.1} parent=11 // pred_check_branch
        %252 = sbr.rel (%p250) target = $region16
      $region15: #{noise_estimator_forward.1} parent=11 // pred_region
        _
      $region16: #{noise_estimator_forward.1} parent=11 // pred_fallthru
        _
      // Predicated region
      $region17: #{noise_estimator_forward.1} parent=11 // pred_check
        %p253 = pneg %p83
      $region18: #{noise_estimator_forward.1} parent=11 // pred_check_branch
        %255 = sbr.rel (%p253) target = $region20
      $region19: #{noise_estimator_forward.1} parent=11 // pred_region
        _
      $region20: #{noise_estimator_forward.1} parent=11 // pred_fallthru
        _
      // Predicated region
      $region21: #{noise_estimator_forward.1} parent=11 // pred_check
        %p256 = pneg %p104
      $region22: #{noise_estimator_forward.1} parent=11 // pred_check_branch
        %258 = sbr.rel (%p256) target = $region24
      $region23: #{noise_estimator_forward.1} parent=11 // pred_region
        _
      $region24: #{noise_estimator_forward.1} parent=11 // pred_fallthru
        _
      // Predicated region
      $region25: #{noise_estimator_forward.1} parent=11 // pred_check
        %p259 = pneg %p125
      $region26: #{noise_estimator_forward.1} parent=11 // pred_check_branch
        %261 = sbr.rel (%p259) target = $region28
      $region27: #{noise_estimator_forward.1} parent=11 // pred_region
        _
      $region28: #{noise_estimator_forward.1} parent=11 // pred_fallthru
        _
      // Predicated region
      $region29: #{noise_estimator_forward.1} parent=11 // pred_check
        %p262 = pneg %p146
      $region30: #{noise_estimator_forward.1} parent=11 // pred_check_branch
        %264 = sbr.rel (%p262) target = $region32
      $region31: #{noise_estimator_forward.1} parent=11 // pred_region
        _
      $region32: #{noise_estimator_forward.1} parent=11 // pred_fallthru
        _
      // Predicated region
      $region33: #{noise_estimator_forward.1} parent=11 // pred_check
        %p265 = pneg %p167
      $region34: #{noise_estimator_forward.1} parent=11 // pred_check_branch
        %267 = sbr.rel (%p265) target = $region36
      $region35: #{noise_estimator_forward.1} parent=11 // pred_region
        _
      $region36: #{noise_estimator_forward.1} parent=11 // pred_fallthru
        _
      // Predicated region
      $region37: #{noise_estimator_forward.1} parent=11 // pred_check
        %p268 = pneg %p188
      $region38: #{noise_estimator_forward.1} parent=11 // pred_check_branch
        %270 = sbr.rel (%p268) target = $region40
      $region39: #{noise_estimator_forward.1} parent=11 // pred_region
        _
      $region40: #{noise_estimator_forward.1} parent=11 // pred_fallthru
        _
      // Predicated region
      $region41: #{noise_estimator_forward.1} parent=11 // pred_check
        %p271 = pneg %p209
      $region42: #{noise_estimator_forward.1} parent=11 // pred_check_branch
        %273 = sbr.rel (%p271) target = $region44
      $region43: #{noise_estimator_forward.1} parent=11 // pred_region
        _
      $region44: #{noise_estimator_forward.1} parent=11 // pred_fallthru
        _
    $region12: #{noise_estimator_forward.1} parent=5 // pred_fallthru
      _
    %p274 = scmp.lt.s32.totalorder %s15, 2
    // Predicated region
    $region45: #{noise_estimator_forward.1} parent=5 // pred_check
      %p275 = pneg %p274
    $region46: #{noise_estimator_forward.1} parent=5 // pred_check_branch
      %277 = sbr.rel (%p275) target = $region48
    $region47: #{noise_estimator_forward.1} parent=5 // pred_region
      // Predicated region
      $region49: #{noise_estimator_forward.1} parent=47 // pred_check
        %p278 = pneg %p35
      $region50: #{noise_estimator_forward.1} parent=47 // pred_check_branch
        %280 = sbr.rel (%p278) target = $region52
      $region51: #{noise_estimator_forward.1} parent=47 // pred_region
        %p281 = scmp.lt.s32.totalorder %s15, 1
        %s282 = scalar_select %p281, %s15, 1
        %s283 = smul.addr %s282, 2
        %s284 = scalar_lea.vmem %s0, %s283
      $region52: #{noise_estimator_forward.1} parent=47 // pred_fallthru
        _
    $region48: #{noise_estimator_forward.1} parent=5 // pred_fallthru
      _
    %p285 = scmp.le.s32.totalorder 1, %s15
    %p286 = scmp.lt.s32.totalorder %s15, 3
    %p287 = pnand %p285, %p286
    %p288 = pneg %p287
    // Predicated region
    $region53: #{noise_estimator_forward.1} parent=5 // pred_check
      _
    $region54: #{noise_estimator_forward.1} parent=5 // pred_check_branch
      %290 = sbr.rel (%p287) target = $region56
    $region55: #{noise_estimator_forward.1} parent=5 // pred_region
      %s291 = ssub.s32 %s15, 1
      %p292 = scmp.lt.s32.totalorder %s20, 1
      %s293 = scalar_select %p292, %s20, 1
      %s294 = smul.addr %s293, 2
      %s295 = scalar_lea.vmem %s0, %s294
      %p296 = pneg %p41
      %p297 = pneg %p38
      %p298 = pneg %p62
      %p299 = pneg %p59
      %p300 = pneg %p83
      %p301 = pneg %p80
      %p302 = pneg %p104
      %p303 = pneg %p101
      %p304 = pneg %p125
      %p305 = pneg %p122
      %p306 = pneg %p146
      %p307 = pneg %p143
      %p308 = pneg %p167
      %p309 = pneg %p164
      %p310 = pneg %p188
      %p311 = pneg %p185
      %p312 = pneg %p209
      %p313 = pneg %p206
      %p314 = pneg %p235
      %p315 = pneg %p232
      %p316 = scmp.lt.s32.totalorder %s20, 1
      %s317 = scalar_select %p316, %s20, 1
      %s318 = smul.addr %s317, 2
      %s319 = smul.addr %s318, 2
      %s320 = scalar_lea.vmem %s9, %s319
      %p321 = scmp.lt.s32.totalorder %s20, 1
      %s322 = scalar_select %p321, %s20, 1
      %s323 = smul.addr %s322, 2
      %s324 = scalar_lea.vmem %s0, %s323
      %p325 = scmp.lt.s32.totalorder %s20, 1
      %s326 = scalar_select %p325, %s20, 1
      %s327 = smul.addr %s326, 2
      %s328 = smul.addr %s327, 2
      %s329 = scalar_lea.vmem %s9, %s328
      %vm333 = vcmask 1044352
      %334 = vst.msk [vmem:[#allocation2] sm:$0xf] %vm333, 0
      %335 = vst.msk [vmem:[#allocation2 + $0x1c] sm:$0xf] %vm333, 0
      %336 = vst.msk [vmem:[#allocation2 + $0x38] sm:$0xf] %vm333, 0
      %337 = vst.msk [vmem:[#allocation2 + $0x54] sm:$0xf] %vm333, 0
      %338 = vst.msk [vmem:[#allocation2 + $0x70] sm:$0xf] %vm333, 0
      %339 = vst.msk [vmem:[#allocation2 + $0x8c] sm:$0xf] %vm333, 0
      %340 = vst.msk [vmem:[#allocation2 + $0xa8] sm:$0xf] %vm333, 0
      %341 = vst.msk [vmem:[#allocation2 + $0xc4] sm:$0xf] %vm333, 0
      %342 = vst.msk [vmem:[#allocation2 + $0xe0] sm:$0xf] %vm333, 0
      %343 = vst.msk [vmem:[#allocation2 + $0xfc] sm:$0xf] %vm333, 0
      %344 = vst.msk [vmem:[#allocation2 + $0x118] sm:$0xf] %vm333, 0
      %345 = vst.msk [vmem:[#allocation2 + $0x134] sm:$0xf] %vm333, 0
      %346 = vst.msk [vmem:[#allocation2 + $0x150] sm:$0xf] %vm333, 0
      %347 = vst.msk [vmem:[#allocation2 + $0x16c] sm:$0xf] %vm333, 0
      %348 = vst.msk [vmem:[#allocation2 + $0x188] sm:$0xf] %vm333, 0
      %349 = vst.msk [vmem:[#allocation2 + $0x1a4] sm:$0xf] %vm333, 0
      %350 = vst.msk [vmem:[#allocation2 + $0x1c0] sm:$0xf] %vm333, 0
      %351 = vst.msk [vmem:[#allocation2 + $0x1dc] sm:$0xf] %vm333, 0
      %352 = vst.msk [vmem:[#allocation2 + $0x1f8] sm:$0xf] %vm333, 0
      %353 = vst.msk [vmem:[#allocation2 + $0x214] sm:$0xf] %vm333, 0
      %354 = vst.msk [vmem:[#allocation2 + $0x230] sm:$0xf] %vm333, 0
      %355 = vst.msk [vmem:[#allocation2 + $0x24c] sm:$0xf] %vm333, 0
      %356 = vst.msk [vmem:[#allocation2 + $0x268] sm:$0xf] %vm333, 0
      %357 = vst.msk [vmem:[#allocation2 + $0x284] sm:$0xf] %vm333, 0
      %vm358 = vcmask 125952
      %359 = vst.msk [vmem:[#allocation2 + $0x18] sm:$0xf] %vm358, 0
      %360 = vst.msk [vmem:[#allocation2 + $0x34] sm:$0xf] %vm358, 0
      %361 = vst.msk [vmem:[#allocation2 + $0x50] sm:$0xf] %vm358, 0
      %362 = vst.msk [vmem:[#allocation2 + $0x6c] sm:$0xf] %vm358, 0
      %363 = vst.msk [vmem:[#allocation2 + $0x88] sm:$0xf] %vm358, 0
      %364 = vst.msk [vmem:[#allocation2 + $0xa4] sm:$0xf] %vm358, 0
      %365 = vst.msk [vmem:[#allocation2 + $0xc0] sm:$0xf] %vm358, 0
      %366 = vst.msk [vmem:[#allocation2 + $0xdc] sm:$0xf] %vm358, 0
      %367 = vst.msk [vmem:[#allocation2 + $0xf8] sm:$0xf] %vm358, 0
      %368 = vst.msk [vmem:[#allocation2 + $0x114] sm:$0xf] %vm358, 0
      %369 = vst.msk [vmem:[#allocation2 + $0x130] sm:$0xf] %vm358, 0
      %370 = vst.msk [vmem:[#allocation2 + $0x14c] sm:$0xf] %vm358, 0
      %371 = vst.msk [vmem:[#allocation2 + $0x168] sm:$0xf] %vm358, 0
      %372 = vst.msk [vmem:[#allocation2 + $0x184] sm:$0xf] %vm358, 0
      %373 = vst.msk [vmem:[#allocation2 + $0x1a0] sm:$0xf] %vm358, 0
      %374 = vst.msk [vmem:[#allocation2 + $0x1bc] sm:$0xf] %vm358, 0
      %375 = vst.msk [vmem:[#allocation2 + $0x1d8] sm:$0xf] %vm358, 0
      %376 = vst.msk [vmem:[#allocation2 + $0x1f4] sm:$0xf] %vm358, 0
      %377 = vst.msk [vmem:[#allocation2 + $0x210] sm:$0xf] %vm358, 0
      %378 = vst.msk [vmem:[#allocation2 + $0x22c] sm:$0xf] %vm358, 0
      %379 = vst.msk [vmem:[#allocation2 + $0x248] sm:$0xf] %vm358, 0
      %380 = vst.msk [vmem:[#allocation2 + $0x264] sm:$0xf] %vm358, 0
      %381 = vst.msk [vmem:[#allocation2 + $0x280] sm:$0xf] %vm358, 0
      %382 = vst.msk [vmem:[#allocation2 + $0x29c] sm:$0xf] %vm358, 0
      %383 = vst [vmem:[#allocation2 + $0xc] sm:$0xf] 0
      %384 = vst [vmem:[#allocation2 + $0x28] sm:$0xf] 0
      %385 = vst [vmem:[#allocation2 + $0x44] sm:$0xf] 0
      %386 = vst [vmem:[#allocation2 + $0x60] sm:$0xf] 0
      %387 = vst [vmem:[#allocation2 + $0x7c] sm:$0xf] 0
      %388 = vst [vmem:[#allocation2 + $0x98] sm:$0xf] 0
      %389 = vst [vmem:[#allocation2 + $0xb4] sm:$0xf] 0
      %390 = vst [vmem:[#allocation2 + $0xd0] sm:$0xf] 0
      %391 = vst [vmem:[#allocation2 + $0xec] sm:$0xf] 0
      %392 = vst [vmem:[#allocation2 + $0x108] sm:$0xf] 0
      %393 = vst [vmem:[#allocation2 + $0x124] sm:$0xf] 0
      %394 = vst [vmem:[#allocation2 + $0x140] sm:$0xf] 0
      %395 = vst [vmem:[#allocation2 + $0x15c] sm:$0xf] 0
      %396 = vst [vmem:[#allocation2 + $0x178] sm:$0xf] 0
      %397 = vst [vmem:[#allocation2 + $0x194] sm:$0xf] 0
      %398 = vst [vmem:[#allocation2 + $0x1b0] sm:$0xf] 0
      %399 = vst [vmem:[#allocation2 + $0x1cc] sm:$0xf] 0
      %400 = vst [vmem:[#allocation2 + $0x1e8] sm:$0xf] 0
      %401 = vst [vmem:[#allocation2 + $0x204] sm:$0xf] 0
      %402 = vst [vmem:[#allocation2 + $0x220] sm:$0xf] 0
      %403 = vst [vmem:[#allocation2 + $0x23c] sm:$0xf] 0
      %404 = vst [vmem:[#allocation2 + $0x258] sm:$0xf] 0
      %405 = vst [vmem:[#allocation2 + $0x274] sm:$0xf] 0
      %406 = vst [vmem:[#allocation2 + $0x290] sm:$0xf] 0
      %v407 = vlaneseq
      %v408 = vand.u32 %v407, 127
      %v409 = vadd.s32 %v408, 128
      %v410 = vadd.s32 %v408, 256
      %v411 = vadd.s32 %v408, 384
      %v412 = vadd.s32 %v408, 512
      %vm413 = vcmp.lt.s32.totalorder %v408, 0
      %v414 = vsub.s32 0, %v408
      %v415 = vsel %vm413, %v414, %v408
      %v416 = vshrl.u32 %v415, 4
      %v417 = vand.u32 %v415, 15
      %v418 = vsub.s32 0, %v417
      %v419 = vsel %vm413, %v418, %v417
      %vm420 = vcmp.lt.s32.totalorder %v409, 0
      %v421 = vsub.s32 0, %v409
      %v422 = vsel %vm420, %v421, %v409
      %v423 = vshrl.u32 %v422, 4
      %v424 = vand.u32 %v422, 15
      %v425 = vsub.s32 0, %v424
      %v426 = vsel %vm420, %v425, %v424
      %vm427 = vcmp.lt.s32.totalorder %v410, 0
      %v428 = vsub.s32 0, %v410
      %v429 = vsel %vm427, %v428, %v410
      %v430 = vshrl.u32 %v429, 4
      %v431 = vand.u32 %v429, 15
      %v432 = vsub.s32 0, %v431
      %v433 = vsel %vm427, %v432, %v431
      %vm434 = vcmp.lt.s32.totalorder %v411, 0
      %v435 = vsub.s32 0, %v411
      %v436 = vsel %vm434, %v435, %v411
      %v437 = vshrl.u32 %v436, 4
      %v438 = vand.u32 %v436, 15
      %v439 = vsub.s32 0, %v438
      %v440 = vsel %vm434, %v439, %v438
      %vm441 = vcmp.lt.s32.totalorder %v412, 0
      %v442 = vsub.s32 0, %v412
      %v443 = vsel %vm441, %v442, %v412
      %v444 = vshrl.u32 %v443, 4
      %v445 = vand.u32 %v443, 15
      %v446 = vsub.s32 0, %v445
      %v447 = vsel %vm441, %v446, %v445
      %vm448 = vcmp.ne.s32.totalorder %v419, 0
      %vm449 = vcmp.ne.s32.totalorder %v426, 0
      %vm450 = vcmp.ne.s32.totalorder %v433, 0
      %vm451 = vcmp.ne.s32.totalorder %v440, 0
      %vm452 = vcmp.ne.s32.totalorder %v447, 0
      %vm453 = vcmp.lt.s32.totalorder %v419, 0
      %vm454 = vcmp.lt.s32.totalorder %v426, 0
      %vm455 = vcmp.lt.s32.totalorder %v433, 0
      %vm456 = vcmp.lt.s32.totalorder %v440, 0
      %vm457 = vcmp.lt.s32.totalorder %v447, 0
      %vm458 = vmand %vm453, %vm448
      %vm459 = vmand %vm454, %vm449
      %vm460 = vmand %vm455, %vm450
      %vm461 = vmand %vm456, %vm451
      %vm462 = vmand %vm457, %vm452
      %v463 = vadd.s32 %v419, 16
      %v464 = vadd.s32 %v426, 16
      %v465 = vadd.s32 %v433, 16
      %v466 = vadd.s32 %v440, 16
      %v467 = vadd.s32 %v447, 16
      %v468 = vsel %vm458, %v463, %v419
      %v469 = vsel %vm459, %v464, %v426
      %v470 = vsel %vm460, %v465, %v433
      %v471 = vsel %vm461, %v466, %v440
      %v472 = vsel %vm462, %v467, %v447
      %vm473 = vcmp.ge.s32.totalorder %v468, 1
      %vm474 = vcmp.ge.s32.totalorder %v469, 1
      %vm475 = vcmp.ge.s32.totalorder %v470, 1
      %vm476 = vcmp.ge.s32.totalorder %v471, 1
      %vm477 = vcmp.ge.s32.totalorder %v472, 1
      %vm478 = vcmp.le.s32.totalorder %v468, 14
      %vm479 = vcmp.le.s32.totalorder %v469, 14
      %vm480 = vcmp.le.s32.totalorder %v470, 14
      %vm481 = vcmp.le.s32.totalorder %v471, 14
      %vm482 = vcmp.le.s32.totalorder %v472, 14
      %v483 = vld [vmem:[%s324] sm:$0x3]
      %485 = vst [vmem:[#allocation1] ss:$4 sm:$0xff] %v483
      %v486 = vld [vmem:[#allocation1] sm:$0xff]
      %v487 = vshll.u32 %v486, 16
      %vm490 = vcmask 1040384
      %vm491 = vsmask.f32 7938
      %vm492 = vmand %vm490, %vm491
      %vm493 = vcmask 1044484
      %vm494 = vsmask.f32 7954
      %vm495 = vmand %vm493, %vm494
      %vm496 = vmor %vm495, %vm492
      %v497 = vld [vmem:[#allocation2 + $0x4] sm:$0x11]
      %v498 = vsel %vm496, %v487, %v497
      %499 = vst [vmem:[#allocation2 + $0x4] sm:$0x11] %v498
      %500 = vst [vmem:[#allocation1] ss:$4 sm:$0xff] %v483
      %v501 = vld [vmem:[#allocation1] sm:$0xff]
      %v503 = vld [vmem:[#allocation2 + $0x10] sm:$0x11]
      %v504 = vsel %vm496, %v501, %v503
      %505 = vst [vmem:[#allocation2 + $0x10] sm:$0x11] %v504
      %v506 = vld [vmem:[#allocation2] sm:$0x11]
      %v507 = vld [vmem:[#allocation2 + $0x8] sm:$0x11]
      %v508 = vld [vmem:[#allocation2 + $0x10] sm:$0x11]
      %v509 = vld [vmem:[#allocation2 + $0x4] sm:$0x11]
      %v510 = vld [vmem:[#allocation2 + $0xc] sm:$0x11]
      %v511 = vld [vmem:[#allocation2 + $0x14] sm:$0x11]
      %vm512 = vmpackc.low %vm474, %vm473
      %vm513 = vmpackc.low %vm476, %vm475
      %vm514 = vmpackc.low %vm477, %vm477
      %v515 = vsel %vm512, 65537, 0
      %v516 = vsel %vm513, 65537, 0
      %v517 = vsel %vm514, 65537, 0
      %518 = vrot.lane.b32.xlu0 %v515, 127
      %v519 = vpop.permute.xlu0 %518
      %520 = vrot.lane.b32.xlu0 %v516, 127
      %v521 = vpop.permute.xlu0 %520
      %522 = vrot.lane.b32.xlu0 %v517, 127
      %v523 = vpop.permute.xlu0 %522
      %v524 = vrot.slane %v519, 4
      %v525 = vrot.slane %v521, 4
      %v526 = vrot.slane %v523, 4
      %vm527 = vcmask 1039360
      %v528 = vsel %vm527, %v524, %v519
      %vm529 = vcmask 1043456
      %v530 = vsel %vm529, %v524, %v525
      %v531 = vsel %vm527, %v530, %v521
      %v532 = vsel %vm529, %v525, %v526
      %v533 = vsel %vm527, %v532, %v523
      %v534 = vunpack.c.l.b16 %v528
      %v535 = vunpack.c.h.b16 %v528
      %v536 = vunpack.c.l.b16 0
      %v537 = vunpack.c.h.b16 0
      %vm538 = vcmp.ne.s32.totalorder %v534, %v536
      %vm539 = vcmp.ne.s32.totalorder %v535, %v537
      %vm540 = vmpackc.low %vm539, %vm538
      %v541 = vunpack.c.l.b16 %v531
      %v542 = vunpack.c.h.b16 %v531
      %v543 = vunpack.c.l.b16 0
      %v544 = vunpack.c.h.b16 0
      %vm545 = vcmp.ne.s32.totalorder %v541, %v543
      %vm546 = vcmp.ne.s32.totalorder %v542, %v544
      %vm547 = vmpackc.low %vm546, %vm545
      %v548 = vunpack.c.l.b16 %v533
      %v549 = vunpack.c.h.b16 %v533
      %v550 = vunpack.c.l.b16 0
      %v551 = vunpack.c.h.b16 0
      %vm552 = vcmp.ne.s32.totalorder %v548, %v550
      %vm553 = vcmp.ne.s32.totalorder %v549, %v551
      %vm554 = vmpackc.low %vm553, %vm552
      %v555 = vsel %vm540, %v506, 0
      %v556 = vsel %vm547, %v507, 0
      %v557 = vsel %vm554, %v508, 0
      %v559 = vshrl.u32 %v555, 16
      %v561 = vrot.slane %v559, 4
      %v562 = vrot.slane %v561, 4
      %v564 = vshrl.u32 %v556, 16
      %v566 = vrot.slane %v564, 4
      %v567 = vrot.slane %v566, 4
      %v569 = vshrl.u32 %v557, 16
      %v571 = vrot.slane %v569, 4
      %v572 = vrot.slane %v571, 4
      %573 = vrot.lane.b32.xlu0 %v562, 1
      %v574 = vpop.permute.xlu0 %573
      %575 = vrot.lane.b32.xlu0 %v567, 1
      %v576 = vpop.permute.xlu0 %575
      %577 = vrot.lane.b32.xlu0 %v572, 1
      %v578 = vpop.permute.xlu0 %577
      %v579 = vrot.slane %v574, 4
      %v580 = vrot.slane %v576, 4
      %v581 = vrot.slane %v578, 4
      %v582 = vsel %vm529, %v579, %v580
      %vm583 = vcmask 7168
      %v584 = vsel %vm583, %v574, %v582
      %v585 = vsel %vm529, %v580, %v581
      %v586 = vsel %vm583, %v576, %v585
      %v587 = vsel %vm583, %v578, %v581
      %vm591 = vsmask.f32 256
      %vm592 = vmand %vm490, %vm591
      %vm593 = vsmask.f32 4352
      %vm594 = vmand %vm493, %vm593
      %vm595 = vmor %vm594, %vm592
      %v596 = vsel %vm595, %v584, %v509
      %597 = vst [vmem:[#allocation2 + $0x4] sm:$0x11] %v596
      %v598 = vld [vmem:[#allocation2 + $0xc] sm:$0x11]
      %v599 = vsel %vm595, %v586, %v598
      %600 = vst [vmem:[#allocation2 + $0xc] sm:$0x11] %v599
      %v601 = vld [vmem:[#allocation2 + $0x14] sm:$0x1]
      %v602 = vsel %vm592, %v587, %v601
      %603 = vst [vmem:[#allocation2 + $0x14] sm:$0x1] %v602
      %vm604 = vmpackc.low %vm479, %vm478
      %vm605 = vmpackc.low %vm481, %vm480
      %vm606 = vmpackc.low %vm482, %vm482
      %v607 = vsel %vm604, 65537, 0
      %v608 = vsel %vm605, 65537, 0
      %v609 = vsel %vm606, 65537, 0
      %610 = vrot.lane.b32.xlu0 %v607, 1
      %v611 = vpop.permute.xlu0 %610
      %612 = vrot.lane.b32.xlu0 %v608, 1
      %v613 = vpop.permute.xlu0 %612
      %614 = vrot.lane.b32.xlu0 %v609, 1
      %v615 = vpop.permute.xlu0 %614
      %v616 = vrot.slane %v611, 4
      %v617 = vrot.slane %v613, 4
      %v618 = vrot.slane %v615, 4
      %v619 = vsel %vm583, %v616, %v611
      %v620 = vsel %vm529, %v616, %v617
      %v621 = vsel %vm583, %v620, %v613
      %v622 = vsel %vm529, %v617, %v618
      %v623 = vsel %vm583, %v622, %v615
      %v624 = vunpack.c.l.b16 %v619
      %v625 = vunpack.c.h.b16 %v619
      %v626 = vunpack.c.l.b16 0
      %v627 = vunpack.c.h.b16 0
      %vm628 = vcmp.ne.s32.totalorder %v624, %v626
      %vm629 = vcmp.ne.s32.totalorder %v625, %v627
      %vm630 = vmpackc.low %vm629, %vm628
      %v631 = vunpack.c.l.b16 %v621
      %v632 = vunpack.c.h.b16 %v621
      %v633 = vunpack.c.l.b16 0
      %v634 = vunpack.c.h.b16 0
      %vm635 = vcmp.ne.s32.totalorder %v631, %v633
      %vm636 = vcmp.ne.s32.totalorder %v632, %v634
      %vm637 = vmpackc.low %vm636, %vm635
      %v638 = vunpack.c.l.b16 %v623
      %v639 = vunpack.c.h.b16 %v623
      %v640 = vunpack.c.l.b16 0
      %v641 = vunpack.c.h.b16 0
      %vm642 = vcmp.ne.s32.totalorder %v638, %v640
      %vm643 = vcmp.ne.s32.totalorder %v639, %v641
      %vm644 = vmpackc.low %vm643, %vm642
      %v645 = vsel %vm630, %v509, 0
      %v646 = vsel %vm637, %v510, 0
      %v647 = vsel %vm644, %v511, 0
      %v649 = vshrl.u32 %v645, 16
      %v651 = vrot.slane %v649, 7
      %v653 = vshrl.u32 %v646, 16
      %v655 = vrot.slane %v653, 7
      %v657 = vshrl.u32 %v647, 16
      %v659 = vrot.slane %v657, 7
      %660 = vrot.lane.b32.xlu0 %v651, 127
      %v661 = vpop.permute.xlu0 %660
      %662 = vrot.lane.b32.xlu0 %v655, 127
      %v663 = vpop.permute.xlu0 %662
      %664 = vrot.lane.b32.xlu0 %v659, 127
      %v665 = vpop.permute.xlu0 %664
      %v666 = vrot.slane %v661, 4
      %v667 = vrot.slane %v663, 4
      %v668 = vrot.slane %v665, 4
      %v669 = vsel %vm529, %v666, %v667
      %v670 = vsel %vm527, %v661, %v669
      %v671 = vsel %vm529, %v667, %v668
      %v672 = vsel %vm527, %v663, %v671
      %v673 = vsel %vm527, %v665, %v668
      %vm677 = vcmask 1041409
      %vm678 = vsmask.f32 1280
      %vm679 = vmand %vm677, %vm678
      %vm680 = vcmask 1045509
      %vm681 = vsmask.f32 5376
      %vm682 = vmand %vm680, %vm681
      %vm683 = vmor %vm682, %vm679
      %v684 = vld [vmem:[#allocation2 + $0x4] sm:$0x22]
      %v685 = vsel %vm683, %v670, %v684
      %686 = vst [vmem:[#allocation2 + $0x4] sm:$0x22] %v685
      %v687 = vld [vmem:[#allocation2 + $0xc] sm:$0x22]
      %v688 = vsel %vm683, %v672, %v687
      %689 = vst [vmem:[#allocation2 + $0xc] sm:$0x22] %v688
      %v690 = vld [vmem:[#allocation2 + $0x14] sm:$0x2]
      %v691 = vsel %vm679, %v673, %v690
      %692 = vst [vmem:[#allocation2 + $0x14] sm:$0x2] %v691
      %v693 = vld [vmem:[#allocation2] sm:$0x33]
      %v694 = vld [vmem:[#allocation2 + $0x8] sm:$0x33]
      %v695 = vld [vmem:[#allocation2 + $0x10] sm:$0x33]
      %v696 = vld [vmem:[%s1] sm:$0xf]
      %v697 = vld [vmem:[%s1 + $0x4] sm:$0xf]
      %v698 = vld [vmem:[%s1 + $0x8] sm:$0xf]
      %v699 = vld [vmem:[%s1 + $0xc] sm:$0xf]
      %v700 = vld [vmem:[#allocation2 + $0x4] sm:$0x33]
      %v701 = vld [vmem:[#allocation2 + $0xc] sm:$0x33]
      %v702 = vld [vmem:[#allocation2 + $0x14] sm:$0x3]
      %s703 = scalar_lea.vmem %s1, 16
      %v704 = vld [vmem:[%s703] sm:$0xf]
      %v705 = vld [vmem:[%s703 + $0x4] sm:$0xf]
      %v706 = vld [vmem:[%s703 + $0x8] sm:$0xf]
      %v707 = vld [vmem:[%s703 + $0xc] sm:$0xf]
      %v712 = vunpack.c.l.b16 %v704
      %v713 = vunpack.c.l.b16 %v705
      %v714 = vunpack.c.l.b16 %v706
      %v715 = vunpack.c.l.b16 %v707
      %v716 = vpack.c.b16 %v713, %v712
      %v717 = vpack.c.b16 %v715, %v714
      %v721 = vunpack.c.l.b16 %v700
      %v722 = vunpack.c.h.b16 %v700
      %v723 = vunpack.c.h.b16 %v701
      %v724 = vunpack.c.l.b16 %v702
      %v725 = vpack.c.b16 %v721, %v721
      %v726 = vpack.c.b16 %v722, %v722
      %v727 = vpack.c.b16 %v723, %v723
      %v728 = vpack.c.b16 %v724, %v724
      %vm729 = vcmask 23552
      %v731 = vsel %vm729, %v716, 0
      %v734 = vsel %vm729, %v717, 0
      %vm736 = vcmask 1040384
      %vm737 = vcmask 1041408
      %v738 = vsel %vm736, 4294967295, 65535
      %v739 = vsel %vm737, %v738, 0
      %v741 = vand.u32 %v725, %v739
      %v744 = vand.u32 %v726, %v739
      %v747 = vand.u32 %v727, %v739
      %v750 = vand.u32 %v728, %v739
      %752 = vmatpush.bf16.msra.mxu0 0
      %753 = vmatpush.bf16.msra.mxu0 0
      %754 = vmatpush.bf16.msra.mxu0 0
      %755 = vmatpush.bf16.msra.mxu0 0
      %756 = vmatpush.bf16.msra.mxu0 0
      %757 = vmatpush.bf16.msra.mxu0 0
      %758 = vmatpush.bf16.msra.mxu0 0
      %759 = vmatpush.bf16.msra.mxu0 %v741
      %760 = vmatmul.bf16.gmra.mxu0 %v731
      %v761 = vpop.f32.mrf.mxu0
      %v762 = vadd.f32 0.0, %v761
      %v763 = vpop.f32.mrf.mxu0
      %v764 = vadd.f32 0.0, %v763
      %765 = vmatmul.bf16.gmra.mxu0 %v734
      %v766 = vpop.f32.mrf.mxu0
      %v767 = vadd.f32 0.0, %v766
      %v768 = vpop.f32.mrf.mxu0
      %v769 = vadd.f32 0.0, %v768
      %770 = vdwg.mxu0
      %771 = vmatpush.bf16.msra.mxu0 0
      %772 = vmatpush.bf16.msra.mxu0 0
      %773 = vmatpush.bf16.msra.mxu0 0
      %774 = vmatpush.bf16.msra.mxu0 0
      %775 = vmatpush.bf16.msra.mxu0 0
      %776 = vmatpush.bf16.msra.mxu0 0
      %777 = vmatpush.bf16.msra.mxu0 0
      %778 = vmatpush.bf16.msra.mxu0 %v744
      %779 = vmatmul.bf16.gmra.mxu0 %v731
      %v780 = vpop.f32.mrf.mxu0
      %v781 = vadd.f32 0.0, %v780
      %v782 = vpop.f32.mrf.mxu0
      %v783 = vadd.f32 0.0, %v782
      %784 = vmatmul.bf16.gmra.mxu0 %v734
      %v785 = vpop.f32.mrf.mxu0
      %v786 = vadd.f32 0.0, %v785
      %v787 = vpop.f32.mrf.mxu0
      %v788 = vadd.f32 0.0, %v787
      %789 = vdwg.mxu0
      %790 = vmatpush.bf16.msra.mxu0 0
      %791 = vmatpush.bf16.msra.mxu0 0
      %792 = vmatpush.bf16.msra.mxu0 0
      %793 = vmatpush.bf16.msra.mxu0 0
      %794 = vmatpush.bf16.msra.mxu0 0
      %795 = vmatpush.bf16.msra.mxu0 0
      %796 = vmatpush.bf16.msra.mxu0 0
      %797 = vmatpush.bf16.msra.mxu0 %v747
      %798 = vmatmul.bf16.gmra.mxu0 %v731
      %v799 = vpop.f32.mrf.mxu0
      %v800 = vadd.f32 0.0, %v799
      %v801 = vpop.f32.mrf.mxu0
      %v802 = vadd.f32 0.0, %v801
      %803 = vmatmul.bf16.gmra.mxu0 %v734
      %v804 = vpop.f32.mrf.mxu0
      %v805 = vadd.f32 0.0, %v804
      %v806 = vpop.f32.mrf.mxu0
      %v807 = vadd.f32 0.0, %v806
      %808 = vdwg.mxu0
      %809 = vmatpush.bf16.msra.mxu0 0
      %810 = vmatpush.bf16.msra.mxu0 0
      %811 = vmatpush.bf16.msra.mxu0 0
      %812 = vmatpush.bf16.msra.mxu0 0
      %813 = vmatpush.bf16.msra.mxu0 0
      %814 = vmatpush.bf16.msra.mxu0 0
      %815 = vmatpush.bf16.msra.mxu0 0
      %816 = vmatpush.bf16.msra.mxu0 %v750
      %817 = vmatmul.bf16.gmra.mxu0 %v731
      %v818 = vpop.f32.mrf.mxu0
      %v819 = vadd.f32 0.0, %v818
      %v820 = vpop.f32.mrf.mxu0
      %v821 = vadd.f32 0.0, %v820
      %822 = vmatmul.bf16.gmra.mxu0 %v734
      %v823 = vpop.f32.mrf.mxu0
      %v824 = vadd.f32 0.0, %v823
      %v825 = vpop.f32.mrf.mxu0
      %v826 = vadd.f32 0.0, %v825
      %827 = vdwg.mxu0
      %v832 = vunpack.c.l.b16 %v696
      %v833 = vunpack.c.l.b16 %v697
      %v834 = vunpack.c.l.b16 %v698
      %v835 = vunpack.c.l.b16 %v699
      %v836 = vpack.c.b16 %v833, %v832
      %v837 = vpack.c.b16 %v835, %v834
      %v841 = vunpack.c.l.b16 %v693
      %v842 = vunpack.c.h.b16 %v693
      %v843 = vunpack.c.l.b16 %v694
      %v844 = vunpack.c.h.b16 %v694
      %v845 = vunpack.c.l.b16 %v695
      %v846 = vunpack.c.h.b16 %v695
      %v847 = vpack.c.b16 %v841, %v841
      %v848 = vpack.c.b16 %v842, %v842
      %v849 = vpack.c.b16 %v843, %v843
      %v850 = vpack.c.b16 %v844, %v844
      %v851 = vpack.c.b16 %v845, %v845
      %v852 = vpack.c.b16 %v846, %v846
      %853 = vrot.lane.b32.xlu0 %v847, 16
      %v854 = vpop.permute.xlu0 %853
      %855 = vrot.lane.b32.xlu0 %v848, 16
      %v856 = vpop.permute.xlu0 %855
      %857 = vrot.lane.b32.xlu0 %v849, 16
      %v858 = vpop.permute.xlu0 %857
      %859 = vrot.lane.b32.xlu0 %v850, 16
      %v860 = vpop.permute.xlu0 %859
      %861 = vrot.lane.b32.xlu0 %v851, 16
      %v862 = vpop.permute.xlu0 %861
      %863 = vrot.lane.b32.xlu0 %v852, 16
      %v864 = vpop.permute.xlu0 %863
      %vm865 = vcmask 130048
      %v866 = vsel %vm865, %v854, %v856
      %v867 = vsel %vm865, %v856, %v858
      %v868 = vsel %vm865, %v860, %v862
      %v869 = vsel %vm865, %v862, %v864
      %v871 = vsel %vm729, %v836, 0
      %v874 = vsel %vm729, %v837, 0
      %v877 = vand.u32 %v866, %v739
      %v880 = vand.u32 %v867, %v739
      %v883 = vand.u32 %v868, %v739
      %v886 = vand.u32 %v869, %v739
      %888 = vmatpush.bf16.msra.mxu0 0
      %889 = vmatpush.bf16.msra.mxu0 0
      %890 = vmatpush.bf16.msra.mxu0 0
      %891 = vmatpush.bf16.msra.mxu0 0
      %892 = vmatpush.bf16.msra.mxu0 0
      %893 = vmatpush.bf16.msra.mxu0 0
      %894 = vmatpush.bf16.msra.mxu0 0
      %895 = vmatpush.bf16.msra.mxu0 %v877
      %896 = vmatmul.bf16.gmra.mxu0 %v871
      %v897 = vpop.f32.mrf.mxu0
      %v898 = vadd.f32 %v762, %v897
      %v899 = vpop.f32.mrf.mxu0
      %v900 = vadd.f32 %v764, %v899
      %901 = vmatmul.bf16.gmra.mxu0 %v874
      %v902 = vpop.f32.mrf.mxu0
      %v903 = vadd.f32 %v767, %v902
      %v904 = vpop.f32.mrf.mxu0
      %v905 = vadd.f32 %v769, %v904
      %906 = vdwg.mxu0
      %907 = vmatpush.bf16.msra.mxu0 0
      %908 = vmatpush.bf16.msra.mxu0 0
      %909 = vmatpush.bf16.msra.mxu0 0
      %910 = vmatpush.bf16.msra.mxu0 0
      %911 = vmatpush.bf16.msra.mxu0 0
      %912 = vmatpush.bf16.msra.mxu0 0
      %913 = vmatpush.bf16.msra.mxu0 0
      %914 = vmatpush.bf16.msra.mxu0 %v880
      %915 = vmatmul.bf16.gmra.mxu0 %v871
      %v916 = vpop.f32.mrf.mxu0
      %v917 = vadd.f32 %v781, %v916
      %v918 = vpop.f32.mrf.mxu0
      %v919 = vadd.f32 %v783, %v918
      %920 = vmatmul.bf16.gmra.mxu0 %v874
      %v921 = vpop.f32.mrf.mxu0
      %v922 = vadd.f32 %v786, %v921
      %v923 = vpop.f32.mrf.mxu0
      %v924 = vadd.f32 %v788, %v923
      %925 = vdwg.mxu0
      %926 = vmatpush.bf16.msra.mxu0 0
      %927 = vmatpush.bf16.msra.mxu0 0
      %928 = vmatpush.bf16.msra.mxu0 0
      %929 = vmatpush.bf16.msra.mxu0 0
      %930 = vmatpush.bf16.msra.mxu0 0
      %931 = vmatpush.bf16.msra.mxu0 0
      %932 = vmatpush.bf16.msra.mxu0 0
      %933 = vmatpush.bf16.msra.mxu0 %v883
      %934 = vmatmul.bf16.gmra.mxu0 %v871
      %v935 = vpop.f32.mrf.mxu0
      %v936 = vadd.f32 %v800, %v935
      %v937 = vpop.f32.mrf.mxu0
      %v938 = vadd.f32 %v802, %v937
      %939 = vmatmul.bf16.gmra.mxu0 %v874
      %v940 = vpop.f32.mrf.mxu0
      %v941 = vadd.f32 %v805, %v940
      %v942 = vpop.f32.mrf.mxu0
      %v943 = vadd.f32 %v807, %v942
      %944 = vdwg.mxu0
      %945 = vmatpush.bf16.msra.mxu0 0
      %946 = vmatpush.bf16.msra.mxu0 0
      %947 = vmatpush.bf16.msra.mxu0 0
      %948 = vmatpush.bf16.msra.mxu0 0
      %949 = vmatpush.bf16.msra.mxu0 0
      %950 = vmatpush.bf16.msra.mxu0 0
      %951 = vmatpush.bf16.msra.mxu0 0
      %952 = vmatpush.bf16.msra.mxu0 %v886
      %953 = vmatmul.bf16.gmra.mxu0 %v871
      %v954 = vpop.f32.mrf.mxu0
      %v955 = vadd.f32 %v819, %v954
      %v956 = vpop.f32.mrf.mxu0
      %v957 = vadd.f32 %v821, %v956
      %958 = vmatmul.bf16.gmra.mxu0 %v874
      %v959 = vpop.f32.mrf.mxu0
      %v960 = vadd.f32 %v824, %v959
      %v961 = vpop.f32.mrf.mxu0
      %v962 = vadd.f32 %v826, %v961
      %963 = vdwg.mxu0
      %v964 = vld [vmem:[#allocation2 + $0x4] sm:$0x33]
      %v965 = vld [vmem:[#allocation2 + $0xc] sm:$0x33]
      %v966 = vld [vmem:[#allocation2 + $0x14] sm:$0x33]
      %s967 = scalar_lea.vmem %s1, 32
      %v968 = vld [vmem:[%s967] sm:$0xf]
      %v969 = vld [vmem:[%s967 + $0x4] sm:$0xf]
      %v970 = vld [vmem:[%s967 + $0x8] sm:$0xf]
      %v971 = vld [vmem:[%s967 + $0xc] sm:$0xf]
      %v976 = vunpack.c.l.b16 %v968
      %v977 = vunpack.c.l.b16 %v969
      %v978 = vunpack.c.l.b16 %v970
      %v979 = vunpack.c.l.b16 %v971
      %v980 = vpack.c.b16 %v977, %v976
      %v981 = vpack.c.b16 %v979, %v978
      %v985 = vunpack.c.l.b16 %v964
      %v986 = vunpack.c.h.b16 %v964
      %v987 = vunpack.c.l.b16 %v965
      %v988 = vunpack.c.h.b16 %v965
      %v989 = vunpack.c.l.b16 %v966
      %v990 = vunpack.c.h.b16 %v966
      %v991 = vpack.c.b16 %v985, %v985
      %v992 = vpack.c.b16 %v986, %v986
      %v993 = vpack.c.b16 %v987, %v987
      %v994 = vpack.c.b16 %v988, %v988
      %v995 = vpack.c.b16 %v989, %v989
      %v996 = vpack.c.b16 %v990, %v990
      %997 = vrot.lane.b32.xlu0 %v991, 112
      %v998 = vpop.permute.xlu0 %997
      %999 = vrot.lane.b32.xlu0 %v992, 112
      %v1000 = vpop.permute.xlu0 %999
      %1001 = vrot.lane.b32.xlu0 %v993, 112
      %v1002 = vpop.permute.xlu0 %1001
      %1003 = vrot.lane.b32.xlu0 %v994, 112
      %v1004 = vpop.permute.xlu0 %1003
      %1005 = vrot.lane.b32.xlu0 %v995, 112
      %v1006 = vpop.permute.xlu0 %1005
      %1007 = vrot.lane.b32.xlu0 %v996, 112
      %v1008 = vpop.permute.xlu0 %1007
      %vm1009 = vcmask 916480
      %v1010 = vsel %vm1009, %v998, %v1000
      %v1011 = vsel %vm1009, %v1000, %v1002
      %v1012 = vsel %vm1009, %v1004, %v1006
      %v1013 = vsel %vm1009, %v1006, %v1008
      %v1015 = vsel %vm729, %v980, 0
      %v1018 = vsel %vm729, %v981, 0
      %v1021 = vand.u32 %v1010, %v739
      %v1024 = vand.u32 %v1011, %v739
      %v1027 = vand.u32 %v1012, %v739
      %v1030 = vand.u32 %v1013, %v739
      %1032 = vmatpush.bf16.msra.mxu0 0
      %1033 = vmatpush.bf16.msra.mxu0 0
      %1034 = vmatpush.bf16.msra.mxu0 0
      %1035 = vmatpush.bf16.msra.mxu0 0
      %1036 = vmatpush.bf16.msra.mxu0 0
      %1037 = vmatpush.bf16.msra.mxu0 0
      %1038 = vmatpush.bf16.msra.mxu0 0
      %1039 = vmatpush.bf16.msra.mxu0 %v1021
      %1040 = vmatmul.bf16.gmra.mxu0 %v1015
      %v1041 = vpop.f32.mrf.mxu0
      %v1042 = vadd.f32 0.0, %v1041
      %v1043 = vpop.f32.mrf.mxu0
      %v1044 = vadd.f32 0.0, %v1043
      %1045 = vmatmul.bf16.gmra.mxu0 %v1018
      %v1046 = vpop.f32.mrf.mxu0
      %v1047 = vadd.f32 0.0, %v1046
      %v1048 = vpop.f32.mrf.mxu0
      %v1049 = vadd.f32 0.0, %v1048
      %1050 = vdwg.mxu0
      %1051 = vmatpush.bf16.msra.mxu0 0
      %1052 = vmatpush.bf16.msra.mxu0 0
      %1053 = vmatpush.bf16.msra.mxu0 0
      %1054 = vmatpush.bf16.msra.mxu0 0
      %1055 = vmatpush.bf16.msra.mxu0 0
      %1056 = vmatpush.bf16.msra.mxu0 0
      %1057 = vmatpush.bf16.msra.mxu0 0
      %1058 = vmatpush.bf16.msra.mxu0 %v1024
      %1059 = vmatmul.bf16.gmra.mxu0 %v1015
      %v1060 = vpop.f32.mrf.mxu0
      %v1061 = vadd.f32 0.0, %v1060
      %v1062 = vpop.f32.mrf.mxu0
      %v1063 = vadd.f32 0.0, %v1062
      %1064 = vmatmul.bf16.gmra.mxu0 %v1018
      %v1065 = vpop.f32.mrf.mxu0
      %v1066 = vadd.f32 0.0, %v1065
      %v1067 = vpop.f32.mrf.mxu0
      %v1068 = vadd.f32 0.0, %v1067
      %1069 = vdwg.mxu0
      %1070 = vmatpush.bf16.msra.mxu0 0
      %1071 = vmatpush.bf16.msra.mxu0 0
      %1072 = vmatpush.bf16.msra.mxu0 0
      %1073 = vmatpush.bf16.msra.mxu0 0
      %1074 = vmatpush.bf16.msra.mxu0 0
      %1075 = vmatpush.bf16.msra.mxu0 0
      %1076 = vmatpush.bf16.msra.mxu0 0
      %1077 = vmatpush.bf16.msra.mxu0 %v1027
      %1078 = vmatmul.bf16.gmra.mxu0 %v1015
      %v1079 = vpop.f32.mrf.mxu0
      %v1080 = vadd.f32 0.0, %v1079
      %v1081 = vpop.f32.mrf.mxu0
      %v1082 = vadd.f32 0.0, %v1081
      %1083 = vmatmul.bf16.gmra.mxu0 %v1018
      %v1084 = vpop.f32.mrf.mxu0
      %v1085 = vadd.f32 0.0, %v1084
      %v1086 = vpop.f32.mrf.mxu0
      %v1087 = vadd.f32 0.0, %v1086
      %1088 = vdwg.mxu0
      %1089 = vmatpush.bf16.msra.mxu0 0
      %1090 = vmatpush.bf16.msra.mxu0 0
      %1091 = vmatpush.bf16.msra.mxu0 0
      %1092 = vmatpush.bf16.msra.mxu0 0
      %1093 = vmatpush.bf16.msra.mxu0 0
      %1094 = vmatpush.bf16.msra.mxu0 0
      %1095 = vmatpush.bf16.msra.mxu0 0
      %1096 = vmatpush.bf16.msra.mxu0 %v1030
      %1097 = vmatmul.bf16.gmra.mxu0 %v1015
      %v1098 = vpop.f32.mrf.mxu0
      %v1099 = vadd.f32 0.0, %v1098
      %v1100 = vpop.f32.mrf.mxu0
      %v1101 = vadd.f32 0.0, %v1100
      %1102 = vmatmul.bf16.gmra.mxu0 %v1018
      %v1103 = vpop.f32.mrf.mxu0
      %v1104 = vadd.f32 0.0, %v1103
      %v1105 = vpop.f32.mrf.mxu0
      %v1106 = vadd.f32 0.0, %v1105
      %1107 = vdwg.mxu0
      %v1108 = vadd.f32 %v898, %v1042
      %v1109 = vadd.f32 %v917, %v1061
      %v1110 = vadd.f32 %v936, %v1080
      %v1111 = vadd.f32 %v955, %v1099
      %v1112 = vadd.f32 %v900, %v1044
      %v1113 = vadd.f32 %v919, %v1063
      %v1114 = vadd.f32 %v938, %v1082
      %v1115 = vadd.f32 %v957, %v1101
      %v1116 = vadd.f32 %v903, %v1047
      %v1117 = vadd.f32 %v922, %v1066
      %v1118 = vadd.f32 %v941, %v1085
      %v1119 = vadd.f32 %v960, %v1104
      %v1120 = vadd.f32 %v905, %v1049
      %v1121 = vadd.f32 %v924, %v1068
      %v1122 = vadd.f32 %v943, %v1087
      %v1123 = vadd.f32 %v962, %v1106
      %v1124 = vld [vmem:[%s2] sm:$0xff]
      %v1125 = vld [vmem:[%s2 + $0x8] sm:$0xff]
      %v1126 = vld [vmem:[%s2 + $0x10] sm:$0xff]
      %v1127 = vld [vmem:[%s2 + $0x18] sm:$0xff]
      %1129 = vset.pattern.permute.xlu0 0
      %1130 = vperm.xlu0 %1129, %v1124
      %v1131 = vpop.permute.xlu0 %1130
      %1134 = vset.pattern.permute.xlu0 0
      %1135 = vperm.xlu0 %1134, %v1125
      %v1136 = vpop.permute.xlu0 %1135
      %1139 = vset.pattern.permute.xlu0 0
      %1140 = vperm.xlu0 %1139, %v1126
      %v1141 = vpop.permute.xlu0 %1140
      %1144 = vset.pattern.permute.xlu0 0
      %1145 = vperm.xlu0 %1144, %v1127
      %v1146 = vpop.permute.xlu0 %1145
      %v1148 = vadd.f32 %v1108, %v1131
      %v1149 = vadd.f32 %v1109, %v1131
      %v1150 = vadd.f32 %v1110, %v1131
      %v1151 = vadd.f32 %v1111, %v1131
      %v1152 = vadd.f32 %v1112, %v1136
      %v1153 = vadd.f32 %v1113, %v1136
      %v1154 = vadd.f32 %v1114, %v1136
      %v1155 = vadd.f32 %v1115, %v1136
      %v1156 = vadd.f32 %v1116, %v1141
      %v1157 = vadd.f32 %v1117, %v1141
      %v1158 = vadd.f32 %v1118, %v1141
      %v1159 = vadd.f32 %v1119, %v1141
      %v1160 = vadd.f32 %v1120, %v1146
      %v1161 = vadd.f32 %v1121, %v1146
      %v1162 = vadd.f32 %v1122, %v1146
      %v1163 = vadd.f32 %v1123, %v1146
      %v1164 = vmax.f32 %v1148, 0.0
      %v1165 = vmax.f32 %v1149, 0.0
      %v1166 = vmax.f32 %v1150, 0.0
      %v1167 = vmax.f32 %v1151, 0.0
      %v1168 = vmax.f32 %v1152, 0.0
      %v1169 = vmax.f32 %v1153, 0.0
      %v1170 = vmax.f32 %v1154, 0.0
      %v1171 = vmax.f32 %v1155, 0.0
      %v1172 = vmax.f32 %v1156, 0.0
      %v1173 = vmax.f32 %v1157, 0.0
      %v1174 = vmax.f32 %v1158, 0.0
      %v1175 = vmax.f32 %v1159, 0.0
      %v1176 = vmax.f32 %v1160, 0.0
      %v1177 = vmax.f32 %v1161, 0.0
      %v1178 = vmax.f32 %v1162, 0.0
      %v1179 = vmax.f32 %v1163, 0.0
      %v1180 = vpack.c.bf16 %v1165, %v1164
      %v1181 = vpack.c.bf16 %v1169, %v1168
      %v1182 = vpack.c.bf16 %v1173, %v1172
      %v1183 = vpack.c.bf16 %v1177, %v1176
      %1184 = vst [vmem:[#allocation2 + $0x74] sm:$0xff] %v1180
      %1185 = vst [vmem:[#allocation2 + $0x90] sm:$0xff] %v1181
      %1186 = vst [vmem:[#allocation2 + $0xac] sm:$0xff] %v1182
      %1187 = vst [vmem:[#allocation2 + $0xc8] sm:$0xff] %v1183
      %v1188 = vpack.c.bf16 %v1167, %v1166
      %v1189 = vpack.c.bf16 %v1171, %v1170
      %v1190 = vpack.c.bf16 %v1175, %v1174
      %v1191 = vpack.c.bf16 %v1179, %v1178
      %1192 = vst [vmem:[#allocation2 + $0x80] sm:$0xff] %v1188
      %1193 = vst [vmem:[#allocation2 + $0x9c] sm:$0xff] %v1189
      %1194 = vst [vmem:[#allocation2 + $0xb8] sm:$0xff] %v1190
      %1195 = vst [vmem:[#allocation2 + $0xd4] sm:$0xff] %v1191
      %v1196 = vld [vmem:[#allocation2 + $0x70] sm:$0xff]
      %v1197 = vld [vmem:[#allocation2 + $0x78] sm:$0xff]
      %v1198 = vld [vmem:[#allocation2 + $0x80] sm:$0xff]
      %v1199 = vld [vmem:[#allocation2 + $0x8c] sm:$0xff]
      %v1200 = vld [vmem:[#allocation2 + $0x94] sm:$0xff]
      %v1201 = vld [vmem:[#allocation2 + $0x9c] sm:$0xff]
      %v1202 = vld [vmem:[#allocation2 + $0xa8] sm:$0xff]
      %v1203 = vld [vmem:[#allocation2 + $0xb0] sm:$0xff]
      %v1204 = vld [vmem:[#allocation2 + $0xb8] sm:$0xff]
      %v1205 = vld [vmem:[#allocation2 + $0xc4] sm:$0xff]
      %v1206 = vld [vmem:[#allocation2 + $0xcc] sm:$0xff]
      %v1207 = vld [vmem:[#allocation2 + $0xd4] sm:$0xff]
      %v1208 = vld [vmem:[#allocation2 + $0x74] sm:$0xff]
      %v1209 = vld [vmem:[#allocation2 + $0x7c] sm:$0xff]
      %v1210 = vld [vmem:[#allocation2 + $0x84] sm:$0xff]
      %v1211 = vld [vmem:[#allocation2 + $0x90] sm:$0xff]
      %v1212 = vld [vmem:[#allocation2 + $0x98] sm:$0xff]
      %v1213 = vld [vmem:[#allocation2 + $0xa0] sm:$0xff]
      %v1214 = vld [vmem:[#allocation2 + $0xac] sm:$0xff]
      %v1215 = vld [vmem:[#allocation2 + $0xb4] sm:$0xff]
      %v1216 = vld [vmem:[#allocation2 + $0xbc] sm:$0xff]
      %v1217 = vld [vmem:[#allocation2 + $0xc8] sm:$0xff]
      %v1218 = vld [vmem:[#allocation2 + $0xd0] sm:$0xff]
      %v1219 = vld [vmem:[#allocation2 + $0xd8] sm:$0xff]
      %v1220 = vsel %vm473, 1, 0
      %v1221 = vsel %vm474, 1, 0
      %v1222 = vsel %vm475, 1, 0
      %v1223 = vsel %vm476, 1, 0
      %v1224 = vsel %vm477, 1, 0
      %vm1225 = vcmp.eq.s32.totalorder %v1220, 1
      %vm1226 = vcmp.eq.s32.totalorder %v1221, 1
      %vm1227 = vcmp.eq.s32.totalorder %v1222, 1
      %vm1228 = vcmp.eq.s32.totalorder %v1223, 1
      %vm1229 = vcmp.eq.s32.totalorder %v1224, 1
      %vm1230 = vmpackc.low %vm1226, %vm1225
      %vm1231 = vmpackc.low %vm1228, %vm1227
      %vm1232 = vmpackc.low %vm1229, %vm1229
      %v1233 = vsel %vm1230, 65537, 0
      %v1234 = vsel %vm1231, 65537, 0
      %v1235 = vsel %vm1232, 65537, 0
      %1236 = vrot.lane.b32.xlu0 %v1233, 127
      %v1237 = vpop.permute.xlu0 %1236
      %1238 = vrot.lane.b32.xlu0 %v1234, 127
      %v1239 = vpop.permute.xlu0 %1238
      %1240 = vrot.lane.b32.xlu0 %v1235, 127
      %v1241 = vpop.permute.xlu0 %1240
      %v1242 = vrot.slane %v1237, 4
      %v1243 = vrot.slane %v1239, 4
      %v1244 = vrot.slane %v1241, 4
      %v1245 = vsel %vm527, %v1242, %v1237
      %v1246 = vsel %vm529, %v1242, %v1243
      %v1247 = vsel %vm527, %v1246, %v1239
      %v1248 = vsel %vm529, %v1243, %v1244
      %v1249 = vsel %vm527, %v1248, %v1241
      %v1250 = vunpack.c.l.b16 %v1245
      %v1251 = vunpack.c.h.b16 %v1245
      %v1252 = vunpack.c.l.b16 0
      %v1253 = vunpack.c.h.b16 0
      %vm1254 = vcmp.ne.s32.totalorder %v1250, %v1252
      %vm1255 = vcmp.ne.s32.totalorder %v1251, %v1253
      %vm1256 = vmpackc.low %vm1255, %vm1254
      %v1257 = vunpack.c.l.b16 %v1247
      %v1258 = vunpack.c.h.b16 %v1247
      %v1259 = vunpack.c.l.b16 0
      %v1260 = vunpack.c.h.b16 0
      %vm1261 = vcmp.ne.s32.totalorder %v1257, %v1259
      %vm1262 = vcmp.ne.s32.totalorder %v1258, %v1260
      %vm1263 = vmpackc.low %vm1262, %vm1261
      %v1264 = vunpack.c.l.b16 %v1249
      %v1265 = vunpack.c.h.b16 %v1249
      %v1266 = vunpack.c.l.b16 0
      %v1267 = vunpack.c.h.b16 0
      %vm1268 = vcmp.ne.s32.totalorder %v1264, %v1266
      %vm1269 = vcmp.ne.s32.totalorder %v1265, %v1267
      %vm1270 = vmpackc.low %vm1269, %vm1268
      %v1271 = vsel %vm1256, %v1196, 0
      %v1272 = vsel %vm1263, %v1197, 0
      %v1273 = vsel %vm1270, %v1198, 0
      %v1274 = vsel %vm1256, %v1199, 0
      %v1275 = vsel %vm1263, %v1200, 0
      %v1276 = vsel %vm1270, %v1201, 0
      %v1277 = vsel %vm1256, %v1202, 0
      %v1278 = vsel %vm1263, %v1203, 0
      %v1279 = vsel %vm1270, %v1204, 0
      %v1280 = vsel %vm1256, %v1205, 0
      %v1281 = vsel %vm1263, %v1206, 0
      %v1282 = vsel %vm1270, %v1207, 0
      %1295 = vrot.lane.b32.xlu0 %v1271, 1
      %v1296 = vpop.permute.xlu0 %1295
      %1297 = vrot.lane.b32.xlu0 %v1272, 1
      %v1298 = vpop.permute.xlu0 %1297
      %1299 = vrot.lane.b32.xlu0 %v1273, 1
      %v1300 = vpop.permute.xlu0 %1299
      %1301 = vrot.lane.b32.xlu0 %v1274, 1
      %v1302 = vpop.permute.xlu0 %1301
      %1303 = vrot.lane.b32.xlu0 %v1275, 1
      %v1304 = vpop.permute.xlu0 %1303
      %1305 = vrot.lane.b32.xlu0 %v1276, 1
      %v1306 = vpop.permute.xlu0 %1305
      %1307 = vrot.lane.b32.xlu0 %v1277, 1
      %v1308 = vpop.permute.xlu0 %1307
      %1309 = vrot.lane.b32.xlu0 %v1278, 1
      %v1310 = vpop.permute.xlu0 %1309
      %1311 = vrot.lane.b32.xlu0 %v1279, 1
      %v1312 = vpop.permute.xlu0 %1311
      %1313 = vrot.lane.b32.xlu0 %v1280, 1
      %v1314 = vpop.permute.xlu0 %1313
      %1315 = vrot.lane.b32.xlu0 %v1281, 1
      %v1316 = vpop.permute.xlu0 %1315
      %1317 = vrot.lane.b32.xlu0 %v1282, 1
      %v1318 = vpop.permute.xlu0 %1317
      %v1319 = vrot.slane %v1296, 4
      %v1320 = vrot.slane %v1298, 4
      %v1321 = vrot.slane %v1300, 4
      %v1322 = vrot.slane %v1302, 4
      %v1323 = vrot.slane %v1304, 4
      %v1324 = vrot.slane %v1306, 4
      %v1325 = vrot.slane %v1308, 4
      %v1326 = vrot.slane %v1310, 4
      %v1327 = vrot.slane %v1312, 4
      %v1328 = vrot.slane %v1314, 4
      %v1329 = vrot.slane %v1316, 4
      %v1330 = vrot.slane %v1318, 4
      %v1331 = vsel %vm529, %v1319, %v1320
      %v1332 = vsel %vm583, %v1296, %v1331
      %v1333 = vsel %vm529, %v1320, %v1321
      %v1334 = vsel %vm583, %v1298, %v1333
      %v1335 = vsel %vm583, %v1300, %v1321
      %v1336 = vsel %vm529, %v1322, %v1323
      %v1337 = vsel %vm583, %v1302, %v1336
      %v1338 = vsel %vm529, %v1323, %v1324
      %v1339 = vsel %vm583, %v1304, %v1338
      %v1340 = vsel %vm583, %v1306, %v1324
      %v1341 = vsel %vm529, %v1325, %v1326
      %v1342 = vsel %vm583, %v1308, %v1341
      %v1343 = vsel %vm529, %v1326, %v1327
      %v1344 = vsel %vm583, %v1310, %v1343
      %v1345 = vsel %vm583, %v1312, %v1327
      %v1346 = vsel %vm529, %v1328, %v1329
      %v1347 = vsel %vm583, %v1314, %v1346
      %v1348 = vsel %vm529, %v1329, %v1330
      %v1349 = vsel %vm583, %v1316, %v1348
      %v1350 = vsel %vm583, %v1318, %v1330
      %1363 = vst [vmem:[#allocation2 + $0x4] sm:$0xff] %v1332
      %1364 = vst [vmem:[#allocation2 + $0xc] sm:$0xff] %v1334
      %1365 = vst [vmem:[#allocation2 + $0x14] sm:$0xf] %v1335
      %1366 = vst [vmem:[#allocation2 + $0x20] sm:$0xff] %v1337
      %1367 = vst [vmem:[#allocation2 + $0x28] sm:$0xff] %v1339
      %1368 = vst [vmem:[#allocation2 + $0x30] sm:$0xf] %v1340
      %1369 = vst [vmem:[#allocation2 + $0x3c] sm:$0xff] %v1342
      %1370 = vst [vmem:[#allocation2 + $0x44] sm:$0xff] %v1344
      %1371 = vst [vmem:[#allocation2 + $0x4c] sm:$0xf] %v1345
      %1372 = vst [vmem:[#allocation2 + $0x58] sm:$0xff] %v1347
      %1373 = vst [vmem:[#allocation2 + $0x60] sm:$0xff] %v1349
      %1374 = vst [vmem:[#allocation2 + $0x68] sm:$0xf] %v1350
      %v1375 = vsel %vm478, 1, 0
      %v1376 = vsel %vm479, 1, 0
      %v1377 = vsel %vm480, 1, 0
      %v1378 = vsel %vm481, 1, 0
      %v1379 = vsel %vm482, 1, 0
      %vm1380 = vcmp.eq.s32.totalorder %v1375, 1
      %vm1381 = vcmp.eq.s32.totalorder %v1376, 1
      %vm1382 = vcmp.eq.s32.totalorder %v1377, 1
      %vm1383 = vcmp.eq.s32.totalorder %v1378, 1
      %vm1384 = vcmp.eq.s32.totalorder %v1379, 1
      %vm1385 = vmpackc.low %vm1381, %vm1380
      %vm1386 = vmpackc.low %vm1383, %vm1382
      %vm1387 = vmpackc.low %vm1384, %vm1384
      %v1388 = vsel %vm1385, 65537, 0
      %v1389 = vsel %vm1386, 65537, 0
      %v1390 = vsel %vm1387, 65537, 0
      %1391 = vrot.lane.b32.xlu0 %v1388, 1
      %v1392 = vpop.permute.xlu0 %1391
      %1393 = vrot.lane.b32.xlu0 %v1389, 1
      %v1394 = vpop.permute.xlu0 %1393
      %1395 = vrot.lane.b32.xlu0 %v1390, 1
      %v1396 = vpop.permute.xlu0 %1395
      %v1397 = vrot.slane %v1392, 4
      %v1398 = vrot.slane %v1394, 4
      %v1399 = vrot.slane %v1396, 4
      %v1400 = vsel %vm583, %v1397, %v1392
      %v1401 = vsel %vm529, %v1397, %v1398
      %v1402 = vsel %vm583, %v1401, %v1394
      %v1403 = vsel %vm529, %v1398, %v1399
      %v1404 = vsel %vm583, %v1403, %v1396
      %v1405 = vunpack.c.l.b16 %v1400
      %v1406 = vunpack.c.h.b16 %v1400
      %v1407 = vunpack.c.l.b16 0
      %v1408 = vunpack.c.h.b16 0
      %vm1409 = vcmp.ne.s32.totalorder %v1405, %v1407
      %vm1410 = vcmp.ne.s32.totalorder %v1406, %v1408
      %vm1411 = vmpackc.low %vm1410, %vm1409
      %v1412 = vunpack.c.l.b16 %v1402
      %v1413 = vunpack.c.h.b16 %v1402
      %v1414 = vunpack.c.l.b16 0
      %v1415 = vunpack.c.h.b16 0
      %vm1416 = vcmp.ne.s32.totalorder %v1412, %v1414
      %vm1417 = vcmp.ne.s32.totalorder %v1413, %v1415
      %vm1418 = vmpackc.low %vm1417, %vm1416
      %v1419 = vunpack.c.l.b16 %v1404
      %v1420 = vunpack.c.h.b16 %v1404
      %v1421 = vunpack.c.l.b16 0
      %v1422 = vunpack.c.h.b16 0
      %vm1423 = vcmp.ne.s32.totalorder %v1419, %v1421
      %vm1424 = vcmp.ne.s32.totalorder %v1420, %v1422
      %vm1425 = vmpackc.low %vm1424, %vm1423
      %v1426 = vsel %vm1411, %v1208, 0
      %v1427 = vsel %vm1418, %v1209, 0
      %v1428 = vsel %vm1425, %v1210, 0
      %v1429 = vsel %vm1411, %v1211, 0
      %v1430 = vsel %vm1418, %v1212, 0
      %v1431 = vsel %vm1425, %v1213, 0
      %v1432 = vsel %vm1411, %v1214, 0
      %v1433 = vsel %vm1418, %v1215, 0
      %v1434 = vsel %vm1425, %v1216, 0
      %v1435 = vsel %vm1411, %v1217, 0
      %v1436 = vsel %vm1418, %v1218, 0
      %v1437 = vsel %vm1425, %v1219, 0
      %1450 = vrot.lane.b32.xlu0 %v1426, 127
      %v1451 = vpop.permute.xlu0 %1450
      %1452 = vrot.lane.b32.xlu0 %v1427, 127
      %v1453 = vpop.permute.xlu0 %1452
      %1454 = vrot.lane.b32.xlu0 %v1428, 127
      %v1455 = vpop.permute.xlu0 %1454
      %1456 = vrot.lane.b32.xlu0 %v1429, 127
      %v1457 = vpop.permute.xlu0 %1456
      %1458 = vrot.lane.b32.xlu0 %v1430, 127
      %v1459 = vpop.permute.xlu0 %1458
      %1460 = vrot.lane.b32.xlu0 %v1431, 127
      %v1461 = vpop.permute.xlu0 %1460
      %1462 = vrot.lane.b32.xlu0 %v1432, 127
      %v1463 = vpop.permute.xlu0 %1462
      %1464 = vrot.lane.b32.xlu0 %v1433, 127
      %v1465 = vpop.permute.xlu0 %1464
      %1466 = vrot.lane.b32.xlu0 %v1434, 127
      %v1467 = vpop.permute.xlu0 %1466
      %1468 = vrot.lane.b32.xlu0 %v1435, 127
      %v1469 = vpop.permute.xlu0 %1468
      %1470 = vrot.lane.b32.xlu0 %v1436, 127
      %v1471 = vpop.permute.xlu0 %1470
      %1472 = vrot.lane.b32.xlu0 %v1437, 127
      %v1473 = vpop.permute.xlu0 %1472
      %v1474 = vrot.slane %v1451, 4
      %v1475 = vrot.slane %v1453, 4
      %v1476 = vrot.slane %v1455, 4
      %v1477 = vrot.slane %v1457, 4
      %v1478 = vrot.slane %v1459, 4
      %v1479 = vrot.slane %v1461, 4
      %v1480 = vrot.slane %v1463, 4
      %v1481 = vrot.slane %v1465, 4
      %v1482 = vrot.slane %v1467, 4
      %v1483 = vrot.slane %v1469, 4
      %v1484 = vrot.slane %v1471, 4
      %v1485 = vrot.slane %v1473, 4
      %v1486 = vsel %vm529, %v1474, %v1475
      %v1487 = vsel %vm527, %v1451, %v1486
      %v1488 = vsel %vm529, %v1475, %v1476
      %v1489 = vsel %vm527, %v1453, %v1488
      %v1490 = vsel %vm527, %v1455, %v1476
      %v1491 = vsel %vm529, %v1477, %v1478
      %v1492 = vsel %vm527, %v1457, %v1491
      %v1493 = vsel %vm529, %v1478, %v1479
      %v1494 = vsel %vm527, %v1459, %v1493
      %v1495 = vsel %vm527, %v1461, %v1479
      %v1496 = vsel %vm529, %v1480, %v1481
      %v1497 = vsel %vm527, %v1463, %v1496
      %v1498 = vsel %vm529, %v1481, %v1482
      %v1499 = vsel %vm527, %v1465, %v1498
      %v1500 = vsel %vm527, %v1467, %v1482
      %v1501 = vsel %vm529, %v1483, %v1484
      %v1502 = vsel %vm527, %v1469, %v1501
      %v1503 = vsel %vm529, %v1484, %v1485
      %v1504 = vsel %vm527, %v1471, %v1503
      %v1505 = vsel %vm527, %v1473, %v1485
      %1518 = vst [vmem:[#allocation2 + $0xe4] sm:$0xff] %v1487
      %1519 = vst [vmem:[#allocation2 + $0xec] sm:$0xff] %v1489
      %1520 = vst [vmem:[#allocation2 + $0xf4] sm:$0xf] %v1490
      %1521 = vst [vmem:[#allocation2 + $0x100] sm:$0xff] %v1492
      %1522 = vst [vmem:[#allocation2 + $0x108] sm:$0xff] %v1494
      %1523 = vst [vmem:[#allocation2 + $0x110] sm:$0xf] %v1495
      %1524 = vst [vmem:[#allocation2 + $0x11c] sm:$0xff] %v1497
      %1525 = vst [vmem:[#allocation2 + $0x124] sm:$0xff] %v1499
      %1526 = vst [vmem:[#allocation2 + $0x12c] sm:$0xf] %v1500
      %1527 = vst [vmem:[#allocation2 + $0x138] sm:$0xff] %v1502
      %1528 = vst [vmem:[#allocation2 + $0x140] sm:$0xff] %v1504
      %1529 = vst [vmem:[#allocation2 + $0x148] sm:$0xf] %v1505
      %v1530 = vld [vmem:[#allocation2] sm:$0xff]
      %v1531 = vld [vmem:[#allocation2 + $0x8] sm:$0xff]
      %v1532 = vld [vmem:[#allocation2 + $0x10] sm:$0xff]
      %v1533 = vld [vmem:[#allocation2 + $0x1c] sm:$0xff]
      %v1534 = vld [vmem:[#allocation2 + $0x24] sm:$0xff]
      %v1535 = vld [vmem:[#allocation2 + $0x2c] sm:$0xff]
      %v1536 = vld [vmem:[#allocation2 + $0x38] sm:$0xff]
      %v1537 = vld [vmem:[#allocation2 + $0x40] sm:$0xff]
      %v1538 = vld [vmem:[#allocation2 + $0x48] sm:$0xff]
      %v1539 = vld [vmem:[#allocation2 + $0x54] sm:$0xff]
      %v1540 = vld [vmem:[#allocation2 + $0x5c] sm:$0xff]
      %v1541 = vld [vmem:[#allocation2 + $0x64] sm:$0xff]
      %v1542 = vld [vmem:[#allocation2 + $0x70] sm:$0xff]
      %v1543 = vld [vmem:[#allocation2 + $0x78] sm:$0xff]
      %v1544 = vld [vmem:[#allocation2 + $0x80] sm:$0xff]
      %v1545 = vld [vmem:[#allocation2 + $0x8c] sm:$0xff]
      %v1546 = vld [vmem:[#allocation2 + $0x94] sm:$0xff]
      %v1547 = vld [vmem:[#allocation2 + $0x9c] sm:$0xff]
      %v1548 = vld [vmem:[#allocation2 + $0xa8] sm:$0xff]
      %v1549 = vld [vmem:[#allocation2 + $0xb0] sm:$0xff]
      %v1550 = vld [vmem:[#allocation2 + $0xb8] sm:$0xff]
      %v1551 = vld [vmem:[#allocation2 + $0xc4] sm:$0xff]
      %v1552 = vld [vmem:[#allocation2 + $0xcc] sm:$0xff]
      %v1553 = vld [vmem:[#allocation2 + $0xd4] sm:$0xff]
      %v1554 = vld [vmem:[#allocation2 + $0xe0] sm:$0xff]
      %v1555 = vld [vmem:[#allocation2 + $0xe8] sm:$0xff]
      %v1556 = vld [vmem:[#allocation2 + $0xf0] sm:$0xff]
      %v1557 = vld [vmem:[#allocation2 + $0xfc] sm:$0xff]
      %v1558 = vld [vmem:[#allocation2 + $0x104] sm:$0xff]
      %v1559 = vld [vmem:[#allocation2 + $0x10c] sm:$0xff]
      %v1560 = vld [vmem:[#allocation2 + $0x118] sm:$0xff]
      %v1561 = vld [vmem:[#allocation2 + $0x120] sm:$0xff]
      %v1562 = vld [vmem:[#allocation2 + $0x128] sm:$0xff]
      %v1563 = vld [vmem:[#allocation2 + $0x134] sm:$0xff]
      %v1564 = vld [vmem:[#allocation2 + $0x13c] sm:$0xff]
      %v1565 = vld [vmem:[#allocation2 + $0x144] sm:$0xff]
      %v1566 = vld [vmem:[%s3] sm:$0xf]
      %v1567 = vld [vmem:[%s3 + $0x4] sm:$0xf]
      %v1568 = vld [vmem:[%s3 + $0x8] sm:$0xf]
      %v1569 = vld [vmem:[%s3 + $0xc] sm:$0xf]
      %v1570 = vld [vmem:[%s3 + $0x10] sm:$0xf]
      %v1571 = vld [vmem:[%s3 + $0x14] sm:$0xf]
      %v1572 = vld [vmem:[%s3 + $0x18] sm:$0xf]
      %v1573 = vld [vmem:[%s3 + $0x1c] sm:$0xf]
      %v1574 = vld [vmem:[#allocation2 + $0x4] sm:$0xff]
      %v1575 = vld [vmem:[#allocation2 + $0xc] sm:$0xff]
      %v1576 = vld [vmem:[#allocation2 + $0x14] sm:$0xf]
      %v1577 = vld [vmem:[#allocation2 + $0x20] sm:$0xff]
      %v1578 = vld [vmem:[#allocation2 + $0x28] sm:$0xff]
      %v1579 = vld [vmem:[#allocation2 + $0x30] sm:$0xf]
      %v1580 = vld [vmem:[#allocation2 + $0x3c] sm:$0xff]
      %v1581 = vld [vmem:[#allocation2 + $0x44] sm:$0xff]
      %v1582 = vld [vmem:[#allocation2 + $0x4c] sm:$0xf]
      %v1583 = vld [vmem:[#allocation2 + $0x58] sm:$0xff]
      %v1584 = vld [vmem:[#allocation2 + $0x60] sm:$0xff]
      %v1585 = vld [vmem:[#allocation2 + $0x68] sm:$0xf]
      %v1586 = vld [vmem:[#allocation2 + $0x74] sm:$0xff]
      %v1587 = vld [vmem:[#allocation2 + $0x7c] sm:$0xff]
      %v1588 = vld [vmem:[#allocation2 + $0x84] sm:$0xf]
      %v1589 = vld [vmem:[#allocation2 + $0x90] sm:$0xff]
      %v1590 = vld [vmem:[#allocation2 + $0x98] sm:$0xff]
      %v1591 = vld [vmem:[#allocation2 + $0xa0] sm:$0xf]
      %v1592 = vld [vmem:[#allocation2 + $0xac] sm:$0xff]
      %v1593 = vld [vmem:[#allocation2 + $0xb4] sm:$0xff]
      %v1594 = vld [vmem:[#allocation2 + $0xbc] sm:$0xf]
      %v1595 = vld [vmem:[#allocation2 + $0xc8] sm:$0xff]
      %v1596 = vld [vmem:[#allocation2 + $0xd0] sm:$0xff]
      %v1597 = vld [vmem:[#allocation2 + $0xd8] sm:$0xf]
      %v1598 = vld [vmem:[#allocation2 + $0xe4] sm:$0xff]
      %v1599 = vld [vmem:[#allocation2 + $0xec] sm:$0xff]
      %v1600 = vld [vmem:[#allocation2 + $0xf4] sm:$0xf]
      %v1601 = vld [vmem:[#allocation2 + $0x100] sm:$0xff]
      %v1602 = vld [vmem:[#allocation2 + $0x108] sm:$0xff]
      %v1603 = vld [vmem:[#allocation2 + $0x110] sm:$0xf]
      %v1604 = vld [vmem:[#allocation2 + $0x11c] sm:$0xff]
      %v1605 = vld [vmem:[#allocation2 + $0x124] sm:$0xff]
      %v1606 = vld [vmem:[#allocation2 + $0x12c] sm:$0xf]
      %v1607 = vld [vmem:[#allocation2 + $0x138] sm:$0xff]
      %v1608 = vld [vmem:[#allocation2 + $0x140] sm:$0xff]
      %v1609 = vld [vmem:[#allocation2 + $0x148] sm:$0xf]
      %s1610 = scalar_lea.vmem %s3, 32
      %v1611 = vld [vmem:[%s1610] sm:$0xf]
      %v1612 = vld [vmem:[%s1610 + $0x4] sm:$0xf]
      %v1613 = vld [vmem:[%s1610 + $0x8] sm:$0xf]
      %v1614 = vld [vmem:[%s1610 + $0xc] sm:$0xf]
      %v1615 = vld [vmem:[%s1610 + $0x10] sm:$0xf]
      %v1616 = vld [vmem:[%s1610 + $0x14] sm:$0xf]
      %v1617 = vld [vmem:[%s1610 + $0x18] sm:$0xf]
      %v1618 = vld [vmem:[%s1610 + $0x1c] sm:$0xf]
      %v1627 = vunpack.c.l.b16 %v1611
      %v1628 = vunpack.c.l.b16 %v1612
      %v1629 = vunpack.c.l.b16 %v1613
      %v1630 = vunpack.c.l.b16 %v1614
      %v1631 = vunpack.c.l.b16 %v1615
      %v1632 = vunpack.c.l.b16 %v1616
      %v1633 = vunpack.c.l.b16 %v1617
      %v1634 = vunpack.c.l.b16 %v1618
      %v1635 = vpack.c.b16 %v1628, %v1627
      %v1636 = vpack.c.b16 %v1630, %v1629
      %v1637 = vpack.c.b16 %v1632, %v1631
      %v1638 = vpack.c.b16 %v1634, %v1633
      %v1675 = vunpack.c.l.b16 %v1574
      %v1676 = vunpack.c.h.b16 %v1574
      %v1677 = vunpack.c.h.b16 %v1575
      %v1678 = vunpack.c.l.b16 %v1576
      %v1679 = vunpack.c.l.b16 %v1577
      %v1680 = vunpack.c.h.b16 %v1577
      %v1681 = vunpack.c.h.b16 %v1578
      %v1682 = vunpack.c.l.b16 %v1579
      %v1683 = vunpack.c.l.b16 %v1580
      %v1684 = vunpack.c.h.b16 %v1580
      %v1685 = vunpack.c.h.b16 %v1581
      %v1686 = vunpack.c.l.b16 %v1582
      %v1687 = vunpack.c.l.b16 %v1583
      %v1688 = vunpack.c.h.b16 %v1583
      %v1689 = vunpack.c.h.b16 %v1584
      %v1690 = vunpack.c.l.b16 %v1585
      %v1691 = vunpack.c.l.b16 %v1586
      %v1692 = vunpack.c.h.b16 %v1586
      %v1693 = vunpack.c.h.b16 %v1587
      %v1694 = vunpack.c.l.b16 %v1588
      %v1695 = vunpack.c.l.b16 %v1589
      %v1696 = vunpack.c.h.b16 %v1589
      %v1697 = vunpack.c.h.b16 %v1590
      %v1698 = vunpack.c.l.b16 %v1591
      %v1699 = vunpack.c.l.b16 %v1592
      %v1700 = vunpack.c.h.b16 %v1592
      %v1701 = vunpack.c.h.b16 %v1593
      %v1702 = vunpack.c.l.b16 %v1594
      %v1703 = vunpack.c.l.b16 %v1595
      %v1704 = vunpack.c.h.b16 %v1595
      %v1705 = vunpack.c.h.b16 %v1596
      %v1706 = vunpack.c.l.b16 %v1597
      %v1707 = vunpack.c.l.b16 %v1598
      %v1708 = vunpack.c.h.b16 %v1598
      %v1709 = vunpack.c.h.b16 %v1599
      %v1710 = vunpack.c.l.b16 %v1600
      %v1711 = vunpack.c.l.b16 %v1601
      %v1712 = vunpack.c.h.b16 %v1601
      %v1713 = vunpack.c.h.b16 %v1602
      %v1714 = vunpack.c.l.b16 %v1603
      %v1715 = vunpack.c.l.b16 %v1604
      %v1716 = vunpack.c.h.b16 %v1604
      %v1717 = vunpack.c.h.b16 %v1605
      %v1718 = vunpack.c.l.b16 %v1606
      %v1719 = vunpack.c.l.b16 %v1607
      %v1720 = vunpack.c.h.b16 %v1607
      %v1721 = vunpack.c.h.b16 %v1608
      %v1722 = vunpack.c.l.b16 %v1609
      %v1723 = vpack.c.b16 %v1679, %v1675
      %v1724 = vpack.c.b16 %v1680, %v1676
      %v1725 = vpack.c.b16 %v1681, %v1677
      %v1726 = vpack.c.b16 %v1682, %v1678
      %v1727 = vpack.c.b16 %v1687, %v1683
      %v1728 = vpack.c.b16 %v1688, %v1684
      %v1729 = vpack.c.b16 %v1689, %v1685
      %v1730 = vpack.c.b16 %v1690, %v1686
      %v1731 = vpack.c.b16 %v1695, %v1691
      %v1732 = vpack.c.b16 %v1696, %v1692
      %v1733 = vpack.c.b16 %v1697, %v1693
      %v1734 = vpack.c.b16 %v1698, %v1694
      %v1735 = vpack.c.b16 %v1703, %v1699
      %v1736 = vpack.c.b16 %v1704, %v1700
      %v1737 = vpack.c.b16 %v1705, %v1701
      %v1738 = vpack.c.b16 %v1706, %v1702
      %v1739 = vpack.c.b16 %v1711, %v1707
      %v1740 = vpack.c.b16 %v1712, %v1708
      %v1741 = vpack.c.b16 %v1713, %v1709
      %v1742 = vpack.c.b16 %v1714, %v1710
      %v1743 = vpack.c.b16 %v1719, %v1715
      %v1744 = vpack.c.b16 %v1720, %v1716
      %v1745 = vpack.c.b16 %v1721, %v1717
      %v1746 = vpack.c.b16 %v1722, %v1718
      %vm1771 = vcmask 785408
      %v1773 = vsel %vm1771, %v1635, 0
      %v1776 = vsel %vm1771, %v1636, 0
      %v1779 = vsel %vm1771, %v1637, 0
      %v1782 = vsel %vm1771, %v1638, 0
      %1784 = vmatpush.bf16.msra.mxu0 0
      %1785 = vmatpush.bf16.msra.mxu0 0
      %1786 = vmatpush.bf16.msra.mxu0 %v1743
      %1787 = vmatpush.bf16.msra.mxu0 %v1739
      %1788 = vmatpush.bf16.msra.mxu0 %v1735
      %1789 = vmatpush.bf16.msra.mxu0 %v1731
      %1790 = vmatpush.bf16.msra.mxu0 %v1727
      %1791 = vmatpush.bf16.msra.mxu0 %v1723
      %1792 = vmatmul.bf16.gmra.mxu0 %v1773
      %v1793 = vpop.f32.mrf.mxu0
      %v1794 = vadd.f32 0.0, %v1793
      %v1795 = vpop.f32.mrf.mxu0
      %v1796 = vadd.f32 0.0, %v1795
      %1797 = vmatmul.bf16.gmra.mxu0 %v1776
      %v1798 = vpop.f32.mrf.mxu0
      %v1799 = vadd.f32 0.0, %v1798
      %v1800 = vpop.f32.mrf.mxu0
      %v1801 = vadd.f32 0.0, %v1800
      %1802 = vmatmul.bf16.gmra.mxu0 %v1779
      %v1803 = vpop.f32.mrf.mxu0
      %v1804 = vadd.f32 0.0, %v1803
      %v1805 = vpop.f32.mrf.mxu0
      %v1806 = vadd.f32 0.0, %v1805
      %1807 = vmatmul.bf16.gmra.mxu0 %v1782
      %v1808 = vpop.f32.mrf.mxu0
      %v1809 = vadd.f32 0.0, %v1808
      %v1810 = vpop.f32.mrf.mxu0
      %v1811 = vadd.f32 0.0, %v1810
      %1812 = vdwg.mxu0
      %1813 = vmatpush.bf16.msra.mxu0 0
      %1814 = vmatpush.bf16.msra.mxu0 0
      %1815 = vmatpush.bf16.msra.mxu0 %v1744
      %1816 = vmatpush.bf16.msra.mxu0 %v1740
      %1817 = vmatpush.bf16.msra.mxu0 %v1736
      %1818 = vmatpush.bf16.msra.mxu0 %v1732
      %1819 = vmatpush.bf16.msra.mxu0 %v1728
      %1820 = vmatpush.bf16.msra.mxu0 %v1724
      %1821 = vmatmul.bf16.gmra.mxu0 %v1773
      %v1822 = vpop.f32.mrf.mxu0
      %v1823 = vadd.f32 0.0, %v1822
      %v1824 = vpop.f32.mrf.mxu0
      %v1825 = vadd.f32 0.0, %v1824
      %1826 = vmatmul.bf16.gmra.mxu0 %v1776
      %v1827 = vpop.f32.mrf.mxu0
      %v1828 = vadd.f32 0.0, %v1827
      %v1829 = vpop.f32.mrf.mxu0
      %v1830 = vadd.f32 0.0, %v1829
      %1831 = vmatmul.bf16.gmra.mxu0 %v1779
      %v1832 = vpop.f32.mrf.mxu0
      %v1833 = vadd.f32 0.0, %v1832
      %v1834 = vpop.f32.mrf.mxu0
      %v1835 = vadd.f32 0.0, %v1834
      %1836 = vmatmul.bf16.gmra.mxu0 %v1782
      %v1837 = vpop.f32.mrf.mxu0
      %v1838 = vadd.f32 0.0, %v1837
      %v1839 = vpop.f32.mrf.mxu0
      %v1840 = vadd.f32 0.0, %v1839
      %1841 = vdwg.mxu0
      %1842 = vmatpush.bf16.msra.mxu0 0
      %1843 = vmatpush.bf16.msra.mxu0 0
      %1844 = vmatpush.bf16.msra.mxu0 %v1745
      %1845 = vmatpush.bf16.msra.mxu0 %v1741
      %1846 = vmatpush.bf16.msra.mxu0 %v1737
      %1847 = vmatpush.bf16.msra.mxu0 %v1733
      %1848 = vmatpush.bf16.msra.mxu0 %v1729
      %1849 = vmatpush.bf16.msra.mxu0 %v1725
      %1850 = vmatmul.bf16.gmra.mxu0 %v1773
      %v1851 = vpop.f32.mrf.mxu0
      %v1852 = vadd.f32 0.0, %v1851
      %v1853 = vpop.f32.mrf.mxu0
      %v1854 = vadd.f32 0.0, %v1853
      %1855 = vmatmul.bf16.gmra.mxu0 %v1776
      %v1856 = vpop.f32.mrf.mxu0
      %v1857 = vadd.f32 0.0, %v1856
      %v1858 = vpop.f32.mrf.mxu0
      %v1859 = vadd.f32 0.0, %v1858
      %1860 = vmatmul.bf16.gmra.mxu0 %v1779
      %v1861 = vpop.f32.mrf.mxu0
      %v1862 = vadd.f32 0.0, %v1861
      %v1863 = vpop.f32.mrf.mxu0
      %v1864 = vadd.f32 0.0, %v1863
      %1865 = vmatmul.bf16.gmra.mxu0 %v1782
      %v1866 = vpop.f32.mrf.mxu0
      %v1867 = vadd.f32 0.0, %v1866
      %v1868 = vpop.f32.mrf.mxu0
      %v1869 = vadd.f32 0.0, %v1868
      %1870 = vdwg.mxu0
      %1871 = vmatpush.bf16.msra.mxu0 0
      %1872 = vmatpush.bf16.msra.mxu0 0
      %1873 = vmatpush.bf16.msra.mxu0 %v1746
      %1874 = vmatpush.bf16.msra.mxu0 %v1742
      %1875 = vmatpush.bf16.msra.mxu0 %v1738
      %1876 = vmatpush.bf16.msra.mxu0 %v1734
      %1877 = vmatpush.bf16.msra.mxu0 %v1730
      %1878 = vmatpush.bf16.msra.mxu0 %v1726
      %1879 = vmatmul.bf16.gmra.mxu0 %v1773
      %v1880 = vpop.f32.mrf.mxu0
      %v1881 = vadd.f32 0.0, %v1880
      %v1882 = vpop.f32.mrf.mxu0
      %v1883 = vadd.f32 0.0, %v1882
      %1884 = vmatmul.bf16.gmra.mxu0 %v1776
      %v1885 = vpop.f32.mrf.mxu0
      %v1886 = vadd.f32 0.0, %v1885
      %v1887 = vpop.f32.mrf.mxu0
      %v1888 = vadd.f32 0.0, %v1887
      %1889 = vmatmul.bf16.gmra.mxu0 %v1779
      %v1890 = vpop.f32.mrf.mxu0
      %v1891 = vadd.f32 0.0, %v1890
      %v1892 = vpop.f32.mrf.mxu0
      %v1893 = vadd.f32 0.0, %v1892
      %1894 = vmatmul.bf16.gmra.mxu0 %v1782
      %v1895 = vpop.f32.mrf.mxu0
      %v1896 = vadd.f32 0.0, %v1895
      %v1897 = vpop.f32.mrf.mxu0
      %v1898 = vadd.f32 0.0, %v1897
      %1899 = vdwg.mxu0
      %v1908 = vunpack.c.l.b16 %v1566
      %v1909 = vunpack.c.l.b16 %v1567
      %v1910 = vunpack.c.l.b16 %v1568
      %v1911 = vunpack.c.l.b16 %v1569
      %v1912 = vunpack.c.l.b16 %v1570
      %v1913 = vunpack.c.l.b16 %v1571
      %v1914 = vunpack.c.l.b16 %v1572
      %v1915 = vunpack.c.l.b16 %v1573
      %v1916 = vpack.c.b16 %v1909, %v1908
      %v1917 = vpack.c.b16 %v1911, %v1910
      %v1918 = vpack.c.b16 %v1913, %v1912
      %v1919 = vpack.c.b16 %v1915, %v1914
      %v1956 = vunpack.c.l.b16 %v1530
      %v1957 = vunpack.c.h.b16 %v1530
      %v1958 = vunpack.c.l.b16 %v1531
      %v1959 = vunpack.c.h.b16 %v1531
      %v1960 = vunpack.c.l.b16 %v1532
      %v1961 = vunpack.c.h.b16 %v1532
      %v1962 = vunpack.c.l.b16 %v1533
      %v1963 = vunpack.c.h.b16 %v1533
      %v1964 = vunpack.c.l.b16 %v1534
      %v1965 = vunpack.c.h.b16 %v1534
      %v1966 = vunpack.c.l.b16 %v1535
      %v1967 = vunpack.c.h.b16 %v1535
      %v1968 = vunpack.c.l.b16 %v1536
      %v1969 = vunpack.c.h.b16 %v1536
      %v1970 = vunpack.c.l.b16 %v1537
      %v1971 = vunpack.c.h.b16 %v1537
      %v1972 = vunpack.c.l.b16 %v1538
      %v1973 = vunpack.c.h.b16 %v1538
      %v1974 = vunpack.c.l.b16 %v1539
      %v1975 = vunpack.c.h.b16 %v1539
      %v1976 = vunpack.c.l.b16 %v1540
      %v1977 = vunpack.c.h.b16 %v1540
      %v1978 = vunpack.c.l.b16 %v1541
      %v1979 = vunpack.c.h.b16 %v1541
      %v1980 = vunpack.c.l.b16 %v1542
      %v1981 = vunpack.c.h.b16 %v1542
      %v1982 = vunpack.c.l.b16 %v1543
      %v1983 = vunpack.c.h.b16 %v1543
      %v1984 = vunpack.c.l.b16 %v1544
      %v1985 = vunpack.c.h.b16 %v1544
      %v1986 = vunpack.c.l.b16 %v1545
      %v1987 = vunpack.c.h.b16 %v1545
      %v1988 = vunpack.c.l.b16 %v1546
      %v1989 = vunpack.c.h.b16 %v1546
      %v1990 = vunpack.c.l.b16 %v1547
      %v1991 = vunpack.c.h.b16 %v1547
      %v1992 = vunpack.c.l.b16 %v1548
      %v1993 = vunpack.c.h.b16 %v1548
      %v1994 = vunpack.c.l.b16 %v1549
      %v1995 = vunpack.c.h.b16 %v1549
      %v1996 = vunpack.c.l.b16 %v1550
      %v1997 = vunpack.c.h.b16 %v1550
      %v1998 = vunpack.c.l.b16 %v1551
      %v1999 = vunpack.c.h.b16 %v1551
      %v2000 = vunpack.c.l.b16 %v1552
      %v2001 = vunpack.c.h.b16 %v1552
      %v2002 = vunpack.c.l.b16 %v1553
      %v2003 = vunpack.c.h.b16 %v1553
      %v2004 = vunpack.c.l.b16 %v1554
      %v2005 = vunpack.c.h.b16 %v1554
      %v2006 = vunpack.c.l.b16 %v1555
      %v2007 = vunpack.c.h.b16 %v1555
      %v2008 = vunpack.c.l.b16 %v1556
      %v2009 = vunpack.c.h.b16 %v1556
      %v2010 = vunpack.c.l.b16 %v1557
      %v2011 = vunpack.c.h.b16 %v1557
      %v2012 = vunpack.c.l.b16 %v1558
      %v2013 = vunpack.c.h.b16 %v1558
      %v2014 = vunpack.c.l.b16 %v1559
      %v2015 = vunpack.c.h.b16 %v1559
      %v2016 = vunpack.c.l.b16 %v1560
      %v2017 = vunpack.c.h.b16 %v1560
      %v2018 = vunpack.c.l.b16 %v1561
      %v2019 = vunpack.c.h.b16 %v1561
      %v2020 = vunpack.c.l.b16 %v1562
      %v2021 = vunpack.c.h.b16 %v1562
      %v2022 = vunpack.c.l.b16 %v1563
      %v2023 = vunpack.c.h.b16 %v1563
      %v2024 = vunpack.c.l.b16 %v1564
      %v2025 = vunpack.c.h.b16 %v1564
      %v2026 = vunpack.c.l.b16 %v1565
      %v2027 = vunpack.c.h.b16 %v1565
      %v2028 = vpack.c.b16 %v1962, %v1956
      %v2029 = vpack.c.b16 %v1963, %v1957
      %v2030 = vpack.c.b16 %v1964, %v1958
      %v2031 = vpack.c.b16 %v1965, %v1959
      %v2032 = vpack.c.b16 %v1966, %v1960
      %v2033 = vpack.c.b16 %v1967, %v1961
      %v2034 = vpack.c.b16 %v1974, %v1968
      %v2035 = vpack.c.b16 %v1975, %v1969
      %v2036 = vpack.c.b16 %v1976, %v1970
      %v2037 = vpack.c.b16 %v1977, %v1971
      %v2038 = vpack.c.b16 %v1978, %v1972
      %v2039 = vpack.c.b16 %v1979, %v1973
      %v2040 = vpack.c.b16 %v1986, %v1980
      %v2041 = vpack.c.b16 %v1987, %v1981
      %v2042 = vpack.c.b16 %v1988, %v1982
      %v2043 = vpack.c.b16 %v1989, %v1983
      %v2044 = vpack.c.b16 %v1990, %v1984
      %v2045 = vpack.c.b16 %v1991, %v1985
      %v2046 = vpack.c.b16 %v1998, %v1992
      %v2047 = vpack.c.b16 %v1999, %v1993
      %v2048 = vpack.c.b16 %v2000, %v1994
      %v2049 = vpack.c.b16 %v2001, %v1995
      %v2050 = vpack.c.b16 %v2002, %v1996
      %v2051 = vpack.c.b16 %v2003, %v1997
      %v2052 = vpack.c.b16 %v2010, %v2004
      %v2053 = vpack.c.b16 %v2011, %v2005
      %v2054 = vpack.c.b16 %v2012, %v2006
      %v2055 = vpack.c.b16 %v2013, %v2007
      %v2056 = vpack.c.b16 %v2014, %v2008
      %v2057 = vpack.c.b16 %v2015, %v2009
      %v2058 = vpack.c.b16 %v2022, %v2016
      %v2059 = vpack.c.b16 %v2023, %v2017
      %v2060 = vpack.c.b16 %v2024, %v2018
      %v2061 = vpack.c.b16 %v2025, %v2019
      %v2062 = vpack.c.b16 %v2026, %v2020
      %v2063 = vpack.c.b16 %v2027, %v2021
      %2064 = vrot.lane.b32.xlu0 %v2028, 16
      %v2065 = vpop.permute.xlu0 %2064
      %2066 = vrot.lane.b32.xlu0 %v2029, 16
      %v2067 = vpop.permute.xlu0 %2066
      %2068 = vrot.lane.b32.xlu0 %v2030, 16
      %v2069 = vpop.permute.xlu0 %2068
      %2070 = vrot.lane.b32.xlu0 %v2031, 16
      %v2071 = vpop.permute.xlu0 %2070
      %2072 = vrot.lane.b32.xlu0 %v2032, 16
      %v2073 = vpop.permute.xlu0 %2072
      %2074 = vrot.lane.b32.xlu0 %v2033, 16
      %v2075 = vpop.permute.xlu0 %2074
      %2076 = vrot.lane.b32.xlu0 %v2034, 16
      %v2077 = vpop.permute.xlu0 %2076
      %2078 = vrot.lane.b32.xlu0 %v2035, 16
      %v2079 = vpop.permute.xlu0 %2078
      %2080 = vrot.lane.b32.xlu0 %v2036, 16
      %v2081 = vpop.permute.xlu0 %2080
      %2082 = vrot.lane.b32.xlu0 %v2037, 16
      %v2083 = vpop.permute.xlu0 %2082
      %2084 = vrot.lane.b32.xlu0 %v2038, 16
      %v2085 = vpop.permute.xlu0 %2084
      %2086 = vrot.lane.b32.xlu0 %v2039, 16
      %v2087 = vpop.permute.xlu0 %2086
      %2088 = vrot.lane.b32.xlu0 %v2040, 16
      %v2089 = vpop.permute.xlu0 %2088
      %2090 = vrot.lane.b32.xlu0 %v2041, 16
      %v2091 = vpop.permute.xlu0 %2090
      %2092 = vrot.lane.b32.xlu0 %v2042, 16
      %v2093 = vpop.permute.xlu0 %2092
      %2094 = vrot.lane.b32.xlu0 %v2043, 16
      %v2095 = vpop.permute.xlu0 %2094
      %2096 = vrot.lane.b32.xlu0 %v2044, 16
      %v2097 = vpop.permute.xlu0 %2096
      %2098 = vrot.lane.b32.xlu0 %v2045, 16
      %v2099 = vpop.permute.xlu0 %2098
      %2100 = vrot.lane.b32.xlu0 %v2046, 16
      %v2101 = vpop.permute.xlu0 %2100
      %2102 = vrot.lane.b32.xlu0 %v2047, 16
      %v2103 = vpop.permute.xlu0 %2102
      %2104 = vrot.lane.b32.xlu0 %v2048, 16
      %v2105 = vpop.permute.xlu0 %2104
      %2106 = vrot.lane.b32.xlu0 %v2049, 16
      %v2107 = vpop.permute.xlu0 %2106
      %2108 = vrot.lane.b32.xlu0 %v2050, 16
      %v2109 = vpop.permute.xlu0 %2108
      %2110 = vrot.lane.b32.xlu0 %v2051, 16
      %v2111 = vpop.permute.xlu0 %2110
      %2112 = vrot.lane.b32.xlu0 %v2052, 16
      %v2113 = vpop.permute.xlu0 %2112
      %2114 = vrot.lane.b32.xlu0 %v2053, 16
      %v2115 = vpop.permute.xlu0 %2114
      %2116 = vrot.lane.b32.xlu0 %v2054, 16
      %v2117 = vpop.permute.xlu0 %2116
      %2118 = vrot.lane.b32.xlu0 %v2055, 16
      %v2119 = vpop.permute.xlu0 %2118
      %2120 = vrot.lane.b32.xlu0 %v2056, 16
      %v2121 = vpop.permute.xlu0 %2120
      %2122 = vrot.lane.b32.xlu0 %v2057, 16
      %v2123 = vpop.permute.xlu0 %2122
      %2124 = vrot.lane.b32.xlu0 %v2058, 16
      %v2125 = vpop.permute.xlu0 %2124
      %2126 = vrot.lane.b32.xlu0 %v2059, 16
      %v2127 = vpop.permute.xlu0 %2126
      %2128 = vrot.lane.b32.xlu0 %v2060, 16
      %v2129 = vpop.permute.xlu0 %2128
      %2130 = vrot.lane.b32.xlu0 %v2061, 16
      %v2131 = vpop.permute.xlu0 %2130
      %2132 = vrot.lane.b32.xlu0 %v2062, 16
      %v2133 = vpop.permute.xlu0 %2132
      %2134 = vrot.lane.b32.xlu0 %v2063, 16
      %v2135 = vpop.permute.xlu0 %2134
      %v2136 = vsel %vm865, %v2065, %v2067
      %v2137 = vsel %vm865, %v2067, %v2069
      %v2138 = vsel %vm865, %v2071, %v2073
      %v2139 = vsel %vm865, %v2073, %v2075
      %v2140 = vsel %vm865, %v2077, %v2079
      %v2141 = vsel %vm865, %v2079, %v2081
      %v2142 = vsel %vm865, %v2083, %v2085
      %v2143 = vsel %vm865, %v2085, %v2087
      %v2144 = vsel %vm865, %v2089, %v2091
      %v2145 = vsel %vm865, %v2091, %v2093
      %v2146 = vsel %vm865, %v2095, %v2097
      %v2147 = vsel %vm865, %v2097, %v2099
      %v2148 = vsel %vm865, %v2101, %v2103
      %v2149 = vsel %vm865, %v2103, %v2105
      %v2150 = vsel %vm865, %v2107, %v2109
      %v2151 = vsel %vm865, %v2109, %v2111
      %v2152 = vsel %vm865, %v2113, %v2115
      %v2153 = vsel %vm865, %v2115, %v2117
      %v2154 = vsel %vm865, %v2119, %v2121
      %v2155 = vsel %vm865, %v2121, %v2123
      %v2156 = vsel %vm865, %v2125, %v2127
      %v2157 = vsel %vm865, %v2127, %v2129
      %v2158 = vsel %vm865, %v2131, %v2133
      %v2159 = vsel %vm865, %v2133, %v2135
      %v2185 = vsel %vm1771, %v1916, 0
      %v2188 = vsel %vm1771, %v1917, 0
      %v2191 = vsel %vm1771, %v1918, 0
      %v2194 = vsel %vm1771, %v1919, 0
      %2196 = vmatpush.bf16.msra.mxu0 0
      %2197 = vmatpush.bf16.msra.mxu0 0
      %2198 = vmatpush.bf16.msra.mxu0 %v2156
      %2199 = vmatpush.bf16.msra.mxu0 %v2152
      %2200 = vmatpush.bf16.msra.mxu0 %v2148
      %2201 = vmatpush.bf16.msra.mxu0 %v2144
      %2202 = vmatpush.bf16.msra.mxu0 %v2140
      %2203 = vmatpush.bf16.msra.mxu0 %v2136
      %2204 = vmatmul.bf16.gmra.mxu0 %v2185
      %v2205 = vpop.f32.mrf.mxu0
      %v2206 = vadd.f32 %v1794, %v2205
      %v2207 = vpop.f32.mrf.mxu0
      %v2208 = vadd.f32 %v1796, %v2207
      %2209 = vmatmul.bf16.gmra.mxu0 %v2188
      %v2210 = vpop.f32.mrf.mxu0
      %v2211 = vadd.f32 %v1799, %v2210
      %v2212 = vpop.f32.mrf.mxu0
      %v2213 = vadd.f32 %v1801, %v2212
      %2214 = vmatmul.bf16.gmra.mxu0 %v2191
      %v2215 = vpop.f32.mrf.mxu0
      %v2216 = vadd.f32 %v1804, %v2215
      %v2217 = vpop.f32.mrf.mxu0
      %v2218 = vadd.f32 %v1806, %v2217
      %2219 = vmatmul.bf16.gmra.mxu0 %v2194
      %v2220 = vpop.f32.mrf.mxu0
      %v2221 = vadd.f32 %v1809, %v2220
      %v2222 = vpop.f32.mrf.mxu0
      %v2223 = vadd.f32 %v1811, %v2222
      %2224 = vdwg.mxu0
      %2225 = vmatpush.bf16.msra.mxu0 0
      %2226 = vmatpush.bf16.msra.mxu0 0
      %2227 = vmatpush.bf16.msra.mxu0 %v2157
      %2228 = vmatpush.bf16.msra.mxu0 %v2153
      %2229 = vmatpush.bf16.msra.mxu0 %v2149
      %2230 = vmatpush.bf16.msra.mxu0 %v2145
      %2231 = vmatpush.bf16.msra.mxu0 %v2141
      %2232 = vmatpush.bf16.msra.mxu0 %v2137
      %2233 = vmatmul.bf16.gmra.mxu0 %v2185
      %v2234 = vpop.f32.mrf.mxu0
      %v2235 = vadd.f32 %v1823, %v2234
      %v2236 = vpop.f32.mrf.mxu0
      %v2237 = vadd.f32 %v1825, %v2236
      %2238 = vmatmul.bf16.gmra.mxu0 %v2188
      %v2239 = vpop.f32.mrf.mxu0
      %v2240 = vadd.f32 %v1828, %v2239
      %v2241 = vpop.f32.mrf.mxu0
      %v2242 = vadd.f32 %v1830, %v2241
      %2243 = vmatmul.bf16.gmra.mxu0 %v2191
      %v2244 = vpop.f32.mrf.mxu0
      %v2245 = vadd.f32 %v1833, %v2244
      %v2246 = vpop.f32.mrf.mxu0
      %v2247 = vadd.f32 %v1835, %v2246
      %2248 = vmatmul.bf16.gmra.mxu0 %v2194
      %v2249 = vpop.f32.mrf.mxu0
      %v2250 = vadd.f32 %v1838, %v2249
      %v2251 = vpop.f32.mrf.mxu0
      %v2252 = vadd.f32 %v1840, %v2251
      %2253 = vdwg.mxu0
      %2254 = vmatpush.bf16.msra.mxu0 0
      %2255 = vmatpush.bf16.msra.mxu0 0
      %2256 = vmatpush.bf16.msra.mxu0 %v2158
      %2257 = vmatpush.bf16.msra.mxu0 %v2154
      %2258 = vmatpush.bf16.msra.mxu0 %v2150
      %2259 = vmatpush.bf16.msra.mxu0 %v2146
      %2260 = vmatpush.bf16.msra.mxu0 %v2142
      %2261 = vmatpush.bf16.msra.mxu0 %v2138
      %2262 = vmatmul.bf16.gmra.mxu0 %v2185
      %v2263 = vpop.f32.mrf.mxu0
      %v2264 = vadd.f32 %v1852, %v2263
      %v2265 = vpop.f32.mrf.mxu0
      %v2266 = vadd.f32 %v1854, %v2265
      %2267 = vmatmul.bf16.gmra.mxu0 %v2188
      %v2268 = vpop.f32.mrf.mxu0
      %v2269 = vadd.f32 %v1857, %v2268
      %v2270 = vpop.f32.mrf.mxu0
      %v2271 = vadd.f32 %v1859, %v2270
      %2272 = vmatmul.bf16.gmra.mxu0 %v2191
      %v2273 = vpop.f32.mrf.mxu0
      %v2274 = vadd.f32 %v1862, %v2273
      %v2275 = vpop.f32.mrf.mxu0
      %v2276 = vadd.f32 %v1864, %v2275
      %2277 = vmatmul.bf16.gmra.mxu0 %v2194
      %v2278 = vpop.f32.mrf.mxu0
      %v2279 = vadd.f32 %v1867, %v2278
      %v2280 = vpop.f32.mrf.mxu0
      %v2281 = vadd.f32 %v1869, %v2280
      %2282 = vdwg.mxu0
      %2283 = vmatpush.bf16.msra.mxu0 0
      %2284 = vmatpush.bf16.msra.mxu0 0
      %2285 = vmatpush.bf16.msra.mxu0 %v2159
      %2286 = vmatpush.bf16.msra.mxu0 %v2155
      %2287 = vmatpush.bf16.msra.mxu0 %v2151
      %2288 = vmatpush.bf16.msra.mxu0 %v2147
      %2289 = vmatpush.bf16.msra.mxu0 %v2143
      %2290 = vmatpush.bf16.msra.mxu0 %v2139
      %2291 = vmatmul.bf16.gmra.mxu0 %v2185
      %v2292 = vpop.f32.mrf.mxu0
      %v2293 = vadd.f32 %v1881, %v2292
      %v2294 = vpop.f32.mrf.mxu0
      %v2295 = vadd.f32 %v1883, %v2294
      %2296 = vmatmul.bf16.gmra.mxu0 %v2188
      %v2297 = vpop.f32.mrf.mxu0
      %v2298 = vadd.f32 %v1886, %v2297
      %v2299 = vpop.f32.mrf.mxu0
      %v2300 = vadd.f32 %v1888, %v2299
      %2301 = vmatmul.bf16.gmra.mxu0 %v2191
      %v2302 = vpop.f32.mrf.mxu0
      %v2303 = vadd.f32 %v1891, %v2302
      %v2304 = vpop.f32.mrf.mxu0
      %v2305 = vadd.f32 %v1893, %v2304
      %2306 = vmatmul.bf16.gmra.mxu0 %v2194
      %v2307 = vpop.f32.mrf.mxu0
      %v2308 = vadd.f32 %v1896, %v2307
      %v2309 = vpop.f32.mrf.mxu0
      %v2310 = vadd.f32 %v1898, %v2309
      %2311 = vdwg.mxu0
      %v2312 = vld [vmem:[#allocation2 + $0x4] sm:$0xff]
      %v2313 = vld [vmem:[#allocation2 + $0xc] sm:$0xff]
      %v2314 = vld [vmem:[#allocation2 + $0x14] sm:$0xff]
      %v2315 = vld [vmem:[#allocation2 + $0x20] sm:$0xff]
      %v2316 = vld [vmem:[#allocation2 + $0x28] sm:$0xff]
      %v2317 = vld [vmem:[#allocation2 + $0x30] sm:$0xff]
      %v2318 = vld [vmem:[#allocation2 + $0x3c] sm:$0xff]
      %v2319 = vld [vmem:[#allocation2 + $0x44] sm:$0xff]
      %v2320 = vld [vmem:[#allocation2 + $0x4c] sm:$0xff]
      %v2321 = vld [vmem:[#allocation2 + $0x58] sm:$0xff]
      %v2322 = vld [vmem:[#allocation2 + $0x60] sm:$0xff]
      %v2323 = vld [vmem:[#allocation2 + $0x68] sm:$0xff]
      %v2324 = vld [vmem:[#allocation2 + $0x74] sm:$0xff]
      %v2325 = vld [vmem:[#allocation2 + $0x7c] sm:$0xff]
      %v2326 = vld [vmem:[#allocation2 + $0x84] sm:$0xff]
      %v2327 = vld [vmem:[#allocation2 + $0x90] sm:$0xff]
      %v2328 = vld [vmem:[#allocation2 + $0x98] sm:$0xff]
      %v2329 = vld [vmem:[#allocation2 + $0xa0] sm:$0xff]
      %v2330 = vld [vmem:[#allocation2 + $0xac] sm:$0xff]
      %v2331 = vld [vmem:[#allocation2 + $0xb4] sm:$0xff]
      %v2332 = vld [vmem:[#allocation2 + $0xbc] sm:$0xff]
      %v2333 = vld [vmem:[#allocation2 + $0xc8] sm:$0xff]
      %v2334 = vld [vmem:[#allocation2 + $0xd0] sm:$0xff]
      %v2335 = vld [vmem:[#allocation2 + $0xd8] sm:$0xff]
      %v2336 = vld [vmem:[#allocation2 + $0xe4] sm:$0xff]
      %v2337 = vld [vmem:[#allocation2 + $0xec] sm:$0xff]
      %v2338 = vld [vmem:[#allocation2 + $0xf4] sm:$0xff]
      %v2339 = vld [vmem:[#allocation2 + $0x100] sm:$0xff]
      %v2340 = vld [vmem:[#allocation2 + $0x108] sm:$0xff]
      %v2341 = vld [vmem:[#allocation2 + $0x110] sm:$0xff]
      %v2342 = vld [vmem:[#allocation2 + $0x11c] sm:$0xff]
      %v2343 = vld [vmem:[#allocation2 + $0x124] sm:$0xff]
      %v2344 = vld [vmem:[#allocation2 + $0x12c] sm:$0xff]
      %v2345 = vld [vmem:[#allocation2 + $0x138] sm:$0xff]
      %v2346 = vld [vmem:[#allocation2 + $0x140] sm:$0xff]
      %v2347 = vld [vmem:[#allocation2 + $0x148] sm:$0xff]
      %s2348 = scalar_lea.vmem %s3, 64
      %v2349 = vld [vmem:[%s2348] sm:$0xf]
      %v2350 = vld [vmem:[%s2348 + $0x4] sm:$0xf]
      %v2351 = vld [vmem:[%s2348 + $0x8] sm:$0xf]
      %v2352 = vld [vmem:[%s2348 + $0xc] sm:$0xf]
      %v2353 = vld [vmem:[%s2348 + $0x10] sm:$0xf]
      %v2354 = vld [vmem:[%s2348 + $0x14] sm:$0xf]
      %v2355 = vld [vmem:[%s2348 + $0x18] sm:$0xf]
      %v2356 = vld [vmem:[%s2348 + $0x1c] sm:$0xf]
      %v2365 = vunpack.c.l.b16 %v2349
      %v2366 = vunpack.c.l.b16 %v2350
      %v2367 = vunpack.c.l.b16 %v2351
      %v2368 = vunpack.c.l.b16 %v2352
      %v2369 = vunpack.c.l.b16 %v2353
      %v2370 = vunpack.c.l.b16 %v2354
      %v2371 = vunpack.c.l.b16 %v2355
      %v2372 = vunpack.c.l.b16 %v2356
      %v2373 = vpack.c.b16 %v2366, %v2365
      %v2374 = vpack.c.b16 %v2368, %v2367
      %v2375 = vpack.c.b16 %v2370, %v2369
      %v2376 = vpack.c.b16 %v2372, %v2371
      %v2413 = vunpack.c.l.b16 %v2312
      %v2414 = vunpack.c.h.b16 %v2312
      %v2415 = vunpack.c.l.b16 %v2313
      %v2416 = vunpack.c.h.b16 %v2313
      %v2417 = vunpack.c.l.b16 %v2314
      %v2418 = vunpack.c.h.b16 %v2314
      %v2419 = vunpack.c.l.b16 %v2315
      %v2420 = vunpack.c.h.b16 %v2315
      %v2421 = vunpack.c.l.b16 %v2316
      %v2422 = vunpack.c.h.b16 %v2316
      %v2423 = vunpack.c.l.b16 %v2317
      %v2424 = vunpack.c.h.b16 %v2317
      %v2425 = vunpack.c.l.b16 %v2318
      %v2426 = vunpack.c.h.b16 %v2318
      %v2427 = vunpack.c.l.b16 %v2319
      %v2428 = vunpack.c.h.b16 %v2319
      %v2429 = vunpack.c.l.b16 %v2320
      %v2430 = vunpack.c.h.b16 %v2320
      %v2431 = vunpack.c.l.b16 %v2321
      %v2432 = vunpack.c.h.b16 %v2321
      %v2433 = vunpack.c.l.b16 %v2322
      %v2434 = vunpack.c.h.b16 %v2322
      %v2435 = vunpack.c.l.b16 %v2323
      %v2436 = vunpack.c.h.b16 %v2323
      %v2437 = vunpack.c.l.b16 %v2324
      %v2438 = vunpack.c.h.b16 %v2324
      %v2439 = vunpack.c.l.b16 %v2325
      %v2440 = vunpack.c.h.b16 %v2325
      %v2441 = vunpack.c.l.b16 %v2326
      %v2442 = vunpack.c.h.b16 %v2326
      %v2443 = vunpack.c.l.b16 %v2327
      %v2444 = vunpack.c.h.b16 %v2327
      %v2445 = vunpack.c.l.b16 %v2328
      %v2446 = vunpack.c.h.b16 %v2328
      %v2447 = vunpack.c.l.b16 %v2329
      %v2448 = vunpack.c.h.b16 %v2329
      %v2449 = vunpack.c.l.b16 %v2330
      %v2450 = vunpack.c.h.b16 %v2330
      %v2451 = vunpack.c.l.b16 %v2331
      %v2452 = vunpack.c.h.b16 %v2331
      %v2453 = vunpack.c.l.b16 %v2332
      %v2454 = vunpack.c.h.b16 %v2332
      %v2455 = vunpack.c.l.b16 %v2333
      %v2456 = vunpack.c.h.b16 %v2333
      %v2457 = vunpack.c.l.b16 %v2334
      %v2458 = vunpack.c.h.b16 %v2334
      %v2459 = vunpack.c.l.b16 %v2335
      %v2460 = vunpack.c.h.b16 %v2335
      %v2461 = vunpack.c.l.b16 %v2336
      %v2462 = vunpack.c.h.b16 %v2336
      %v2463 = vunpack.c.l.b16 %v2337
      %v2464 = vunpack.c.h.b16 %v2337
      %v2465 = vunpack.c.l.b16 %v2338
      %v2466 = vunpack.c.h.b16 %v2338
      %v2467 = vunpack.c.l.b16 %v2339
      %v2468 = vunpack.c.h.b16 %v2339
      %v2469 = vunpack.c.l.b16 %v2340
      %v2470 = vunpack.c.h.b16 %v2340
      %v2471 = vunpack.c.l.b16 %v2341
      %v2472 = vunpack.c.h.b16 %v2341
      %v2473 = vunpack.c.l.b16 %v2342
      %v2474 = vunpack.c.h.b16 %v2342
      %v2475 = vunpack.c.l.b16 %v2343
      %v2476 = vunpack.c.h.b16 %v2343
      %v2477 = vunpack.c.l.b16 %v2344
      %v2478 = vunpack.c.h.b16 %v2344
      %v2479 = vunpack.c.l.b16 %v2345
      %v2480 = vunpack.c.h.b16 %v2345
      %v2481 = vunpack.c.l.b16 %v2346
      %v2482 = vunpack.c.h.b16 %v2346
      %v2483 = vunpack.c.l.b16 %v2347
      %v2484 = vunpack.c.h.b16 %v2347
      %v2485 = vpack.c.b16 %v2419, %v2413
      %v2486 = vpack.c.b16 %v2420, %v2414
      %v2487 = vpack.c.b16 %v2421, %v2415
      %v2488 = vpack.c.b16 %v2422, %v2416
      %v2489 = vpack.c.b16 %v2423, %v2417
      %v2490 = vpack.c.b16 %v2424, %v2418
      %v2491 = vpack.c.b16 %v2431, %v2425
      %v2492 = vpack.c.b16 %v2432, %v2426
      %v2493 = vpack.c.b16 %v2433, %v2427
      %v2494 = vpack.c.b16 %v2434, %v2428
      %v2495 = vpack.c.b16 %v2435, %v2429
      %v2496 = vpack.c.b16 %v2436, %v2430
      %v2497 = vpack.c.b16 %v2443, %v2437
      %v2498 = vpack.c.b16 %v2444, %v2438
      %v2499 = vpack.c.b16 %v2445, %v2439
      %v2500 = vpack.c.b16 %v2446, %v2440
      %v2501 = vpack.c.b16 %v2447, %v2441
      %v2502 = vpack.c.b16 %v2448, %v2442
      %v2503 = vpack.c.b16 %v2455, %v2449
      %v2504 = vpack.c.b16 %v2456, %v2450
      %v2505 = vpack.c.b16 %v2457, %v2451
      %v2506 = vpack.c.b16 %v2458, %v2452
      %v2507 = vpack.c.b16 %v2459, %v2453
      %v2508 = vpack.c.b16 %v2460, %v2454
      %v2509 = vpack.c.b16 %v2467, %v2461
      %v2510 = vpack.c.b16 %v2468, %v2462
      %v2511 = vpack.c.b16 %v2469, %v2463
      %v2512 = vpack.c.b16 %v2470, %v2464
      %v2513 = vpack.c.b16 %v2471, %v2465
      %v2514 = vpack.c.b16 %v2472, %v2466
      %v2515 = vpack.c.b16 %v2479, %v2473
      %v2516 = vpack.c.b16 %v2480, %v2474
      %v2517 = vpack.c.b16 %v2481, %v2475
      %v2518 = vpack.c.b16 %v2482, %v2476
      %v2519 = vpack.c.b16 %v2483, %v2477
      %v2520 = vpack.c.b16 %v2484, %v2478
      %2521 = vrot.lane.b32.xlu0 %v2485, 112
      %v2522 = vpop.permute.xlu0 %2521
      %2523 = vrot.lane.b32.xlu0 %v2486, 112
      %v2524 = vpop.permute.xlu0 %2523
      %2525 = vrot.lane.b32.xlu0 %v2487, 112
      %v2526 = vpop.permute.xlu0 %2525
      %2527 = vrot.lane.b32.xlu0 %v2488, 112
      %v2528 = vpop.permute.xlu0 %2527
      %2529 = vrot.lane.b32.xlu0 %v2489, 112
      %v2530 = vpop.permute.xlu0 %2529
      %2531 = vrot.lane.b32.xlu0 %v2490, 112
      %v2532 = vpop.permute.xlu0 %2531
      %2533 = vrot.lane.b32.xlu0 %v2491, 112
      %v2534 = vpop.permute.xlu0 %2533
      %2535 = vrot.lane.b32.xlu0 %v2492, 112
      %v2536 = vpop.permute.xlu0 %2535
      %2537 = vrot.lane.b32.xlu0 %v2493, 112
      %v2538 = vpop.permute.xlu0 %2537
      %2539 = vrot.lane.b32.xlu0 %v2494, 112
      %v2540 = vpop.permute.xlu0 %2539
      %2541 = vrot.lane.b32.xlu0 %v2495, 112
      %v2542 = vpop.permute.xlu0 %2541
      %2543 = vrot.lane.b32.xlu0 %v2496, 112
      %v2544 = vpop.permute.xlu0 %2543
      %2545 = vrot.lane.b32.xlu0 %v2497, 112
      %v2546 = vpop.permute.xlu0 %2545
      %2547 = vrot.lane.b32.xlu0 %v2498, 112
      %v2548 = vpop.permute.xlu0 %2547
      %2549 = vrot.lane.b32.xlu0 %v2499, 112
      %v2550 = vpop.permute.xlu0 %2549
      %2551 = vrot.lane.b32.xlu0 %v2500, 112
      %v2552 = vpop.permute.xlu0 %2551
      %2553 = vrot.lane.b32.xlu0 %v2501, 112
      %v2554 = vpop.permute.xlu0 %2553
      %2555 = vrot.lane.b32.xlu0 %v2502, 112
      %v2556 = vpop.permute.xlu0 %2555
      %2557 = vrot.lane.b32.xlu0 %v2503, 112
      %v2558 = vpop.permute.xlu0 %2557
      %2559 = vrot.lane.b32.xlu0 %v2504, 112
      %v2560 = vpop.permute.xlu0 %2559
      %2561 = vrot.lane.b32.xlu0 %v2505, 112
      %v2562 = vpop.permute.xlu0 %2561
      %2563 = vrot.lane.b32.xlu0 %v2506, 112
      %v2564 = vpop.permute.xlu0 %2563
      %2565 = vrot.lane.b32.xlu0 %v2507, 112
      %v2566 = vpop.permute.xlu0 %2565
      %2567 = vrot.lane.b32.xlu0 %v2508, 112
      %v2568 = vpop.permute.xlu0 %2567
      %2569 = vrot.lane.b32.xlu0 %v2509, 112
      %v2570 = vpop.permute.xlu0 %2569
      %2571 = vrot.lane.b32.xlu0 %v2510, 112
      %v2572 = vpop.permute.xlu0 %2571
      %2573 = vrot.lane.b32.xlu0 %v2511, 112
      %v2574 = vpop.permute.xlu0 %2573
      %2575 = vrot.lane.b32.xlu0 %v2512, 112
      %v2576 = vpop.permute.xlu0 %2575
      %2577 = vrot.lane.b32.xlu0 %v2513, 112
      %v2578 = vpop.permute.xlu0 %2577
      %2579 = vrot.lane.b32.xlu0 %v2514, 112
      %v2580 = vpop.permute.xlu0 %2579
      %2581 = vrot.lane.b32.xlu0 %v2515, 112
      %v2582 = vpop.permute.xlu0 %2581
      %2583 = vrot.lane.b32.xlu0 %v2516, 112
      %v2584 = vpop.permute.xlu0 %2583
      %2585 = vrot.lane.b32.xlu0 %v2517, 112
      %v2586 = vpop.permute.xlu0 %2585
      %2587 = vrot.lane.b32.xlu0 %v2518, 112
      %v2588 = vpop.permute.xlu0 %2587
      %2589 = vrot.lane.b32.xlu0 %v2519, 112
      %v2590 = vpop.permute.xlu0 %2589
      %2591 = vrot.lane.b32.xlu0 %v2520, 112
      %v2592 = vpop.permute.xlu0 %2591
      %v2593 = vsel %vm1009, %v2522, %v2524
      %v2594 = vsel %vm1009, %v2524, %v2526
      %v2595 = vsel %vm1009, %v2528, %v2530
      %v2596 = vsel %vm1009, %v2530, %v2532
      %v2597 = vsel %vm1009, %v2534, %v2536
      %v2598 = vsel %vm1009, %v2536, %v2538
      %v2599 = vsel %vm1009, %v2540, %v2542
      %v2600 = vsel %vm1009, %v2542, %v2544
      %v2601 = vsel %vm1009, %v2546, %v2548
      %v2602 = vsel %vm1009, %v2548, %v2550
      %v2603 = vsel %vm1009, %v2552, %v2554
      %v2604 = vsel %vm1009, %v2554, %v2556
      %v2605 = vsel %vm1009, %v2558, %v2560
      %v2606 = vsel %vm1009, %v2560, %v2562
      %v2607 = vsel %vm1009, %v2564, %v2566
      %v2608 = vsel %vm1009, %v2566, %v2568
      %v2609 = vsel %vm1009, %v2570, %v2572
      %v2610 = vsel %vm1009, %v2572, %v2574
      %v2611 = vsel %vm1009, %v2576, %v2578
      %v2612 = vsel %vm1009, %v2578, %v2580
      %v2613 = vsel %vm1009, %v2582, %v2584
      %v2614 = vsel %vm1009, %v2584, %v2586
      %v2615 = vsel %vm1009, %v2588, %v2590
      %v2616 = vsel %vm1009, %v2590, %v2592
      %v2642 = vsel %vm1771, %v2373, 0
      %v2645 = vsel %vm1771, %v2374, 0
      %v2648 = vsel %vm1771, %v2375, 0
      %v2651 = vsel %vm1771, %v2376, 0
      %2653 = vmatpush.bf16.msra.mxu0 0
      %2654 = vmatpush.bf16.msra.mxu0 0
      %2655 = vmatpush.bf16.msra.mxu0 %v2613
      %2656 = vmatpush.bf16.msra.mxu0 %v2609
      %2657 = vmatpush.bf16.msra.mxu0 %v2605
      %2658 = vmatpush.bf16.msra.mxu0 %v2601
      %2659 = vmatpush.bf16.msra.mxu0 %v2597
      %2660 = vmatpush.bf16.msra.mxu0 %v2593
      %2661 = vmatmul.bf16.gmra.mxu0 %v2642
      %v2662 = vpop.f32.mrf.mxu0
      %v2663 = vadd.f32 0.0, %v2662
      %v2664 = vpop.f32.mrf.mxu0
      %v2665 = vadd.f32 0.0, %v2664
      %2666 = vmatmul.bf16.gmra.mxu0 %v2645
      %v2667 = vpop.f32.mrf.mxu0
      %v2668 = vadd.f32 0.0, %v2667
      %v2669 = vpop.f32.mrf.mxu0
      %v2670 = vadd.f32 0.0, %v2669
      %2671 = vmatmul.bf16.gmra.mxu0 %v2648
      %v2672 = vpop.f32.mrf.mxu0
      %v2673 = vadd.f32 0.0, %v2672
      %v2674 = vpop.f32.mrf.mxu0
      %v2675 = vadd.f32 0.0, %v2674
      %2676 = vmatmul.bf16.gmra.mxu0 %v2651
      %v2677 = vpop.f32.mrf.mxu0
      %v2678 = vadd.f32 0.0, %v2677
      %v2679 = vpop.f32.mrf.mxu0
      %v2680 = vadd.f32 0.0, %v2679
      %2681 = vdwg.mxu0
      %2682 = vmatpush.bf16.msra.mxu0 0
      %2683 = vmatpush.bf16.msra.mxu0 0
      %2684 = vmatpush.bf16.msra.mxu0 %v2614
      %2685 = vmatpush.bf16.msra.mxu0 %v2610
      %2686 = vmatpush.bf16.msra.mxu0 %v2606
      %2687 = vmatpush.bf16.msra.mxu0 %v2602
      %2688 = vmatpush.bf16.msra.mxu0 %v2598
      %2689 = vmatpush.bf16.msra.mxu0 %v2594
      %2690 = vmatmul.bf16.gmra.mxu0 %v2642
      %v2691 = vpop.f32.mrf.mxu0
      %v2692 = vadd.f32 0.0, %v2691
      %v2693 = vpop.f32.mrf.mxu0
      %v2694 = vadd.f32 0.0, %v2693
      %2695 = vmatmul.bf16.gmra.mxu0 %v2645
      %v2696 = vpop.f32.mrf.mxu0
      %v2697 = vadd.f32 0.0, %v2696
      %v2698 = vpop.f32.mrf.mxu0
      %v2699 = vadd.f32 0.0, %v2698
      %2700 = vmatmul.bf16.gmra.mxu0 %v2648
      %v2701 = vpop.f32.mrf.mxu0
      %v2702 = vadd.f32 0.0, %v2701
      %v2703 = vpop.f32.mrf.mxu0
      %v2704 = vadd.f32 0.0, %v2703
      %2705 = vmatmul.bf16.gmra.mxu0 %v2651
      %v2706 = vpop.f32.mrf.mxu0
      %v2707 = vadd.f32 0.0, %v2706
      %v2708 = vpop.f32.mrf.mxu0
      %v2709 = vadd.f32 0.0, %v2708
      %2710 = vdwg.mxu0
      %2711 = vmatpush.bf16.msra.mxu0 0
      %2712 = vmatpush.bf16.msra.mxu0 0
      %2713 = vmatpush.bf16.msra.mxu0 %v2615
      %2714 = vmatpush.bf16.msra.mxu0 %v2611
      %2715 = vmatpush.bf16.msra.mxu0 %v2607
      %2716 = vmatpush.bf16.msra.mxu0 %v2603
      %2717 = vmatpush.bf16.msra.mxu0 %v2599
      %2718 = vmatpush.bf16.msra.mxu0 %v2595
      %2719 = vmatmul.bf16.gmra.mxu0 %v2642
      %v2720 = vpop.f32.mrf.mxu0
      %v2721 = vadd.f32 0.0, %v2720
      %v2722 = vpop.f32.mrf.mxu0
      %v2723 = vadd.f32 0.0, %v2722
      %2724 = vmatmul.bf16.gmra.mxu0 %v2645
      %v2725 = vpop.f32.mrf.mxu0
      %v2726 = vadd.f32 0.0, %v2725
      %v2727 = vpop.f32.mrf.mxu0
      %v2728 = vadd.f32 0.0, %v2727
      %2729 = vmatmul.bf16.gmra.mxu0 %v2648
      %v2730 = vpop.f32.mrf.mxu0
      %v2731 = vadd.f32 0.0, %v2730
      %v2732 = vpop.f32.mrf.mxu0
      %v2733 = vadd.f32 0.0, %v2732
      %2734 = vmatmul.bf16.gmra.mxu0 %v2651
      %v2735 = vpop.f32.mrf.mxu0
      %v2736 = vadd.f32 0.0, %v2735
      %v2737 = vpop.f32.mrf.mxu0
      %v2738 = vadd.f32 0.0, %v2737
      %2739 = vdwg.mxu0
      %2740 = vmatpush.bf16.msra.mxu0 0
      %2741 = vmatpush.bf16.msra.mxu0 0
      %2742 = vmatpush.bf16.msra.mxu0 %v2616
      %2743 = vmatpush.bf16.msra.mxu0 %v2612
      %2744 = vmatpush.bf16.msra.mxu0 %v2608
      %2745 = vmatpush.bf16.msra.mxu0 %v2604
      %2746 = vmatpush.bf16.msra.mxu0 %v2600
      %2747 = vmatpush.bf16.msra.mxu0 %v2596
      %2748 = vmatmul.bf16.gmra.mxu0 %v2642
      %v2749 = vpop.f32.mrf.mxu0
      %v2750 = vadd.f32 0.0, %v2749
      %v2751 = vpop.f32.mrf.mxu0
      %v2752 = vadd.f32 0.0, %v2751
      %2753 = vmatmul.bf16.gmra.mxu0 %v2645
      %v2754 = vpop.f32.mrf.mxu0
      %v2755 = vadd.f32 0.0, %v2754
      %v2756 = vpop.f32.mrf.mxu0
      %v2757 = vadd.f32 0.0, %v2756
      %2758 = vmatmul.bf16.gmra.mxu0 %v2648
      %v2759 = vpop.f32.mrf.mxu0
      %v2760 = vadd.f32 0.0, %v2759
      %v2761 = vpop.f32.mrf.mxu0
      %v2762 = vadd.f32 0.0, %v2761
      %2763 = vmatmul.bf16.gmra.mxu0 %v2651
      %v2764 = vpop.f32.mrf.mxu0
      %v2765 = vadd.f32 0.0, %v2764
      %v2766 = vpop.f32.mrf.mxu0
      %v2767 = vadd.f32 0.0, %v2766
      %2768 = vdwg.mxu0
      %v2769 = vadd.f32 %v2206, %v2663
      %v2770 = vadd.f32 %v2235, %v2692
      %v2771 = vadd.f32 %v2264, %v2721
      %v2772 = vadd.f32 %v2293, %v2750
      %v2773 = vadd.f32 %v2208, %v2665
      %v2774 = vadd.f32 %v2237, %v2694
      %v2775 = vadd.f32 %v2266, %v2723
      %v2776 = vadd.f32 %v2295, %v2752
      %v2777 = vadd.f32 %v2211, %v2668
      %v2778 = vadd.f32 %v2240, %v2697
      %v2779 = vadd.f32 %v2269, %v2726
      %v2780 = vadd.f32 %v2298, %v2755
      %v2781 = vadd.f32 %v2213, %v2670
      %v2782 = vadd.f32 %v2242, %v2699
      %v2783 = vadd.f32 %v2271, %v2728
      %v2784 = vadd.f32 %v2300, %v2757
      %v2785 = vadd.f32 %v2216, %v2673
      %v2786 = vadd.f32 %v2245, %v2702
      %v2787 = vadd.f32 %v2274, %v2731
      %v2788 = vadd.f32 %v2303, %v2760
      %v2789 = vadd.f32 %v2218, %v2675
      %v2790 = vadd.f32 %v2247, %v2704
      %v2791 = vadd.f32 %v2276, %v2733
      %v2792 = vadd.f32 %v2305, %v2762
      %v2793 = vadd.f32 %v2221, %v2678
      %v2794 = vadd.f32 %v2250, %v2707
      %v2795 = vadd.f32 %v2279, %v2736
      %v2796 = vadd.f32 %v2308, %v2765
      %v2797 = vadd.f32 %v2223, %v2680
      %v2798 = vadd.f32 %v2252, %v2709
      %v2799 = vadd.f32 %v2281, %v2738
      %v2800 = vadd.f32 %v2310, %v2767
      %v2801 = vld [vmem:[%s4] sm:$0xff]
      %v2802 = vld [vmem:[%s4 + $0x8] sm:$0xff]
      %v2803 = vld [vmem:[%s4 + $0x10] sm:$0xff]
      %v2804 = vld [vmem:[%s4 + $0x18] sm:$0xff]
      %v2805 = vld [vmem:[%s4 + $0x20] sm:$0xff]
      %v2806 = vld [vmem:[%s4 + $0x28] sm:$0xff]
      %v2807 = vld [vmem:[%s4 + $0x30] sm:$0xff]
      %v2808 = vld [vmem:[%s4 + $0x38] sm:$0xff]
      %2810 = vset.pattern.permute.xlu0 0
      %2811 = vperm.xlu0 %2810, %v2801
      %v2812 = vpop.permute.xlu0 %2811
      %2815 = vset.pattern.permute.xlu0 0
      %2816 = vperm.xlu0 %2815, %v2802
      %v2817 = vpop.permute.xlu0 %2816
      %2820 = vset.pattern.permute.xlu0 0
      %2821 = vperm.xlu0 %2820, %v2803
      %v2822 = vpop.permute.xlu0 %2821
      %2825 = vset.pattern.permute.xlu0 0
      %2826 = vperm.xlu0 %2825, %v2804
      %v2827 = vpop.permute.xlu0 %2826
      %2830 = vset.pattern.permute.xlu0 0
      %2831 = vperm.xlu0 %2830, %v2805
      %v2832 = vpop.permute.xlu0 %2831
      %2835 = vset.pattern.permute.xlu0 0
      %2836 = vperm.xlu0 %2835, %v2806
      %v2837 = vpop.permute.xlu0 %2836
      %2840 = vset.pattern.permute.xlu0 0
      %2841 = vperm.xlu0 %2840, %v2807
      %v2842 = vpop.permute.xlu0 %2841
      %2845 = vset.pattern.permute.xlu0 0
      %2846 = vperm.xlu0 %2845, %v2808
      %v2847 = vpop.permute.xlu0 %2846
      %v2849 = vadd.f32 %v2769, %v2812
      %v2850 = vadd.f32 %v2770, %v2812
      %v2851 = vadd.f32 %v2771, %v2812
      %v2852 = vadd.f32 %v2772, %v2812
      %v2853 = vadd.f32 %v2773, %v2817
      %v2854 = vadd.f32 %v2774, %v2817
      %v2855 = vadd.f32 %v2775, %v2817
      %v2856 = vadd.f32 %v2776, %v2817
      %v2857 = vadd.f32 %v2777, %v2822
      %v2858 = vadd.f32 %v2778, %v2822
      %v2859 = vadd.f32 %v2779, %v2822
      %v2860 = vadd.f32 %v2780, %v2822
      %v2861 = vadd.f32 %v2781, %v2827
      %v2862 = vadd.f32 %v2782, %v2827
      %v2863 = vadd.f32 %v2783, %v2827
      %v2864 = vadd.f32 %v2784, %v2827
      %v2865 = vadd.f32 %v2785, %v2832
      %v2866 = vadd.f32 %v2786, %v2832
      %v2867 = vadd.f32 %v2787, %v2832
      %v2868 = vadd.f32 %v2788, %v2832
      %v2869 = vadd.f32 %v2789, %v2837
      %v2870 = vadd.f32 %v2790, %v2837
      %v2871 = vadd.f32 %v2791, %v2837
      %v2872 = vadd.f32 %v2792, %v2837
      %v2873 = vadd.f32 %v2793, %v2842
      %v2874 = vadd.f32 %v2794, %v2842
      %v2875 = vadd.f32 %v2795, %v2842
      %v2876 = vadd.f32 %v2796, %v2842
      %v2877 = vadd.f32 %v2797, %v2847
      %v2878 = vadd.f32 %v2798, %v2847
      %v2879 = vadd.f32 %v2799, %v2847
      %v2880 = vadd.f32 %v2800, %v2847
      %v2881 = vmax.f32 %v2849, 0.0
      %v2882 = vmax.f32 %v2850, 0.0
      %v2883 = vmax.f32 %v2851, 0.0
      %v2884 = vmax.f32 %v2852, 0.0
      %v2885 = vmax.f32 %v2853, 0.0
      %v2886 = vmax.f32 %v2854, 0.0
      %v2887 = vmax.f32 %v2855, 0.0
      %v2888 = vmax.f32 %v2856, 0.0
      %v2889 = vmax.f32 %v2857, 0.0
      %v2890 = vmax.f32 %v2858, 0.0
      %v2891 = vmax.f32 %v2859, 0.0
      %v2892 = vmax.f32 %v2860, 0.0
      %v2893 = vmax.f32 %v2861, 0.0
      %v2894 = vmax.f32 %v2862, 0.0
      %v2895 = vmax.f32 %v2863, 0.0
      %v2896 = vmax.f32 %v2864, 0.0
      %v2897 = vmax.f32 %v2865, 0.0
      %v2898 = vmax.f32 %v2866, 0.0
      %v2899 = vmax.f32 %v2867, 0.0
      %v2900 = vmax.f32 %v2868, 0.0
      %v2901 = vmax.f32 %v2869, 0.0
      %v2902 = vmax.f32 %v2870, 0.0
      %v2903 = vmax.f32 %v2871, 0.0
      %v2904 = vmax.f32 %v2872, 0.0
      %v2905 = vmax.f32 %v2873, 0.0
      %v2906 = vmax.f32 %v2874, 0.0
      %v2907 = vmax.f32 %v2875, 0.0
      %v2908 = vmax.f32 %v2876, 0.0
      %v2909 = vmax.f32 %v2877, 0.0
      %v2910 = vmax.f32 %v2878, 0.0
      %v2911 = vmax.f32 %v2879, 0.0
      %v2912 = vmax.f32 %v2880, 0.0
      %v2913 = vpack.c.bf16 %v2882, %v2881
      %v2914 = vpack.c.bf16 %v2886, %v2885
      %v2915 = vpack.c.bf16 %v2890, %v2889
      %v2916 = vpack.c.bf16 %v2894, %v2893
      %v2917 = vpack.c.bf16 %v2898, %v2897
      %v2918 = vpack.c.bf16 %v2902, %v2901
      %v2919 = vpack.c.bf16 %v2906, %v2905
      %v2920 = vpack.c.bf16 %v2910, %v2909
      %2921 = vst [vmem:[#allocation2 + $0xe4] sm:$0xff] %v2913
      %2922 = vst [vmem:[#allocation2 + $0x100] sm:$0xff] %v2914
      %2923 = vst [vmem:[#allocation2 + $0x11c] sm:$0xff] %v2915
      %2924 = vst [vmem:[#allocation2 + $0x138] sm:$0xff] %v2916
      %2925 = vst [vmem:[#allocation2 + $0x154] sm:$0xff] %v2917
      %2926 = vst [vmem:[#allocation2 + $0x170] sm:$0xff] %v2918
      %2927 = vst [vmem:[#allocation2 + $0x18c] sm:$0xff] %v2919
      %2928 = vst [vmem:[#allocation2 + $0x1a8] sm:$0xff] %v2920
      %v2929 = vpack.c.bf16 %v2884, %v2883
      %v2930 = vpack.c.bf16 %v2888, %v2887
      %v2931 = vpack.c.bf16 %v2892, %v2891
      %v2932 = vpack.c.bf16 %v2896, %v2895
      %v2933 = vpack.c.bf16 %v2900, %v2899
      %v2934 = vpack.c.bf16 %v2904, %v2903
      %v2935 = vpack.c.bf16 %v2908, %v2907
      %v2936 = vpack.c.bf16 %v2912, %v2911
      %2937 = vst [vmem:[#allocation2 + $0xf0] sm:$0xff] %v2929
      %2938 = vst [vmem:[#allocation2 + $0x10c] sm:$0xff] %v2930
      %2939 = vst [vmem:[#allocation2 + $0x128] sm:$0xff] %v2931
      %2940 = vst [vmem:[#allocation2 + $0x144] sm:$0xff] %v2932
      %2941 = vst [vmem:[#allocation2 + $0x160] sm:$0xff] %v2933
      %2942 = vst [vmem:[#allocation2 + $0x17c] sm:$0xff] %v2934
      %2943 = vst [vmem:[#allocation2 + $0x198] sm:$0xff] %v2935
      %2944 = vst [vmem:[#allocation2 + $0x1b4] sm:$0xff] %v2936
      %v2945 = vld [vmem:[#allocation2 + $0xe0] sm:$0xff]
      %v2946 = vld [vmem:[#allocation2 + $0xe8] sm:$0xff]
      %v2947 = vld [vmem:[#allocation2 + $0xf0] sm:$0xff]
      %v2948 = vld [vmem:[#allocation2 + $0xfc] sm:$0xff]
      %v2949 = vld [vmem:[#allocation2 + $0x104] sm:$0xff]
      %v2950 = vld [vmem:[#allocation2 + $0x10c] sm:$0xff]
      %v2951 = vld [vmem:[#allocation2 + $0x118] sm:$0xff]
      %v2952 = vld [vmem:[#allocation2 + $0x120] sm:$0xff]
      %v2953 = vld [vmem:[#allocation2 + $0x128] sm:$0xff]
      %v2954 = vld [vmem:[#allocation2 + $0x134] sm:$0xff]
      %v2955 = vld [vmem:[#allocation2 + $0x13c] sm:$0xff]
      %v2956 = vld [vmem:[#allocation2 + $0x144] sm:$0xff]
      %v2957 = vld [vmem:[#allocation2 + $0x150] sm:$0xff]
      %v2958 = vld [vmem:[#allocation2 + $0x158] sm:$0xff]
      %v2959 = vld [vmem:[#allocation2 + $0x160] sm:$0xff]
      %v2960 = vld [vmem:[#allocation2 + $0x16c] sm:$0xff]
      %v2961 = vld [vmem:[#allocation2 + $0x174] sm:$0xff]
      %v2962 = vld [vmem:[#allocation2 + $0x17c] sm:$0xff]
      %v2963 = vld [vmem:[#allocation2 + $0x188] sm:$0xff]
      %v2964 = vld [vmem:[#allocation2 + $0x190] sm:$0xff]
      %v2965 = vld [vmem:[#allocation2 + $0x198] sm:$0xff]
      %v2966 = vld [vmem:[#allocation2 + $0x1a4] sm:$0xff]
      %v2967 = vld [vmem:[#allocation2 + $0x1ac] sm:$0xff]
      %v2968 = vld [vmem:[#allocation2 + $0x1b4] sm:$0xff]
      %v2969 = vld [vmem:[#allocation2 + $0xe4] sm:$0xff]
      %v2970 = vld [vmem:[#allocation2 + $0xec] sm:$0xff]
      %v2971 = vld [vmem:[#allocation2 + $0xf4] sm:$0xff]
      %v2972 = vld [vmem:[#allocation2 + $0x100] sm:$0xff]
      %v2973 = vld [vmem:[#allocation2 + $0x108] sm:$0xff]
      %v2974 = vld [vmem:[#allocation2 + $0x110] sm:$0xff]
      %v2975 = vld [vmem:[#allocation2 + $0x11c] sm:$0xff]
      %v2976 = vld [vmem:[#allocation2 + $0x124] sm:$0xff]
      %v2977 = vld [vmem:[#allocation2 + $0x12c] sm:$0xff]
      %v2978 = vld [vmem:[#allocation2 + $0x138] sm:$0xff]
      %v2979 = vld [vmem:[#allocation2 + $0x140] sm:$0xff]
      %v2980 = vld [vmem:[#allocation2 + $0x148] sm:$0xff]
      %v2981 = vld [vmem:[#allocation2 + $0x154] sm:$0xff]
      %v2982 = vld [vmem:[#allocation2 + $0x15c] sm:$0xff]
      %v2983 = vld [vmem:[#allocation2 + $0x164] sm:$0xff]
      %v2984 = vld [vmem:[#allocation2 + $0x170] sm:$0xff]
      %v2985 = vld [vmem:[#allocation2 + $0x178] sm:$0xff]
      %v2986 = vld [vmem:[#allocation2 + $0x180] sm:$0xff]
      %v2987 = vld [vmem:[#allocation2 + $0x18c] sm:$0xff]
      %v2988 = vld [vmem:[#allocation2 + $0x194] sm:$0xff]
      %v2989 = vld [vmem:[#allocation2 + $0x19c] sm:$0xff]
      %v2990 = vld [vmem:[#allocation2 + $0x1a8] sm:$0xff]
      %v2991 = vld [vmem:[#allocation2 + $0x1b0] sm:$0xff]
      %v2992 = vld [vmem:[#allocation2 + $0x1b8] sm:$0xff]
      %v2993 = vsel %vm1256, %v2945, 0
      %v2994 = vsel %vm1263, %v2946, 0
      %v2995 = vsel %vm1270, %v2947, 0
      %v2996 = vsel %vm1256, %v2948, 0
      %v2997 = vsel %vm1263, %v2949, 0
      %v2998 = vsel %vm1270, %v2950, 0
      %v2999 = vsel %vm1256, %v2951, 0
      %v3000 = vsel %vm1263, %v2952, 0
      %v3001 = vsel %vm1270, %v2953, 0
      %v3002 = vsel %vm1256, %v2954, 0
      %v3003 = vsel %vm1263, %v2955, 0
      %v3004 = vsel %vm1270, %v2956, 0
      %v3005 = vsel %vm1256, %v2957, 0
      %v3006 = vsel %vm1263, %v2958, 0
      %v3007 = vsel %vm1270, %v2959, 0
      %v3008 = vsel %vm1256, %v2960, 0
      %v3009 = vsel %vm1263, %v2961, 0
      %v3010 = vsel %vm1270, %v2962, 0
      %v3011 = vsel %vm1256, %v2963, 0
      %v3012 = vsel %vm1263, %v2964, 0
      %v3013 = vsel %vm1270, %v2965, 0
      %v3014 = vsel %vm1256, %v2966, 0
      %v3015 = vsel %vm1263, %v2967, 0
      %v3016 = vsel %vm1270, %v2968, 0
      %3041 = vrot.lane.b32.xlu0 %v2993, 1
      %v3042 = vpop.permute.xlu0 %3041
      %3043 = vrot.lane.b32.xlu0 %v2994, 1
      %v3044 = vpop.permute.xlu0 %3043
      %3045 = vrot.lane.b32.xlu0 %v2995, 1
      %v3046 = vpop.permute.xlu0 %3045
      %3047 = vrot.lane.b32.xlu0 %v2996, 1
      %v3048 = vpop.permute.xlu0 %3047
      %3049 = vrot.lane.b32.xlu0 %v2997, 1
      %v3050 = vpop.permute.xlu0 %3049
      %3051 = vrot.lane.b32.xlu0 %v2998, 1
      %v3052 = vpop.permute.xlu0 %3051
      %3053 = vrot.lane.b32.xlu0 %v2999, 1
      %v3054 = vpop.permute.xlu0 %3053
      %3055 = vrot.lane.b32.xlu0 %v3000, 1
      %v3056 = vpop.permute.xlu0 %3055
      %3057 = vrot.lane.b32.xlu0 %v3001, 1
      %v3058 = vpop.permute.xlu0 %3057
      %3059 = vrot.lane.b32.xlu0 %v3002, 1
      %v3060 = vpop.permute.xlu0 %3059
      %3061 = vrot.lane.b32.xlu0 %v3003, 1
      %v3062 = vpop.permute.xlu0 %3061
      %3063 = vrot.lane.b32.xlu0 %v3004, 1
      %v3064 = vpop.permute.xlu0 %3063
      %3065 = vrot.lane.b32.xlu0 %v3005, 1
      %v3066 = vpop.permute.xlu0 %3065
      %3067 = vrot.lane.b32.xlu0 %v3006, 1
      %v3068 = vpop.permute.xlu0 %3067
      %3069 = vrot.lane.b32.xlu0 %v3007, 1
      %v3070 = vpop.permute.xlu0 %3069
      %3071 = vrot.lane.b32.xlu0 %v3008, 1
      %v3072 = vpop.permute.xlu0 %3071
      %3073 = vrot.lane.b32.xlu0 %v3009, 1
      %v3074 = vpop.permute.xlu0 %3073
      %3075 = vrot.lane.b32.xlu0 %v3010, 1
      %v3076 = vpop.permute.xlu0 %3075
      %3077 = vrot.lane.b32.xlu0 %v3011, 1
      %v3078 = vpop.permute.xlu0 %3077
      %3079 = vrot.lane.b32.xlu0 %v3012, 1
      %v3080 = vpop.permute.xlu0 %3079
      %3081 = vrot.lane.b32.xlu0 %v3013, 1
      %v3082 = vpop.permute.xlu0 %3081
      %3083 = vrot.lane.b32.xlu0 %v3014, 1
      %v3084 = vpop.permute.xlu0 %3083
      %3085 = vrot.lane.b32.xlu0 %v3015, 1
      %v3086 = vpop.permute.xlu0 %3085
      %3087 = vrot.lane.b32.xlu0 %v3016, 1
      %v3088 = vpop.permute.xlu0 %3087
      %v3089 = vrot.slane %v3042, 4
      %v3090 = vrot.slane %v3044, 4
      %v3091 = vrot.slane %v3046, 4
      %v3092 = vrot.slane %v3048, 4
      %v3093 = vrot.slane %v3050, 4
      %v3094 = vrot.slane %v3052, 4
      %v3095 = vrot.slane %v3054, 4
      %v3096 = vrot.slane %v3056, 4
      %v3097 = vrot.slane %v3058, 4
      %v3098 = vrot.slane %v3060, 4
      %v3099 = vrot.slane %v3062, 4
      %v3100 = vrot.slane %v3064, 4
      %v3101 = vrot.slane %v3066, 4
      %v3102 = vrot.slane %v3068, 4
      %v3103 = vrot.slane %v3070, 4
      %v3104 = vrot.slane %v3072, 4
      %v3105 = vrot.slane %v3074, 4
      %v3106 = vrot.slane %v3076, 4
      %v3107 = vrot.slane %v3078, 4
      %v3108 = vrot.slane %v3080, 4
      %v3109 = vrot.slane %v3082, 4
      %v3110 = vrot.slane %v3084, 4
      %v3111 = vrot.slane %v3086, 4
      %v3112 = vrot.slane %v3088, 4
      %v3113 = vsel %vm529, %v3089, %v3090
      %v3114 = vsel %vm583, %v3042, %v3113
      %v3115 = vsel %vm529, %v3090, %v3091
      %v3116 = vsel %vm583, %v3044, %v3115
      %v3117 = vsel %vm583, %v3046, %v3091
      %v3118 = vsel %vm529, %v3092, %v3093
      %v3119 = vsel %vm583, %v3048, %v3118
      %v3120 = vsel %vm529, %v3093, %v3094
      %v3121 = vsel %vm583, %v3050, %v3120
      %v3122 = vsel %vm583, %v3052, %v3094
      %v3123 = vsel %vm529, %v3095, %v3096
      %v3124 = vsel %vm583, %v3054, %v3123
      %v3125 = vsel %vm529, %v3096, %v3097
      %v3126 = vsel %vm583, %v3056, %v3125
      %v3127 = vsel %vm583, %v3058, %v3097
      %v3128 = vsel %vm529, %v3098, %v3099
      %v3129 = vsel %vm583, %v3060, %v3128
      %v3130 = vsel %vm529, %v3099, %v3100
      %v3131 = vsel %vm583, %v3062, %v3130
      %v3132 = vsel %vm583, %v3064, %v3100
      %v3133 = vsel %vm529, %v3101, %v3102
      %v3134 = vsel %vm583, %v3066, %v3133
      %v3135 = vsel %vm529, %v3102, %v3103
      %v3136 = vsel %vm583, %v3068, %v3135
      %v3137 = vsel %vm583, %v3070, %v3103
      %v3138 = vsel %vm529, %v3104, %v3105
      %v3139 = vsel %vm583, %v3072, %v3138
      %v3140 = vsel %vm529, %v3105, %v3106
      %v3141 = vsel %vm583, %v3074, %v3140
      %v3142 = vsel %vm583, %v3076, %v3106
      %v3143 = vsel %vm529, %v3107, %v3108
      %v3144 = vsel %vm583, %v3078, %v3143
      %v3145 = vsel %vm529, %v3108, %v3109
      %v3146 = vsel %vm583, %v3080, %v3145
      %v3147 = vsel %vm583, %v3082, %v3109
      %v3148 = vsel %vm529, %v3110, %v3111
      %v3149 = vsel %vm583, %v3084, %v3148
      %v3150 = vsel %vm529, %v3111, %v3112
      %v3151 = vsel %vm583, %v3086, %v3150
      %v3152 = vsel %vm583, %v3088, %v3112
      %3177 = vst [vmem:[#allocation2 + $0x4] sm:$0xff] %v3114
      %3178 = vst [vmem:[#allocation2 + $0xc] sm:$0xff] %v3116
      %3179 = vst [vmem:[#allocation2 + $0x14] sm:$0xf] %v3117
      %3180 = vst [vmem:[#allocation2 + $0x20] sm:$0xff] %v3119
      %3181 = vst [vmem:[#allocation2 + $0x28] sm:$0xff] %v3121
      %3182 = vst [vmem:[#allocation2 + $0x30] sm:$0xf] %v3122
      %3183 = vst [vmem:[#allocation2 + $0x3c] sm:$0xff] %v3124
      %3184 = vst [vmem:[#allocation2 + $0x44] sm:$0xff] %v3126
      %3185 = vst [vmem:[#allocation2 + $0x4c] sm:$0xf] %v3127
      %3186 = vst [vmem:[#allocation2 + $0x58] sm:$0xff] %v3129
      %3187 = vst [vmem:[#allocation2 + $0x60] sm:$0xff] %v3131
      %3188 = vst [vmem:[#allocation2 + $0x68] sm:$0xf] %v3132
      %3189 = vst [vmem:[#allocation2 + $0x74] sm:$0xff] %v3134
      %3190 = vst [vmem:[#allocation2 + $0x7c] sm:$0xff] %v3136
      %3191 = vst [vmem:[#allocation2 + $0x84] sm:$0xf] %v3137
      %3192 = vst [vmem:[#allocation2 + $0x90] sm:$0xff] %v3139
      %3193 = vst [vmem:[#allocation2 + $0x98] sm:$0xff] %v3141
      %3194 = vst [vmem:[#allocation2 + $0xa0] sm:$0xf] %v3142
      %3195 = vst [vmem:[#allocation2 + $0xac] sm:$0xff] %v3144
      %3196 = vst [vmem:[#allocation2 + $0xb4] sm:$0xff] %v3146
      %3197 = vst [vmem:[#allocation2 + $0xbc] sm:$0xf] %v3147
      %3198 = vst [vmem:[#allocation2 + $0xc8] sm:$0xff] %v3149
      %3199 = vst [vmem:[#allocation2 + $0xd0] sm:$0xff] %v3151
      %3200 = vst [vmem:[#allocation2 + $0xd8] sm:$0xf] %v3152
      %v3201 = vsel %vm1411, %v2969, 0
      %v3202 = vsel %vm1418, %v2970, 0
      %v3203 = vsel %vm1425, %v2971, 0
      %v3204 = vsel %vm1411, %v2972, 0
      %v3205 = vsel %vm1418, %v2973, 0
      %v3206 = vsel %vm1425, %v2974, 0
      %v3207 = vsel %vm1411, %v2975, 0
      %v3208 = vsel %vm1418, %v2976, 0
      %v3209 = vsel %vm1425, %v2977, 0
      %v3210 = vsel %vm1411, %v2978, 0
      %v3211 = vsel %vm1418, %v2979, 0
      %v3212 = vsel %vm1425, %v2980, 0
      %v3213 = vsel %vm1411, %v2981, 0
      %v3214 = vsel %vm1418, %v2982, 0
      %v3215 = vsel %vm1425, %v2983, 0
      %v3216 = vsel %vm1411, %v2984, 0
      %v3217 = vsel %vm1418, %v2985, 0
      %v3218 = vsel %vm1425, %v2986, 0
      %v3219 = vsel %vm1411, %v2987, 0
      %v3220 = vsel %vm1418, %v2988, 0
      %v3221 = vsel %vm1425, %v2989, 0
      %v3222 = vsel %vm1411, %v2990, 0
      %v3223 = vsel %vm1418, %v2991, 0
      %v3224 = vsel %vm1425, %v2992, 0
      %3249 = vrot.lane.b32.xlu0 %v3201, 127
      %v3250 = vpop.permute.xlu0 %3249
      %3251 = vrot.lane.b32.xlu0 %v3202, 127
      %v3252 = vpop.permute.xlu0 %3251
      %3253 = vrot.lane.b32.xlu0 %v3203, 127
      %v3254 = vpop.permute.xlu0 %3253
      %3255 = vrot.lane.b32.xlu0 %v3204, 127
      %v3256 = vpop.permute.xlu0 %3255
      %3257 = vrot.lane.b32.xlu0 %v3205, 127
      %v3258 = vpop.permute.xlu0 %3257
      %3259 = vrot.lane.b32.xlu0 %v3206, 127
      %v3260 = vpop.permute.xlu0 %3259
      %3261 = vrot.lane.b32.xlu0 %v3207, 127
      %v3262 = vpop.permute.xlu0 %3261
      %3263 = vrot.lane.b32.xlu0 %v3208, 127
      %v3264 = vpop.permute.xlu0 %3263
      %3265 = vrot.lane.b32.xlu0 %v3209, 127
      %v3266 = vpop.permute.xlu0 %3265
      %3267 = vrot.lane.b32.xlu0 %v3210, 127
      %v3268 = vpop.permute.xlu0 %3267
      %3269 = vrot.lane.b32.xlu0 %v3211, 127
      %v3270 = vpop.permute.xlu0 %3269
      %3271 = vrot.lane.b32.xlu0 %v3212, 127
      %v3272 = vpop.permute.xlu0 %3271
      %3273 = vrot.lane.b32.xlu0 %v3213, 127
      %v3274 = vpop.permute.xlu0 %3273
      %3275 = vrot.lane.b32.xlu0 %v3214, 127
      %v3276 = vpop.permute.xlu0 %3275
      %3277 = vrot.lane.b32.xlu0 %v3215, 127
      %v3278 = vpop.permute.xlu0 %3277
      %3279 = vrot.lane.b32.xlu0 %v3216, 127
      %v3280 = vpop.permute.xlu0 %3279
      %3281 = vrot.lane.b32.xlu0 %v3217, 127
      %v3282 = vpop.permute.xlu0 %3281
      %3283 = vrot.lane.b32.xlu0 %v3218, 127
      %v3284 = vpop.permute.xlu0 %3283
      %3285 = vrot.lane.b32.xlu0 %v3219, 127
      %v3286 = vpop.permute.xlu0 %3285
      %3287 = vrot.lane.b32.xlu0 %v3220, 127
      %v3288 = vpop.permute.xlu0 %3287
      %3289 = vrot.lane.b32.xlu0 %v3221, 127
      %v3290 = vpop.permute.xlu0 %3289
      %3291 = vrot.lane.b32.xlu0 %v3222, 127
      %v3292 = vpop.permute.xlu0 %3291
      %3293 = vrot.lane.b32.xlu0 %v3223, 127
      %v3294 = vpop.permute.xlu0 %3293
      %3295 = vrot.lane.b32.xlu0 %v3224, 127
      %v3296 = vpop.permute.xlu0 %3295
      %v3297 = vrot.slane %v3250, 4
      %v3298 = vrot.slane %v3252, 4
      %v3299 = vrot.slane %v3254, 4
      %v3300 = vrot.slane %v3256, 4
      %v3301 = vrot.slane %v3258, 4
      %v3302 = vrot.slane %v3260, 4
      %v3303 = vrot.slane %v3262, 4
      %v3304 = vrot.slane %v3264, 4
      %v3305 = vrot.slane %v3266, 4
      %v3306 = vrot.slane %v3268, 4
      %v3307 = vrot.slane %v3270, 4
      %v3308 = vrot.slane %v3272, 4
      %v3309 = vrot.slane %v3274, 4
      %v3310 = vrot.slane %v3276, 4
      %v3311 = vrot.slane %v3278, 4
      %v3312 = vrot.slane %v3280, 4
      %v3313 = vrot.slane %v3282, 4
      %v3314 = vrot.slane %v3284, 4
      %v3315 = vrot.slane %v3286, 4
      %v3316 = vrot.slane %v3288, 4
      %v3317 = vrot.slane %v3290, 4
      %v3318 = vrot.slane %v3292, 4
      %v3319 = vrot.slane %v3294, 4
      %v3320 = vrot.slane %v3296, 4
      %v3321 = vsel %vm529, %v3297, %v3298
      %v3322 = vsel %vm527, %v3250, %v3321
      %v3323 = vsel %vm529, %v3298, %v3299
      %v3324 = vsel %vm527, %v3252, %v3323
      %v3325 = vsel %vm527, %v3254, %v3299
      %v3326 = vsel %vm529, %v3300, %v3301
      %v3327 = vsel %vm527, %v3256, %v3326
      %v3328 = vsel %vm529, %v3301, %v3302
      %v3329 = vsel %vm527, %v3258, %v3328
      %v3330 = vsel %vm527, %v3260, %v3302
      %v3331 = vsel %vm529, %v3303, %v3304
      %v3332 = vsel %vm527, %v3262, %v3331
      %v3333 = vsel %vm529, %v3304, %v3305
      %v3334 = vsel %vm527, %v3264, %v3333
      %v3335 = vsel %vm527, %v3266, %v3305
      %v3336 = vsel %vm529, %v3306, %v3307
      %v3337 = vsel %vm527, %v3268, %v3336
      %v3338 = vsel %vm529, %v3307, %v3308
      %v3339 = vsel %vm527, %v3270, %v3338
      %v3340 = vsel %vm527, %v3272, %v3308
      %v3341 = vsel %vm529, %v3309, %v3310
      %v3342 = vsel %vm527, %v3274, %v3341
      %v3343 = vsel %vm529, %v3310, %v3311
      %v3344 = vsel %vm527, %v3276, %v3343
      %v3345 = vsel %vm527, %v3278, %v3311
      %v3346 = vsel %vm529, %v3312, %v3313
      %v3347 = vsel %vm527, %v3280, %v3346
      %v3348 = vsel %vm529, %v3313, %v3314
      %v3349 = vsel %vm527, %v3282, %v3348
      %v3350 = vsel %vm527, %v3284, %v3314
      %v3351 = vsel %vm529, %v3315, %v3316
      %v3352 = vsel %vm527, %v3286, %v3351
      %v3353 = vsel %vm529, %v3316, %v3317
      %v3354 = vsel %vm527, %v3288, %v3353
      %v3355 = vsel %vm527, %v3290, %v3317
      %v3356 = vsel %vm529, %v3318, %v3319
      %v3357 = vsel %vm527, %v3292, %v3356
      %v3358 = vsel %vm529, %v3319, %v3320
      %v3359 = vsel %vm527, %v3294, %v3358
      %v3360 = vsel %vm527, %v3296, %v3320
      %3385 = vst [vmem:[#allocation2 + $0x1c4] sm:$0xff] %v3322
      %3386 = vst [vmem:[#allocation2 + $0x1cc] sm:$0xff] %v3324
      %3387 = vst [vmem:[#allocation2 + $0x1d4] sm:$0xf] %v3325
      %3388 = vst [vmem:[#allocation2 + $0x1e0] sm:$0xff] %v3327
      %3389 = vst [vmem:[#allocation2 + $0x1e8] sm:$0xff] %v3329
      %3390 = vst [vmem:[#allocation2 + $0x1f0] sm:$0xf] %v3330
      %3391 = vst [vmem:[#allocation2 + $0x1fc] sm:$0xff] %v3332
      %3392 = vst [vmem:[#allocation2 + $0x204] sm:$0xff] %v3334
      %3393 = vst [vmem:[#allocation2 + $0x20c] sm:$0xf] %v3335
      %3394 = vst [vmem:[#allocation2 + $0x218] sm:$0xff] %v3337
      %3395 = vst [vmem:[#allocation2 + $0x220] sm:$0xff] %v3339
      %3396 = vst [vmem:[#allocation2 + $0x228] sm:$0xf] %v3340
      %3397 = vst [vmem:[#allocation2 + $0x234] sm:$0xff] %v3342
      %3398 = vst [vmem:[#allocation2 + $0x23c] sm:$0xff] %v3344
      %3399 = vst [vmem:[#allocation2 + $0x244] sm:$0xf] %v3345
      %3400 = vst [vmem:[#allocation2 + $0x250] sm:$0xff] %v3347
      %3401 = vst [vmem:[#allocation2 + $0x258] sm:$0xff] %v3349
      %3402 = vst [vmem:[#allocation2 + $0x260] sm:$0xf] %v3350
      %3403 = vst [vmem:[#allocation2 + $0x26c] sm:$0xff] %v3352
      %3404 = vst [vmem:[#allocation2 + $0x274] sm:$0xff] %v3354
      %3405 = vst [vmem:[#allocation2 + $0x27c] sm:$0xf] %v3355
      %3406 = vst [vmem:[#allocation2 + $0x288] sm:$0xff] %v3357
      %3407 = vst [vmem:[#allocation2 + $0x290] sm:$0xff] %v3359
      %3408 = vst [vmem:[#allocation2 + $0x298] sm:$0xf] %v3360
      %v3409 = vld [vmem:[#allocation2] sm:$0xff]
      %v3410 = vld [vmem:[#allocation2 + $0x8] sm:$0xff]
      %v3411 = vld [vmem:[#allocation2 + $0x10] sm:$0xff]
      %v3412 = vld [vmem:[#allocation2 + $0x1c] sm:$0xff]
      %v3413 = vld [vmem:[#allocation2 + $0x24] sm:$0xff]
      %v3414 = vld [vmem:[#allocation2 + $0x2c] sm:$0xff]
      %v3415 = vld [vmem:[#allocation2 + $0x38] sm:$0xff]
      %v3416 = vld [vmem:[#allocation2 + $0x40] sm:$0xff]
      %v3417 = vld [vmem:[#allocation2 + $0x48] sm:$0xff]
      %v3418 = vld [vmem:[#allocation2 + $0x54] sm:$0xff]
      %v3419 = vld [vmem:[#allocation2 + $0x5c] sm:$0xff]
      %v3420 = vld [vmem:[#allocation2 + $0x64] sm:$0xff]
      %v3421 = vld [vmem:[#allocation2 + $0x70] sm:$0xff]
      %v3422 = vld [vmem:[#allocation2 + $0x78] sm:$0xff]
      %v3423 = vld [vmem:[#allocation2 + $0x80] sm:$0xff]
      %v3424 = vld [vmem:[#allocation2 + $0x8c] sm:$0xff]
      %v3425 = vld [vmem:[#allocation2 + $0x94] sm:$0xff]
      %v3426 = vld [vmem:[#allocation2 + $0x9c] sm:$0xff]
      %v3427 = vld [vmem:[#allocation2 + $0xa8] sm:$0xff]
      %v3428 = vld [vmem:[#allocation2 + $0xb0] sm:$0xff]
      %v3429 = vld [vmem:[#allocation2 + $0xb8] sm:$0xff]
      %v3430 = vld [vmem:[#allocation2 + $0xc4] sm:$0xff]
      %v3431 = vld [vmem:[#allocation2 + $0xcc] sm:$0xff]
      %v3432 = vld [vmem:[#allocation2 + $0xd4] sm:$0xff]
      %v3433 = vld [vmem:[#allocation2 + $0xe0] sm:$0xff]
      %v3434 = vld [vmem:[#allocation2 + $0xe8] sm:$0xff]
      %v3435 = vld [vmem:[#allocation2 + $0xf0] sm:$0xff]
      %v3436 = vld [vmem:[#allocation2 + $0xfc] sm:$0xff]
      %v3437 = vld [vmem:[#allocation2 + $0x104] sm:$0xff]
      %v3438 = vld [vmem:[#allocation2 + $0x10c] sm:$0xff]
      %v3439 = vld [vmem:[#allocation2 + $0x118] sm:$0xff]
      %v3440 = vld [vmem:[#allocation2 + $0x120] sm:$0xff]
      %v3441 = vld [vmem:[#allocation2 + $0x128] sm:$0xff]
      %v3442 = vld [vmem:[#allocation2 + $0x134] sm:$0xff]
      %v3443 = vld [vmem:[#allocation2 + $0x13c] sm:$0xff]
      %v3444 = vld [vmem:[#allocation2 + $0x144] sm:$0xff]
      %v3445 = vld [vmem:[#allocation2 + $0x150] sm:$0xff]
      %v3446 = vld [vmem:[#allocation2 + $0x158] sm:$0xff]
      %v3447 = vld [vmem:[#allocation2 + $0x160] sm:$0xff]
      %v3448 = vld [vmem:[#allocation2 + $0x16c] sm:$0xff]
      %v3449 = vld [vmem:[#allocation2 + $0x174] sm:$0xff]
      %v3450 = vld [vmem:[#allocation2 + $0x17c] sm:$0xff]
      %v3451 = vld [vmem:[#allocation2 + $0x188] sm:$0xff]
      %v3452 = vld [vmem:[#allocation2 + $0x190] sm:$0xff]
      %v3453 = vld [vmem:[#allocation2 + $0x198] sm:$0xff]
      %v3454 = vld [vmem:[#allocation2 + $0x1a4] sm:$0xff]
      %v3455 = vld [vmem:[#allocation2 + $0x1ac] sm:$0xff]
      %v3456 = vld [vmem:[#allocation2 + $0x1b4] sm:$0xff]
      %v3457 = vld [vmem:[#allocation2 + $0x1c0] sm:$0xff]
      %v3458 = vld [vmem:[#allocation2 + $0x1c8] sm:$0xff]
      %v3459 = vld [vmem:[#allocation2 + $0x1d0] sm:$0xff]
      %v3460 = vld [vmem:[#allocation2 + $0x1dc] sm:$0xff]
      %v3461 = vld [vmem:[#allocation2 + $0x1e4] sm:$0xff]
      %v3462 = vld [vmem:[#allocation2 + $0x1ec] sm:$0xff]
      %v3463 = vld [vmem:[#allocation2 + $0x1f8] sm:$0xff]
      %v3464 = vld [vmem:[#allocation2 + $0x200] sm:$0xff]
      %v3465 = vld [vmem:[#allocation2 + $0x208] sm:$0xff]
      %v3466 = vld [vmem:[#allocation2 + $0x214] sm:$0xff]
      %v3467 = vld [vmem:[#allocation2 + $0x21c] sm:$0xff]
      %v3468 = vld [vmem:[#allocation2 + $0x224] sm:$0xff]
      %v3469 = vld [vmem:[#allocation2 + $0x230] sm:$0xff]
      %v3470 = vld [vmem:[#allocation2 + $0x238] sm:$0xff]
      %v3471 = vld [vmem:[#allocation2 + $0x240] sm:$0xff]
      %v3472 = vld [vmem:[#allocation2 + $0x24c] sm:$0xff]
      %v3473 = vld [vmem:[#allocation2 + $0x254] sm:$0xff]
      %v3474 = vld [vmem:[#allocation2 + $0x25c] sm:$0xff]
      %v3475 = vld [vmem:[#allocation2 + $0x268] sm:$0xff]
      %v3476 = vld [vmem:[#allocation2 + $0x270] sm:$0xff]
      %v3477 = vld [vmem:[#allocation2 + $0x278] sm:$0xff]
      %v3478 = vld [vmem:[#allocation2 + $0x284] sm:$0xff]
      %v3479 = vld [vmem:[#allocation2 + $0x28c] sm:$0xff]
      %v3480 = vld [vmem:[#allocation2 + $0x294] sm:$0xff]
      %v3481 = vld [vmem:[%s5] sm:$0xff]
      %v3482 = vld [vmem:[%s5 + $0x8] sm:$0xff]
      %v3483 = vld [vmem:[%s5 + $0x10] sm:$0xff]
      %v3484 = vld [vmem:[%s5 + $0x18] sm:$0xff]
      %v3485 = vld [vmem:[#allocation2 + $0x4] sm:$0xff]
      %v3486 = vld [vmem:[#allocation2 + $0xc] sm:$0xff]
      %v3487 = vld [vmem:[#allocation2 + $0x14] sm:$0xf]
      %v3488 = vld [vmem:[#allocation2 + $0x20] sm:$0xff]
      %v3489 = vld [vmem:[#allocation2 + $0x28] sm:$0xff]
      %v3490 = vld [vmem:[#allocation2 + $0x30] sm:$0xf]
      %v3491 = vld [vmem:[#allocation2 + $0x3c] sm:$0xff]
      %v3492 = vld [vmem:[#allocation2 + $0x44] sm:$0xff]
      %v3493 = vld [vmem:[#allocation2 + $0x4c] sm:$0xf]
      %v3494 = vld [vmem:[#allocation2 + $0x58] sm:$0xff]
      %v3495 = vld [vmem:[#allocation2 + $0x60] sm:$0xff]
      %v3496 = vld [vmem:[#allocation2 + $0x68] sm:$0xf]
      %v3497 = vld [vmem:[#allocation2 + $0x74] sm:$0xff]
      %v3498 = vld [vmem:[#allocation2 + $0x7c] sm:$0xff]
      %v3499 = vld [vmem:[#allocation2 + $0x84] sm:$0xf]
      %v3500 = vld [vmem:[#allocation2 + $0x90] sm:$0xff]
      %v3501 = vld [vmem:[#allocation2 + $0x98] sm:$0xff]
      %v3502 = vld [vmem:[#allocation2 + $0xa0] sm:$0xf]
      %v3503 = vld [vmem:[#allocation2 + $0xac] sm:$0xff]
      %v3504 = vld [vmem:[#allocation2 + $0xb4] sm:$0xff]
      %v3505 = vld [vmem:[#allocation2 + $0xbc] sm:$0xf]
      %v3506 = vld [vmem:[#allocation2 + $0xc8] sm:$0xff]
      %v3507 = vld [vmem:[#allocation2 + $0xd0] sm:$0xff]
      %v3508 = vld [vmem:[#allocation2 + $0xd8] sm:$0xf]
      %v3509 = vld [vmem:[#allocation2 + $0xe4] sm:$0xff]
      %v3510 = vld [vmem:[#allocation2 + $0xec] sm:$0xff]
      %v3511 = vld [vmem:[#allocation2 + $0xf4] sm:$0xf]
      %v3512 = vld [vmem:[#allocation2 + $0x100] sm:$0xff]
      %v3513 = vld [vmem:[#allocation2 + $0x108] sm:$0xff]
      %v3514 = vld [vmem:[#allocation2 + $0x110] sm:$0xf]
      %v3515 = vld [vmem:[#allocation2 + $0x11c] sm:$0xff]
      %v3516 = vld [vmem:[#allocation2 + $0x124] sm:$0xff]
      %v3517 = vld [vmem:[#allocation2 + $0x12c] sm:$0xf]
      %v3518 = vld [vmem:[#allocation2 + $0x138] sm:$0xff]
      %v3519 = vld [vmem:[#allocation2 + $0x140] sm:$0xff]
      %v3520 = vld [vmem:[#allocation2 + $0x148] sm:$0xf]
      %v3521 = vld [vmem:[#allocation2 + $0x154] sm:$0xff]
      %v3522 = vld [vmem:[#allocation2 + $0x15c] sm:$0xff]
      %v3523 = vld [vmem:[#allocation2 + $0x164] sm:$0xf]
      %v3524 = vld [vmem:[#allocation2 + $0x170] sm:$0xff]
      %v3525 = vld [vmem:[#allocation2 + $0x178] sm:$0xff]
      %v3526 = vld [vmem:[#allocation2 + $0x180] sm:$0xf]
      %v3527 = vld [vmem:[#allocation2 + $0x18c] sm:$0xff]
      %v3528 = vld [vmem:[#allocation2 + $0x194] sm:$0xff]
      %v3529 = vld [vmem:[#allocation2 + $0x19c] sm:$0xf]
      %v3530 = vld [vmem:[#allocation2 + $0x1a8] sm:$0xff]
      %v3531 = vld [vmem:[#allocation2 + $0x1b0] sm:$0xff]
      %v3532 = vld [vmem:[#allocation2 + $0x1b8] sm:$0xf]
      %v3533 = vld [vmem:[#allocation2 + $0x1c4] sm:$0xff]
      %v3534 = vld [vmem:[#allocation2 + $0x1cc] sm:$0xff]
      %v3535 = vld [vmem:[#allocation2 + $0x1d4] sm:$0xf]
      %v3536 = vld [vmem:[#allocation2 + $0x1e0] sm:$0xff]
      %v3537 = vld [vmem:[#allocation2 + $0x1e8] sm:$0xff]
      %v3538 = vld [vmem:[#allocation2 + $0x1f0] sm:$0xf]
      %v3539 = vld [vmem:[#allocation2 + $0x1fc] sm:$0xff]
      %v3540 = vld [vmem:[#allocation2 + $0x204] sm:$0xff]
      %v3541 = vld [vmem:[#allocation2 + $0x20c] sm:$0xf]
      %v3542 = vld [vmem:[#allocation2 + $0x218] sm:$0xff]
      %v3543 = vld [vmem:[#allocation2 + $0x220] sm:$0xff]
      %v3544 = vld [vmem:[#allocation2 + $0x228] sm:$0xf]
      %v3545 = vld [vmem:[#allocation2 + $0x234] sm:$0xff]
      %v3546 = vld [vmem:[#allocation2 + $0x23c] sm:$0xff]
      %v3547 = vld [vmem:[#allocation2 + $0x244] sm:$0xf]
      %v3548 = vld [vmem:[#allocation2 + $0x250] sm:$0xff]
      %v3549 = vld [vmem:[#allocation2 + $0x258] sm:$0xff]
      %v3550 = vld [vmem:[#allocation2 + $0x260] sm:$0xf]
      %v3551 = vld [vmem:[#allocation2 + $0x26c] sm:$0xff]
      %v3552 = vld [vmem:[#allocation2 + $0x274] sm:$0xff]
      %v3553 = vld [vmem:[#allocation2 + $0x27c] sm:$0xf]
      %v3554 = vld [vmem:[#allocation2 + $0x288] sm:$0xff]
      %v3555 = vld [vmem:[#allocation2 + $0x290] sm:$0xff]
      %v3556 = vld [vmem:[#allocation2 + $0x298] sm:$0xf]
      %s3557 = scalar_lea.vmem %s5, 32
      %v3558 = vld [vmem:[%s3557] sm:$0xff]
      %v3559 = vld [vmem:[%s3557 + $0x8] sm:$0xff]
      %v3560 = vld [vmem:[%s3557 + $0x10] sm:$0xff]
      %v3561 = vld [vmem:[%s3557 + $0x18] sm:$0xff]
      %v3566 = vunpack.c.l.b16 %v3558
      %v3567 = vunpack.c.h.b16 %v3558
      %v3568 = vunpack.c.l.b16 %v3559
      %v3569 = vunpack.c.h.b16 %v3559
      %v3570 = vunpack.c.l.b16 %v3560
      %v3571 = vunpack.c.h.b16 %v3560
      %v3572 = vunpack.c.l.b16 %v3561
      %v3573 = vunpack.c.h.b16 %v3561
      %v3574 = vpack.c.b16 %v3568, %v3566
      %v3575 = vpack.c.b16 %v3569, %v3567
      %v3576 = vpack.c.b16 %v3572, %v3570
      %v3577 = vpack.c.b16 %v3573, %v3571
      %v3652 = vunpack.c.l.b16 %v3485
      %v3653 = vunpack.c.h.b16 %v3485
      %v3654 = vunpack.c.h.b16 %v3486
      %v3655 = vunpack.c.l.b16 %v3487
      %v3656 = vunpack.c.l.b16 %v3488
      %v3657 = vunpack.c.h.b16 %v3488
      %v3658 = vunpack.c.h.b16 %v3489
      %v3659 = vunpack.c.l.b16 %v3490
      %v3660 = vunpack.c.l.b16 %v3491
      %v3661 = vunpack.c.h.b16 %v3491
      %v3662 = vunpack.c.h.b16 %v3492
      %v3663 = vunpack.c.l.b16 %v3493
      %v3664 = vunpack.c.l.b16 %v3494
      %v3665 = vunpack.c.h.b16 %v3494
      %v3666 = vunpack.c.h.b16 %v3495
      %v3667 = vunpack.c.l.b16 %v3496
      %v3668 = vunpack.c.l.b16 %v3497
      %v3669 = vunpack.c.h.b16 %v3497
      %v3670 = vunpack.c.h.b16 %v3498
      %v3671 = vunpack.c.l.b16 %v3499
      %v3672 = vunpack.c.l.b16 %v3500
      %v3673 = vunpack.c.h.b16 %v3500
      %v3674 = vunpack.c.h.b16 %v3501
      %v3675 = vunpack.c.l.b16 %v3502
      %v3676 = vunpack.c.l.b16 %v3503
      %v3677 = vunpack.c.h.b16 %v3503
      %v3678 = vunpack.c.h.b16 %v3504
      %v3679 = vunpack.c.l.b16 %v3505
      %v3680 = vunpack.c.l.b16 %v3506
      %v3681 = vunpack.c.h.b16 %v3506
      %v3682 = vunpack.c.h.b16 %v3507
      %v3683 = vunpack.c.l.b16 %v3508
      %v3684 = vunpack.c.l.b16 %v3509
      %v3685 = vunpack.c.h.b16 %v3509
      %v3686 = vunpack.c.h.b16 %v3510
      %v3687 = vunpack.c.l.b16 %v3511
      %v3688 = vunpack.c.l.b16 %v3512
      %v3689 = vunpack.c.h.b16 %v3512
      %v3690 = vunpack.c.h.b16 %v3513
      %v3691 = vunpack.c.l.b16 %v3514
      %v3692 = vunpack.c.l.b16 %v3515
      %v3693 = vunpack.c.h.b16 %v3515
      %v3694 = vunpack.c.h.b16 %v3516
      %v3695 = vunpack.c.l.b16 %v3517
      %v3696 = vunpack.c.l.b16 %v3518
      %v3697 = vunpack.c.h.b16 %v3518
      %v3698 = vunpack.c.h.b16 %v3519
      %v3699 = vunpack.c.l.b16 %v3520
      %v3700 = vunpack.c.l.b16 %v3521
      %v3701 = vunpack.c.h.b16 %v3521
      %v3702 = vunpack.c.h.b16 %v3522
      %v3703 = vunpack.c.l.b16 %v3523
      %v3704 = vunpack.c.l.b16 %v3524
      %v3705 = vunpack.c.h.b16 %v3524
      %v3706 = vunpack.c.h.b16 %v3525
      %v3707 = vunpack.c.l.b16 %v3526
      %v3708 = vunpack.c.l.b16 %v3527
      %v3709 = vunpack.c.h.b16 %v3527
      %v3710 = vunpack.c.h.b16 %v3528
      %v3711 = vunpack.c.l.b16 %v3529
      %v3712 = vunpack.c.l.b16 %v3530
      %v3713 = vunpack.c.h.b16 %v3530
      %v3714 = vunpack.c.h.b16 %v3531
      %v3715 = vunpack.c.l.b16 %v3532
      %v3716 = vunpack.c.l.b16 %v3533
      %v3717 = vunpack.c.h.b16 %v3533
      %v3718 = vunpack.c.h.b16 %v3534
      %v3719 = vunpack.c.l.b16 %v3535
      %v3720 = vunpack.c.l.b16 %v3536
      %v3721 = vunpack.c.h.b16 %v3536
      %v3722 = vunpack.c.h.b16 %v3537
      %v3723 = vunpack.c.l.b16 %v3538
      %v3724 = vunpack.c.l.b16 %v3539
      %v3725 = vunpack.c.h.b16 %v3539
      %v3726 = vunpack.c.h.b16 %v3540
      %v3727 = vunpack.c.l.b16 %v3541
      %v3728 = vunpack.c.l.b16 %v3542
      %v3729 = vunpack.c.h.b16 %v3542
      %v3730 = vunpack.c.h.b16 %v3543
      %v3731 = vunpack.c.l.b16 %v3544
      %v3732 = vunpack.c.l.b16 %v3545
      %v3733 = vunpack.c.h.b16 %v3545
      %v3734 = vunpack.c.h.b16 %v3546
      %v3735 = vunpack.c.l.b16 %v3547
      %v3736 = vunpack.c.l.b16 %v3548
      %v3737 = vunpack.c.h.b16 %v3548
      %v3738 = vunpack.c.h.b16 %v3549
      %v3739 = vunpack.c.l.b16 %v3550
      %v3740 = vunpack.c.l.b16 %v3551
      %v3741 = vunpack.c.h.b16 %v3551
      %v3742 = vunpack.c.h.b16 %v3552
      %v3743 = vunpack.c.l.b16 %v3553
      %v3744 = vunpack.c.l.b16 %v3554
      %v3745 = vunpack.c.h.b16 %v3554
      %v3746 = vunpack.c.h.b16 %v3555
      %v3747 = vunpack.c.l.b16 %v3556
      %v3748 = vpack.c.b16 %v3656, %v3652
      %v3749 = vpack.c.b16 %v3657, %v3653
      %v3750 = vpack.c.b16 %v3658, %v3654
      %v3751 = vpack.c.b16 %v3659, %v3655
      %v3752 = vpack.c.b16 %v3664, %v3660
      %v3753 = vpack.c.b16 %v3665, %v3661
      %v3754 = vpack.c.b16 %v3666, %v3662
      %v3755 = vpack.c.b16 %v3667, %v3663
      %v3756 = vpack.c.b16 %v3672, %v3668
      %v3757 = vpack.c.b16 %v3673, %v3669
      %v3758 = vpack.c.b16 %v3674, %v3670
      %v3759 = vpack.c.b16 %v3675, %v3671
      %v3760 = vpack.c.b16 %v3680, %v3676
      %v3761 = vpack.c.b16 %v3681, %v3677
      %v3762 = vpack.c.b16 %v3682, %v3678
      %v3763 = vpack.c.b16 %v3683, %v3679
      %v3764 = vpack.c.b16 %v3688, %v3684
      %v3765 = vpack.c.b16 %v3689, %v3685
      %v3766 = vpack.c.b16 %v3690, %v3686
      %v3767 = vpack.c.b16 %v3691, %v3687
      %v3768 = vpack.c.b16 %v3696, %v3692
      %v3769 = vpack.c.b16 %v3697, %v3693
      %v3770 = vpack.c.b16 %v3698, %v3694
      %v3771 = vpack.c.b16 %v3699, %v3695
      %v3772 = vpack.c.b16 %v3704, %v3700
      %v3773 = vpack.c.b16 %v3705, %v3701
      %v3774 = vpack.c.b16 %v3706, %v3702
      %v3775 = vpack.c.b16 %v3707, %v3703
      %v3776 = vpack.c.b16 %v3712, %v3708
      %v3777 = vpack.c.b16 %v3713, %v3709
      %v3778 = vpack.c.b16 %v3714, %v3710
      %v3779 = vpack.c.b16 %v3715, %v3711
      %v3780 = vpack.c.b16 %v3720, %v3716
      %v3781 = vpack.c.b16 %v3721, %v3717
      %v3782 = vpack.c.b16 %v3722, %v3718
      %v3783 = vpack.c.b16 %v3723, %v3719
      %v3784 = vpack.c.b16 %v3728, %v3724
      %v3785 = vpack.c.b16 %v3729, %v3725
      %v3786 = vpack.c.b16 %v3730, %v3726
      %v3787 = vpack.c.b16 %v3731, %v3727
      %v3788 = vpack.c.b16 %v3736, %v3732
      %v3789 = vpack.c.b16 %v3737, %v3733
      %v3790 = vpack.c.b16 %v3738, %v3734
      %v3791 = vpack.c.b16 %v3739, %v3735
      %v3792 = vpack.c.b16 %v3744, %v3740
      %v3793 = vpack.c.b16 %v3745, %v3741
      %v3794 = vpack.c.b16 %v3746, %v3742
      %v3795 = vpack.c.b16 %v3747, %v3743
      %vm3844 = vcmask 523264
      %v3846 = vsel %vm3844, %v3575, 0
      %v3849 = vsel %vm3844, %v3577, 0
      %3851 = vmatpush.bf16.msra.mxu0 %v3776
      %3852 = vmatpush.bf16.msra.mxu0 %v3772
      %3853 = vmatpush.bf16.msra.mxu0 %v3768
      %3854 = vmatpush.bf16.msra.mxu0 %v3764
      %3855 = vmatpush.bf16.msra.mxu0 %v3760
      %3856 = vmatpush.bf16.msra.mxu0 %v3756
      %3857 = vmatpush.bf16.msra.mxu0 %v3752
      %3858 = vmatpush.bf16.msra.mxu0 %v3748
      %3859 = vmatmul.bf16.gmra.mxu0 %v3574
      %v3860 = vpop.f32.mrf.mxu0
      %v3861 = vadd.f32 0.0, %v3860
      %v3862 = vpop.f32.mrf.mxu0
      %v3863 = vadd.f32 0.0, %v3862
      %3864 = vmatmul.bf16.gmra.mxu0 %v3576
      %v3865 = vpop.f32.mrf.mxu0
      %v3866 = vadd.f32 0.0, %v3865
      %v3867 = vpop.f32.mrf.mxu0
      %v3868 = vadd.f32 0.0, %v3867
      %3869 = vdwg.mxu0
      %3870 = vmatpush.bf16.msra.mxu0 0
      %3871 = vmatpush.bf16.msra.mxu0 0
      %3872 = vmatpush.bf16.msra.mxu0 0
      %3873 = vmatpush.bf16.msra.mxu0 0
      %3874 = vmatpush.bf16.msra.mxu0 %v3792
      %3875 = vmatpush.bf16.msra.mxu0 %v3788
      %3876 = vmatpush.bf16.msra.mxu0 %v3784
      %3877 = vmatpush.bf16.msra.mxu0 %v3780
      %3878 = vmatmul.bf16.gmra.mxu0 %v3846
      %v3879 = vpop.f32.mrf.mxu0
      %v3880 = vadd.f32 %v3861, %v3879
      %v3881 = vpop.f32.mrf.mxu0
      %v3882 = vadd.f32 %v3863, %v3881
      %3883 = vmatmul.bf16.gmra.mxu0 %v3849
      %v3884 = vpop.f32.mrf.mxu0
      %v3885 = vadd.f32 %v3866, %v3884
      %v3886 = vpop.f32.mrf.mxu0
      %v3887 = vadd.f32 %v3868, %v3886
      %3888 = vdwg.mxu0
      %3889 = vmatpush.bf16.msra.mxu0 %v3777
      %3890 = vmatpush.bf16.msra.mxu0 %v3773
      %3891 = vmatpush.bf16.msra.mxu0 %v3769
      %3892 = vmatpush.bf16.msra.mxu0 %v3765
      %3893 = vmatpush.bf16.msra.mxu0 %v3761
      %3894 = vmatpush.bf16.msra.mxu0 %v3757
      %3895 = vmatpush.bf16.msra.mxu0 %v3753
      %3896 = vmatpush.bf16.msra.mxu0 %v3749
      %3897 = vmatmul.bf16.gmra.mxu0 %v3574
      %v3898 = vpop.f32.mrf.mxu0
      %v3899 = vadd.f32 0.0, %v3898
      %v3900 = vpop.f32.mrf.mxu0
      %v3901 = vadd.f32 0.0, %v3900
      %3902 = vmatmul.bf16.gmra.mxu0 %v3576
      %v3903 = vpop.f32.mrf.mxu0
      %v3904 = vadd.f32 0.0, %v3903
      %v3905 = vpop.f32.mrf.mxu0
      %v3906 = vadd.f32 0.0, %v3905
      %3907 = vdwg.mxu0
      %3908 = vmatpush.bf16.msra.mxu0 0
      %3909 = vmatpush.bf16.msra.mxu0 0
      %3910 = vmatpush.bf16.msra.mxu0 0
      %3911 = vmatpush.bf16.msra.mxu0 0
      %3912 = vmatpush.bf16.msra.mxu0 %v3793
      %3913 = vmatpush.bf16.msra.mxu0 %v3789
      %3914 = vmatpush.bf16.msra.mxu0 %v3785
      %3915 = vmatpush.bf16.msra.mxu0 %v3781
      %3916 = vmatmul.bf16.gmra.mxu0 %v3846
      %v3917 = vpop.f32.mrf.mxu0
      %v3918 = vadd.f32 %v3899, %v3917
      %v3919 = vpop.f32.mrf.mxu0
      %v3920 = vadd.f32 %v3901, %v3919
      %3921 = vmatmul.bf16.gmra.mxu0 %v3849
      %v3922 = vpop.f32.mrf.mxu0
      %v3923 = vadd.f32 %v3904, %v3922
      %v3924 = vpop.f32.mrf.mxu0
      %v3925 = vadd.f32 %v3906, %v3924
      %3926 = vdwg.mxu0
      %3927 = vmatpush.bf16.msra.mxu0 %v3778
      %3928 = vmatpush.bf16.msra.mxu0 %v3774
      %3929 = vmatpush.bf16.msra.mxu0 %v3770
      %3930 = vmatpush.bf16.msra.mxu0 %v3766
      %3931 = vmatpush.bf16.msra.mxu0 %v3762
      %3932 = vmatpush.bf16.msra.mxu0 %v3758
      %3933 = vmatpush.bf16.msra.mxu0 %v3754
      %3934 = vmatpush.bf16.msra.mxu0 %v3750
      %3935 = vmatmul.bf16.gmra.mxu0 %v3574
      %v3936 = vpop.f32.mrf.mxu0
      %v3937 = vadd.f32 0.0, %v3936
      %v3938 = vpop.f32.mrf.mxu0
      %v3939 = vadd.f32 0.0, %v3938
      %3940 = vmatmul.bf16.gmra.mxu0 %v3576
      %v3941 = vpop.f32.mrf.mxu0
      %v3942 = vadd.f32 0.0, %v3941
      %v3943 = vpop.f32.mrf.mxu0
      %v3944 = vadd.f32 0.0, %v3943
      %3945 = vdwg.mxu0
      %3946 = vmatpush.bf16.msra.mxu0 0
      %3947 = vmatpush.bf16.msra.mxu0 0
      %3948 = vmatpush.bf16.msra.mxu0 0
      %3949 = vmatpush.bf16.msra.mxu0 0
      %3950 = vmatpush.bf16.msra.mxu0 %v3794
      %3951 = vmatpush.bf16.msra.mxu0 %v3790
      %3952 = vmatpush.bf16.msra.mxu0 %v3786
      %3953 = vmatpush.bf16.msra.mxu0 %v3782
      %3954 = vmatmul.bf16.gmra.mxu0 %v3846
      %v3955 = vpop.f32.mrf.mxu0
      %v3956 = vadd.f32 %v3937, %v3955
      %v3957 = vpop.f32.mrf.mxu0
      %v3958 = vadd.f32 %v3939, %v3957
      %3959 = vmatmul.bf16.gmra.mxu0 %v3849
      %v3960 = vpop.f32.mrf.mxu0
      %v3961 = vadd.f32 %v3942, %v3960
      %v3962 = vpop.f32.mrf.mxu0
      %v3963 = vadd.f32 %v3944, %v3962
      %3964 = vdwg.mxu0
      %3965 = vmatpush.bf16.msra.mxu0 %v3779
      %3966 = vmatpush.bf16.msra.mxu0 %v3775
      %3967 = vmatpush.bf16.msra.mxu0 %v3771
      %3968 = vmatpush.bf16.msra.mxu0 %v3767
      %3969 = vmatpush.bf16.msra.mxu0 %v3763
      %3970 = vmatpush.bf16.msra.mxu0 %v3759
      %3971 = vmatpush.bf16.msra.mxu0 %v3755
      %3972 = vmatpush.bf16.msra.mxu0 %v3751
      %3973 = vmatmul.bf16.gmra.mxu0 %v3574
      %v3974 = vpop.f32.mrf.mxu0
      %v3975 = vadd.f32 0.0, %v3974
      %v3976 = vpop.f32.mrf.mxu0
      %v3977 = vadd.f32 0.0, %v3976
      %3978 = vmatmul.bf16.gmra.mxu0 %v3576
      %v3979 = vpop.f32.mrf.mxu0
      %v3980 = vadd.f32 0.0, %v3979
      %v3981 = vpop.f32.mrf.mxu0
      %v3982 = vadd.f32 0.0, %v3981
      %3983 = vdwg.mxu0
      %3984 = vmatpush.bf16.msra.mxu0 0
      %3985 = vmatpush.bf16.msra.mxu0 0
      %3986 = vmatpush.bf16.msra.mxu0 0
      %3987 = vmatpush.bf16.msra.mxu0 0
      %3988 = vmatpush.bf16.msra.mxu0 %v3795
      %3989 = vmatpush.bf16.msra.mxu0 %v3791
      %3990 = vmatpush.bf16.msra.mxu0 %v3787
      %3991 = vmatpush.bf16.msra.mxu0 %v3783
      %3992 = vmatmul.bf16.gmra.mxu0 %v3846
      %v3993 = vpop.f32.mrf.mxu0
      %v3994 = vadd.f32 %v3975, %v3993
      %v3995 = vpop.f32.mrf.mxu0
      %v3996 = vadd.f32 %v3977, %v3995
      %3997 = vmatmul.bf16.gmra.mxu0 %v3849
      %v3998 = vpop.f32.mrf.mxu0
      %v3999 = vadd.f32 %v3980, %v3998
      %v4000 = vpop.f32.mrf.mxu0
      %v4001 = vadd.f32 %v3982, %v4000
      %4002 = vdwg.mxu0
      %v4007 = vunpack.c.l.b16 %v3481
      %v4008 = vunpack.c.h.b16 %v3481
      %v4009 = vunpack.c.l.b16 %v3482
      %v4010 = vunpack.c.h.b16 %v3482
      %v4011 = vunpack.c.l.b16 %v3483
      %v4012 = vunpack.c.h.b16 %v3483
      %v4013 = vunpack.c.l.b16 %v3484
      %v4014 = vunpack.c.h.b16 %v3484
      %v4015 = vpack.c.b16 %v4009, %v4007
      %v4016 = vpack.c.b16 %v4010, %v4008
      %v4017 = vpack.c.b16 %v4013, %v4011
      %v4018 = vpack.c.b16 %v4014, %v4012
      %v4093 = vunpack.c.l.b16 %v3409
      %v4094 = vunpack.c.h.b16 %v3409
      %v4095 = vunpack.c.l.b16 %v3410
      %v4096 = vunpack.c.h.b16 %v3410
      %v4097 = vunpack.c.l.b16 %v3411
      %v4098 = vunpack.c.h.b16 %v3411
      %v4099 = vunpack.c.l.b16 %v3412
      %v4100 = vunpack.c.h.b16 %v3412
      %v4101 = vunpack.c.l.b16 %v3413
      %v4102 = vunpack.c.h.b16 %v3413
      %v4103 = vunpack.c.l.b16 %v3414
      %v4104 = vunpack.c.h.b16 %v3414
      %v4105 = vunpack.c.l.b16 %v3415
      %v4106 = vunpack.c.h.b16 %v3415
      %v4107 = vunpack.c.l.b16 %v3416
      %v4108 = vunpack.c.h.b16 %v3416
      %v4109 = vunpack.c.l.b16 %v3417
      %v4110 = vunpack.c.h.b16 %v3417
      %v4111 = vunpack.c.l.b16 %v3418
      %v4112 = vunpack.c.h.b16 %v3418
      %v4113 = vunpack.c.l.b16 %v3419
      %v4114 = vunpack.c.h.b16 %v3419
      %v4115 = vunpack.c.l.b16 %v3420
      %v4116 = vunpack.c.h.b16 %v3420
      %v4117 = vunpack.c.l.b16 %v3421
      %v4118 = vunpack.c.h.b16 %v3421
      %v4119 = vunpack.c.l.b16 %v3422
      %v4120 = vunpack.c.h.b16 %v3422
      %v4121 = vunpack.c.l.b16 %v3423
      %v4122 = vunpack.c.h.b16 %v3423
      %v4123 = vunpack.c.l.b16 %v3424
      %v4124 = vunpack.c.h.b16 %v3424
      %v4125 = vunpack.c.l.b16 %v3425
      %v4126 = vunpack.c.h.b16 %v3425
      %v4127 = vunpack.c.l.b16 %v3426
      %v4128 = vunpack.c.h.b16 %v3426
      %v4129 = vunpack.c.l.b16 %v3427
      %v4130 = vunpack.c.h.b16 %v3427
      %v4131 = vunpack.c.l.b16 %v3428
      %v4132 = vunpack.c.h.b16 %v3428
      %v4133 = vunpack.c.l.b16 %v3429
      %v4134 = vunpack.c.h.b16 %v3429
      %v4135 = vunpack.c.l.b16 %v3430
      %v4136 = vunpack.c.h.b16 %v3430
      %v4137 = vunpack.c.l.b16 %v3431
      %v4138 = vunpack.c.h.b16 %v3431
      %v4139 = vunpack.c.l.b16 %v3432
      %v4140 = vunpack.c.h.b16 %v3432
      %v4141 = vunpack.c.l.b16 %v3433
      %v4142 = vunpack.c.h.b16 %v3433
      %v4143 = vunpack.c.l.b16 %v3434
      %v4144 = vunpack.c.h.b16 %v3434
      %v4145 = vunpack.c.l.b16 %v3435
      %v4146 = vunpack.c.h.b16 %v3435
      %v4147 = vunpack.c.l.b16 %v3436
      %v4148 = vunpack.c.h.b16 %v3436
      %v4149 = vunpack.c.l.b16 %v3437
      %v4150 = vunpack.c.h.b16 %v3437
      %v4151 = vunpack.c.l.b16 %v3438
      %v4152 = vunpack.c.h.b16 %v3438
      %v4153 = vunpack.c.l.b16 %v3439
      %v4154 = vunpack.c.h.b16 %v3439
      %v4155 = vunpack.c.l.b16 %v3440
      %v4156 = vunpack.c.h.b16 %v3440
      %v4157 = vunpack.c.l.b16 %v3441
      %v4158 = vunpack.c.h.b16 %v3441
      %v4159 = vunpack.c.l.b16 %v3442
      %v4160 = vunpack.c.h.b16 %v3442
      %v4161 = vunpack.c.l.b16 %v3443
      %v4162 = vunpack.c.h.b16 %v3443
      %v4163 = vunpack.c.l.b16 %v3444
      %v4164 = vunpack.c.h.b16 %v3444
      %v4165 = vunpack.c.l.b16 %v3445
      %v4166 = vunpack.c.h.b16 %v3445
      %v4167 = vunpack.c.l.b16 %v3446
      %v4168 = vunpack.c.h.b16 %v3446
      %v4169 = vunpack.c.l.b16 %v3447
      %v4170 = vunpack.c.h.b16 %v3447
      %v4171 = vunpack.c.l.b16 %v3448
      %v4172 = vunpack.c.h.b16 %v3448
      %v4173 = vunpack.c.l.b16 %v3449
      %v4174 = vunpack.c.h.b16 %v3449
      %v4175 = vunpack.c.l.b16 %v3450
      %v4176 = vunpack.c.h.b16 %v3450
      %v4177 = vunpack.c.l.b16 %v3451
      %v4178 = vunpack.c.h.b16 %v3451
      %v4179 = vunpack.c.l.b16 %v3452
      %v4180 = vunpack.c.h.b16 %v3452
      %v4181 = vunpack.c.l.b16 %v3453
      %v4182 = vunpack.c.h.b16 %v3453
      %v4183 = vunpack.c.l.b16 %v3454
      %v4184 = vunpack.c.h.b16 %v3454
      %v4185 = vunpack.c.l.b16 %v3455
      %v4186 = vunpack.c.h.b16 %v3455
      %v4187 = vunpack.c.l.b16 %v3456
      %v4188 = vunpack.c.h.b16 %v3456
      %v4189 = vunpack.c.l.b16 %v3457
      %v4190 = vunpack.c.h.b16 %v3457
      %v4191 = vunpack.c.l.b16 %v3458
      %v4192 = vunpack.c.h.b16 %v3458
      %v4193 = vunpack.c.l.b16 %v3459
      %v4194 = vunpack.c.h.b16 %v3459
      %v4195 = vunpack.c.l.b16 %v3460
      %v4196 = vunpack.c.h.b16 %v3460
      %v4197 = vunpack.c.l.b16 %v3461
      %v4198 = vunpack.c.h.b16 %v3461
      %v4199 = vunpack.c.l.b16 %v3462
      %v4200 = vunpack.c.h.b16 %v3462
      %v4201 = vunpack.c.l.b16 %v3463
      %v4202 = vunpack.c.h.b16 %v3463
      %v4203 = vunpack.c.l.b16 %v3464
      %v4204 = vunpack.c.h.b16 %v3464
      %v4205 = vunpack.c.l.b16 %v3465
      %v4206 = vunpack.c.h.b16 %v3465
      %v4207 = vunpack.c.l.b16 %v3466
      %v4208 = vunpack.c.h.b16 %v3466
      %v4209 = vunpack.c.l.b16 %v3467
      %v4210 = vunpack.c.h.b16 %v3467
      %v4211 = vunpack.c.l.b16 %v3468
      %v4212 = vunpack.c.h.b16 %v3468
      %v4213 = vunpack.c.l.b16 %v3469
      %v4214 = vunpack.c.h.b16 %v3469
      %v4215 = vunpack.c.l.b16 %v3470
      %v4216 = vunpack.c.h.b16 %v3470
      %v4217 = vunpack.c.l.b16 %v3471
      %v4218 = vunpack.c.h.b16 %v3471
      %v4219 = vunpack.c.l.b16 %v3472
      %v4220 = vunpack.c.h.b16 %v3472
      %v4221 = vunpack.c.l.b16 %v3473
      %v4222 = vunpack.c.h.b16 %v3473
      %v4223 = vunpack.c.l.b16 %v3474
      %v4224 = vunpack.c.h.b16 %v3474
      %v4225 = vunpack.c.l.b16 %v3475
      %v4226 = vunpack.c.h.b16 %v3475
      %v4227 = vunpack.c.l.b16 %v3476
      %v4228 = vunpack.c.h.b16 %v3476
      %v4229 = vunpack.c.l.b16 %v3477
      %v4230 = vunpack.c.h.b16 %v3477
      %v4231 = vunpack.c.l.b16 %v3478
      %v4232 = vunpack.c.h.b16 %v3478
      %v4233 = vunpack.c.l.b16 %v3479
      %v4234 = vunpack.c.h.b16 %v3479
      %v4235 = vunpack.c.l.b16 %v3480
      %v4236 = vunpack.c.h.b16 %v3480
      %v4237 = vpack.c.b16 %v4099, %v4093
      %v4238 = vpack.c.b16 %v4100, %v4094
      %v4239 = vpack.c.b16 %v4101, %v4095
      %v4240 = vpack.c.b16 %v4102, %v4096
      %v4241 = vpack.c.b16 %v4103, %v4097
      %v4242 = vpack.c.b16 %v4104, %v4098
      %v4243 = vpack.c.b16 %v4111, %v4105
      %v4244 = vpack.c.b16 %v4112, %v4106
      %v4245 = vpack.c.b16 %v4113, %v4107
      %v4246 = vpack.c.b16 %v4114, %v4108
      %v4247 = vpack.c.b16 %v4115, %v4109
      %v4248 = vpack.c.b16 %v4116, %v4110
      %v4249 = vpack.c.b16 %v4123, %v4117
      %v4250 = vpack.c.b16 %v4124, %v4118
      %v4251 = vpack.c.b16 %v4125, %v4119
      %v4252 = vpack.c.b16 %v4126, %v4120
      %v4253 = vpack.c.b16 %v4127, %v4121
      %v4254 = vpack.c.b16 %v4128, %v4122
      %v4255 = vpack.c.b16 %v4135, %v4129
      %v4256 = vpack.c.b16 %v4136, %v4130
      %v4257 = vpack.c.b16 %v4137, %v4131
      %v4258 = vpack.c.b16 %v4138, %v4132
      %v4259 = vpack.c.b16 %v4139, %v4133
      %v4260 = vpack.c.b16 %v4140, %v4134
      %v4261 = vpack.c.b16 %v4147, %v4141
      %v4262 = vpack.c.b16 %v4148, %v4142
      %v4263 = vpack.c.b16 %v4149, %v4143
      %v4264 = vpack.c.b16 %v4150, %v4144
      %v4265 = vpack.c.b16 %v4151, %v4145
      %v4266 = vpack.c.b16 %v4152, %v4146
      %v4267 = vpack.c.b16 %v4159, %v4153
      %v4268 = vpack.c.b16 %v4160, %v4154
      %v4269 = vpack.c.b16 %v4161, %v4155
      %v4270 = vpack.c.b16 %v4162, %v4156
      %v4271 = vpack.c.b16 %v4163, %v4157
      %v4272 = vpack.c.b16 %v4164, %v4158
      %v4273 = vpack.c.b16 %v4171, %v4165
      %v4274 = vpack.c.b16 %v4172, %v4166
      %v4275 = vpack.c.b16 %v4173, %v4167
      %v4276 = vpack.c.b16 %v4174, %v4168
      %v4277 = vpack.c.b16 %v4175, %v4169
      %v4278 = vpack.c.b16 %v4176, %v4170
      %v4279 = vpack.c.b16 %v4183, %v4177
      %v4280 = vpack.c.b16 %v4184, %v4178
      %v4281 = vpack.c.b16 %v4185, %v4179
      %v4282 = vpack.c.b16 %v4186, %v4180
      %v4283 = vpack.c.b16 %v4187, %v4181
      %v4284 = vpack.c.b16 %v4188, %v4182
      %v4285 = vpack.c.b16 %v4195, %v4189
      %v4286 = vpack.c.b16 %v4196, %v4190
      %v4287 = vpack.c.b16 %v4197, %v4191
      %v4288 = vpack.c.b16 %v4198, %v4192
      %v4289 = vpack.c.b16 %v4199, %v4193
      %v4290 = vpack.c.b16 %v4200, %v4194
      %v4291 = vpack.c.b16 %v4207, %v4201
      %v4292 = vpack.c.b16 %v4208, %v4202
      %v4293 = vpack.c.b16 %v4209, %v4203
      %v4294 = vpack.c.b16 %v4210, %v4204
      %v4295 = vpack.c.b16 %v4211, %v4205
      %v4296 = vpack.c.b16 %v4212, %v4206
      %v4297 = vpack.c.b16 %v4219, %v4213
      %v4298 = vpack.c.b16 %v4220, %v4214
      %v4299 = vpack.c.b16 %v4221, %v4215
      %v4300 = vpack.c.b16 %v4222, %v4216
      %v4301 = vpack.c.b16 %v4223, %v4217
      %v4302 = vpack.c.b16 %v4224, %v4218
      %v4303 = vpack.c.b16 %v4231, %v4225
      %v4304 = vpack.c.b16 %v4232, %v4226
      %v4305 = vpack.c.b16 %v4233, %v4227
      %v4306 = vpack.c.b16 %v4234, %v4228
      %v4307 = vpack.c.b16 %v4235, %v4229
      %v4308 = vpack.c.b16 %v4236, %v4230
      %4309 = vrot.lane.b32.xlu0 %v4237, 16
      %v4310 = vpop.permute.xlu0 %4309
      %4311 = vrot.lane.b32.xlu0 %v4238, 16
      %v4312 = vpop.permute.xlu0 %4311
      %4313 = vrot.lane.b32.xlu0 %v4239, 16
      %v4314 = vpop.permute.xlu0 %4313
      %4315 = vrot.lane.b32.xlu0 %v4240, 16
      %v4316 = vpop.permute.xlu0 %4315
      %4317 = vrot.lane.b32.xlu0 %v4241, 16
      %v4318 = vpop.permute.xlu0 %4317
      %4319 = vrot.lane.b32.xlu0 %v4242, 16
      %v4320 = vpop.permute.xlu0 %4319
      %4321 = vrot.lane.b32.xlu0 %v4243, 16
      %v4322 = vpop.permute.xlu0 %4321
      %4323 = vrot.lane.b32.xlu0 %v4244, 16
      %v4324 = vpop.permute.xlu0 %4323
      %4325 = vrot.lane.b32.xlu0 %v4245, 16
      %v4326 = vpop.permute.xlu0 %4325
      %4327 = vrot.lane.b32.xlu0 %v4246, 16
      %v4328 = vpop.permute.xlu0 %4327
      %4329 = vrot.lane.b32.xlu0 %v4247, 16
      %v4330 = vpop.permute.xlu0 %4329
      %4331 = vrot.lane.b32.xlu0 %v4248, 16
      %v4332 = vpop.permute.xlu0 %4331
      %4333 = vrot.lane.b32.xlu0 %v4249, 16
      %v4334 = vpop.permute.xlu0 %4333
      %4335 = vrot.lane.b32.xlu0 %v4250, 16
      %v4336 = vpop.permute.xlu0 %4335
      %4337 = vrot.lane.b32.xlu0 %v4251, 16
      %v4338 = vpop.permute.xlu0 %4337
      %4339 = vrot.lane.b32.xlu0 %v4252, 16
      %v4340 = vpop.permute.xlu0 %4339
      %4341 = vrot.lane.b32.xlu0 %v4253, 16
      %v4342 = vpop.permute.xlu0 %4341
      %4343 = vrot.lane.b32.xlu0 %v4254, 16
      %v4344 = vpop.permute.xlu0 %4343
      %4345 = vrot.lane.b32.xlu0 %v4255, 16
      %v4346 = vpop.permute.xlu0 %4345
      %4347 = vrot.lane.b32.xlu0 %v4256, 16
      %v4348 = vpop.permute.xlu0 %4347
      %4349 = vrot.lane.b32.xlu0 %v4257, 16
      %v4350 = vpop.permute.xlu0 %4349
      %4351 = vrot.lane.b32.xlu0 %v4258, 16
      %v4352 = vpop.permute.xlu0 %4351
      %4353 = vrot.lane.b32.xlu0 %v4259, 16
      %v4354 = vpop.permute.xlu0 %4353
      %4355 = vrot.lane.b32.xlu0 %v4260, 16
      %v4356 = vpop.permute.xlu0 %4355
      %4357 = vrot.lane.b32.xlu0 %v4261, 16
      %v4358 = vpop.permute.xlu0 %4357
      %4359 = vrot.lane.b32.xlu0 %v4262, 16
      %v4360 = vpop.permute.xlu0 %4359
      %4361 = vrot.lane.b32.xlu0 %v4263, 16
      %v4362 = vpop.permute.xlu0 %4361
      %4363 = vrot.lane.b32.xlu0 %v4264, 16
      %v4364 = vpop.permute.xlu0 %4363
      %4365 = vrot.lane.b32.xlu0 %v4265, 16
      %v4366 = vpop.permute.xlu0 %4365
      %4367 = vrot.lane.b32.xlu0 %v4266, 16
      %v4368 = vpop.permute.xlu0 %4367
      %4369 = vrot.lane.b32.xlu0 %v4267, 16
      %v4370 = vpop.permute.xlu0 %4369
      %4371 = vrot.lane.b32.xlu0 %v4268, 16
      %v4372 = vpop.permute.xlu0 %4371
      %4373 = vrot.lane.b32.xlu0 %v4269, 16
      %v4374 = vpop.permute.xlu0 %4373
      %4375 = vrot.lane.b32.xlu0 %v4270, 16
      %v4376 = vpop.permute.xlu0 %4375
      %4377 = vrot.lane.b32.xlu0 %v4271, 16
      %v4378 = vpop.permute.xlu0 %4377
      %4379 = vrot.lane.b32.xlu0 %v4272, 16
      %v4380 = vpop.permute.xlu0 %4379
      %4381 = vrot.lane.b32.xlu0 %v4273, 16
      %v4382 = vpop.permute.xlu0 %4381
      %4383 = vrot.lane.b32.xlu0 %v4274, 16
      %v4384 = vpop.permute.xlu0 %4383
      %4385 = vrot.lane.b32.xlu0 %v4275, 16
      %v4386 = vpop.permute.xlu0 %4385
      %4387 = vrot.lane.b32.xlu0 %v4276, 16
      %v4388 = vpop.permute.xlu0 %4387
      %4389 = vrot.lane.b32.xlu0 %v4277, 16
      %v4390 = vpop.permute.xlu0 %4389
      %4391 = vrot.lane.b32.xlu0 %v4278, 16
      %v4392 = vpop.permute.xlu0 %4391
      %4393 = vrot.lane.b32.xlu0 %v4279, 16
      %v4394 = vpop.permute.xlu0 %4393
      %4395 = vrot.lane.b32.xlu0 %v4280, 16
      %v4396 = vpop.permute.xlu0 %4395
      %4397 = vrot.lane.b32.xlu0 %v4281, 16
      %v4398 = vpop.permute.xlu0 %4397
      %4399 = vrot.lane.b32.xlu0 %v4282, 16
      %v4400 = vpop.permute.xlu0 %4399
      %4401 = vrot.lane.b32.xlu0 %v4283, 16
      %v4402 = vpop.permute.xlu0 %4401
      %4403 = vrot.lane.b32.xlu0 %v4284, 16
      %v4404 = vpop.permute.xlu0 %4403
      %4405 = vrot.lane.b32.xlu0 %v4285, 16
      %v4406 = vpop.permute.xlu0 %4405
      %4407 = vrot.lane.b32.xlu0 %v4286, 16
      %v4408 = vpop.permute.xlu0 %4407
      %4409 = vrot.lane.b32.xlu0 %v4287, 16
      %v4410 = vpop.permute.xlu0 %4409
      %4411 = vrot.lane.b32.xlu0 %v4288, 16
      %v4412 = vpop.permute.xlu0 %4411
      %4413 = vrot.lane.b32.xlu0 %v4289, 16
      %v4414 = vpop.permute.xlu0 %4413
      %4415 = vrot.lane.b32.xlu0 %v4290, 16
      %v4416 = vpop.permute.xlu0 %4415
      %4417 = vrot.lane.b32.xlu0 %v4291, 16
      %v4418 = vpop.permute.xlu0 %4417
      %4419 = vrot.lane.b32.xlu0 %v4292, 16
      %v4420 = vpop.permute.xlu0 %4419
      %4421 = vrot.lane.b32.xlu0 %v4293, 16
      %v4422 = vpop.permute.xlu0 %4421
      %4423 = vrot.lane.b32.xlu0 %v4294, 16
      %v4424 = vpop.permute.xlu0 %4423
      %4425 = vrot.lane.b32.xlu0 %v4295, 16
      %v4426 = vpop.permute.xlu0 %4425
      %4427 = vrot.lane.b32.xlu0 %v4296, 16
      %v4428 = vpop.permute.xlu0 %4427
      %4429 = vrot.lane.b32.xlu0 %v4297, 16
      %v4430 = vpop.permute.xlu0 %4429
      %4431 = vrot.lane.b32.xlu0 %v4298, 16
      %v4432 = vpop.permute.xlu0 %4431
      %4433 = vrot.lane.b32.xlu0 %v4299, 16
      %v4434 = vpop.permute.xlu0 %4433
      %4435 = vrot.lane.b32.xlu0 %v4300, 16
      %v4436 = vpop.permute.xlu0 %4435
      %4437 = vrot.lane.b32.xlu0 %v4301, 16
      %v4438 = vpop.permute.xlu0 %4437
      %4439 = vrot.lane.b32.xlu0 %v4302, 16
      %v4440 = vpop.permute.xlu0 %4439
      %4441 = vrot.lane.b32.xlu0 %v4303, 16
      %v4442 = vpop.permute.xlu0 %4441
      %4443 = vrot.lane.b32.xlu0 %v4304, 16
      %v4444 = vpop.permute.xlu0 %4443
      %4445 = vrot.lane.b32.xlu0 %v4305, 16
      %v4446 = vpop.permute.xlu0 %4445
      %4447 = vrot.lane.b32.xlu0 %v4306, 16
      %v4448 = vpop.permute.xlu0 %4447
      %4449 = vrot.lane.b32.xlu0 %v4307, 16
      %v4450 = vpop.permute.xlu0 %4449
      %4451 = vrot.lane.b32.xlu0 %v4308, 16
      %v4452 = vpop.permute.xlu0 %4451
      %v4453 = vsel %vm865, %v4310, %v4312
      %v4454 = vsel %vm865, %v4312, %v4314
      %v4455 = vsel %vm865, %v4316, %v4318
      %v4456 = vsel %vm865, %v4318, %v4320
      %v4457 = vsel %vm865, %v4322, %v4324
      %v4458 = vsel %vm865, %v4324, %v4326
      %v4459 = vsel %vm865, %v4328, %v4330
      %v4460 = vsel %vm865, %v4330, %v4332
      %v4461 = vsel %vm865, %v4334, %v4336
      %v4462 = vsel %vm865, %v4336, %v4338
      %v4463 = vsel %vm865, %v4340, %v4342
      %v4464 = vsel %vm865, %v4342, %v4344
      %v4465 = vsel %vm865, %v4346, %v4348
      %v4466 = vsel %vm865, %v4348, %v4350
      %v4467 = vsel %vm865, %v4352, %v4354
      %v4468 = vsel %vm865, %v4354, %v4356
      %v4469 = vsel %vm865, %v4358, %v4360
      %v4470 = vsel %vm865, %v4360, %v4362
      %v4471 = vsel %vm865, %v4364, %v4366
      %v4472 = vsel %vm865, %v4366, %v4368
      %v4473 = vsel %vm865, %v4370, %v4372
      %v4474 = vsel %vm865, %v4372, %v4374
      %v4475 = vsel %vm865, %v4376, %v4378
      %v4476 = vsel %vm865, %v4378, %v4380
      %v4477 = vsel %vm865, %v4382, %v4384
      %v4478 = vsel %vm865, %v4384, %v4386
      %v4479 = vsel %vm865, %v4388, %v4390
      %v4480 = vsel %vm865, %v4390, %v4392
      %v4481 = vsel %vm865, %v4394, %v4396
      %v4482 = vsel %vm865, %v4396, %v4398
      %v4483 = vsel %vm865, %v4400, %v4402
      %v4484 = vsel %vm865, %v4402, %v4404
      %v4485 = vsel %vm865, %v4406, %v4408
      %v4486 = vsel %vm865, %v4408, %v4410
      %v4487 = vsel %vm865, %v4412, %v4414
      %v4488 = vsel %vm865, %v4414, %v4416
      %v4489 = vsel %vm865, %v4418, %v4420
      %v4490 = vsel %vm865, %v4420, %v4422
      %v4491 = vsel %vm865, %v4424, %v4426
      %v4492 = vsel %vm865, %v4426, %v4428
      %v4493 = vsel %vm865, %v4430, %v4432
      %v4494 = vsel %vm865, %v4432, %v4434
      %v4495 = vsel %vm865, %v4436, %v4438
      %v4496 = vsel %vm865, %v4438, %v4440
      %v4497 = vsel %vm865, %v4442, %v4444
      %v4498 = vsel %vm865, %v4444, %v4446
      %v4499 = vsel %vm865, %v4448, %v4450
      %v4500 = vsel %vm865, %v4450, %v4452
      %v4550 = vsel %vm3844, %v4016, 0
      %v4553 = vsel %vm3844, %v4018, 0
      %4555 = vmatpush.bf16.msra.mxu0 %v4481
      %4556 = vmatpush.bf16.msra.mxu0 %v4477
      %4557 = vmatpush.bf16.msra.mxu0 %v4473
      %4558 = vmatpush.bf16.msra.mxu0 %v4469
      %4559 = vmatpush.bf16.msra.mxu0 %v4465
      %4560 = vmatpush.bf16.msra.mxu0 %v4461
      %4561 = vmatpush.bf16.msra.mxu0 %v4457
      %4562 = vmatpush.bf16.msra.mxu0 %v4453
      %4563 = vmatmul.bf16.gmra.mxu0 %v4015
      %v4564 = vpop.f32.mrf.mxu0
      %v4565 = vadd.f32 %v3880, %v4564
      %v4566 = vpop.f32.mrf.mxu0
      %v4567 = vadd.f32 %v3882, %v4566
      %4568 = vmatmul.bf16.gmra.mxu0 %v4017
      %v4569 = vpop.f32.mrf.mxu0
      %v4570 = vadd.f32 %v3885, %v4569
      %v4571 = vpop.f32.mrf.mxu0
      %v4572 = vadd.f32 %v3887, %v4571
      %4573 = vdwg.mxu0
      %4574 = vmatpush.bf16.msra.mxu0 0
      %4575 = vmatpush.bf16.msra.mxu0 0
      %4576 = vmatpush.bf16.msra.mxu0 0
      %4577 = vmatpush.bf16.msra.mxu0 0
      %4578 = vmatpush.bf16.msra.mxu0 %v4497
      %4579 = vmatpush.bf16.msra.mxu0 %v4493
      %4580 = vmatpush.bf16.msra.mxu0 %v4489
      %4581 = vmatpush.bf16.msra.mxu0 %v4485
      %4582 = vmatmul.bf16.gmra.mxu0 %v4550
      %v4583 = vpop.f32.mrf.mxu0
      %v4584 = vadd.f32 %v4565, %v4583
      %v4585 = vpop.f32.mrf.mxu0
      %v4586 = vadd.f32 %v4567, %v4585
      %4587 = vmatmul.bf16.gmra.mxu0 %v4553
      %v4588 = vpop.f32.mrf.mxu0
      %v4589 = vadd.f32 %v4570, %v4588
      %v4590 = vpop.f32.mrf.mxu0
      %v4591 = vadd.f32 %v4572, %v4590
      %4592 = vdwg.mxu0
      %4593 = vmatpush.bf16.msra.mxu0 %v4482
      %4594 = vmatpush.bf16.msra.mxu0 %v4478
      %4595 = vmatpush.bf16.msra.mxu0 %v4474
      %4596 = vmatpush.bf16.msra.mxu0 %v4470
      %4597 = vmatpush.bf16.msra.mxu0 %v4466
      %4598 = vmatpush.bf16.msra.mxu0 %v4462
      %4599 = vmatpush.bf16.msra.mxu0 %v4458
      %4600 = vmatpush.bf16.msra.mxu0 %v4454
      %4601 = vmatmul.bf16.gmra.mxu0 %v4015
      %v4602 = vpop.f32.mrf.mxu0
      %v4603 = vadd.f32 %v3918, %v4602
      %v4604 = vpop.f32.mrf.mxu0
      %v4605 = vadd.f32 %v3920, %v4604
      %4606 = vmatmul.bf16.gmra.mxu0 %v4017
      %v4607 = vpop.f32.mrf.mxu0
      %v4608 = vadd.f32 %v3923, %v4607
      %v4609 = vpop.f32.mrf.mxu0
      %v4610 = vadd.f32 %v3925, %v4609
      %4611 = vdwg.mxu0
      %4612 = vmatpush.bf16.msra.mxu0 0
      %4613 = vmatpush.bf16.msra.mxu0 0
      %4614 = vmatpush.bf16.msra.mxu0 0
      %4615 = vmatpush.bf16.msra.mxu0 0
      %4616 = vmatpush.bf16.msra.mxu0 %v4498
      %4617 = vmatpush.bf16.msra.mxu0 %v4494
      %4618 = vmatpush.bf16.msra.mxu0 %v4490
      %4619 = vmatpush.bf16.msra.mxu0 %v4486
      %4620 = vmatmul.bf16.gmra.mxu0 %v4550
      %v4621 = vpop.f32.mrf.mxu0
      %v4622 = vadd.f32 %v4603, %v4621
      %v4623 = vpop.f32.mrf.mxu0
      %v4624 = vadd.f32 %v4605, %v4623
      %4625 = vmatmul.bf16.gmra.mxu0 %v4553
      %v4626 = vpop.f32.mrf.mxu0
      %v4627 = vadd.f32 %v4608, %v4626
      %v4628 = vpop.f32.mrf.mxu0
      %v4629 = vadd.f32 %v4610, %v4628
      %4630 = vdwg.mxu0
      %4631 = vmatpush.bf16.msra.mxu0 %v4483
      %4632 = vmatpush.bf16.msra.mxu0 %v4479
      %4633 = vmatpush.bf16.msra.mxu0 %v4475
      %4634 = vmatpush.bf16.msra.mxu0 %v4471
      %4635 = vmatpush.bf16.msra.mxu0 %v4467
      %4636 = vmatpush.bf16.msra.mxu0 %v4463
      %4637 = vmatpush.bf16.msra.mxu0 %v4459
      %4638 = vmatpush.bf16.msra.mxu0 %v4455
      %4639 = vmatmul.bf16.gmra.mxu0 %v4015
      %v4640 = vpop.f32.mrf.mxu0
      %v4641 = vadd.f32 %v3956, %v4640
      %v4642 = vpop.f32.mrf.mxu0
      %v4643 = vadd.f32 %v3958, %v4642
      %4644 = vmatmul.bf16.gmra.mxu0 %v4017
      %v4645 = vpop.f32.mrf.mxu0
      %v4646 = vadd.f32 %v3961, %v4645
      %v4647 = vpop.f32.mrf.mxu0
      %v4648 = vadd.f32 %v3963, %v4647
      %4649 = vdwg.mxu0
      %4650 = vmatpush.bf16.msra.mxu0 0
      %4651 = vmatpush.bf16.msra.mxu0 0
      %4652 = vmatpush.bf16.msra.mxu0 0
      %4653 = vmatpush.bf16.msra.mxu0 0
      %4654 = vmatpush.bf16.msra.mxu0 %v4499
      %4655 = vmatpush.bf16.msra.mxu0 %v4495
      %4656 = vmatpush.bf16.msra.mxu0 %v4491
      %4657 = vmatpush.bf16.msra.mxu0 %v4487
      %4658 = vmatmul.bf16.gmra.mxu0 %v4550
      %v4659 = vpop.f32.mrf.mxu0
      %v4660 = vadd.f32 %v4641, %v4659
      %v4661 = vpop.f32.mrf.mxu0
      %v4662 = vadd.f32 %v4643, %v4661
      %4663 = vmatmul.bf16.gmra.mxu0 %v4553
      %v4664 = vpop.f32.mrf.mxu0
      %v4665 = vadd.f32 %v4646, %v4664
      %v4666 = vpop.f32.mrf.mxu0
      %v4667 = vadd.f32 %v4648, %v4666
      %4668 = vdwg.mxu0
      %4669 = vmatpush.bf16.msra.mxu0 %v4484
      %4670 = vmatpush.bf16.msra.mxu0 %v4480
      %4671 = vmatpush.bf16.msra.mxu0 %v4476
      %4672 = vmatpush.bf16.msra.mxu0 %v4472
      %4673 = vmatpush.bf16.msra.mxu0 %v4468
      %4674 = vmatpush.bf16.msra.mxu0 %v4464
      %4675 = vmatpush.bf16.msra.mxu0 %v4460
      %4676 = vmatpush.bf16.msra.mxu0 %v4456
      %4677 = vmatmul.bf16.gmra.mxu0 %v4015
      %v4678 = vpop.f32.mrf.mxu0
      %v4679 = vadd.f32 %v3994, %v4678
      %v4680 = vpop.f32.mrf.mxu0
      %v4681 = vadd.f32 %v3996, %v4680
      %4682 = vmatmul.bf16.gmra.mxu0 %v4017
      %v4683 = vpop.f32.mrf.mxu0
      %v4684 = vadd.f32 %v3999, %v4683
      %v4685 = vpop.f32.mrf.mxu0
      %v4686 = vadd.f32 %v4001, %v4685
      %4687 = vdwg.mxu0
      %4688 = vmatpush.bf16.msra.mxu0 0
      %4689 = vmatpush.bf16.msra.mxu0 0
      %4690 = vmatpush.bf16.msra.mxu0 0
      %4691 = vmatpush.bf16.msra.mxu0 0
      %4692 = vmatpush.bf16.msra.mxu0 %v4500
      %4693 = vmatpush.bf16.msra.mxu0 %v4496
      %4694 = vmatpush.bf16.msra.mxu0 %v4492
      %4695 = vmatpush.bf16.msra.mxu0 %v4488
      %4696 = vmatmul.bf16.gmra.mxu0 %v4550
      %v4697 = vpop.f32.mrf.mxu0
      %v4698 = vadd.f32 %v4679, %v4697
      %v4699 = vpop.f32.mrf.mxu0
      %v4700 = vadd.f32 %v4681, %v4699
      %4701 = vmatmul.bf16.gmra.mxu0 %v4553
      %v4702 = vpop.f32.mrf.mxu0
      %v4703 = vadd.f32 %v4684, %v4702
      %v4704 = vpop.f32.mrf.mxu0
      %v4705 = vadd.f32 %v4686, %v4704
      %4706 = vdwg.mxu0
      %v4707 = vld [vmem:[#allocation2 + $0x4] sm:$0xff]
      %v4708 = vld [vmem:[#allocation2 + $0xc] sm:$0xff]
      %v4709 = vld [vmem:[#allocation2 + $0x14] sm:$0xff]
      %v4710 = vld [vmem:[#allocation2 + $0x20] sm:$0xff]
      %v4711 = vld [vmem:[#allocation2 + $0x28] sm:$0xff]
      %v4712 = vld [vmem:[#allocation2 + $0x30] sm:$0xff]
      %v4713 = vld [vmem:[#allocation2 + $0x3c] sm:$0xff]
      %v4714 = vld [vmem:[#allocation2 + $0x44] sm:$0xff]
      %v4715 = vld [vmem:[#allocation2 + $0x4c] sm:$0xff]
      %v4716 = vld [vmem:[#allocation2 + $0x58] sm:$0xff]
      %v4717 = vld [vmem:[#allocation2 + $0x60] sm:$0xff]
      %v4718 = vld [vmem:[#allocation2 + $0x68] sm:$0xff]
      %v4719 = vld [vmem:[#allocation2 + $0x74] sm:$0xff]
      %v4720 = vld [vmem:[#allocation2 + $0x7c] sm:$0xff]
      %v4721 = vld [vmem:[#allocation2 + $0x84] sm:$0xff]
      %v4722 = vld [vmem:[#allocation2 + $0x90] sm:$0xff]
      %v4723 = vld [vmem:[#allocation2 + $0x98] sm:$0xff]
      %v4724 = vld [vmem:[#allocation2 + $0xa0] sm:$0xff]
      %v4725 = vld [vmem:[#allocation2 + $0xac] sm:$0xff]
      %v4726 = vld [vmem:[#allocation2 + $0xb4] sm:$0xff]
      %v4727 = vld [vmem:[#allocation2 + $0xbc] sm:$0xff]
      %v4728 = vld [vmem:[#allocation2 + $0xc8] sm:$0xff]
      %v4729 = vld [vmem:[#allocation2 + $0xd0] sm:$0xff]
      %v4730 = vld [vmem:[#allocation2 + $0xd8] sm:$0xff]
      %v4731 = vld [vmem:[#allocation2 + $0xe4] sm:$0xff]
      %v4732 = vld [vmem:[#allocation2 + $0xec] sm:$0xff]
      %v4733 = vld [vmem:[#allocation2 + $0xf4] sm:$0xff]
      %v4734 = vld [vmem:[#allocation2 + $0x100] sm:$0xff]
      %v4735 = vld [vmem:[#allocation2 + $0x108] sm:$0xff]
      %v4736 = vld [vmem:[#allocation2 + $0x110] sm:$0xff]
      %v4737 = vld [vmem:[#allocation2 + $0x11c] sm:$0xff]
      %v4738 = vld [vmem:[#allocation2 + $0x124] sm:$0xff]
      %v4739 = vld [vmem:[#allocation2 + $0x12c] sm:$0xff]
      %v4740 = vld [vmem:[#allocation2 + $0x138] sm:$0xff]
      %v4741 = vld [vmem:[#allocation2 + $0x140] sm:$0xff]
      %v4742 = vld [vmem:[#allocation2 + $0x148] sm:$0xff]
      %v4743 = vld [vmem:[#allocation2 + $0x154] sm:$0xff]
      %v4744 = vld [vmem:[#allocation2 + $0x15c] sm:$0xff]
      %v4745 = vld [vmem:[#allocation2 + $0x164] sm:$0xff]
      %v4746 = vld [vmem:[#allocation2 + $0x170] sm:$0xff]
      %v4747 = vld [vmem:[#allocation2 + $0x178] sm:$0xff]
      %v4748 = vld [vmem:[#allocation2 + $0x180] sm:$0xff]
      %v4749 = vld [vmem:[#allocation2 + $0x18c] sm:$0xff]
      %v4750 = vld [vmem:[#allocation2 + $0x194] sm:$0xff]
      %v4751 = vld [vmem:[#allocation2 + $0x19c] sm:$0xff]
      %v4752 = vld [vmem:[#allocation2 + $0x1a8] sm:$0xff]
      %v4753 = vld [vmem:[#allocation2 + $0x1b0] sm:$0xff]
      %v4754 = vld [vmem:[#allocation2 + $0x1b8] sm:$0xff]
      %v4755 = vld [vmem:[#allocation2 + $0x1c4] sm:$0xff]
      %v4756 = vld [vmem:[#allocation2 + $0x1cc] sm:$0xff]
      %v4757 = vld [vmem:[#allocation2 + $0x1d4] sm:$0xff]
      %v4758 = vld [vmem:[#allocation2 + $0x1e0] sm:$0xff]
      %v4759 = vld [vmem:[#allocation2 + $0x1e8] sm:$0xff]
      %v4760 = vld [vmem:[#allocation2 + $0x1f0] sm:$0xff]
      %v4761 = vld [vmem:[#allocation2 + $0x1fc] sm:$0xff]
      %v4762 = vld [vmem:[#allocation2 + $0x204] sm:$0xff]
      %v4763 = vld [vmem:[#allocation2 + $0x20c] sm:$0xff]
      %v4764 = vld [vmem:[#allocation2 + $0x218] sm:$0xff]
      %v4765 = vld [vmem:[#allocation2 + $0x220] sm:$0xff]
      %v4766 = vld [vmem:[#allocation2 + $0x228] sm:$0xff]
      %v4767 = vld [vmem:[#allocation2 + $0x234] sm:$0xff]
      %v4768 = vld [vmem:[#allocation2 + $0x23c] sm:$0xff]
      %v4769 = vld [vmem:[#allocation2 + $0x244] sm:$0xff]
      %v4770 = vld [vmem:[#allocation2 + $0x250] sm:$0xff]
      %v4771 = vld [vmem:[#allocation2 + $0x258] sm:$0xff]
      %v4772 = vld [vmem:[#allocation2 + $0x260] sm:$0xff]
      %v4773 = vld [vmem:[#allocation2 + $0x26c] sm:$0xff]
      %v4774 = vld [vmem:[#allocation2 + $0x274] sm:$0xff]
      %v4775 = vld [vmem:[#allocation2 + $0x27c] sm:$0xff]
      %v4776 = vld [vmem:[#allocation2 + $0x288] sm:$0xff]
      %v4777 = vld [vmem:[#allocation2 + $0x290] sm:$0xff]
      %v4778 = vld [vmem:[#allocation2 + $0x298] sm:$0xff]
      %s4779 = scalar_lea.vmem %s5, 64
      %v4780 = vld [vmem:[%s4779] sm:$0xff]
      %v4781 = vld [vmem:[%s4779 + $0x8] sm:$0xff]
      %v4782 = vld [vmem:[%s4779 + $0x10] sm:$0xff]
      %v4783 = vld [vmem:[%s4779 + $0x18] sm:$0xff]
      %v4788 = vunpack.c.l.b16 %v4780
      %v4789 = vunpack.c.h.b16 %v4780
      %v4790 = vunpack.c.l.b16 %v4781
      %v4791 = vunpack.c.h.b16 %v4781
      %v4792 = vunpack.c.l.b16 %v4782
      %v4793 = vunpack.c.h.b16 %v4782
      %v4794 = vunpack.c.l.b16 %v4783
      %v4795 = vunpack.c.h.b16 %v4783
      %v4796 = vpack.c.b16 %v4790, %v4788
      %v4797 = vpack.c.b16 %v4791, %v4789
      %v4798 = vpack.c.b16 %v4794, %v4792
      %v4799 = vpack.c.b16 %v4795, %v4793
      %v4874 = vunpack.c.l.b16 %v4707
      %v4875 = vunpack.c.h.b16 %v4707
      %v4876 = vunpack.c.l.b16 %v4708
      %v4877 = vunpack.c.h.b16 %v4708
      %v4878 = vunpack.c.l.b16 %v4709
      %v4879 = vunpack.c.h.b16 %v4709
      %v4880 = vunpack.c.l.b16 %v4710
      %v4881 = vunpack.c.h.b16 %v4710
      %v4882 = vunpack.c.l.b16 %v4711
      %v4883 = vunpack.c.h.b16 %v4711
      %v4884 = vunpack.c.l.b16 %v4712
      %v4885 = vunpack.c.h.b16 %v4712
      %v4886 = vunpack.c.l.b16 %v4713
      %v4887 = vunpack.c.h.b16 %v4713
      %v4888 = vunpack.c.l.b16 %v4714
      %v4889 = vunpack.c.h.b16 %v4714
      %v4890 = vunpack.c.l.b16 %v4715
      %v4891 = vunpack.c.h.b16 %v4715
      %v4892 = vunpack.c.l.b16 %v4716
      %v4893 = vunpack.c.h.b16 %v4716
      %v4894 = vunpack.c.l.b16 %v4717
      %v4895 = vunpack.c.h.b16 %v4717
      %v4896 = vunpack.c.l.b16 %v4718
      %v4897 = vunpack.c.h.b16 %v4718
      %v4898 = vunpack.c.l.b16 %v4719
      %v4899 = vunpack.c.h.b16 %v4719
      %v4900 = vunpack.c.l.b16 %v4720
      %v4901 = vunpack.c.h.b16 %v4720
      %v4902 = vunpack.c.l.b16 %v4721
      %v4903 = vunpack.c.h.b16 %v4721
      %v4904 = vunpack.c.l.b16 %v4722
      %v4905 = vunpack.c.h.b16 %v4722
      %v4906 = vunpack.c.l.b16 %v4723
      %v4907 = vunpack.c.h.b16 %v4723
      %v4908 = vunpack.c.l.b16 %v4724
      %v4909 = vunpack.c.h.b16 %v4724
      %v4910 = vunpack.c.l.b16 %v4725
      %v4911 = vunpack.c.h.b16 %v4725
      %v4912 = vunpack.c.l.b16 %v4726
      %v4913 = vunpack.c.h.b16 %v4726
      %v4914 = vunpack.c.l.b16 %v4727
      %v4915 = vunpack.c.h.b16 %v4727
      %v4916 = vunpack.c.l.b16 %v4728
      %v4917 = vunpack.c.h.b16 %v4728
      %v4918 = vunpack.c.l.b16 %v4729
      %v4919 = vunpack.c.h.b16 %v4729
      %v4920 = vunpack.c.l.b16 %v4730
      %v4921 = vunpack.c.h.b16 %v4730
      %v4922 = vunpack.c.l.b16 %v4731
      %v4923 = vunpack.c.h.b16 %v4731
      %v4924 = vunpack.c.l.b16 %v4732
      %v4925 = vunpack.c.h.b16 %v4732
      %v4926 = vunpack.c.l.b16 %v4733
      %v4927 = vunpack.c.h.b16 %v4733
      %v4928 = vunpack.c.l.b16 %v4734
      %v4929 = vunpack.c.h.b16 %v4734
      %v4930 = vunpack.c.l.b16 %v4735
      %v4931 = vunpack.c.h.b16 %v4735
      %v4932 = vunpack.c.l.b16 %v4736
      %v4933 = vunpack.c.h.b16 %v4736
      %v4934 = vunpack.c.l.b16 %v4737
      %v4935 = vunpack.c.h.b16 %v4737
      %v4936 = vunpack.c.l.b16 %v4738
      %v4937 = vunpack.c.h.b16 %v4738
      %v4938 = vunpack.c.l.b16 %v4739
      %v4939 = vunpack.c.h.b16 %v4739
      %v4940 = vunpack.c.l.b16 %v4740
      %v4941 = vunpack.c.h.b16 %v4740
      %v4942 = vunpack.c.l.b16 %v4741
      %v4943 = vunpack.c.h.b16 %v4741
      %v4944 = vunpack.c.l.b16 %v4742
      %v4945 = vunpack.c.h.b16 %v4742
      %v4946 = vunpack.c.l.b16 %v4743
      %v4947 = vunpack.c.h.b16 %v4743
      %v4948 = vunpack.c.l.b16 %v4744
      %v4949 = vunpack.c.h.b16 %v4744
      %v4950 = vunpack.c.l.b16 %v4745
      %v4951 = vunpack.c.h.b16 %v4745
      %v4952 = vunpack.c.l.b16 %v4746
      %v4953 = vunpack.c.h.b16 %v4746
      %v4954 = vunpack.c.l.b16 %v4747
      %v4955 = vunpack.c.h.b16 %v4747
      %v4956 = vunpack.c.l.b16 %v4748
      %v4957 = vunpack.c.h.b16 %v4748
      %v4958 = vunpack.c.l.b16 %v4749
      %v4959 = vunpack.c.h.b16 %v4749
      %v4960 = vunpack.c.l.b16 %v4750
      %v4961 = vunpack.c.h.b16 %v4750
      %v4962 = vunpack.c.l.b16 %v4751
      %v4963 = vunpack.c.h.b16 %v4751
      %v4964 = vunpack.c.l.b16 %v4752
      %v4965 = vunpack.c.h.b16 %v4752
      %v4966 = vunpack.c.l.b16 %v4753
      %v4967 = vunpack.c.h.b16 %v4753
      %v4968 = vunpack.c.l.b16 %v4754
      %v4969 = vunpack.c.h.b16 %v4754
      %v4970 = vunpack.c.l.b16 %v4755
      %v4971 = vunpack.c.h.b16 %v4755
      %v4972 = vunpack.c.l.b16 %v4756
      %v4973 = vunpack.c.h.b16 %v4756
      %v4974 = vunpack.c.l.b16 %v4757
      %v4975 = vunpack.c.h.b16 %v4757
      %v4976 = vunpack.c.l.b16 %v4758
      %v4977 = vunpack.c.h.b16 %v4758
      %v4978 = vunpack.c.l.b16 %v4759
      %v4979 = vunpack.c.h.b16 %v4759
      %v4980 = vunpack.c.l.b16 %v4760
      %v4981 = vunpack.c.h.b16 %v4760
      %v4982 = vunpack.c.l.b16 %v4761
      %v4983 = vunpack.c.h.b16 %v4761
      %v4984 = vunpack.c.l.b16 %v4762
      %v4985 = vunpack.c.h.b16 %v4762
      %v4986 = vunpack.c.l.b16 %v4763
      %v4987 = vunpack.c.h.b16 %v4763
      %v4988 = vunpack.c.l.b16 %v4764
      %v4989 = vunpack.c.h.b16 %v4764
      %v4990 = vunpack.c.l.b16 %v4765
      %v4991 = vunpack.c.h.b16 %v4765
      %v4992 = vunpack.c.l.b16 %v4766
      %v4993 = vunpack.c.h.b16 %v4766
      %v4994 = vunpack.c.l.b16 %v4767
      %v4995 = vunpack.c.h.b16 %v4767
      %v4996 = vunpack.c.l.b16 %v4768
      %v4997 = vunpack.c.h.b16 %v4768
      %v4998 = vunpack.c.l.b16 %v4769
      %v4999 = vunpack.c.h.b16 %v4769
      %v5000 = vunpack.c.l.b16 %v4770
      %v5001 = vunpack.c.h.b16 %v4770
      %v5002 = vunpack.c.l.b16 %v4771
      %v5003 = vunpack.c.h.b16 %v4771
      %v5004 = vunpack.c.l.b16 %v4772
      %v5005 = vunpack.c.h.b16 %v4772
      %v5006 = vunpack.c.l.b16 %v4773
      %v5007 = vunpack.c.h.b16 %v4773
      %v5008 = vunpack.c.l.b16 %v4774
      %v5009 = vunpack.c.h.b16 %v4774
      %v5010 = vunpack.c.l.b16 %v4775
      %v5011 = vunpack.c.h.b16 %v4775
      %v5012 = vunpack.c.l.b16 %v4776
      %v5013 = vunpack.c.h.b16 %v4776
      %v5014 = vunpack.c.l.b16 %v4777
      %v5015 = vunpack.c.h.b16 %v4777
      %v5016 = vunpack.c.l.b16 %v4778
      %v5017 = vunpack.c.h.b16 %v4778
      %v5018 = vpack.c.b16 %v4880, %v4874
      %v5019 = vpack.c.b16 %v4881, %v4875
      %v5020 = vpack.c.b16 %v4882, %v4876
      %v5021 = vpack.c.b16 %v4883, %v4877
      %v5022 = vpack.c.b16 %v4884, %v4878
      %v5023 = vpack.c.b16 %v4885, %v4879
      %v5024 = vpack.c.b16 %v4892, %v4886
      %v5025 = vpack.c.b16 %v4893, %v4887
      %v5026 = vpack.c.b16 %v4894, %v4888
      %v5027 = vpack.c.b16 %v4895, %v4889
      %v5028 = vpack.c.b16 %v4896, %v4890
      %v5029 = vpack.c.b16 %v4897, %v4891
      %v5030 = vpack.c.b16 %v4904, %v4898
      %v5031 = vpack.c.b16 %v4905, %v4899
      %v5032 = vpack.c.b16 %v4906, %v4900
      %v5033 = vpack.c.b16 %v4907, %v4901
      %v5034 = vpack.c.b16 %v4908, %v4902
      %v5035 = vpack.c.b16 %v4909, %v4903
      %v5036 = vpack.c.b16 %v4916, %v4910
      %v5037 = vpack.c.b16 %v4917, %v4911
      %v5038 = vpack.c.b16 %v4918, %v4912
      %v5039 = vpack.c.b16 %v4919, %v4913
      %v5040 = vpack.c.b16 %v4920, %v4914
      %v5041 = vpack.c.b16 %v4921, %v4915
      %v5042 = vpack.c.b16 %v4928, %v4922
      %v5043 = vpack.c.b16 %v4929, %v4923
      %v5044 = vpack.c.b16 %v4930, %v4924
      %v5045 = vpack.c.b16 %v4931, %v4925
      %v5046 = vpack.c.b16 %v4932, %v4926
      %v5047 = vpack.c.b16 %v4933, %v4927
      %v5048 = vpack.c.b16 %v4940, %v4934
      %v5049 = vpack.c.b16 %v4941, %v4935
      %v5050 = vpack.c.b16 %v4942, %v4936
      %v5051 = vpack.c.b16 %v4943, %v4937
      %v5052 = vpack.c.b16 %v4944, %v4938
      %v5053 = vpack.c.b16 %v4945, %v4939
      %v5054 = vpack.c.b16 %v4952, %v4946
      %v5055 = vpack.c.b16 %v4953, %v4947
      %v5056 = vpack.c.b16 %v4954, %v4948
      %v5057 = vpack.c.b16 %v4955, %v4949
      %v5058 = vpack.c.b16 %v4956, %v4950
      %v5059 = vpack.c.b16 %v4957, %v4951
      %v5060 = vpack.c.b16 %v4964, %v4958
      %v5061 = vpack.c.b16 %v4965, %v4959
      %v5062 = vpack.c.b16 %v4966, %v4960
      %v5063 = vpack.c.b16 %v4967, %v4961
      %v5064 = vpack.c.b16 %v4968, %v4962
      %v5065 = vpack.c.b16 %v4969, %v4963
      %v5066 = vpack.c.b16 %v4976, %v4970
      %v5067 = vpack.c.b16 %v4977, %v4971
      %v5068 = vpack.c.b16 %v4978, %v4972
      %v5069 = vpack.c.b16 %v4979, %v4973
      %v5070 = vpack.c.b16 %v4980, %v4974
      %v5071 = vpack.c.b16 %v4981, %v4975
      %v5072 = vpack.c.b16 %v4988, %v4982
      %v5073 = vpack.c.b16 %v4989, %v4983
      %v5074 = vpack.c.b16 %v4990, %v4984
      %v5075 = vpack.c.b16 %v4991, %v4985
      %v5076 = vpack.c.b16 %v4992, %v4986
      %v5077 = vpack.c.b16 %v4993, %v4987
      %v5078 = vpack.c.b16 %v5000, %v4994
      %v5079 = vpack.c.b16 %v5001, %v4995
      %v5080 = vpack.c.b16 %v5002, %v4996
      %v5081 = vpack.c.b16 %v5003, %v4997
      %v5082 = vpack.c.b16 %v5004, %v4998
      %v5083 = vpack.c.b16 %v5005, %v4999
      %v5084 = vpack.c.b16 %v5012, %v5006
      %v5085 = vpack.c.b16 %v5013, %v5007
      %v5086 = vpack.c.b16 %v5014, %v5008
      %v5087 = vpack.c.b16 %v5015, %v5009
      %v5088 = vpack.c.b16 %v5016, %v5010
      %v5089 = vpack.c.b16 %v5017, %v5011
      %5090 = vrot.lane.b32.xlu0 %v5018, 112
      %v5091 = vpop.permute.xlu0 %5090
      %5092 = vrot.lane.b32.xlu0 %v5019, 112
      %v5093 = vpop.permute.xlu0 %5092
      %5094 = vrot.lane.b32.xlu0 %v5020, 112
      %v5095 = vpop.permute.xlu0 %5094
      %5096 = vrot.lane.b32.xlu0 %v5021, 112
      %v5097 = vpop.permute.xlu0 %5096
      %5098 = vrot.lane.b32.xlu0 %v5022, 112
      %v5099 = vpop.permute.xlu0 %5098
      %5100 = vrot.lane.b32.xlu0 %v5023, 112
      %v5101 = vpop.permute.xlu0 %5100
      %5102 = vrot.lane.b32.xlu0 %v5024, 112
      %v5103 = vpop.permute.xlu0 %5102
      %5104 = vrot.lane.b32.xlu0 %v5025, 112
      %v5105 = vpop.permute.xlu0 %5104
      %5106 = vrot.lane.b32.xlu0 %v5026, 112
      %v5107 = vpop.permute.xlu0 %5106
      %5108 = vrot.lane.b32.xlu0 %v5027, 112
      %v5109 = vpop.permute.xlu0 %5108
      %5110 = vrot.lane.b32.xlu0 %v5028, 112
      %v5111 = vpop.permute.xlu0 %5110
      %5112 = vrot.lane.b32.xlu0 %v5029, 112
      %v5113 = vpop.permute.xlu0 %5112
      %5114 = vrot.lane.b32.xlu0 %v5030, 112
      %v5115 = vpop.permute.xlu0 %5114
      %5116 = vrot.lane.b32.xlu0 %v5031, 112
      %v5117 = vpop.permute.xlu0 %5116
      %5118 = vrot.lane.b32.xlu0 %v5032, 112
      %v5119 = vpop.permute.xlu0 %5118
      %5120 = vrot.lane.b32.xlu0 %v5033, 112
      %v5121 = vpop.permute.xlu0 %5120
      %5122 = vrot.lane.b32.xlu0 %v5034, 112
      %v5123 = vpop.permute.xlu0 %5122
      %5124 = vrot.lane.b32.xlu0 %v5035, 112
      %v5125 = vpop.permute.xlu0 %5124
      %5126 = vrot.lane.b32.xlu0 %v5036, 112
      %v5127 = vpop.permute.xlu0 %5126
      %5128 = vrot.lane.b32.xlu0 %v5037, 112
      %v5129 = vpop.permute.xlu0 %5128
      %5130 = vrot.lane.b32.xlu0 %v5038, 112
      %v5131 = vpop.permute.xlu0 %5130
      %5132 = vrot.lane.b32.xlu0 %v5039, 112
      %v5133 = vpop.permute.xlu0 %5132
      %5134 = vrot.lane.b32.xlu0 %v5040, 112
      %v5135 = vpop.permute.xlu0 %5134
      %5136 = vrot.lane.b32.xlu0 %v5041, 112
      %v5137 = vpop.permute.xlu0 %5136
      %5138 = vrot.lane.b32.xlu0 %v5042, 112
      %v5139 = vpop.permute.xlu0 %5138
      %5140 = vrot.lane.b32.xlu0 %v5043, 112
      %v5141 = vpop.permute.xlu0 %5140
      %5142 = vrot.lane.b32.xlu0 %v5044, 112
      %v5143 = vpop.permute.xlu0 %5142
      %5144 = vrot.lane.b32.xlu0 %v5045, 112
      %v5145 = vpop.permute.xlu0 %5144
      %5146 = vrot.lane.b32.xlu0 %v5046, 112
      %v5147 = vpop.permute.xlu0 %5146
      %5148 = vrot.lane.b32.xlu0 %v5047, 112
      %v5149 = vpop.permute.xlu0 %5148
      %5150 = vrot.lane.b32.xlu0 %v5048, 112
      %v5151 = vpop.permute.xlu0 %5150
      %5152 = vrot.lane.b32.xlu0 %v5049, 112
      %v5153 = vpop.permute.xlu0 %5152
      %5154 = vrot.lane.b32.xlu0 %v5050, 112
      %v5155 = vpop.permute.xlu0 %5154
      %5156 = vrot.lane.b32.xlu0 %v5051, 112
      %v5157 = vpop.permute.xlu0 %5156
      %5158 = vrot.lane.b32.xlu0 %v5052, 112
      %v5159 = vpop.permute.xlu0 %5158
      %5160 = vrot.lane.b32.xlu0 %v5053, 112
      %v5161 = vpop.permute.xlu0 %5160
      %5162 = vrot.lane.b32.xlu0 %v5054, 112
      %v5163 = vpop.permute.xlu0 %5162
      %5164 = vrot.lane.b32.xlu0 %v5055, 112
      %v5165 = vpop.permute.xlu0 %5164
      %5166 = vrot.lane.b32.xlu0 %v5056, 112
      %v5167 = vpop.permute.xlu0 %5166
      %5168 = vrot.lane.b32.xlu0 %v5057, 112
      %v5169 = vpop.permute.xlu0 %5168
      %5170 = vrot.lane.b32.xlu0 %v5058, 112
      %v5171 = vpop.permute.xlu0 %5170
      %5172 = vrot.lane.b32.xlu0 %v5059, 112
      %v5173 = vpop.permute.xlu0 %5172
      %5174 = vrot.lane.b32.xlu0 %v5060, 112
      %v5175 = vpop.permute.xlu0 %5174
      %5176 = vrot.lane.b32.xlu0 %v5061, 112
      %v5177 = vpop.permute.xlu0 %5176
      %5178 = vrot.lane.b32.xlu0 %v5062, 112
      %v5179 = vpop.permute.xlu0 %5178
      %5180 = vrot.lane.b32.xlu0 %v5063, 112
      %v5181 = vpop.permute.xlu0 %5180
      %5182 = vrot.lane.b32.xlu0 %v5064, 112
      %v5183 = vpop.permute.xlu0 %5182
      %5184 = vrot.lane.b32.xlu0 %v5065, 112
      %v5185 = vpop.permute.xlu0 %5184
      %5186 = vrot.lane.b32.xlu0 %v5066, 112
      %v5187 = vpop.permute.xlu0 %5186
      %5188 = vrot.lane.b32.xlu0 %v5067, 112
      %v5189 = vpop.permute.xlu0 %5188
      %5190 = vrot.lane.b32.xlu0 %v5068, 112
      %v5191 = vpop.permute.xlu0 %5190
      %5192 = vrot.lane.b32.xlu0 %v5069, 112
      %v5193 = vpop.permute.xlu0 %5192
      %5194 = vrot.lane.b32.xlu0 %v5070, 112
      %v5195 = vpop.permute.xlu0 %5194
      %5196 = vrot.lane.b32.xlu0 %v5071, 112
      %v5197 = vpop.permute.xlu0 %5196
      %5198 = vrot.lane.b32.xlu0 %v5072, 112
      %v5199 = vpop.permute.xlu0 %5198
      %5200 = vrot.lane.b32.xlu0 %v5073, 112
      %v5201 = vpop.permute.xlu0 %5200
      %5202 = vrot.lane.b32.xlu0 %v5074, 112
      %v5203 = vpop.permute.xlu0 %5202
      %5204 = vrot.lane.b32.xlu0 %v5075, 112
      %v5205 = vpop.permute.xlu0 %5204
      %5206 = vrot.lane.b32.xlu0 %v5076, 112
      %v5207 = vpop.permute.xlu0 %5206
      %5208 = vrot.lane.b32.xlu0 %v5077, 112
      %v5209 = vpop.permute.xlu0 %5208
      %5210 = vrot.lane.b32.xlu0 %v5078, 112
      %v5211 = vpop.permute.xlu0 %5210
      %5212 = vrot.lane.b32.xlu0 %v5079, 112
      %v5213 = vpop.permute.xlu0 %5212
      %5214 = vrot.lane.b32.xlu0 %v5080, 112
      %v5215 = vpop.permute.xlu0 %5214
      %5216 = vrot.lane.b32.xlu0 %v5081, 112
      %v5217 = vpop.permute.xlu0 %5216
      %5218 = vrot.lane.b32.xlu0 %v5082, 112
      %v5219 = vpop.permute.xlu0 %5218
      %5220 = vrot.lane.b32.xlu0 %v5083, 112
      %v5221 = vpop.permute.xlu0 %5220
      %5222 = vrot.lane.b32.xlu0 %v5084, 112
      %v5223 = vpop.permute.xlu0 %5222
      %5224 = vrot.lane.b32.xlu0 %v5085, 112
      %v5225 = vpop.permute.xlu0 %5224
      %5226 = vrot.lane.b32.xlu0 %v5086, 112
      %v5227 = vpop.permute.xlu0 %5226
      %5228 = vrot.lane.b32.xlu0 %v5087, 112
      %v5229 = vpop.permute.xlu0 %5228
      %5230 = vrot.lane.b32.xlu0 %v5088, 112
      %v5231 = vpop.permute.xlu0 %5230
      %5232 = vrot.lane.b32.xlu0 %v5089, 112
      %v5233 = vpop.permute.xlu0 %5232
      %v5234 = vsel %vm1009, %v5091, %v5093
      %v5235 = vsel %vm1009, %v5093, %v5095
      %v5236 = vsel %vm1009, %v5097, %v5099
      %v5237 = vsel %vm1009, %v5099, %v5101
      %v5238 = vsel %vm1009, %v5103, %v5105
      %v5239 = vsel %vm1009, %v5105, %v5107
      %v5240 = vsel %vm1009, %v5109, %v5111
      %v5241 = vsel %vm1009, %v5111, %v5113
      %v5242 = vsel %vm1009, %v5115, %v5117
      %v5243 = vsel %vm1009, %v5117, %v5119
      %v5244 = vsel %vm1009, %v5121, %v5123
      %v5245 = vsel %vm1009, %v5123, %v5125
      %v5246 = vsel %vm1009, %v5127, %v5129
      %v5247 = vsel %vm1009, %v5129, %v5131
      %v5248 = vsel %vm1009, %v5133, %v5135
      %v5249 = vsel %vm1009, %v5135, %v5137
      %v5250 = vsel %vm1009, %v5139, %v5141
      %v5251 = vsel %vm1009, %v5141, %v5143
      %v5252 = vsel %vm1009, %v5145, %v5147
      %v5253 = vsel %vm1009, %v5147, %v5149
      %v5254 = vsel %vm1009, %v5151, %v5153
      %v5255 = vsel %vm1009, %v5153, %v5155
      %v5256 = vsel %vm1009, %v5157, %v5159
      %v5257 = vsel %vm1009, %v5159, %v5161
      %v5258 = vsel %vm1009, %v5163, %v5165
      %v5259 = vsel %vm1009, %v5165, %v5167
      %v5260 = vsel %vm1009, %v5169, %v5171
      %v5261 = vsel %vm1009, %v5171, %v5173
      %v5262 = vsel %vm1009, %v5175, %v5177
      %v5263 = vsel %vm1009, %v5177, %v5179
      %v5264 = vsel %vm1009, %v5181, %v5183
      %v5265 = vsel %vm1009, %v5183, %v5185
      %v5266 = vsel %vm1009, %v5187, %v5189
      %v5267 = vsel %vm1009, %v5189, %v5191
      %v5268 = vsel %vm1009, %v5193, %v5195
      %v5269 = vsel %vm1009, %v5195, %v5197
      %v5270 = vsel %vm1009, %v5199, %v5201
      %v5271 = vsel %vm1009, %v5201, %v5203
      %v5272 = vsel %vm1009, %v5205, %v5207
      %v5273 = vsel %vm1009, %v5207, %v5209
      %v5274 = vsel %vm1009, %v5211, %v5213
      %v5275 = vsel %vm1009, %v5213, %v5215
      %v5276 = vsel %vm1009, %v5217, %v5219
      %v5277 = vsel %vm1009, %v5219, %v5221
      %v5278 = vsel %vm1009, %v5223, %v5225
      %v5279 = vsel %vm1009, %v5225, %v5227
      %v5280 = vsel %vm1009, %v5229, %v5231
      %v5281 = vsel %vm1009, %v5231, %v5233
      %v5331 = vsel %vm3844, %v4797, 0
      %v5334 = vsel %vm3844, %v4799, 0
      %5336 = vmatpush.bf16.msra.mxu0 %v5262
      %5337 = vmatpush.bf16.msra.mxu0 %v5258
      %5338 = vmatpush.bf16.msra.mxu0 %v5254
      %5339 = vmatpush.bf16.msra.mxu0 %v5250
      %5340 = vmatpush.bf16.msra.mxu0 %v5246
      %5341 = vmatpush.bf16.msra.mxu0 %v5242
      %5342 = vmatpush.bf16.msra.mxu0 %v5238
      %5343 = vmatpush.bf16.msra.mxu0 %v5234
      %5344 = vmatmul.bf16.gmra.mxu0 %v4796
      %v5345 = vpop.f32.mrf.mxu0
      %v5346 = vadd.f32 0.0, %v5345
      %v5347 = vpop.f32.mrf.mxu0
      %v5348 = vadd.f32 0.0, %v5347
      %5349 = vmatmul.bf16.gmra.mxu0 %v4798
      %v5350 = vpop.f32.mrf.mxu0
      %v5351 = vadd.f32 0.0, %v5350
      %v5352 = vpop.f32.mrf.mxu0
      %v5353 = vadd.f32 0.0, %v5352
      %5354 = vdwg.mxu0
      %5355 = vmatpush.bf16.msra.mxu0 0
      %5356 = vmatpush.bf16.msra.mxu0 0
      %5357 = vmatpush.bf16.msra.mxu0 0
      %5358 = vmatpush.bf16.msra.mxu0 0
      %5359 = vmatpush.bf16.msra.mxu0 %v5278
      %5360 = vmatpush.bf16.msra.mxu0 %v5274
      %5361 = vmatpush.bf16.msra.mxu0 %v5270
      %5362 = vmatpush.bf16.msra.mxu0 %v5266
      %5363 = vmatmul.bf16.gmra.mxu0 %v5331
      %v5364 = vpop.f32.mrf.mxu0
      %v5365 = vadd.f32 %v5346, %v5364
      %v5366 = vpop.f32.mrf.mxu0
      %v5367 = vadd.f32 %v5348, %v5366
      %5368 = vmatmul.bf16.gmra.mxu0 %v5334
      %v5369 = vpop.f32.mrf.mxu0
      %v5370 = vadd.f32 %v5351, %v5369
      %v5371 = vpop.f32.mrf.mxu0
      %v5372 = vadd.f32 %v5353, %v5371
      %5373 = vdwg.mxu0
      %5374 = vmatpush.bf16.msra.mxu0 %v5263
      %5375 = vmatpush.bf16.msra.mxu0 %v5259
      %5376 = vmatpush.bf16.msra.mxu0 %v5255
      %5377 = vmatpush.bf16.msra.mxu0 %v5251
      %5378 = vmatpush.bf16.msra.mxu0 %v5247
      %5379 = vmatpush.bf16.msra.mxu0 %v5243
      %5380 = vmatpush.bf16.msra.mxu0 %v5239
      %5381 = vmatpush.bf16.msra.mxu0 %v5235
      %5382 = vmatmul.bf16.gmra.mxu0 %v4796
      %v5383 = vpop.f32.mrf.mxu0
      %v5384 = vadd.f32 0.0, %v5383
      %v5385 = vpop.f32.mrf.mxu0
      %v5386 = vadd.f32 0.0, %v5385
      %5387 = vmatmul.bf16.gmra.mxu0 %v4798
      %v5388 = vpop.f32.mrf.mxu0
      %v5389 = vadd.f32 0.0, %v5388
      %v5390 = vpop.f32.mrf.mxu0
      %v5391 = vadd.f32 0.0, %v5390
      %5392 = vdwg.mxu0
      %5393 = vmatpush.bf16.msra.mxu0 0
      %5394 = vmatpush.bf16.msra.mxu0 0
      %5395 = vmatpush.bf16.msra.mxu0 0
      %5396 = vmatpush.bf16.msra.mxu0 0
      %5397 = vmatpush.bf16.msra.mxu0 %v5279
      %5398 = vmatpush.bf16.msra.mxu0 %v5275
      %5399 = vmatpush.bf16.msra.mxu0 %v5271
      %5400 = vmatpush.bf16.msra.mxu0 %v5267
      %5401 = vmatmul.bf16.gmra.mxu0 %v5331
      %v5402 = vpop.f32.mrf.mxu0
      %v5403 = vadd.f32 %v5384, %v5402
      %v5404 = vpop.f32.mrf.mxu0
      %v5405 = vadd.f32 %v5386, %v5404
      %5406 = vmatmul.bf16.gmra.mxu0 %v5334
      %v5407 = vpop.f32.mrf.mxu0
      %v5408 = vadd.f32 %v5389, %v5407
      %v5409 = vpop.f32.mrf.mxu0
      %v5410 = vadd.f32 %v5391, %v5409
      %5411 = vdwg.mxu0
      %5412 = vmatpush.bf16.msra.mxu0 %v5264
      %5413 = vmatpush.bf16.msra.mxu0 %v5260
      %5414 = vmatpush.bf16.msra.mxu0 %v5256
      %5415 = vmatpush.bf16.msra.mxu0 %v5252
      %5416 = vmatpush.bf16.msra.mxu0 %v5248
      %5417 = vmatpush.bf16.msra.mxu0 %v5244
      %5418 = vmatpush.bf16.msra.mxu0 %v5240
      %5419 = vmatpush.bf16.msra.mxu0 %v5236
      %5420 = vmatmul.bf16.gmra.mxu0 %v4796
      %v5421 = vpop.f32.mrf.mxu0
      %v5422 = vadd.f32 0.0, %v5421
      %v5423 = vpop.f32.mrf.mxu0
      %v5424 = vadd.f32 0.0, %v5423
      %5425 = vmatmul.bf16.gmra.mxu0 %v4798
      %v5426 = vpop.f32.mrf.mxu0
      %v5427 = vadd.f32 0.0, %v5426
      %v5428 = vpop.f32.mrf.mxu0
      %v5429 = vadd.f32 0.0, %v5428
      %5430 = vdwg.mxu0
      %5431 = vmatpush.bf16.msra.mxu0 0
      %5432 = vmatpush.bf16.msra.mxu0 0
      %5433 = vmatpush.bf16.msra.mxu0 0
      %5434 = vmatpush.bf16.msra.mxu0 0
      %5435 = vmatpush.bf16.msra.mxu0 %v5280
      %5436 = vmatpush.bf16.msra.mxu0 %v5276
      %5437 = vmatpush.bf16.msra.mxu0 %v5272
      %5438 = vmatpush.bf16.msra.mxu0 %v5268
      %5439 = vmatmul.bf16.gmra.mxu0 %v5331
      %v5440 = vpop.f32.mrf.mxu0
      %v5441 = vadd.f32 %v5422, %v5440
      %v5442 = vpop.f32.mrf.mxu0
      %v5443 = vadd.f32 %v5424, %v5442
      %5444 = vmatmul.bf16.gmra.mxu0 %v5334
      %v5445 = vpop.f32.mrf.mxu0
      %v5446 = vadd.f32 %v5427, %v5445
      %v5447 = vpop.f32.mrf.mxu0
      %v5448 = vadd.f32 %v5429, %v5447
      %5449 = vdwg.mxu0
      %5450 = vmatpush.bf16.msra.mxu0 %v5265
      %5451 = vmatpush.bf16.msra.mxu0 %v5261
      %5452 = vmatpush.bf16.msra.mxu0 %v5257
      %5453 = vmatpush.bf16.msra.mxu0 %v5253
      %5454 = vmatpush.bf16.msra.mxu0 %v5249
      %5455 = vmatpush.bf16.msra.mxu0 %v5245
      %5456 = vmatpush.bf16.msra.mxu0 %v5241
      %5457 = vmatpush.bf16.msra.mxu0 %v5237
      %5458 = vmatmul.bf16.gmra.mxu0 %v4796
      %v5459 = vpop.f32.mrf.mxu0
      %v5460 = vadd.f32 0.0, %v5459
      %v5461 = vpop.f32.mrf.mxu0
      %v5462 = vadd.f32 0.0, %v5461
      %5463 = vmatmul.bf16.gmra.mxu0 %v4798
      %v5464 = vpop.f32.mrf.mxu0
      %v5465 = vadd.f32 0.0, %v5464
      %v5466 = vpop.f32.mrf.mxu0
      %v5467 = vadd.f32 0.0, %v5466
      %5468 = vdwg.mxu0
      %5469 = vmatpush.bf16.msra.mxu0 0
      %5470 = vmatpush.bf16.msra.mxu0 0
      %5471 = vmatpush.bf16.msra.mxu0 0
      %5472 = vmatpush.bf16.msra.mxu0 0
      %5473 = vmatpush.bf16.msra.mxu0 %v5281
      %5474 = vmatpush.bf16.msra.mxu0 %v5277
      %5475 = vmatpush.bf16.msra.mxu0 %v5273
      %5476 = vmatpush.bf16.msra.mxu0 %v5269
      %5477 = vmatmul.bf16.gmra.mxu0 %v5331
      %v5478 = vpop.f32.mrf.mxu0
      %v5479 = vadd.f32 %v5460, %v5478
      %v5480 = vpop.f32.mrf.mxu0
      %v5481 = vadd.f32 %v5462, %v5480
      %5482 = vmatmul.bf16.gmra.mxu0 %v5334
      %v5483 = vpop.f32.mrf.mxu0
      %v5484 = vadd.f32 %v5465, %v5483
      %v5485 = vpop.f32.mrf.mxu0
      %v5486 = vadd.f32 %v5467, %v5485
      %5487 = vdwg.mxu0
      %v5488 = vadd.f32 %v4584, %v5365
      %v5489 = vadd.f32 %v4622, %v5403
      %v5490 = vadd.f32 %v4660, %v5441
      %v5491 = vadd.f32 %v4698, %v5479
      %v5492 = vadd.f32 %v4586, %v5367
      %v5493 = vadd.f32 %v4624, %v5405
      %v5494 = vadd.f32 %v4662, %v5443
      %v5495 = vadd.f32 %v4700, %v5481
      %v5496 = vadd.f32 %v4589, %v5370
      %v5497 = vadd.f32 %v4627, %v5408
      %v5498 = vadd.f32 %v4665, %v5446
      %v5499 = vadd.f32 %v4703, %v5484
      %v5500 = vadd.f32 %v4591, %v5372
      %v5501 = vadd.f32 %v4629, %v5410
      %v5502 = vadd.f32 %v4667, %v5448
      %v5503 = vadd.f32 %v4705, %v5486
      %v5504 = vld [vmem:[%s6] sm:$0xff]
      %v5505 = vld [vmem:[%s6 + $0x8] sm:$0xff]
      %v5506 = vld [vmem:[%s6 + $0x10] sm:$0xff]
      %v5507 = vld [vmem:[%s6 + $0x18] sm:$0xff]
      %5509 = vset.pattern.permute.xlu0 0
      %5510 = vperm.xlu0 %5509, %v5504
      %v5511 = vpop.permute.xlu0 %5510
      %5514 = vset.pattern.permute.xlu0 0
      %5515 = vperm.xlu0 %5514, %v5505
      %v5516 = vpop.permute.xlu0 %5515
      %5519 = vset.pattern.permute.xlu0 0
      %5520 = vperm.xlu0 %5519, %v5506
      %v5521 = vpop.permute.xlu0 %5520
      %5524 = vset.pattern.permute.xlu0 0
      %5525 = vperm.xlu0 %5524, %v5507
      %v5526 = vpop.permute.xlu0 %5525
      %v5528 = vadd.f32 %v5488, %v5511
      %v5529 = vadd.f32 %v5489, %v5511
      %v5530 = vadd.f32 %v5490, %v5511
      %v5531 = vadd.f32 %v5491, %v5511
      %v5532 = vadd.f32 %v5492, %v5516
      %v5533 = vadd.f32 %v5493, %v5516
      %v5534 = vadd.f32 %v5494, %v5516
      %v5535 = vadd.f32 %v5495, %v5516
      %v5536 = vadd.f32 %v5496, %v5521
      %v5537 = vadd.f32 %v5497, %v5521
      %v5538 = vadd.f32 %v5498, %v5521
      %v5539 = vadd.f32 %v5499, %v5521
      %v5540 = vadd.f32 %v5500, %v5526
      %v5541 = vadd.f32 %v5501, %v5526
      %v5542 = vadd.f32 %v5502, %v5526
      %v5543 = vadd.f32 %v5503, %v5526
      %v5544 = vmax.f32 %v5528, 0.0
      %v5545 = vmax.f32 %v5529, 0.0
      %v5546 = vmax.f32 %v5530, 0.0
      %v5547 = vmax.f32 %v5531, 0.0
      %v5548 = vmax.f32 %v5532, 0.0
      %v5549 = vmax.f32 %v5533, 0.0
      %v5550 = vmax.f32 %v5534, 0.0
      %v5551 = vmax.f32 %v5535, 0.0
      %v5552 = vmax.f32 %v5536, 0.0
      %v5553 = vmax.f32 %v5537, 0.0
      %v5554 = vmax.f32 %v5538, 0.0
      %v5555 = vmax.f32 %v5539, 0.0
      %v5556 = vmax.f32 %v5540, 0.0
      %v5557 = vmax.f32 %v5541, 0.0
      %v5558 = vmax.f32 %v5542, 0.0
      %v5559 = vmax.f32 %v5543, 0.0
      %v5560 = vpack.c.bf16 %v5545, %v5544
      %v5561 = vpack.c.bf16 %v5549, %v5548
      %v5562 = vpack.c.bf16 %v5553, %v5552
      %v5563 = vpack.c.bf16 %v5557, %v5556
      %5564 = vst [vmem:[#allocation2 + $0x74] sm:$0xff] %v5560
      %5565 = vst [vmem:[#allocation2 + $0x90] sm:$0xff] %v5561
      %5566 = vst [vmem:[#allocation2 + $0xac] sm:$0xff] %v5562
      %5567 = vst [vmem:[#allocation2 + $0xc8] sm:$0xff] %v5563
      %v5568 = vpack.c.bf16 %v5547, %v5546
      %v5569 = vpack.c.bf16 %v5551, %v5550
      %v5570 = vpack.c.bf16 %v5555, %v5554
      %v5571 = vpack.c.bf16 %v5559, %v5558
      %5572 = vst [vmem:[#allocation2 + $0x80] sm:$0xff] %v5568
      %5573 = vst [vmem:[#allocation2 + $0x9c] sm:$0xff] %v5569
      %5574 = vst [vmem:[#allocation2 + $0xb8] sm:$0xff] %v5570
      %5575 = vst [vmem:[#allocation2 + $0xd4] sm:$0xff] %v5571
      %v5576 = vld [vmem:[#allocation2 + $0x70] sm:$0xff]
      %v5577 = vld [vmem:[#allocation2 + $0x78] sm:$0xff]
      %v5578 = vld [vmem:[#allocation2 + $0x80] sm:$0xff]
      %v5579 = vld [vmem:[#allocation2 + $0x8c] sm:$0xff]
      %v5580 = vld [vmem:[#allocation2 + $0x94] sm:$0xff]
      %v5581 = vld [vmem:[#allocation2 + $0x9c] sm:$0xff]
      %v5582 = vld [vmem:[#allocation2 + $0xa8] sm:$0xff]
      %v5583 = vld [vmem:[#allocation2 + $0xb0] sm:$0xff]
      %v5584 = vld [vmem:[#allocation2 + $0xb8] sm:$0xff]
      %v5585 = vld [vmem:[#allocation2 + $0xc4] sm:$0xff]
      %v5586 = vld [vmem:[#allocation2 + $0xcc] sm:$0xff]
      %v5587 = vld [vmem:[#allocation2 + $0xd4] sm:$0xff]
      %v5588 = vld [vmem:[#allocation2 + $0x74] sm:$0xff]
      %v5589 = vld [vmem:[#allocation2 + $0x7c] sm:$0xff]
      %v5590 = vld [vmem:[#allocation2 + $0x84] sm:$0xff]
      %v5591 = vld [vmem:[#allocation2 + $0x90] sm:$0xff]
      %v5592 = vld [vmem:[#allocation2 + $0x98] sm:$0xff]
      %v5593 = vld [vmem:[#allocation2 + $0xa0] sm:$0xff]
      %v5594 = vld [vmem:[#allocation2 + $0xac] sm:$0xff]
      %v5595 = vld [vmem:[#allocation2 + $0xb4] sm:$0xff]
      %v5596 = vld [vmem:[#allocation2 + $0xbc] sm:$0xff]
      %v5597 = vld [vmem:[#allocation2 + $0xc8] sm:$0xff]
      %v5598 = vld [vmem:[#allocation2 + $0xd0] sm:$0xff]
      %v5599 = vld [vmem:[#allocation2 + $0xd8] sm:$0xff]
      %v5600 = vsel %vm1256, %v5576, 0
      %v5601 = vsel %vm1263, %v5577, 0
      %v5602 = vsel %vm1270, %v5578, 0
      %v5603 = vsel %vm1256, %v5579, 0
      %v5604 = vsel %vm1263, %v5580, 0
      %v5605 = vsel %vm1270, %v5581, 0
      %v5606 = vsel %vm1256, %v5582, 0
      %v5607 = vsel %vm1263, %v5583, 0
      %v5608 = vsel %vm1270, %v5584, 0
      %v5609 = vsel %vm1256, %v5585, 0
      %v5610 = vsel %vm1263, %v5586, 0
      %v5611 = vsel %vm1270, %v5587, 0
      %5624 = vrot.lane.b32.xlu0 %v5600, 1
      %v5625 = vpop.permute.xlu0 %5624
      %5626 = vrot.lane.b32.xlu0 %v5601, 1
      %v5627 = vpop.permute.xlu0 %5626
      %5628 = vrot.lane.b32.xlu0 %v5602, 1
      %v5629 = vpop.permute.xlu0 %5628
      %5630 = vrot.lane.b32.xlu0 %v5603, 1
      %v5631 = vpop.permute.xlu0 %5630
      %5632 = vrot.lane.b32.xlu0 %v5604, 1
      %v5633 = vpop.permute.xlu0 %5632
      %5634 = vrot.lane.b32.xlu0 %v5605, 1
      %v5635 = vpop.permute.xlu0 %5634
      %5636 = vrot.lane.b32.xlu0 %v5606, 1
      %v5637 = vpop.permute.xlu0 %5636
      %5638 = vrot.lane.b32.xlu0 %v5607, 1
      %v5639 = vpop.permute.xlu0 %5638
      %5640 = vrot.lane.b32.xlu0 %v5608, 1
      %v5641 = vpop.permute.xlu0 %5640
      %5642 = vrot.lane.b32.xlu0 %v5609, 1
      %v5643 = vpop.permute.xlu0 %5642
      %5644 = vrot.lane.b32.xlu0 %v5610, 1
      %v5645 = vpop.permute.xlu0 %5644
      %5646 = vrot.lane.b32.xlu0 %v5611, 1
      %v5647 = vpop.permute.xlu0 %5646
      %v5648 = vrot.slane %v5625, 4
      %v5649 = vrot.slane %v5627, 4
      %v5650 = vrot.slane %v5629, 4
      %v5651 = vrot.slane %v5631, 4
      %v5652 = vrot.slane %v5633, 4
      %v5653 = vrot.slane %v5635, 4
      %v5654 = vrot.slane %v5637, 4
      %v5655 = vrot.slane %v5639, 4
      %v5656 = vrot.slane %v5641, 4
      %v5657 = vrot.slane %v5643, 4
      %v5658 = vrot.slane %v5645, 4
      %v5659 = vrot.slane %v5647, 4
      %v5660 = vsel %vm529, %v5648, %v5649
      %v5661 = vsel %vm583, %v5625, %v5660
      %v5662 = vsel %vm529, %v5649, %v5650
      %v5663 = vsel %vm583, %v5627, %v5662
      %v5664 = vsel %vm583, %v5629, %v5650
      %v5665 = vsel %vm529, %v5651, %v5652
      %v5666 = vsel %vm583, %v5631, %v5665
      %v5667 = vsel %vm529, %v5652, %v5653
      %v5668 = vsel %vm583, %v5633, %v5667
      %v5669 = vsel %vm583, %v5635, %v5653
      %v5670 = vsel %vm529, %v5654, %v5655
      %v5671 = vsel %vm583, %v5637, %v5670
      %v5672 = vsel %vm529, %v5655, %v5656
      %v5673 = vsel %vm583, %v5639, %v5672
      %v5674 = vsel %vm583, %v5641, %v5656
      %v5675 = vsel %vm529, %v5657, %v5658
      %v5676 = vsel %vm583, %v5643, %v5675
      %v5677 = vsel %vm529, %v5658, %v5659
      %v5678 = vsel %vm583, %v5645, %v5677
      %v5679 = vsel %vm583, %v5647, %v5659
      %5692 = vst [vmem:[#allocation2 + $0x4] sm:$0xff] %v5661
      %5693 = vst [vmem:[#allocation2 + $0xc] sm:$0xff] %v5663
      %5694 = vst [vmem:[#allocation2 + $0x14] sm:$0xf] %v5664
      %5695 = vst [vmem:[#allocation2 + $0x20] sm:$0xff] %v5666
      %5696 = vst [vmem:[#allocation2 + $0x28] sm:$0xff] %v5668
      %5697 = vst [vmem:[#allocation2 + $0x30] sm:$0xf] %v5669
      %5698 = vst [vmem:[#allocation2 + $0x3c] sm:$0xff] %v5671
      %5699 = vst [vmem:[#allocation2 + $0x44] sm:$0xff] %v5673
      %5700 = vst [vmem:[#allocation2 + $0x4c] sm:$0xf] %v5674
      %5701 = vst [vmem:[#allocation2 + $0x58] sm:$0xff] %v5676
      %5702 = vst [vmem:[#allocation2 + $0x60] sm:$0xff] %v5678
      %5703 = vst [vmem:[#allocation2 + $0x68] sm:$0xf] %v5679
      %v5704 = vsel %vm1411, %v5588, 0
      %v5705 = vsel %vm1418, %v5589, 0
      %v5706 = vsel %vm1425, %v5590, 0
      %v5707 = vsel %vm1411, %v5591, 0
      %v5708 = vsel %vm1418, %v5592, 0
      %v5709 = vsel %vm1425, %v5593, 0
      %v5710 = vsel %vm1411, %v5594, 0
      %v5711 = vsel %vm1418, %v5595, 0
      %v5712 = vsel %vm1425, %v5596, 0
      %v5713 = vsel %vm1411, %v5597, 0
      %v5714 = vsel %vm1418, %v5598, 0
      %v5715 = vsel %vm1425, %v5599, 0
      %5728 = vrot.lane.b32.xlu0 %v5704, 127
      %v5729 = vpop.permute.xlu0 %5728
      %5730 = vrot.lane.b32.xlu0 %v5705, 127
      %v5731 = vpop.permute.xlu0 %5730
      %5732 = vrot.lane.b32.xlu0 %v5706, 127
      %v5733 = vpop.permute.xlu0 %5732
      %5734 = vrot.lane.b32.xlu0 %v5707, 127
      %v5735 = vpop.permute.xlu0 %5734
      %5736 = vrot.lane.b32.xlu0 %v5708, 127
      %v5737 = vpop.permute.xlu0 %5736
      %5738 = vrot.lane.b32.xlu0 %v5709, 127
      %v5739 = vpop.permute.xlu0 %5738
      %5740 = vrot.lane.b32.xlu0 %v5710, 127
      %v5741 = vpop.permute.xlu0 %5740
      %5742 = vrot.lane.b32.xlu0 %v5711, 127
      %v5743 = vpop.permute.xlu0 %5742
      %5744 = vrot.lane.b32.xlu0 %v5712, 127
      %v5745 = vpop.permute.xlu0 %5744
      %5746 = vrot.lane.b32.xlu0 %v5713, 127
      %v5747 = vpop.permute.xlu0 %5746
      %5748 = vrot.lane.b32.xlu0 %v5714, 127
      %v5749 = vpop.permute.xlu0 %5748
      %5750 = vrot.lane.b32.xlu0 %v5715, 127
      %v5751 = vpop.permute.xlu0 %5750
      %v5752 = vrot.slane %v5729, 4
      %v5753 = vrot.slane %v5731, 4
      %v5754 = vrot.slane %v5733, 4
      %v5755 = vrot.slane %v5735, 4
      %v5756 = vrot.slane %v5737, 4
      %v5757 = vrot.slane %v5739, 4
      %v5758 = vrot.slane %v5741, 4
      %v5759 = vrot.slane %v5743, 4
      %v5760 = vrot.slane %v5745, 4
      %v5761 = vrot.slane %v5747, 4
      %v5762 = vrot.slane %v5749, 4
      %v5763 = vrot.slane %v5751, 4
      %v5764 = vsel %vm529, %v5752, %v5753
      %v5765 = vsel %vm527, %v5729, %v5764
      %v5766 = vsel %vm529, %v5753, %v5754
      %v5767 = vsel %vm527, %v5731, %v5766
      %v5768 = vsel %vm527, %v5733, %v5754
      %v5769 = vsel %vm529, %v5755, %v5756
      %v5770 = vsel %vm527, %v5735, %v5769
      %v5771 = vsel %vm529, %v5756, %v5757
      %v5772 = vsel %vm527, %v5737, %v5771
      %v5773 = vsel %vm527, %v5739, %v5757
      %v5774 = vsel %vm529, %v5758, %v5759
      %v5775 = vsel %vm527, %v5741, %v5774
      %v5776 = vsel %vm529, %v5759, %v5760
      %v5777 = vsel %vm527, %v5743, %v5776
      %v5778 = vsel %vm527, %v5745, %v5760
      %v5779 = vsel %vm529, %v5761, %v5762
      %v5780 = vsel %vm527, %v5747, %v5779
      %v5781 = vsel %vm529, %v5762, %v5763
      %v5782 = vsel %vm527, %v5749, %v5781
      %v5783 = vsel %vm527, %v5751, %v5763
      %5796 = vst [vmem:[#allocation2 + $0xe4] sm:$0xff] %v5765
      %5797 = vst [vmem:[#allocation2 + $0xec] sm:$0xff] %v5767
      %5798 = vst [vmem:[#allocation2 + $0xf4] sm:$0xf] %v5768
      %5799 = vst [vmem:[#allocation2 + $0x100] sm:$0xff] %v5770
      %5800 = vst [vmem:[#allocation2 + $0x108] sm:$0xff] %v5772
      %5801 = vst [vmem:[#allocation2 + $0x110] sm:$0xf] %v5773
      %5802 = vst [vmem:[#allocation2 + $0x11c] sm:$0xff] %v5775
      %5803 = vst [vmem:[#allocation2 + $0x124] sm:$0xff] %v5777
      %5804 = vst [vmem:[#allocation2 + $0x12c] sm:$0xf] %v5778
      %5805 = vst [vmem:[#allocation2 + $0x138] sm:$0xff] %v5780
      %5806 = vst [vmem:[#allocation2 + $0x140] sm:$0xff] %v5782
      %5807 = vst [vmem:[#allocation2 + $0x148] sm:$0xf] %v5783
      %v5808 = vld [vmem:[#allocation2] sm:$0xff]
      %v5809 = vld [vmem:[#allocation2 + $0x8] sm:$0xff]
      %v5810 = vld [vmem:[#allocation2 + $0x10] sm:$0xff]
      %v5811 = vld [vmem:[#allocation2 + $0x1c] sm:$0xff]
      %v5812 = vld [vmem:[#allocation2 + $0x24] sm:$0xff]
      %v5813 = vld [vmem:[#allocation2 + $0x2c] sm:$0xff]
      %v5814 = vld [vmem:[#allocation2 + $0x38] sm:$0xff]
      %v5815 = vld [vmem:[#allocation2 + $0x40] sm:$0xff]
      %v5816 = vld [vmem:[#allocation2 + $0x48] sm:$0xff]
      %v5817 = vld [vmem:[#allocation2 + $0x54] sm:$0xff]
      %v5818 = vld [vmem:[#allocation2 + $0x5c] sm:$0xff]
      %v5819 = vld [vmem:[#allocation2 + $0x64] sm:$0xff]
      %v5820 = vld [vmem:[#allocation2 + $0x70] sm:$0xff]
      %v5821 = vld [vmem:[#allocation2 + $0x78] sm:$0xff]
      %v5822 = vld [vmem:[#allocation2 + $0x80] sm:$0xff]
      %v5823 = vld [vmem:[#allocation2 + $0x8c] sm:$0xff]
      %v5824 = vld [vmem:[#allocation2 + $0x94] sm:$0xff]
      %v5825 = vld [vmem:[#allocation2 + $0x9c] sm:$0xff]
      %v5826 = vld [vmem:[#allocation2 + $0xa8] sm:$0xff]
      %v5827 = vld [vmem:[#allocation2 + $0xb0] sm:$0xff]
      %v5828 = vld [vmem:[#allocation2 + $0xb8] sm:$0xff]
      %v5829 = vld [vmem:[#allocation2 + $0xc4] sm:$0xff]
      %v5830 = vld [vmem:[#allocation2 + $0xcc] sm:$0xff]
      %v5831 = vld [vmem:[#allocation2 + $0xd4] sm:$0xff]
      %v5832 = vld [vmem:[#allocation2 + $0xe0] sm:$0xff]
      %v5833 = vld [vmem:[#allocation2 + $0xe8] sm:$0xff]
      %v5834 = vld [vmem:[#allocation2 + $0xf0] sm:$0xff]
      %v5835 = vld [vmem:[#allocation2 + $0xfc] sm:$0xff]
      %v5836 = vld [vmem:[#allocation2 + $0x104] sm:$0xff]
      %v5837 = vld [vmem:[#allocation2 + $0x10c] sm:$0xff]
      %v5838 = vld [vmem:[#allocation2 + $0x118] sm:$0xff]
      %v5839 = vld [vmem:[#allocation2 + $0x120] sm:$0xff]
      %v5840 = vld [vmem:[#allocation2 + $0x128] sm:$0xff]
      %v5841 = vld [vmem:[#allocation2 + $0x134] sm:$0xff]
      %v5842 = vld [vmem:[#allocation2 + $0x13c] sm:$0xff]
      %v5843 = vld [vmem:[#allocation2 + $0x144] sm:$0xff]
      %v5844 = vld [vmem:[%s7] sm:$0xf]
      %v5845 = vld [vmem:[#allocation2 + $0x4] sm:$0xff]
      %v5846 = vld [vmem:[#allocation2 + $0xc] sm:$0xff]
      %v5847 = vld [vmem:[#allocation2 + $0x14] sm:$0xf]
      %v5848 = vld [vmem:[#allocation2 + $0x20] sm:$0xff]
      %v5849 = vld [vmem:[#allocation2 + $0x28] sm:$0xff]
      %v5850 = vld [vmem:[#allocation2 + $0x30] sm:$0xf]
      %v5851 = vld [vmem:[#allocation2 + $0x3c] sm:$0xff]
      %v5852 = vld [vmem:[#allocation2 + $0x44] sm:$0xff]
      %v5853 = vld [vmem:[#allocation2 + $0x4c] sm:$0xf]
      %v5854 = vld [vmem:[#allocation2 + $0x58] sm:$0xff]
      %v5855 = vld [vmem:[#allocation2 + $0x60] sm:$0xff]
      %v5856 = vld [vmem:[#allocation2 + $0x68] sm:$0xf]
      %v5857 = vld [vmem:[#allocation2 + $0x74] sm:$0xff]
      %v5858 = vld [vmem:[#allocation2 + $0x7c] sm:$0xff]
      %v5859 = vld [vmem:[#allocation2 + $0x84] sm:$0xf]
      %v5860 = vld [vmem:[#allocation2 + $0x90] sm:$0xff]
      %v5861 = vld [vmem:[#allocation2 + $0x98] sm:$0xff]
      %v5862 = vld [vmem:[#allocation2 + $0xa0] sm:$0xf]
      %v5863 = vld [vmem:[#allocation2 + $0xac] sm:$0xff]
      %v5864 = vld [vmem:[#allocation2 + $0xb4] sm:$0xff]
      %v5865 = vld [vmem:[#allocation2 + $0xbc] sm:$0xf]
      %v5866 = vld [vmem:[#allocation2 + $0xc8] sm:$0xff]
      %v5867 = vld [vmem:[#allocation2 + $0xd0] sm:$0xff]
      %v5868 = vld [vmem:[#allocation2 + $0xd8] sm:$0xf]
      %v5869 = vld [vmem:[#allocation2 + $0xe4] sm:$0xff]
      %v5870 = vld [vmem:[#allocation2 + $0xec] sm:$0xff]
      %v5871 = vld [vmem:[#allocation2 + $0xf4] sm:$0xf]
      %v5872 = vld [vmem:[#allocation2 + $0x100] sm:$0xff]
      %v5873 = vld [vmem:[#allocation2 + $0x108] sm:$0xff]
      %v5874 = vld [vmem:[#allocation2 + $0x110] sm:$0xf]
      %v5875 = vld [vmem:[#allocation2 + $0x11c] sm:$0xff]
      %v5876 = vld [vmem:[#allocation2 + $0x124] sm:$0xff]
      %v5877 = vld [vmem:[#allocation2 + $0x12c] sm:$0xf]
      %v5878 = vld [vmem:[#allocation2 + $0x138] sm:$0xff]
      %v5879 = vld [vmem:[#allocation2 + $0x140] sm:$0xff]
      %v5880 = vld [vmem:[#allocation2 + $0x148] sm:$0xf]
      %s5881 = scalar_lea.vmem %s7, 4
      %v5882 = vld [vmem:[%s5881] sm:$0xf]
      %v5919 = vunpack.c.l.b16 %v5845
      %v5920 = vunpack.c.h.b16 %v5845
      %v5921 = vunpack.c.h.b16 %v5846
      %v5922 = vunpack.c.l.b16 %v5847
      %v5923 = vunpack.c.l.b16 %v5848
      %v5924 = vunpack.c.h.b16 %v5848
      %v5925 = vunpack.c.h.b16 %v5849
      %v5926 = vunpack.c.l.b16 %v5850
      %v5927 = vunpack.c.l.b16 %v5851
      %v5928 = vunpack.c.h.b16 %v5851
      %v5929 = vunpack.c.h.b16 %v5852
      %v5930 = vunpack.c.l.b16 %v5853
      %v5931 = vunpack.c.l.b16 %v5854
      %v5932 = vunpack.c.h.b16 %v5854
      %v5933 = vunpack.c.h.b16 %v5855
      %v5934 = vunpack.c.l.b16 %v5856
      %v5935 = vunpack.c.l.b16 %v5857
      %v5936 = vunpack.c.h.b16 %v5857
      %v5937 = vunpack.c.h.b16 %v5858
      %v5938 = vunpack.c.l.b16 %v5859
      %v5939 = vunpack.c.l.b16 %v5860
      %v5940 = vunpack.c.h.b16 %v5860
      %v5941 = vunpack.c.h.b16 %v5861
      %v5942 = vunpack.c.l.b16 %v5862
      %v5943 = vunpack.c.l.b16 %v5863
      %v5944 = vunpack.c.h.b16 %v5863
      %v5945 = vunpack.c.h.b16 %v5864
      %v5946 = vunpack.c.l.b16 %v5865
      %v5947 = vunpack.c.l.b16 %v5866
      %v5948 = vunpack.c.h.b16 %v5866
      %v5949 = vunpack.c.h.b16 %v5867
      %v5950 = vunpack.c.l.b16 %v5868
      %v5951 = vunpack.c.l.b16 %v5869
      %v5952 = vunpack.c.h.b16 %v5869
      %v5953 = vunpack.c.h.b16 %v5870
      %v5954 = vunpack.c.l.b16 %v5871
      %v5955 = vunpack.c.l.b16 %v5872
      %v5956 = vunpack.c.h.b16 %v5872
      %v5957 = vunpack.c.h.b16 %v5873
      %v5958 = vunpack.c.l.b16 %v5874
      %v5959 = vunpack.c.l.b16 %v5875
      %v5960 = vunpack.c.h.b16 %v5875
      %v5961 = vunpack.c.h.b16 %v5876
      %v5962 = vunpack.c.l.b16 %v5877
      %v5963 = vunpack.c.l.b16 %v5878
      %v5964 = vunpack.c.h.b16 %v5878
      %v5965 = vunpack.c.h.b16 %v5879
      %v5966 = vunpack.c.l.b16 %v5880
      %v5967 = vpack.c.b16 %v5923, %v5919
      %v5968 = vpack.c.b16 %v5924, %v5920
      %v5969 = vpack.c.b16 %v5925, %v5921
      %v5970 = vpack.c.b16 %v5926, %v5922
      %v5971 = vpack.c.b16 %v5931, %v5927
      %v5972 = vpack.c.b16 %v5932, %v5928
      %v5973 = vpack.c.b16 %v5933, %v5929
      %v5974 = vpack.c.b16 %v5934, %v5930
      %v5975 = vpack.c.b16 %v5939, %v5935
      %v5976 = vpack.c.b16 %v5940, %v5936
      %v5977 = vpack.c.b16 %v5941, %v5937
      %v5978 = vpack.c.b16 %v5942, %v5938
      %v5979 = vpack.c.b16 %v5947, %v5943
      %v5980 = vpack.c.b16 %v5948, %v5944
      %v5981 = vpack.c.b16 %v5949, %v5945
      %v5982 = vpack.c.b16 %v5950, %v5946
      %v5983 = vpack.c.b16 %v5955, %v5951
      %v5984 = vpack.c.b16 %v5956, %v5952
      %v5985 = vpack.c.b16 %v5957, %v5953
      %v5986 = vpack.c.b16 %v5958, %v5954
      %v5987 = vpack.c.b16 %v5963, %v5959
      %v5988 = vpack.c.b16 %v5964, %v5960
      %v5989 = vpack.c.b16 %v5965, %v5961
      %v5990 = vpack.c.b16 %v5966, %v5962
      %v6016 = vsel %vm1771, %v5882, 0
      %6018 = vmatpush.bf16.msra.mxu0 0
      %6019 = vmatpush.bf16.msra.mxu0 0
      %6020 = vmatpush.bf16.msra.mxu0 %v5987
      %6021 = vmatpush.bf16.msra.mxu0 %v5983
      %6022 = vmatpush.bf16.msra.mxu0 %v5979
      %6023 = vmatpush.bf16.msra.mxu0 %v5975
      %6024 = vmatpush.bf16.msra.mxu0 %v5971
      %6025 = vmatpush.bf16.msra.mxu0 %v5967
      %6026 = vmatmul.bf16.gmra.mxu0 %v6016
      %v6027 = vpop.f32.mrf.mxu0
      %v6028 = vadd.f32 0.0, %v6027
      %v6029 = vpop.f32.mrf.mxu0
      %6030 = vdwg.mxu0
      %6031 = vmatpush.bf16.msra.mxu0 0
      %6032 = vmatpush.bf16.msra.mxu0 0
      %6033 = vmatpush.bf16.msra.mxu0 %v5988
      %6034 = vmatpush.bf16.msra.mxu0 %v5984
      %6035 = vmatpush.bf16.msra.mxu0 %v5980
      %6036 = vmatpush.bf16.msra.mxu0 %v5976
      %6037 = vmatpush.bf16.msra.mxu0 %v5972
      %6038 = vmatpush.bf16.msra.mxu0 %v5968
      %6039 = vmatmul.bf16.gmra.mxu0 %v6016
      %v6040 = vpop.f32.mrf.mxu0
      %v6041 = vadd.f32 0.0, %v6040
      %v6042 = vpop.f32.mrf.mxu0
      %6043 = vdwg.mxu0
      %6044 = vmatpush.bf16.msra.mxu0 0
      %6045 = vmatpush.bf16.msra.mxu0 0
      %6046 = vmatpush.bf16.msra.mxu0 %v5989
      %6047 = vmatpush.bf16.msra.mxu0 %v5985
      %6048 = vmatpush.bf16.msra.mxu0 %v5981
      %6049 = vmatpush.bf16.msra.mxu0 %v5977
      %6050 = vmatpush.bf16.msra.mxu0 %v5973
      %6051 = vmatpush.bf16.msra.mxu0 %v5969
      %6052 = vmatmul.bf16.gmra.mxu0 %v6016
      %v6053 = vpop.f32.mrf.mxu0
      %v6054 = vadd.f32 0.0, %v6053
      %v6055 = vpop.f32.mrf.mxu0
      %6056 = vdwg.mxu0
      %6057 = vmatpush.bf16.msra.mxu0 0
      %6058 = vmatpush.bf16.msra.mxu0 0
      %6059 = vmatpush.bf16.msra.mxu0 %v5990
      %6060 = vmatpush.bf16.msra.mxu0 %v5986
      %6061 = vmatpush.bf16.msra.mxu0 %v5982
      %6062 = vmatpush.bf16.msra.mxu0 %v5978
      %6063 = vmatpush.bf16.msra.mxu0 %v5974
      %6064 = vmatpush.bf16.msra.mxu0 %v5970
      %6065 = vmatmul.bf16.gmra.mxu0 %v6016
      %v6066 = vpop.f32.mrf.mxu0
      %v6067 = vadd.f32 0.0, %v6066
      %v6068 = vpop.f32.mrf.mxu0
      %6069 = vdwg.mxu0
      %v6106 = vunpack.c.l.b16 %v5808
      %v6107 = vunpack.c.h.b16 %v5808
      %v6108 = vunpack.c.l.b16 %v5809
      %v6109 = vunpack.c.h.b16 %v5809
      %v6110 = vunpack.c.l.b16 %v5810
      %v6111 = vunpack.c.h.b16 %v5810
      %v6112 = vunpack.c.l.b16 %v5811
      %v6113 = vunpack.c.h.b16 %v5811
      %v6114 = vunpack.c.l.b16 %v5812
      %v6115 = vunpack.c.h.b16 %v5812
      %v6116 = vunpack.c.l.b16 %v5813
      %v6117 = vunpack.c.h.b16 %v5813
      %v6118 = vunpack.c.l.b16 %v5814
      %v6119 = vunpack.c.h.b16 %v5814
      %v6120 = vunpack.c.l.b16 %v5815
      %v6121 = vunpack.c.h.b16 %v5815
      %v6122 = vunpack.c.l.b16 %v5816
      %v6123 = vunpack.c.h.b16 %v5816
      %v6124 = vunpack.c.l.b16 %v5817
      %v6125 = vunpack.c.h.b16 %v5817
      %v6126 = vunpack.c.l.b16 %v5818
      %v6127 = vunpack.c.h.b16 %v5818
      %v6128 = vunpack.c.l.b16 %v5819
      %v6129 = vunpack.c.h.b16 %v5819
      %v6130 = vunpack.c.l.b16 %v5820
      %v6131 = vunpack.c.h.b16 %v5820
      %v6132 = vunpack.c.l.b16 %v5821
      %v6133 = vunpack.c.h.b16 %v5821
      %v6134 = vunpack.c.l.b16 %v5822
      %v6135 = vunpack.c.h.b16 %v5822
      %v6136 = vunpack.c.l.b16 %v5823
      %v6137 = vunpack.c.h.b16 %v5823
      %v6138 = vunpack.c.l.b16 %v5824
      %v6139 = vunpack.c.h.b16 %v5824
      %v6140 = vunpack.c.l.b16 %v5825
      %v6141 = vunpack.c.h.b16 %v5825
      %v6142 = vunpack.c.l.b16 %v5826
      %v6143 = vunpack.c.h.b16 %v5826
      %v6144 = vunpack.c.l.b16 %v5827
      %v6145 = vunpack.c.h.b16 %v5827
      %v6146 = vunpack.c.l.b16 %v5828
      %v6147 = vunpack.c.h.b16 %v5828
      %v6148 = vunpack.c.l.b16 %v5829
      %v6149 = vunpack.c.h.b16 %v5829
      %v6150 = vunpack.c.l.b16 %v5830
      %v6151 = vunpack.c.h.b16 %v5830
      %v6152 = vunpack.c.l.b16 %v5831
      %v6153 = vunpack.c.h.b16 %v5831
      %v6154 = vunpack.c.l.b16 %v5832
      %v6155 = vunpack.c.h.b16 %v5832
      %v6156 = vunpack.c.l.b16 %v5833
      %v6157 = vunpack.c.h.b16 %v5833
      %v6158 = vunpack.c.l.b16 %v5834
      %v6159 = vunpack.c.h.b16 %v5834
      %v6160 = vunpack.c.l.b16 %v5835
      %v6161 = vunpack.c.h.b16 %v5835
      %v6162 = vunpack.c.l.b16 %v5836
      %v6163 = vunpack.c.h.b16 %v5836
      %v6164 = vunpack.c.l.b16 %v5837
      %v6165 = vunpack.c.h.b16 %v5837
      %v6166 = vunpack.c.l.b16 %v5838
      %v6167 = vunpack.c.h.b16 %v5838
      %v6168 = vunpack.c.l.b16 %v5839
      %v6169 = vunpack.c.h.b16 %v5839
      %v6170 = vunpack.c.l.b16 %v5840
      %v6171 = vunpack.c.h.b16 %v5840
      %v6172 = vunpack.c.l.b16 %v5841
      %v6173 = vunpack.c.h.b16 %v5841
      %v6174 = vunpack.c.l.b16 %v5842
      %v6175 = vunpack.c.h.b16 %v5842
      %v6176 = vunpack.c.l.b16 %v5843
      %v6177 = vunpack.c.h.b16 %v5843
      %v6178 = vpack.c.b16 %v6112, %v6106
      %v6179 = vpack.c.b16 %v6113, %v6107
      %v6180 = vpack.c.b16 %v6114, %v6108
      %v6181 = vpack.c.b16 %v6115, %v6109
      %v6182 = vpack.c.b16 %v6116, %v6110
      %v6183 = vpack.c.b16 %v6117, %v6111
      %v6184 = vpack.c.b16 %v6124, %v6118
      %v6185 = vpack.c.b16 %v6125, %v6119
      %v6186 = vpack.c.b16 %v6126, %v6120
      %v6187 = vpack.c.b16 %v6127, %v6121
      %v6188 = vpack.c.b16 %v6128, %v6122
      %v6189 = vpack.c.b16 %v6129, %v6123
      %v6190 = vpack.c.b16 %v6136, %v6130
      %v6191 = vpack.c.b16 %v6137, %v6131
      %v6192 = vpack.c.b16 %v6138, %v6132
      %v6193 = vpack.c.b16 %v6139, %v6133
      %v6194 = vpack.c.b16 %v6140, %v6134
      %v6195 = vpack.c.b16 %v6141, %v6135
      %v6196 = vpack.c.b16 %v6148, %v6142
      %v6197 = vpack.c.b16 %v6149, %v6143
      %v6198 = vpack.c.b16 %v6150, %v6144
      %v6199 = vpack.c.b16 %v6151, %v6145
      %v6200 = vpack.c.b16 %v6152, %v6146
      %v6201 = vpack.c.b16 %v6153, %v6147
      %v6202 = vpack.c.b16 %v6160, %v6154
      %v6203 = vpack.c.b16 %v6161, %v6155
      %v6204 = vpack.c.b16 %v6162, %v6156
      %v6205 = vpack.c.b16 %v6163, %v6157
      %v6206 = vpack.c.b16 %v6164, %v6158
      %v6207 = vpack.c.b16 %v6165, %v6159
      %v6208 = vpack.c.b16 %v6172, %v6166
      %v6209 = vpack.c.b16 %v6173, %v6167
      %v6210 = vpack.c.b16 %v6174, %v6168
      %v6211 = vpack.c.b16 %v6175, %v6169
      %v6212 = vpack.c.b16 %v6176, %v6170
      %v6213 = vpack.c.b16 %v6177, %v6171
      %6214 = vrot.lane.b32.xlu0 %v6178, 16
      %v6215 = vpop.permute.xlu0 %6214
      %6216 = vrot.lane.b32.xlu0 %v6179, 16
      %v6217 = vpop.permute.xlu0 %6216
      %6218 = vrot.lane.b32.xlu0 %v6180, 16
      %v6219 = vpop.permute.xlu0 %6218
      %6220 = vrot.lane.b32.xlu0 %v6181, 16
      %v6221 = vpop.permute.xlu0 %6220
      %6222 = vrot.lane.b32.xlu0 %v6182, 16
      %v6223 = vpop.permute.xlu0 %6222
      %6224 = vrot.lane.b32.xlu0 %v6183, 16
      %v6225 = vpop.permute.xlu0 %6224
      %6226 = vrot.lane.b32.xlu0 %v6184, 16
      %v6227 = vpop.permute.xlu0 %6226
      %6228 = vrot.lane.b32.xlu0 %v6185, 16
      %v6229 = vpop.permute.xlu0 %6228
      %6230 = vrot.lane.b32.xlu0 %v6186, 16
      %v6231 = vpop.permute.xlu0 %6230
      %6232 = vrot.lane.b32.xlu0 %v6187, 16
      %v6233 = vpop.permute.xlu0 %6232
      %6234 = vrot.lane.b32.xlu0 %v6188, 16
      %v6235 = vpop.permute.xlu0 %6234
      %6236 = vrot.lane.b32.xlu0 %v6189, 16
      %v6237 = vpop.permute.xlu0 %6236
      %6238 = vrot.lane.b32.xlu0 %v6190, 16
      %v6239 = vpop.permute.xlu0 %6238
      %6240 = vrot.lane.b32.xlu0 %v6191, 16
      %v6241 = vpop.permute.xlu0 %6240
      %6242 = vrot.lane.b32.xlu0 %v6192, 16
      %v6243 = vpop.permute.xlu0 %6242
      %6244 = vrot.lane.b32.xlu0 %v6193, 16
      %v6245 = vpop.permute.xlu0 %6244
      %6246 = vrot.lane.b32.xlu0 %v6194, 16
      %v6247 = vpop.permute.xlu0 %6246
      %6248 = vrot.lane.b32.xlu0 %v6195, 16
      %v6249 = vpop.permute.xlu0 %6248
      %6250 = vrot.lane.b32.xlu0 %v6196, 16
      %v6251 = vpop.permute.xlu0 %6250
      %6252 = vrot.lane.b32.xlu0 %v6197, 16
      %v6253 = vpop.permute.xlu0 %6252
      %6254 = vrot.lane.b32.xlu0 %v6198, 16
      %v6255 = vpop.permute.xlu0 %6254
      %6256 = vrot.lane.b32.xlu0 %v6199, 16
      %v6257 = vpop.permute.xlu0 %6256
      %6258 = vrot.lane.b32.xlu0 %v6200, 16
      %v6259 = vpop.permute.xlu0 %6258
      %6260 = vrot.lane.b32.xlu0 %v6201, 16
      %v6261 = vpop.permute.xlu0 %6260
      %6262 = vrot.lane.b32.xlu0 %v6202, 16
      %v6263 = vpop.permute.xlu0 %6262
      %6264 = vrot.lane.b32.xlu0 %v6203, 16
      %v6265 = vpop.permute.xlu0 %6264
      %6266 = vrot.lane.b32.xlu0 %v6204, 16
      %v6267 = vpop.permute.xlu0 %6266
      %6268 = vrot.lane.b32.xlu0 %v6205, 16
      %v6269 = vpop.permute.xlu0 %6268
      %6270 = vrot.lane.b32.xlu0 %v6206, 16
      %v6271 = vpop.permute.xlu0 %6270
      %6272 = vrot.lane.b32.xlu0 %v6207, 16
      %v6273 = vpop.permute.xlu0 %6272
      %6274 = vrot.lane.b32.xlu0 %v6208, 16
      %v6275 = vpop.permute.xlu0 %6274
      %6276 = vrot.lane.b32.xlu0 %v6209, 16
      %v6277 = vpop.permute.xlu0 %6276
      %6278 = vrot.lane.b32.xlu0 %v6210, 16
      %v6279 = vpop.permute.xlu0 %6278
      %6280 = vrot.lane.b32.xlu0 %v6211, 16
      %v6281 = vpop.permute.xlu0 %6280
      %6282 = vrot.lane.b32.xlu0 %v6212, 16
      %v6283 = vpop.permute.xlu0 %6282
      %6284 = vrot.lane.b32.xlu0 %v6213, 16
      %v6285 = vpop.permute.xlu0 %6284
      %v6286 = vsel %vm865, %v6215, %v6217
      %v6287 = vsel %vm865, %v6217, %v6219
      %v6288 = vsel %vm865, %v6221, %v6223
      %v6289 = vsel %vm865, %v6223, %v6225
      %v6290 = vsel %vm865, %v6227, %v6229
      %v6291 = vsel %vm865, %v6229, %v6231
      %v6292 = vsel %vm865, %v6233, %v6235
      %v6293 = vsel %vm865, %v6235, %v6237
      %v6294 = vsel %vm865, %v6239, %v6241
      %v6295 = vsel %vm865, %v6241, %v6243
      %v6296 = vsel %vm865, %v6245, %v6247
      %v6297 = vsel %vm865, %v6247, %v6249
      %v6298 = vsel %vm865, %v6251, %v6253
      %v6299 = vsel %vm865, %v6253, %v6255
      %v6300 = vsel %vm865, %v6257, %v6259
      %v6301 = vsel %vm865, %v6259, %v6261
      %v6302 = vsel %vm865, %v6263, %v6265
      %v6303 = vsel %vm865, %v6265, %v6267
      %v6304 = vsel %vm865, %v6269, %v6271
      %v6305 = vsel %vm865, %v6271, %v6273
      %v6306 = vsel %vm865, %v6275, %v6277
      %v6307 = vsel %vm865, %v6277, %v6279
      %v6308 = vsel %vm865, %v6281, %v6283
      %v6309 = vsel %vm865, %v6283, %v6285
      %v6335 = vsel %vm1771, %v5844, 0
      %6337 = vmatpush.bf16.msra.mxu0 0
      %6338 = vmatpush.bf16.msra.mxu0 0
      %6339 = vmatpush.bf16.msra.mxu0 %v6306
      %6340 = vmatpush.bf16.msra.mxu0 %v6302
      %6341 = vmatpush.bf16.msra.mxu0 %v6298
      %6342 = vmatpush.bf16.msra.mxu0 %v6294
      %6343 = vmatpush.bf16.msra.mxu0 %v6290
      %6344 = vmatpush.bf16.msra.mxu0 %v6286
      %6345 = vmatmul.bf16.gmra.mxu0 %v6335
      %v6346 = vpop.f32.mrf.mxu0
      %v6347 = vadd.f32 %v6028, %v6346
      %v6348 = vpop.f32.mrf.mxu0
      %6349 = vdwg.mxu0
      %6350 = vmatpush.bf16.msra.mxu0 0
      %6351 = vmatpush.bf16.msra.mxu0 0
      %6352 = vmatpush.bf16.msra.mxu0 %v6307
      %6353 = vmatpush.bf16.msra.mxu0 %v6303
      %6354 = vmatpush.bf16.msra.mxu0 %v6299
      %6355 = vmatpush.bf16.msra.mxu0 %v6295
      %6356 = vmatpush.bf16.msra.mxu0 %v6291
      %6357 = vmatpush.bf16.msra.mxu0 %v6287
      %6358 = vmatmul.bf16.gmra.mxu0 %v6335
      %v6359 = vpop.f32.mrf.mxu0
      %v6360 = vadd.f32 %v6041, %v6359
      %v6361 = vpop.f32.mrf.mxu0
      %6362 = vdwg.mxu0
      %6363 = vmatpush.bf16.msra.mxu0 0
      %6364 = vmatpush.bf16.msra.mxu0 0
      %6365 = vmatpush.bf16.msra.mxu0 %v6308
      %6366 = vmatpush.bf16.msra.mxu0 %v6304
      %6367 = vmatpush.bf16.msra.mxu0 %v6300
      %6368 = vmatpush.bf16.msra.mxu0 %v6296
      %6369 = vmatpush.bf16.msra.mxu0 %v6292
      %6370 = vmatpush.bf16.msra.mxu0 %v6288
      %6371 = vmatmul.bf16.gmra.mxu0 %v6335
      %v6372 = vpop.f32.mrf.mxu0
      %v6373 = vadd.f32 %v6054, %v6372
      %v6374 = vpop.f32.mrf.mxu0
      %6375 = vdwg.mxu0
      %6376 = vmatpush.bf16.msra.mxu0 0
      %6377 = vmatpush.bf16.msra.mxu0 0
      %6378 = vmatpush.bf16.msra.mxu0 %v6309
      %6379 = vmatpush.bf16.msra.mxu0 %v6305
      %6380 = vmatpush.bf16.msra.mxu0 %v6301
      %6381 = vmatpush.bf16.msra.mxu0 %v6297
      %6382 = vmatpush.bf16.msra.mxu0 %v6293
      %6383 = vmatpush.bf16.msra.mxu0 %v6289
      %6384 = vmatmul.bf16.gmra.mxu0 %v6335
      %v6385 = vpop.f32.mrf.mxu0
      %v6386 = vadd.f32 %v6067, %v6385
      %v6387 = vpop.f32.mrf.mxu0
      %6388 = vdwg.mxu0
      %v6389 = vld [vmem:[#allocation2 + $0x4] sm:$0xff]
      %v6390 = vld [vmem:[#allocation2 + $0xc] sm:$0xff]
      %v6391 = vld [vmem:[#allocation2 + $0x14] sm:$0xff]
      %v6392 = vld [vmem:[#allocation2 + $0x20] sm:$0xff]
      %v6393 = vld [vmem:[#allocation2 + $0x28] sm:$0xff]
      %v6394 = vld [vmem:[#allocation2 + $0x30] sm:$0xff]
      %v6395 = vld [vmem:[#allocation2 + $0x3c] sm:$0xff]
      %v6396 = vld [vmem:[#allocation2 + $0x44] sm:$0xff]
      %v6397 = vld [vmem:[#allocation2 + $0x4c] sm:$0xff]
      %v6398 = vld [vmem:[#allocation2 + $0x58] sm:$0xff]
      %v6399 = vld [vmem:[#allocation2 + $0x60] sm:$0xff]
      %v6400 = vld [vmem:[#allocation2 + $0x68] sm:$0xff]
      %v6401 = vld [vmem:[#allocation2 + $0x74] sm:$0xff]
      %v6402 = vld [vmem:[#allocation2 + $0x7c] sm:$0xff]
      %v6403 = vld [vmem:[#allocation2 + $0x84] sm:$0xff]
      %v6404 = vld [vmem:[#allocation2 + $0x90] sm:$0xff]
      %v6405 = vld [vmem:[#allocation2 + $0x98] sm:$0xff]
      %v6406 = vld [vmem:[#allocation2 + $0xa0] sm:$0xff]
      %v6407 = vld [vmem:[#allocation2 + $0xac] sm:$0xff]
      %v6408 = vld [vmem:[#allocation2 + $0xb4] sm:$0xff]
      %v6409 = vld [vmem:[#allocation2 + $0xbc] sm:$0xff]
      %v6410 = vld [vmem:[#allocation2 + $0xc8] sm:$0xff]
      %v6411 = vld [vmem:[#allocation2 + $0xd0] sm:$0xff]
      %v6412 = vld [vmem:[#allocation2 + $0xd8] sm:$0xff]
      %v6413 = vld [vmem:[#allocation2 + $0xe4] sm:$0xff]
      %v6414 = vld [vmem:[#allocation2 + $0xec] sm:$0xff]
      %v6415 = vld [vmem:[#allocation2 + $0xf4] sm:$0xff]
      %v6416 = vld [vmem:[#allocation2 + $0x100] sm:$0xff]
      %v6417 = vld [vmem:[#allocation2 + $0x108] sm:$0xff]
      %v6418 = vld [vmem:[#allocation2 + $0x110] sm:$0xff]
      %v6419 = vld [vmem:[#allocation2 + $0x11c] sm:$0xff]
      %v6420 = vld [vmem:[#allocation2 + $0x124] sm:$0xff]
      %v6421 = vld [vmem:[#allocation2 + $0x12c] sm:$0xff]
      %v6422 = vld [vmem:[#allocation2 + $0x138] sm:$0xff]
      %v6423 = vld [vmem:[#allocation2 + $0x140] sm:$0xff]
      %v6424 = vld [vmem:[#allocation2 + $0x148] sm:$0xff]
      %s6425 = scalar_lea.vmem %s7, 8
      %v6426 = vld [vmem:[%s6425] sm:$0xf]
      %v6463 = vunpack.c.l.b16 %v6389
      %v6464 = vunpack.c.h.b16 %v6389
      %v6465 = vunpack.c.l.b16 %v6390
      %v6466 = vunpack.c.h.b16 %v6390
      %v6467 = vunpack.c.l.b16 %v6391
      %v6468 = vunpack.c.h.b16 %v6391
      %v6469 = vunpack.c.l.b16 %v6392
      %v6470 = vunpack.c.h.b16 %v6392
      %v6471 = vunpack.c.l.b16 %v6393
      %v6472 = vunpack.c.h.b16 %v6393
      %v6473 = vunpack.c.l.b16 %v6394
      %v6474 = vunpack.c.h.b16 %v6394
      %v6475 = vunpack.c.l.b16 %v6395
      %v6476 = vunpack.c.h.b16 %v6395
      %v6477 = vunpack.c.l.b16 %v6396
      %v6478 = vunpack.c.h.b16 %v6396
      %v6479 = vunpack.c.l.b16 %v6397
      %v6480 = vunpack.c.h.b16 %v6397
      %v6481 = vunpack.c.l.b16 %v6398
      %v6482 = vunpack.c.h.b16 %v6398
      %v6483 = vunpack.c.l.b16 %v6399
      %v6484 = vunpack.c.h.b16 %v6399
      %v6485 = vunpack.c.l.b16 %v6400
      %v6486 = vunpack.c.h.b16 %v6400
      %v6487 = vunpack.c.l.b16 %v6401
      %v6488 = vunpack.c.h.b16 %v6401
      %v6489 = vunpack.c.l.b16 %v6402
      %v6490 = vunpack.c.h.b16 %v6402
      %v6491 = vunpack.c.l.b16 %v6403
      %v6492 = vunpack.c.h.b16 %v6403
      %v6493 = vunpack.c.l.b16 %v6404
      %v6494 = vunpack.c.h.b16 %v6404
      %v6495 = vunpack.c.l.b16 %v6405
      %v6496 = vunpack.c.h.b16 %v6405
      %v6497 = vunpack.c.l.b16 %v6406
      %v6498 = vunpack.c.h.b16 %v6406
      %v6499 = vunpack.c.l.b16 %v6407
      %v6500 = vunpack.c.h.b16 %v6407
      %v6501 = vunpack.c.l.b16 %v6408
      %v6502 = vunpack.c.h.b16 %v6408
      %v6503 = vunpack.c.l.b16 %v6409
      %v6504 = vunpack.c.h.b16 %v6409
      %v6505 = vunpack.c.l.b16 %v6410
      %v6506 = vunpack.c.h.b16 %v6410
      %v6507 = vunpack.c.l.b16 %v6411
      %v6508 = vunpack.c.h.b16 %v6411
      %v6509 = vunpack.c.l.b16 %v6412
      %v6510 = vunpack.c.h.b16 %v6412
      %v6511 = vunpack.c.l.b16 %v6413
      %v6512 = vunpack.c.h.b16 %v6413
      %v6513 = vunpack.c.l.b16 %v6414
      %v6514 = vunpack.c.h.b16 %v6414
      %v6515 = vunpack.c.l.b16 %v6415
      %v6516 = vunpack.c.h.b16 %v6415
      %v6517 = vunpack.c.l.b16 %v6416
      %v6518 = vunpack.c.h.b16 %v6416
      %v6519 = vunpack.c.l.b16 %v6417
      %v6520 = vunpack.c.h.b16 %v6417
      %v6521 = vunpack.c.l.b16 %v6418
      %v6522 = vunpack.c.h.b16 %v6418
      %v6523 = vunpack.c.l.b16 %v6419
      %v6524 = vunpack.c.h.b16 %v6419
      %v6525 = vunpack.c.l.b16 %v6420
      %v6526 = vunpack.c.h.b16 %v6420
      %v6527 = vunpack.c.l.b16 %v6421
      %v6528 = vunpack.c.h.b16 %v6421
      %v6529 = vunpack.c.l.b16 %v6422
      %v6530 = vunpack.c.h.b16 %v6422
      %v6531 = vunpack.c.l.b16 %v6423
      %v6532 = vunpack.c.h.b16 %v6423
      %v6533 = vunpack.c.l.b16 %v6424
      %v6534 = vunpack.c.h.b16 %v6424
      %v6535 = vpack.c.b16 %v6469, %v6463
      %v6536 = vpack.c.b16 %v6470, %v6464
      %v6537 = vpack.c.b16 %v6471, %v6465
      %v6538 = vpack.c.b16 %v6472, %v6466
      %v6539 = vpack.c.b16 %v6473, %v6467
      %v6540 = vpack.c.b16 %v6474, %v6468
      %v6541 = vpack.c.b16 %v6481, %v6475
      %v6542 = vpack.c.b16 %v6482, %v6476
      %v6543 = vpack.c.b16 %v6483, %v6477
      %v6544 = vpack.c.b16 %v6484, %v6478
      %v6545 = vpack.c.b16 %v6485, %v6479
      %v6546 = vpack.c.b16 %v6486, %v6480
      %v6547 = vpack.c.b16 %v6493, %v6487
      %v6548 = vpack.c.b16 %v6494, %v6488
      %v6549 = vpack.c.b16 %v6495, %v6489
      %v6550 = vpack.c.b16 %v6496, %v6490
      %v6551 = vpack.c.b16 %v6497, %v6491
      %v6552 = vpack.c.b16 %v6498, %v6492
      %v6553 = vpack.c.b16 %v6505, %v6499
      %v6554 = vpack.c.b16 %v6506, %v6500
      %v6555 = vpack.c.b16 %v6507, %v6501
      %v6556 = vpack.c.b16 %v6508, %v6502
      %v6557 = vpack.c.b16 %v6509, %v6503
      %v6558 = vpack.c.b16 %v6510, %v6504
      %v6559 = vpack.c.b16 %v6517, %v6511
      %v6560 = vpack.c.b16 %v6518, %v6512
      %v6561 = vpack.c.b16 %v6519, %v6513
      %v6562 = vpack.c.b16 %v6520, %v6514
      %v6563 = vpack.c.b16 %v6521, %v6515
      %v6564 = vpack.c.b16 %v6522, %v6516
      %v6565 = vpack.c.b16 %v6529, %v6523
      %v6566 = vpack.c.b16 %v6530, %v6524
      %v6567 = vpack.c.b16 %v6531, %v6525
      %v6568 = vpack.c.b16 %v6532, %v6526
      %v6569 = vpack.c.b16 %v6533, %v6527
      %v6570 = vpack.c.b16 %v6534, %v6528
      %6571 = vrot.lane.b32.xlu0 %v6535, 112
      %v6572 = vpop.permute.xlu0 %6571
      %6573 = vrot.lane.b32.xlu0 %v6536, 112
      %v6574 = vpop.permute.xlu0 %6573
      %6575 = vrot.lane.b32.xlu0 %v6537, 112
      %v6576 = vpop.permute.xlu0 %6575
      %6577 = vrot.lane.b32.xlu0 %v6538, 112
      %v6578 = vpop.permute.xlu0 %6577
      %6579 = vrot.lane.b32.xlu0 %v6539, 112
      %v6580 = vpop.permute.xlu0 %6579
      %6581 = vrot.lane.b32.xlu0 %v6540, 112
      %v6582 = vpop.permute.xlu0 %6581
      %6583 = vrot.lane.b32.xlu0 %v6541, 112
      %v6584 = vpop.permute.xlu0 %6583
      %6585 = vrot.lane.b32.xlu0 %v6542, 112
      %v6586 = vpop.permute.xlu0 %6585
      %6587 = vrot.lane.b32.xlu0 %v6543, 112
      %v6588 = vpop.permute.xlu0 %6587
      %6589 = vrot.lane.b32.xlu0 %v6544, 112
      %v6590 = vpop.permute.xlu0 %6589
      %6591 = vrot.lane.b32.xlu0 %v6545, 112
      %v6592 = vpop.permute.xlu0 %6591
      %6593 = vrot.lane.b32.xlu0 %v6546, 112
      %v6594 = vpop.permute.xlu0 %6593
      %6595 = vrot.lane.b32.xlu0 %v6547, 112
      %v6596 = vpop.permute.xlu0 %6595
      %6597 = vrot.lane.b32.xlu0 %v6548, 112
      %v6598 = vpop.permute.xlu0 %6597
      %6599 = vrot.lane.b32.xlu0 %v6549, 112
      %v6600 = vpop.permute.xlu0 %6599
      %6601 = vrot.lane.b32.xlu0 %v6550, 112
      %v6602 = vpop.permute.xlu0 %6601
      %6603 = vrot.lane.b32.xlu0 %v6551, 112
      %v6604 = vpop.permute.xlu0 %6603
      %6605 = vrot.lane.b32.xlu0 %v6552, 112
      %v6606 = vpop.permute.xlu0 %6605
      %6607 = vrot.lane.b32.xlu0 %v6553, 112
      %v6608 = vpop.permute.xlu0 %6607
      %6609 = vrot.lane.b32.xlu0 %v6554, 112
      %v6610 = vpop.permute.xlu0 %6609
      %6611 = vrot.lane.b32.xlu0 %v6555, 112
      %v6612 = vpop.permute.xlu0 %6611
      %6613 = vrot.lane.b32.xlu0 %v6556, 112
      %v6614 = vpop.permute.xlu0 %6613
      %6615 = vrot.lane.b32.xlu0 %v6557, 112
      %v6616 = vpop.permute.xlu0 %6615
      %6617 = vrot.lane.b32.xlu0 %v6558, 112
      %v6618 = vpop.permute.xlu0 %6617
      %6619 = vrot.lane.b32.xlu0 %v6559, 112
      %v6620 = vpop.permute.xlu0 %6619
      %6621 = vrot.lane.b32.xlu0 %v6560, 112
      %v6622 = vpop.permute.xlu0 %6621
      %6623 = vrot.lane.b32.xlu0 %v6561, 112
      %v6624 = vpop.permute.xlu0 %6623
      %6625 = vrot.lane.b32.xlu0 %v6562, 112
      %v6626 = vpop.permute.xlu0 %6625
      %6627 = vrot.lane.b32.xlu0 %v6563, 112
      %v6628 = vpop.permute.xlu0 %6627
      %6629 = vrot.lane.b32.xlu0 %v6564, 112
      %v6630 = vpop.permute.xlu0 %6629
      %6631 = vrot.lane.b32.xlu0 %v6565, 112
      %v6632 = vpop.permute.xlu0 %6631
      %6633 = vrot.lane.b32.xlu0 %v6566, 112
      %v6634 = vpop.permute.xlu0 %6633
      %6635 = vrot.lane.b32.xlu0 %v6567, 112
      %v6636 = vpop.permute.xlu0 %6635
      %6637 = vrot.lane.b32.xlu0 %v6568, 112
      %v6638 = vpop.permute.xlu0 %6637
      %6639 = vrot.lane.b32.xlu0 %v6569, 112
      %v6640 = vpop.permute.xlu0 %6639
      %6641 = vrot.lane.b32.xlu0 %v6570, 112
      %v6642 = vpop.permute.xlu0 %6641
      %v6643 = vsel %vm1009, %v6572, %v6574
      %v6644 = vsel %vm1009, %v6574, %v6576
      %v6645 = vsel %vm1009, %v6578, %v6580
      %v6646 = vsel %vm1009, %v6580, %v6582
      %v6647 = vsel %vm1009, %v6584, %v6586
      %v6648 = vsel %vm1009, %v6586, %v6588
      %v6649 = vsel %vm1009, %v6590, %v6592
      %v6650 = vsel %vm1009, %v6592, %v6594
      %v6651 = vsel %vm1009, %v6596, %v6598
      %v6652 = vsel %vm1009, %v6598, %v6600
      %v6653 = vsel %vm1009, %v6602, %v6604
      %v6654 = vsel %vm1009, %v6604, %v6606
      %v6655 = vsel %vm1009, %v6608, %v6610
      %v6656 = vsel %vm1009, %v6610, %v6612
      %v6657 = vsel %vm1009, %v6614, %v6616
      %v6658 = vsel %vm1009, %v6616, %v6618
      %v6659 = vsel %vm1009, %v6620, %v6622
      %v6660 = vsel %vm1009, %v6622, %v6624
      %v6661 = vsel %vm1009, %v6626, %v6628
      %v6662 = vsel %vm1009, %v6628, %v6630
      %v6663 = vsel %vm1009, %v6632, %v6634
      %v6664 = vsel %vm1009, %v6634, %v6636
      %v6665 = vsel %vm1009, %v6638, %v6640
      %v6666 = vsel %vm1009, %v6640, %v6642
      %v6692 = vsel %vm1771, %v6426, 0
      %6694 = vmatpush.bf16.msra.mxu0 0
      %6695 = vmatpush.bf16.msra.mxu0 0
      %6696 = vmatpush.bf16.msra.mxu0 %v6663
      %6697 = vmatpush.bf16.msra.mxu0 %v6659
      %6698 = vmatpush.bf16.msra.mxu0 %v6655
      %6699 = vmatpush.bf16.msra.mxu0 %v6651
      %6700 = vmatpush.bf16.msra.mxu0 %v6647
      %6701 = vmatpush.bf16.msra.mxu0 %v6643
      %6702 = vmatmul.bf16.gmra.mxu0 %v6692
      %v6703 = vpop.f32.mrf.mxu0
      %v6704 = vadd.f32 0.0, %v6703
      %v6705 = vpop.f32.mrf.mxu0
      %6706 = vdwg.mxu0
      %6707 = vmatpush.bf16.msra.mxu0 0
      %6708 = vmatpush.bf16.msra.mxu0 0
      %6709 = vmatpush.bf16.msra.mxu0 %v6664
      %6710 = vmatpush.bf16.msra.mxu0 %v6660
      %6711 = vmatpush.bf16.msra.mxu0 %v6656
      %6712 = vmatpush.bf16.msra.mxu0 %v6652
      %6713 = vmatpush.bf16.msra.mxu0 %v6648
      %6714 = vmatpush.bf16.msra.mxu0 %v6644
      %6715 = vmatmul.bf16.gmra.mxu0 %v6692
      %v6716 = vpop.f32.mrf.mxu0
      %v6717 = vadd.f32 0.0, %v6716
      %v6718 = vpop.f32.mrf.mxu0
      %6719 = vdwg.mxu0
      %6720 = vmatpush.bf16.msra.mxu0 0
      %6721 = vmatpush.bf16.msra.mxu0 0
      %6722 = vmatpush.bf16.msra.mxu0 %v6665
      %6723 = vmatpush.bf16.msra.mxu0 %v6661
      %6724 = vmatpush.bf16.msra.mxu0 %v6657
      %6725 = vmatpush.bf16.msra.mxu0 %v6653
      %6726 = vmatpush.bf16.msra.mxu0 %v6649
      %6727 = vmatpush.bf16.msra.mxu0 %v6645
      %6728 = vmatmul.bf16.gmra.mxu0 %v6692
      %v6729 = vpop.f32.mrf.mxu0
      %v6730 = vadd.f32 0.0, %v6729
      %v6731 = vpop.f32.mrf.mxu0
      %6732 = vdwg.mxu0
      %6733 = vmatpush.bf16.msra.mxu0 0
      %6734 = vmatpush.bf16.msra.mxu0 0
      %6735 = vmatpush.bf16.msra.mxu0 %v6666
      %6736 = vmatpush.bf16.msra.mxu0 %v6662
      %6737 = vmatpush.bf16.msra.mxu0 %v6658
      %6738 = vmatpush.bf16.msra.mxu0 %v6654
      %6739 = vmatpush.bf16.msra.mxu0 %v6650
      %6740 = vmatpush.bf16.msra.mxu0 %v6646
      %6741 = vmatmul.bf16.gmra.mxu0 %v6692
      %v6742 = vpop.f32.mrf.mxu0
      %v6743 = vadd.f32 0.0, %v6742
      %v6744 = vpop.f32.mrf.mxu0
      %6745 = vdwg.mxu0
      %v6746 = vadd.f32 %v6347, %v6704
      %v6747 = vadd.f32 %v6360, %v6717
      %v6748 = vadd.f32 %v6373, %v6730
      %v6749 = vadd.f32 %v6386, %v6743
      %v6750 = vld [vmem:[%s8] sm:$0xff]
      %6752 = vset.pattern.permute.xlu0 0
      %6753 = vperm.xlu0 %6752, %v6750
      %v6754 = vpop.permute.xlu0 %6753
      %v6756 = vadd.f32 %v6746, %v6754
      %v6757 = vadd.f32 %v6747, %v6754
      %v6758 = vadd.f32 %v6748, %v6754
      %v6759 = vadd.f32 %v6749, %v6754
      %v6762 = vrot.slane %v6758, 7
      %v6763 = vrot.slane %v6759, 7
      %v6766 = vsel %vm736, %v6756, %v6762
      %v6767 = vsel %vm736, %v6757, %v6763
      %v6770 = vrot.slane %v6767, 6
      %v6771 = vsel %vm737, %v6766, %v6770
      %6773 = vst [vmem:[%s329] sm:$0xf] %v6771
      %p6774 = scmp.lt.s32.totalorder %s20, 1
      %s6775 = scalar_select %p6774, %s20, 1
      %s6776 = smul.addr %s6775, 2
      %s6777 = smul.addr %s6776, 2
      %s6778 = scalar_lea.vmem %s9, %s6777
      // Predicated region
      $region57: #{noise_estimator_forward.1} parent=55 // pred_check
        %p6779 = pneg %p232
      $region58: #{noise_estimator_forward.1} parent=55 // pred_check_branch
        %6781 = sbr.rel (%p6779) target = $region60
      $region59: #{noise_estimator_forward.1} parent=55 // pred_region
        _
      $region60: #{noise_estimator_forward.1} parent=55 // pred_fallthru
        _
    $region56: #{noise_estimator_forward.1} parent=5 // pred_fallthru
      _
    %p6782 = scmp.le.s32.totalorder 2, %s15
    // Predicated region
    $region61: #{noise_estimator_forward.1} parent=5 // pred_check
      %p6783 = pneg %p6782
    $region62: #{noise_estimator_forward.1} parent=5 // pred_check_branch
      %6785 = sbr.rel (%p6783) target = $region64
    $region63: #{noise_estimator_forward.1} parent=5 // pred_region
      %s6786 = ssub.s32 %s15, 2
      // Predicated region
      $region65: #{noise_estimator_forward.1} parent=63 // pred_check
        %p6787 = pneg %p238
      $region66: #{noise_estimator_forward.1} parent=63 // pred_check_branch
        %6789 = sbr.rel (%p6787) target = $region68
      $region67: #{noise_estimator_forward.1} parent=63 // pred_region
        %p6790 = scmp.lt.s32.totalorder %s21, 1
        %s6791 = scalar_select %p6790, %s21, 1
        %s6792 = smul.addr %s6791, 2
        %s6793 = smul.addr %s6792, 2
        %s6794 = scalar_lea.vmem %s9, %s6793
      $region68: #{noise_estimator_forward.1} parent=63 // pred_fallthru
        _
    $region64: #{noise_estimator_forward.1} parent=5 // pred_fallthru
      _
  $region6: #{noise_estimator_forward.1} parent=0 // loop_footer
    %s19 = sadd.s32 1, %s15
  $region7: #{noise_estimator_forward.1} parent=0 // loop_footer_branch
    %14 = sbr.rel target = $region3
  $region8: #{noise_estimator_forward.1} parent=0 // loop_exit
    _

</llo_original>
